<compile_context>
chip_gen: v6e
topology: v6e:2x2x1
jax: 0.10.0
libtpu: 0.0.40
codegen_flags: <defaults>
</compile_context>

<pallas_src>
import functools

import numpy as np
import jax
import jax.numpy as jnp
from jax.experimental import pallas as pl
from jax.experimental.pallas import tpu as pltpu


# ------------------------------ Pallas kernel -------------------------------

def _pool2x2(z_ref, hbuf_ref, p_ref, ch):
    """2x2 / stride-2 max pool.

    z_ref : (2*Hp, 2*Wp*ch) f32, lane layout w*ch + c
    p_ref : (Hp,   Wp*ch)   f32, lane layout w*ch + c
    """
    hp = p_ref.shape[0]
    wp = p_ref.shape[1] // ch
    # H direction: pairwise row maxima (contiguous sublane slices only).
    for k in range(hp):
        hbuf_ref[k:k + 1, :] = jnp.maximum(z_ref[2 * k:2 * k + 1, :],
                                           z_ref[2 * k + 1:2 * k + 2, :])
    hm = hbuf_ref[...]
    # W direction: pairwise maxima of contiguous ch-wide lane blocks.
    for w in range(wp):
        p_ref[:, w * ch:(w + 1) * ch] = jnp.maximum(
            hm[:, (2 * w) * ch:(2 * w + 1) * ch],
            hm[:, (2 * w + 1) * ch:(2 * w + 2) * ch])


def _cnn5_fused_kernel(x_ref, t1_ref, b1_ref, t2_ref, b2_ref,
                       wf1_ref, bf1_ref, wf2_ref, bf2_ref, wf3_ref, bf3_ref,
                       m_ref,
                       out_ref, het_ref,
                       z1_s, h1_s, p1_s, z2_s, h2_s, p2_s,
                       *, c1, c2):
    f32 = jnp.float32
    cdt = jnp.bfloat16                      # MXU input dtype (f32 accumulation)
    kh = t1_ref.shape[0]

    # ---------------- conv1 (Toeplitz taps) + bias + ReLU ----------------
    ho1, l1 = z1_s.shape
    xv = x_ref[...]                         # (32, W*Cin) f32
    acc = jnp.zeros((ho1, l1), f32)
    for i in range(kh):
        acc = acc + jnp.dot(xv[i:i + ho1, :].astype(cdt), t1_ref[i],
                            preferred_element_type=f32)
    z1_s[...] = jnp.maximum(acc + b1_ref[...], 0.0)

    # ---------------- pool1 (2x2, stride 2) ----------------
    _pool2x2(z1_s, h1_s, p1_s, c1)

    # ---------------- conv2 (Toeplitz taps) + bias + ReLU ----------------
    ho2, l2 = z2_s.shape
    p1v = p1_s[...]                         # (14, 14*c1) f32
    acc2 = jnp.zeros((ho2, l2), f32)
    for i in range(kh):
        acc2 = acc2 + jnp.dot(p1v[i:i + ho2, :].astype(cdt), t2_ref[i],
                              preferred_element_type=f32)
    z2_s[...] = jnp.maximum(acc2 + b2_ref[...], 0.0)

    # ---------------- pool2 (2x2, stride 2) ----------------
    _pool2x2(z2_s, h2_s, p2_s, c2)

    # ---------------- fc1 + ReLU (flatten folded into weight layout) ----------------
    hp2 = p2_s.shape[0]
    nf = bf1_ref.shape[1]
    p2v = p2_s[...]                         # (5, 5*c2) f32
    accf = jnp.zeros((1, nf), f32)
    for h in range(hp2):
        accf = accf + jnp.dot(p2v[h:h + 1, :].astype(cdt), wf1_ref[h],
                              preferred_element_type=f32)
    y1 = jnp.maximum(accf + bf1_ref[...], 0.0)          # (1, 512)

    # ---------------- fc2 + ReLU  -> hetero_rep ----------------
    y2 = jnp.dot(y1.astype(cdt), wf2_ref[...], preferred_element_type=f32)
    het_ref[...] = jnp.maximum(y2 + bf2_ref[...], 0.0)  # (1, 512)

    # ---------------- fc3 on m_rep_large (no ReLU) ----------------
    y3 = jnp.dot(m_ref[...].astype(cdt), wf3_ref[...], preferred_element_type=f32)
    out_ref[...] = y3 + bf3_ref[...]                    # (1, 128)


# --------------------------- parameter preparation ---------------------------

def _conv_toeplitz_taps(w_oihw, w_in):
    """Per-kernel-row Toeplitz matrices for a VALID, stride-1 conv.

    Returns T of shape (KH, w_in*Cin, Wo*Cout) such that, with input rows laid
    out as X[h, w*Cin + c], the conv output row ho (lane layout wo*Cout + n) is
        out[ho] = sum_i X[ho + i, :] @ T[i].
    """
    co, ci, kh, kw = w_oihw.shape
    wo = w_in - kw + 1
    wt = np.transpose(np.asarray(w_oihw, np.float32), (2, 3, 1, 0))  # (kh,kw,ci,co)
    t = np.zeros((kh, w_in * ci, wo * co), np.float32)
    for j in range(kw):
        for o in range(wo):
            t[:, (o + j) * ci:(o + j + 1) * ci, o * co:(o + 1) * co] = wt[:, j]
    return t


def prepare_params(params, *, image_hw=32):
    """One-time host-side packing: Toeplitz conv taps, tiled biases, fc1 row
    permutation (torch NCHW flatten order), zero-padding of fc dims to 512/128,
    and bf16 weight storage (f32 biases)."""
    f32 = np.float32
    w1 = np.asarray(params["conv1_w"], f32); b1 = np.asarray(params["conv1_b"], f32)
    w2 = np.asarray(params["conv2_w"], f32); b2 = np.asarray(params["conv2_b"], f32)
    fw1 = np.asarray(params["fc1_w"], f32);  fb1 = np.asarray(params["fc1_b"], f32)
    fw2 = np.asarray(params["fc2_w"], f32);  fb2 = np.asarray(params["fc2_b"], f32)
    fw3 = np.asarray(params["fc3_w"], f32);  fb3 = np.asarray(params["fc3_b"], f32)

    c1, cin, kh, kw = w1.shape
    c2 = w2.shape[0]
    H = W = image_hw
    ho1, wo1 = H - kh + 1, W - kw + 1          # 28, 28
    hp1, wp1 = ho1 // 2, wo1 // 2              # 14, 14
    ho2, wo2 = hp1 - kh + 1, wp1 - kw + 1      # 10, 10
    hp2, wp2 = ho2 // 2, wo2 // 2              # 5, 5
    assert fw1.shape[0] == c2 * hp2 * wp2, "fc1 expects a 32x32 spatial input"

    NF, NO = 512, 128                          # padded fc widths (lane-dense)
    n_fc, out_dim = fw2.shape[1], fw3.shape[1]

    t1 = _conv_toeplitz_taps(w1, W)            # (5, W*cin,  wo1*c1)
    t2 = _conv_toeplitz_taps(w2, wp1)          # (5, wp1*c1, wo2*c2)
    b1row = np.tile(b1, wo1)[None, :]          # (1, wo1*c1): lane = wo*c1 + n
    b2row = np.tile(b2, wo2)[None, :]

    # fc1 rows reordered from torch's (c, h, w) flatten to the kernel's pooled
    # layout (h, w, c); columns zero-padded 500 -> 512.
    h_i, w_i, c_i = np.meshgrid(np.arange(hp2), np.arange(wp2), np.arange(c2),
                                indexing="ij")
    old_rows = (c_i * hp2 * wp2 + h_i * wp2 + w_i).reshape(-1)
    wf1 = np.pad(fw1[old_rows, :], ((0, 0), (0, NF - fw1.shape[1])))
    wf1 = wf1.reshape(hp2, wp2 * c2, NF)       # (5, 160, 512)

    wf2 = np.pad(fw2, ((0, NF - fw2.shape[0]), (0, NF - fw2.shape[1])))
    wf3 = np.pad(fw3, ((0, NF - fw3.shape[0]), (0, NO - fw3.shape[1])))

    bf16 = jnp.bfloat16
    arrays = {
        "t1": jnp.asarray(t1, bf16), "b1": jnp.asarray(b1row, jnp.float32),
        "t2": jnp.asarray(t2, bf16), "b2": jnp.asarray(b2row, jnp.float32),
        "wf1": jnp.asarray(wf1, bf16),
        "bf1": jnp.asarray(np.pad(fb1, (0, NF - fb1.shape[0]))[None, :], jnp.float32),
        "wf2": jnp.asarray(wf2, bf16),
        "bf2": jnp.asarray(np.pad(fb2, (0, NF - fb2.shape[0]))[None, :], jnp.float32),
        "wf3": jnp.asarray(wf3, bf16),
        "bf3": jnp.asarray(np.pad(fb3, (0, NO - fb3.shape[0]))[None, :], jnp.float32),
    }
    meta = dict(cin=cin, c1=c1, c2=c2, kh=kh,
                ho1=ho1, wo1=wo1, hp1=hp1, wp1=wp1,
                ho2=ho2, wo2=wo2, hp2=hp2, wp2=wp2,
                nf=NF, no=NO, n_fc=n_fc, out_dim=out_dim)
    return {"arrays": arrays, "meta": meta}


# --------------------------------- forward ----------------------------------

def cnn_5_large_forward(prepped, x_nchw, m_rep_large):
    """Mirrors CNN_5_large.forward(x, m_rep_large) -> (x, hetero_rep)."""
    a, meta = prepped["arrays"], prepped["meta"]
    B, cin, H, W = x_nchw.shape
    NF, NO = meta["nf"], meta["no"]

    # NCHW -> (B, H, W*Cin): lanes = w*Cin + c (width-major, channel-minor).
    x3d = jnp.transpose(x_nchw, (0, 2, 3, 1)).reshape(B, H, W * cin)
    m3d = jnp.pad(m_rep_large, ((0, 0), (0, NF - m_rep_large.shape[1])))[:, None, :]

    kernel = functools.partial(_cnn5_fused_kernel, c1=meta["c1"], c2=meta["c2"])

    def full(arr):
        nd = arr.ndim
        return pl.BlockSpec(arr.shape, lambda b, _nd=nd: (0,) * _nd)

    out3d, het3d = pl.pallas_call(
        kernel,
        grid=(B,),
        in_specs=[
            pl.BlockSpec((None, H, W * cin), lambda b: (b, 0, 0)),   # x (per sample)
            full(a["t1"]), full(a["b1"]),
            full(a["t2"]), full(a["b2"]),
            full(a["wf1"]), full(a["bf1"]),
            full(a["wf2"]), full(a["bf2"]),
            full(a["wf3"]), full(a["bf3"]),
            pl.BlockSpec((None, 1, NF), lambda b: (b, 0, 0)),        # m_rep_large
        ],
        out_specs=(
            pl.BlockSpec((None, 1, NO), lambda b: (b, 0, 0)),
            pl.BlockSpec((None, 1, NF), lambda b: (b, 0, 0)),
        ),
        out_shape=(
            jax.ShapeDtypeStruct((B, 1, NO), jnp.float32),
            jax.ShapeDtypeStruct((B, 1, NF), jnp.float32),
        ),
        scratch_shapes=[
            pltpu.VMEM((meta["ho1"], meta["wo1"] * meta["c1"]), jnp.float32),  # z1
            pltpu.VMEM((meta["hp1"], meta["wo1"] * meta["c1"]), jnp.float32),  # h-pool1
            pltpu.VMEM((meta["hp1"], meta["wp1"] * meta["c1"]), jnp.float32),  # p1
            pltpu.VMEM((meta["ho2"], meta["wo2"] * meta["c2"]), jnp.float32),  # z2
            pltpu.VMEM((meta["hp2"], meta["wo2"] * meta["c2"]), jnp.float32),  # h-pool2
            pltpu.VMEM((meta["hp2"], meta["wp2"] * meta["c2"]), jnp.float32),  # p2
        ],
        compiler_params=pltpu.CompilerParams(
            dimension_semantics=("parallel",)),
    )(x3d, a["t1"], a["b1"], a["t2"], a["b2"],
      a["wf1"], a["bf1"], a["wf2"], a["bf2"], a["wf3"], a["bf3"], m3d)

    out = out3d[:, 0, :meta["out_dim"]]
    hetero_rep = het3d[:, 0, :meta["n_fc"]]
    return out, hetero_rep


# ------------------------------ model / params ------------------------------

def init_params(key, in_channels=3, n_kernels=16, out_dim=10):
    """Deterministic init, PyTorch-style U(-1/sqrt(fan_in), 1/sqrt(fan_in)).
    FC weights stored as (in_features, out_features) so y = x @ W + b."""
    ks = jax.random.split(key, 10)

    def u(k, shape, fan_in):
        bound = 1.0 / float(fan_in) ** 0.5
        return jax.random.uniform(k, shape, jnp.float32, -bound, bound)

    fc1_in = 2 * n_kernels * 5 * 5
    return {
        "conv1_w": u(ks[0], (n_kernels, in_channels, 5, 5), in_channels * 25),
        "conv1_b": u(ks[1], (n_kernels,), in_channels * 25),
        "conv2_w": u(ks[2], (2 * n_kernels, n_kernels, 5, 5), n_kernels * 25),
        "conv2_b": u(ks[3], (2 * n_kernels,), n_kernels * 25),
        "fc1_w": u(ks[4], (fc1_in, 500), fc1_in),
        "fc1_b": u(ks[5], (500,), fc1_in),
        "fc2_w": u(ks[6], (500, 500), 500),
        "fc2_b": u(ks[7], (500,), 500),
        "fc3_w": u(ks[8], (500, out_dim), 500),
        "fc3_b": u(ks[9], (out_dim,), 500),
    }


# ----------------------------------- main ------------------------------------

if __name__ == "__main__":
    in_channels, n_kernels, out_dim = 3, 16, 10
    B = 2
    key = jax.random.PRNGKey(0)
    k_param, k_x, k_m = jax.random.split(key, 3)

    params = init_params(k_param, in_channels, n_kernels, out_dim)
    prepped = prepare_params(params, image_hw=32)  # fc1 dim hard-codes 32x32 input

    x = jax.random.normal(k_x, (B, in_channels, 32, 32), jnp.float32)
    m_rep_large = jax.random.normal(k_m, (B, 500), jnp.float32)

    fwd = jax.jit(functools.partial(cnn_5_large_forward, prepped))
    out, hetero_rep = fwd(x, m_rep_large)
    jax.block_until_ready((out, hetero_rep))

    assert out.shape == (B, out_dim), out.shape
    assert hetero_rep.shape == (B, 500), hetero_rep.shape
    assert bool(jnp.all(jnp.isfinite(out))) and bool(jnp.all(jnp.isfinite(hetero_rep)))
    print("KERNEL_OK")
</pallas_src>

<mosaic_0001>
module attributes {stable_mosaic.version = 11 : i64} {
  func.func @_cnn5_fused_kernel(%arg0: i32, %arg1: memref<1x32x96xf32, #tpu.memory_space<vmem>>, %arg2: memref<5x96x448xbf16, #tpu.memory_space<vmem>>, %arg3: memref<1x448xf32, #tpu.memory_space<vmem>>, %arg4: memref<5x224x320xbf16, #tpu.memory_space<vmem>>, %arg5: memref<1x320xf32, #tpu.memory_space<vmem>>, %arg6: memref<5x160x512xbf16, #tpu.memory_space<vmem>>, %arg7: memref<1x512xf32, #tpu.memory_space<vmem>>, %arg8: memref<512x512xbf16, #tpu.memory_space<vmem>>, %arg9: memref<1x512xf32, #tpu.memory_space<vmem>>, %arg10: memref<512x128xbf16, #tpu.memory_space<vmem>>, %arg11: memref<1x128xf32, #tpu.memory_space<vmem>>, %arg12: memref<1x1x512xf32, #tpu.memory_space<vmem>>, %arg13: memref<1x1x128xf32, #tpu.memory_space<vmem>>, %arg14: memref<1x1x512xf32, #tpu.memory_space<vmem>>, %arg15: memref<28x448xf32, #tpu.memory_space<vmem>>, %arg16: memref<14x448xf32, #tpu.memory_space<vmem>>, %arg17: memref<14x224xf32, #tpu.memory_space<vmem>>, %arg18: memref<10x320xf32, #tpu.memory_space<vmem>>, %arg19: memref<5x320xf32, #tpu.memory_space<vmem>>, %arg20: memref<5x160xf32, #tpu.memory_space<vmem>>) attributes {dimension_semantics = [#tpu.dimension_semantics<parallel>], iteration_bounds = array<i64: 2>, scalar_prefetch = 0 : i64, scratch_operands = 6 : i64, tpu.core_type = #tpu.core_type<tc>, window_params = [{transform_indices = @transform_0, window_bounds = array<i64: 1, 32, 96>}, {pipeline_mode = #tpu.pipeline_mode<synchronous>, transform_indices = @transform_1, window_bounds = array<i64: 5, 96, 448>}, {pipeline_mode = #tpu.pipeline_mode<synchronous>, transform_indices = @transform_2, window_bounds = array<i64: 1, 448>}, {pipeline_mode = #tpu.pipeline_mode<synchronous>, transform_indices = @transform_3, window_bounds = array<i64: 5, 224, 320>}, {pipeline_mode = #tpu.pipeline_mode<synchronous>, transform_indices = @transform_4, window_bounds = array<i64: 1, 320>}, {pipeline_mode = #tpu.pipeline_mode<synchronous>, transform_indices = @transform_5, window_bounds = array<i64: 5, 160, 512>}, {pipeline_mode = #tpu.pipeline_mode<synchronous>, transform_indices = @transform_6, window_bounds = array<i64: 1, 512>}, {pipeline_mode = #tpu.pipeline_mode<synchronous>, transform_indices = @transform_7, window_bounds = array<i64: 512, 512>}, {pipeline_mode = #tpu.pipeline_mode<synchronous>, transform_indices = @transform_8, window_bounds = array<i64: 1, 512>}, {pipeline_mode = #tpu.pipeline_mode<synchronous>, transform_indices = @transform_9, window_bounds = array<i64: 512, 128>}, {pipeline_mode = #tpu.pipeline_mode<synchronous>, transform_indices = @transform_10, window_bounds = array<i64: 1, 128>}, {transform_indices = @transform_11, window_bounds = array<i64: 1, 1, 512>}, {transform_indices = @transform_12, window_bounds = array<i64: 1, 1, 128>}, {transform_indices = @transform_13, window_bounds = array<i64: 1, 1, 512>}]} {
    %c0 = arith.constant 0 : index
    %c0_0 = arith.constant 0 : index
    %c0_1 = arith.constant 0 : index
    %0 = vector.load %arg1[%c0, %c0_0, %c0_1] : memref<1x32x96xf32, #tpu.memory_space<vmem>>, vector<1x32x96xf32>
    %1 = vector.shape_cast %0 : vector<1x32x96xf32> to vector<32x96xf32>
    %cst = arith.constant 0.000000e+00 : f32
    %2 = vector.broadcast %cst : f32 to vector<28x448xf32>
    %3 = vector.extract_strided_slice %1 {offsets = [0, 0], sizes = [28, 96], strides = [1, 1]} : vector<32x96xf32> to vector<28x96xf32>
    %4 = arith.truncf %3 : vector<28x96xf32> to vector<28x96xbf16>
    %c0_2 = arith.constant 0 : index
    %c0_3 = arith.constant 0 : index
    %c0_4 = arith.constant 0 : index
    %5 = vector.load %arg2[%c0_2, %c0_3, %c0_4] : memref<5x96x448xbf16, #tpu.memory_space<vmem>>, vector<1x96x448xbf16>
    %6 = vector.shape_cast %5 : vector<1x96x448xbf16> to vector<96x448xbf16>
    %cst_5 = arith.constant dense<0.000000e+00> : vector<28x448xf32>
    %7 = tpu.matmul %4, %6, %cst_5 {dimension_numbers = #tpu.dot_dimension_numbers<[1], [0], [0], [1], [0, 0, 1, 1], [], []>} : vector<28x96xbf16>, vector<96x448xbf16>, vector<28x448xf32> -> vector<28x448xf32>
    %8 = arith.addf %2, %7 : vector<28x448xf32>
    %9 = vector.extract_strided_slice %1 {offsets = [1, 0], sizes = [28, 96], strides = [1, 1]} : vector<32x96xf32> to vector<28x96xf32>
    %10 = arith.truncf %9 : vector<28x96xf32> to vector<28x96xbf16>
    %c1 = arith.constant 1 : index
    %c0_6 = arith.constant 0 : index
    %c0_7 = arith.constant 0 : index
    %11 = vector.load %arg2[%c1, %c0_6, %c0_7] : memref<5x96x448xbf16, #tpu.memory_space<vmem>>, vector<1x96x448xbf16>
    %12 = vector.shape_cast %11 : vector<1x96x448xbf16> to vector<96x448xbf16>
    %cst_8 = arith.constant dense<0.000000e+00> : vector<28x448xf32>
    %13 = tpu.matmul %10, %12, %cst_8 {dimension_numbers = #tpu.dot_dimension_numbers<[1], [0], [0], [1], [0, 0, 1, 1], [], []>} : vector<28x96xbf16>, vector<96x448xbf16>, vector<28x448xf32> -> vector<28x448xf32>
    %14 = arith.addf %8, %13 : vector<28x448xf32>
    %15 = vector.extract_strided_slice %1 {offsets = [2, 0], sizes = [28, 96], strides = [1, 1]} : vector<32x96xf32> to vector<28x96xf32>
    %16 = arith.truncf %15 : vector<28x96xf32> to vector<28x96xbf16>
    %c2 = arith.constant 2 : index
    %c0_9 = arith.constant 0 : index
    %c0_10 = arith.constant 0 : index
    %17 = vector.load %arg2[%c2, %c0_9, %c0_10] : memref<5x96x448xbf16, #tpu.memory_space<vmem>>, vector<1x96x448xbf16>
    %18 = vector.shape_cast %17 : vector<1x96x448xbf16> to vector<96x448xbf16>
    %cst_11 = arith.constant dense<0.000000e+00> : vector<28x448xf32>
    %19 = tpu.matmul %16, %18, %cst_11 {dimension_numbers = #tpu.dot_dimension_numbers<[1], [0], [0], [1], [0, 0, 1, 1], [], []>} : vector<28x96xbf16>, vector<96x448xbf16>, vector<28x448xf32> -> vector<28x448xf32>
    %20 = arith.addf %14, %19 : vector<28x448xf32>
    %21 = vector.extract_strided_slice %1 {offsets = [3, 0], sizes = [28, 96], strides = [1, 1]} : vector<32x96xf32> to vector<28x96xf32>
    %22 = arith.truncf %21 : vector<28x96xf32> to vector<28x96xbf16>
    %c3 = arith.constant 3 : index
    %c0_12 = arith.constant 0 : index
    %c0_13 = arith.constant 0 : index
    %23 = vector.load %arg2[%c3, %c0_12, %c0_13] : memref<5x96x448xbf16, #tpu.memory_space<vmem>>, vector<1x96x448xbf16>
    %24 = vector.shape_cast %23 : vector<1x96x448xbf16> to vector<96x448xbf16>
    %cst_14 = arith.constant dense<0.000000e+00> : vector<28x448xf32>
    %25 = tpu.matmul %22, %24, %cst_14 {dimension_numbers = #tpu.dot_dimension_numbers<[1], [0], [0], [1], [0, 0, 1, 1], [], []>} : vector<28x96xbf16>, vector<96x448xbf16>, vector<28x448xf32> -> vector<28x448xf32>
    %26 = arith.addf %20, %25 : vector<28x448xf32>
    %27 = vector.extract_strided_slice %1 {offsets = [4, 0], sizes = [28, 96], strides = [1, 1]} : vector<32x96xf32> to vector<28x96xf32>
    %28 = arith.truncf %27 : vector<28x96xf32> to vector<28x96xbf16>
    %c4 = arith.constant 4 : index
    %c0_15 = arith.constant 0 : index
    %c0_16 = arith.constant 0 : index
    %29 = vector.load %arg2[%c4, %c0_15, %c0_16] : memref<5x96x448xbf16, #tpu.memory_space<vmem>>, vector<1x96x448xbf16>
    %30 = vector.shape_cast %29 : vector<1x96x448xbf16> to vector<96x448xbf16>
    %cst_17 = arith.constant dense<0.000000e+00> : vector<28x448xf32>
    %31 = tpu.matmul %28, %30, %cst_17 {dimension_numbers = #tpu.dot_dimension_numbers<[1], [0], [0], [1], [0, 0, 1, 1], [], []>} : vector<28x96xbf16>, vector<96x448xbf16>, vector<28x448xf32> -> vector<28x448xf32>
    %32 = arith.addf %26, %31 : vector<28x448xf32>
    %c0_18 = arith.constant 0 : index
    %c0_19 = arith.constant 0 : index
    %33 = vector.load %arg3[%c0_18, %c0_19] : memref<1x448xf32, #tpu.memory_space<vmem>>, vector<1x448xf32>
    %34 = vector.broadcast %33 : vector<1x448xf32> to vector<28x448xf32>
    %35 = arith.addf %32, %34 : vector<28x448xf32>
    %cst_20 = arith.constant 0.000000e+00 : f32
    %36 = vector.broadcast %cst_20 : f32 to vector<28x448xf32>
    %37 = arith.maximumf %35, %36 : vector<28x448xf32>
    %c0_21 = arith.constant 0 : index
    %c0_22 = arith.constant 0 : index
    %38 = vector.load %arg15[%c0_21, %c0_22] : memref<28x448xf32, #tpu.memory_space<vmem>>, vector<28x448xf32>
    tpu.vector_store %arg15[%c0_21, %c0_22], %37 {strides = array<i32>} : memref<28x448xf32, #tpu.memory_space<vmem>>, vector<28x448xf32>,
    %c0_23 = arith.constant 0 : index
    %c0_24 = arith.constant 0 : index
    %39 = vector.load %arg15[%c0_23, %c0_24] : memref<28x448xf32, #tpu.memory_space<vmem>>, vector<1x448xf32>
    %c1_25 = arith.constant 1 : index
    %c0_26 = arith.constant 0 : index
    %40 = vector.load %arg15[%c1_25, %c0_26] : memref<28x448xf32, #tpu.memory_space<vmem>>, vector<1x448xf32>
    %41 = arith.maximumf %39, %40 : vector<1x448xf32>
    %c0_27 = arith.constant 0 : index
    %c0_28 = arith.constant 0 : index
    %42 = vector.load %arg16[%c0_27, %c0_28] : memref<14x448xf32, #tpu.memory_space<vmem>>, vector<1x448xf32>
    tpu.vector_store %arg16[%c0_27, %c0_28], %41 {strides = array<i32>} : memref<14x448xf32, #tpu.memory_space<vmem>>, vector<1x448xf32>,
    %c2_29 = arith.constant 2 : index
    %c0_30 = arith.constant 0 : index
    %43 = vector.load %arg15[%c2_29, %c0_30] : memref<28x448xf32, #tpu.memory_space<vmem>>, vector<1x448xf32>
    %c3_31 = arith.constant 3 : index
    %c0_32 = arith.constant 0 : index
    %44 = vector.load %arg15[%c3_31, %c0_32] : memref<28x448xf32, #tpu.memory_space<vmem>>, vector<1x448xf32>
    %45 = arith.maximumf %43, %44 : vector<1x448xf32>
    %c1_33 = arith.constant 1 : index
    %c0_34 = arith.constant 0 : index
    %46 = vector.load %arg16[%c1_33, %c0_34] : memref<14x448xf32, #tpu.memory_space<vmem>>, vector<1x448xf32>
    tpu.vector_store %arg16[%c1_33, %c0_34], %45 {strides = array<i32>} : memref<14x448xf32, #tpu.memory_space<vmem>>, vector<1x448xf32>,
    %c4_35 = arith.constant 4 : index
    %c0_36 = arith.constant 0 : index
    %47 = vector.load %arg15[%c4_35, %c0_36] : memref<28x448xf32, #tpu.memory_space<vmem>>, vector<1x448xf32>
    %c5 = arith.constant 5 : index
    %c0_37 = arith.constant 0 : index
    %48 = vector.load %arg15[%c5, %c0_37] : memref<28x448xf32, #tpu.memory_space<vmem>>, vector<1x448xf32>
    %49 = arith.maximumf %47, %48 : vector<1x448xf32>
    %c2_38 = arith.constant 2 : index
    %c0_39 = arith.constant 0 : index
    %50 = vector.load %arg16[%c2_38, %c0_39] : memref<14x448xf32, #tpu.memory_space<vmem>>, vector<1x448xf32>
    tpu.vector_store %arg16[%c2_38, %c0_39], %49 {strides = array<i32>} : memref<14x448xf32, #tpu.memory_space<vmem>>, vector<1x448xf32>,
    %c6 = arith.constant 6 : index
    %c0_40 = arith.constant 0 : index
    %51 = vector.load %arg15[%c6, %c0_40] : memref<28x448xf32, #tpu.memory_space<vmem>>, vector<1x448xf32>
    %c7 = arith.constant 7 : index
    %c0_41 = arith.constant 0 : index
    %52 = vector.load %arg15[%c7, %c0_41] : memref<28x448xf32, #tpu.memory_space<vmem>>, vector<1x448xf32>
    %53 = arith.maximumf %51, %52 : vector<1x448xf32>
    %c3_42 = arith.constant 3 : index
    %c0_43 = arith.constant 0 : index
    %54 = vector.load %arg16[%c3_42, %c0_43] : memref<14x448xf32, #tpu.memory_space<vmem>>, vector<1x448xf32>
    tpu.vector_store %arg16[%c3_42, %c0_43], %53 {strides = array<i32>} : memref<14x448xf32, #tpu.memory_space<vmem>>, vector<1x448xf32>,
    %c8 = arith.constant 8 : index
    %c0_44 = arith.constant 0 : index
    %55 = vector.load %arg15[%c8, %c0_44] : memref<28x448xf32, #tpu.memory_space<vmem>>, vector<1x448xf32>
    %c9 = arith.constant 9 : index
    %c0_45 = arith.constant 0 : index
    %56 = vector.load %arg15[%c9, %c0_45] : memref<28x448xf32, #tpu.memory_space<vmem>>, vector<1x448xf32>
    %57 = arith.maximumf %55, %56 : vector<1x448xf32>
    %c4_46 = arith.constant 4 : index
    %c0_47 = arith.constant 0 : index
    %58 = vector.load %arg16[%c4_46, %c0_47] : memref<14x448xf32, #tpu.memory_space<vmem>>, vector<1x448xf32>
    tpu.vector_store %arg16[%c4_46, %c0_47], %57 {strides = array<i32>} : memref<14x448xf32, #tpu.memory_space<vmem>>, vector<1x448xf32>,
    %c10 = arith.constant 10 : index
    %c0_48 = arith.constant 0 : index
    %59 = vector.load %arg15[%c10, %c0_48] : memref<28x448xf32, #tpu.memory_space<vmem>>, vector<1x448xf32>
    %c11 = arith.constant 11 : index
    %c0_49 = arith.constant 0 : index
    %60 = vector.load %arg15[%c11, %c0_49] : memref<28x448xf32, #tpu.memory_space<vmem>>, vector<1x448xf32>
    %61 = arith.maximumf %59, %60 : vector<1x448xf32>
    %c5_50 = arith.constant 5 : index
    %c0_51 = arith.constant 0 : index
    %62 = vector.load %arg16[%c5_50, %c0_51] : memref<14x448xf32, #tpu.memory_space<vmem>>, vector<1x448xf32>
    tpu.vector_store %arg16[%c5_50, %c0_51], %61 {strides = array<i32>} : memref<14x448xf32, #tpu.memory_space<vmem>>, vector<1x448xf32>,
    %c12 = arith.constant 12 : index
    %c0_52 = arith.constant 0 : index
    %63 = vector.load %arg15[%c12, %c0_52] : memref<28x448xf32, #tpu.memory_space<vmem>>, vector<1x448xf32>
    %c13 = arith.constant 13 : index
    %c0_53 = arith.constant 0 : index
    %64 = vector.load %arg15[%c13, %c0_53] : memref<28x448xf32, #tpu.memory_space<vmem>>, vector<1x448xf32>
    %65 = arith.maximumf %63, %64 : vector<1x448xf32>
    %c6_54 = arith.constant 6 : index
    %c0_55 = arith.constant 0 : index
    %66 = vector.load %arg16[%c6_54, %c0_55] : memref<14x448xf32, #tpu.memory_space<vmem>>, vector<1x448xf32>
    tpu.vector_store %arg16[%c6_54, %c0_55], %65 {strides = array<i32>} : memref<14x448xf32, #tpu.memory_space<vmem>>, vector<1x448xf32>,
    %c14 = arith.constant 14 : index
    %c0_56 = arith.constant 0 : index
    %67 = vector.load %arg15[%c14, %c0_56] : memref<28x448xf32, #tpu.memory_space<vmem>>, vector<1x448xf32>
    %c15 = arith.constant 15 : index
    %c0_57 = arith.constant 0 : index
    %68 = vector.load %arg15[%c15, %c0_57] : memref<28x448xf32, #tpu.memory_space<vmem>>, vector<1x448xf32>
    %69 = arith.maximumf %67, %68 : vector<1x448xf32>
    %c7_58 = arith.constant 7 : index
    %c0_59 = arith.constant 0 : index
    %70 = vector.load %arg16[%c7_58, %c0_59] : memref<14x448xf32, #tpu.memory_space<vmem>>, vector<1x448xf32>
    tpu.vector_store %arg16[%c7_58, %c0_59], %69 {strides = array<i32>} : memref<14x448xf32, #tpu.memory_space<vmem>>, vector<1x448xf32>,
    %c16 = arith.constant 16 : index
    %c0_60 = arith.constant 0 : index
    %71 = vector.load %arg15[%c16, %c0_60] : memref<28x448xf32, #tpu.memory_space<vmem>>, vector<1x448xf32>
    %c17 = arith.constant 17 : index
    %c0_61 = arith.constant 0 : index
    %72 = vector.load %arg15[%c17, %c0_61] : memref<28x448xf32, #tpu.memory_space<vmem>>, vector<1x448xf32>
    %73 = arith.maximumf %71, %72 : vector<1x448xf32>
    %c8_62 = arith.constant 8 : index
    %c0_63 = arith.constant 0 : index
    %74 = vector.load %arg16[%c8_62, %c0_63] : memref<14x448xf32, #tpu.memory_space<vmem>>, vector<1x448xf32>
    tpu.vector_store %arg16[%c8_62, %c0_63], %73 {strides = array<i32>} : memref<14x448xf32, #tpu.memory_space<vmem>>, vector<1x448xf32>,
    %c18 = arith.constant 18 : index
    %c0_64 = arith.constant 0 : index
    %75 = vector.load %arg15[%c18, %c0_64] : memref<28x448xf32, #tpu.memory_space<vmem>>, vector<1x448xf32>
    %c19 = arith.constant 19 : index
    %c0_65 = arith.constant 0 : index
    %76 = vector.load %arg15[%c19, %c0_65] : memref<28x448xf32, #tpu.memory_space<vmem>>, vector<1x448xf32>
    %77 = arith.maximumf %75, %76 : vector<1x448xf32>
    %c9_66 = arith.constant 9 : index
    %c0_67 = arith.constant 0 : index
    %78 = vector.load %arg16[%c9_66, %c0_67] : memref<14x448xf32, #tpu.memory_space<vmem>>, vector<1x448xf32>
    tpu.vector_store %arg16[%c9_66, %c0_67], %77 {strides = array<i32>} : memref<14x448xf32, #tpu.memory_space<vmem>>, vector<1x448xf32>,
    %c20 = arith.constant 20 : index
    %c0_68 = arith.constant 0 : index
    %79 = vector.load %arg15[%c20, %c0_68] : memref<28x448xf32, #tpu.memory_space<vmem>>, vector<1x448xf32>
    %c21 = arith.constant 21 : index
    %c0_69 = arith.constant 0 : index
    %80 = vector.load %arg15[%c21, %c0_69] : memref<28x448xf32, #tpu.memory_space<vmem>>, vector<1x448xf32>
    %81 = arith.maximumf %79, %80 : vector<1x448xf32>
    %c10_70 = arith.constant 10 : index
    %c0_71 = arith.constant 0 : index
    %82 = vector.load %arg16[%c10_70, %c0_71] : memref<14x448xf32, #tpu.memory_space<vmem>>, vector<1x448xf32>
    tpu.vector_store %arg16[%c10_70, %c0_71], %81 {strides = array<i32>} : memref<14x448xf32, #tpu.memory_space<vmem>>, vector<1x448xf32>,
    %c22 = arith.constant 22 : index
    %c0_72 = arith.constant 0 : index
    %83 = vector.load %arg15[%c22, %c0_72] : memref<28x448xf32, #tpu.memory_space<vmem>>, vector<1x448xf32>
    %c23 = arith.constant 23 : index
    %c0_73 = arith.constant 0 : index
    %84 = vector.load %arg15[%c23, %c0_73] : memref<28x448xf32, #tpu.memory_space<vmem>>, vector<1x448xf32>
    %85 = arith.maximumf %83, %84 : vector<1x448xf32>
    %c11_74 = arith.constant 11 : index
    %c0_75 = arith.constant 0 : index
    %86 = vector.load %arg16[%c11_74, %c0_75] : memref<14x448xf32, #tpu.memory_space<vmem>>, vector<1x448xf32>
    tpu.vector_store %arg16[%c11_74, %c0_75], %85 {strides = array<i32>} : memref<14x448xf32, #tpu.memory_space<vmem>>, vector<1x448xf32>,
    %c24 = arith.constant 24 : index
    %c0_76 = arith.constant 0 : index
    %87 = vector.load %arg15[%c24, %c0_76] : memref<28x448xf32, #tpu.memory_space<vmem>>, vector<1x448xf32>
    %c25 = arith.constant 25 : index
    %c0_77 = arith.constant 0 : index
    %88 = vector.load %arg15[%c25, %c0_77] : memref<28x448xf32, #tpu.memory_space<vmem>>, vector<1x448xf32>
    %89 = arith.maximumf %87, %88 : vector<1x448xf32>
    %c12_78 = arith.constant 12 : index
    %c0_79 = arith.constant 0 : index
    %90 = vector.load %arg16[%c12_78, %c0_79] : memref<14x448xf32, #tpu.memory_space<vmem>>, vector<1x448xf32>
    tpu.vector_store %arg16[%c12_78, %c0_79], %89 {strides = array<i32>} : memref<14x448xf32, #tpu.memory_space<vmem>>, vector<1x448xf32>,
    %c26 = arith.constant 26 : index
    %c0_80 = arith.constant 0 : index
    %91 = vector.load %arg15[%c26, %c0_80] : memref<28x448xf32, #tpu.memory_space<vmem>>, vector<1x448xf32>
    %c27 = arith.constant 27 : index
    %c0_81 = arith.constant 0 : index
    %92 = vector.load %arg15[%c27, %c0_81] : memref<28x448xf32, #tpu.memory_space<vmem>>, vector<1x448xf32>
    %93 = arith.maximumf %91, %92 : vector<1x448xf32>
    %c13_82 = arith.constant 13 : index
    %c0_83 = arith.constant 0 : index
    %94 = vector.load %arg16[%c13_82, %c0_83] : memref<14x448xf32, #tpu.memory_space<vmem>>, vector<1x448xf32>
    tpu.vector_store %arg16[%c13_82, %c0_83], %93 {strides = array<i32>} : memref<14x448xf32, #tpu.memory_space<vmem>>, vector<1x448xf32>,
    %c0_84 = arith.constant 0 : index
    %c0_85 = arith.constant 0 : index
    %95 = vector.load %arg16[%c0_84, %c0_85] : memref<14x448xf32, #tpu.memory_space<vmem>>, vector<14x448xf32>
    %96 = vector.extract_strided_slice %95 {offsets = [0, 0], sizes = [14, 16], strides = [1, 1]} : vector<14x448xf32> to vector<14x16xf32>
    %97 = vector.extract_strided_slice %95 {offsets = [0, 16], sizes = [14, 16], strides = [1, 1]} : vector<14x448xf32> to vector<14x16xf32>
    %98 = arith.maximumf %96, %97 : vector<14x16xf32>
    %c0_86 = arith.constant 0 : index
    %c0_87 = arith.constant 0 : index
    %99 = vector.load %arg17[%c0_86, %c0_87] : memref<14x224xf32, #tpu.memory_space<vmem>>, vector<14x16xf32>
    tpu.vector_store %arg17[%c0_86, %c0_87], %98 {strides = array<i32>} : memref<14x224xf32, #tpu.memory_space<vmem>>, vector<14x16xf32>,
    %100 = vector.extract_strided_slice %95 {offsets = [0, 32], sizes = [14, 16], strides = [1, 1]} : vector<14x448xf32> to vector<14x16xf32>
    %101 = vector.extract_strided_slice %95 {offsets = [0, 48], sizes = [14, 16], strides = [1, 1]} : vector<14x448xf32> to vector<14x16xf32>
    %102 = arith.maximumf %100, %101 : vector<14x16xf32>
    %c0_88 = arith.constant 0 : index
    %c16_89 = arith.constant 16 : index
    %103 = vector.load %arg17[%c0_88, %c16_89] : memref<14x224xf32, #tpu.memory_space<vmem>>, vector<14x16xf32>
    tpu.vector_store %arg17[%c0_88, %c16_89], %102 {strides = array<i32>} : memref<14x224xf32, #tpu.memory_space<vmem>>, vector<14x16xf32>,
    %104 = vector.extract_strided_slice %95 {offsets = [0, 64], sizes = [14, 16], strides = [1, 1]} : vector<14x448xf32> to vector<14x16xf32>
    %105 = vector.extract_strided_slice %95 {offsets = [0, 80], sizes = [14, 16], strides = [1, 1]} : vector<14x448xf32> to vector<14x16xf32>
    %106 = arith.maximumf %104, %105 : vector<14x16xf32>
    %c0_90 = arith.constant 0 : index
    %c32 = arith.constant 32 : index
    %107 = vector.load %arg17[%c0_90, %c32] : memref<14x224xf32, #tpu.memory_space<vmem>>, vector<14x16xf32>
    tpu.vector_store %arg17[%c0_90, %c32], %106 {strides = array<i32>} : memref<14x224xf32, #tpu.memory_space<vmem>>, vector<14x16xf32>,
    %108 = vector.extract_strided_slice %95 {offsets = [0, 96], sizes = [14, 16], strides = [1, 1]} : vector<14x448xf32> to vector<14x16xf32>
    %109 = vector.extract_strided_slice %95 {offsets = [0, 112], sizes = [14, 16], strides = [1, 1]} : vector<14x448xf32> to vector<14x16xf32>
    %110 = arith.maximumf %108, %109 : vector<14x16xf32>
    %c0_91 = arith.constant 0 : index
    %c48 = arith.constant 48 : index
    %111 = vector.load %arg17[%c0_91, %c48] : memref<14x224xf32, #tpu.memory_space<vmem>>, vector<14x16xf32>
    tpu.vector_store %arg17[%c0_91, %c48], %110 {strides = array<i32>} : memref<14x224xf32, #tpu.memory_space<vmem>>, vector<14x16xf32>,
    %112 = vector.extract_strided_slice %95 {offsets = [0, 128], sizes = [14, 16], strides = [1, 1]} : vector<14x448xf32> to vector<14x16xf32>
    %113 = vector.extract_strided_slice %95 {offsets = [0, 144], sizes = [14, 16], strides = [1, 1]} : vector<14x448xf32> to vector<14x16xf32>
    %114 = arith.maximumf %112, %113 : vector<14x16xf32>
    %c0_92 = arith.constant 0 : index
    %c64 = arith.constant 64 : index
    %115 = vector.load %arg17[%c0_92, %c64] : memref<14x224xf32, #tpu.memory_space<vmem>>, vector<14x16xf32>
    tpu.vector_store %arg17[%c0_92, %c64], %114 {strides = array<i32>} : memref<14x224xf32, #tpu.memory_space<vmem>>, vector<14x16xf32>,
    %116 = vector.extract_strided_slice %95 {offsets = [0, 160], sizes = [14, 16], strides = [1, 1]} : vector<14x448xf32> to vector<14x16xf32>
    %117 = vector.extract_strided_slice %95 {offsets = [0, 176], sizes = [14, 16], strides = [1, 1]} : vector<14x448xf32> to vector<14x16xf32>
    %118 = arith.maximumf %116, %117 : vector<14x16xf32>
    %c0_93 = arith.constant 0 : index
    %c80 = arith.constant 80 : index
    %119 = vector.load %arg17[%c0_93, %c80] : memref<14x224xf32, #tpu.memory_space<vmem>>, vector<14x16xf32>
    tpu.vector_store %arg17[%c0_93, %c80], %118 {strides = array<i32>} : memref<14x224xf32, #tpu.memory_space<vmem>>, vector<14x16xf32>,
    %120 = vector.extract_strided_slice %95 {offsets = [0, 192], sizes = [14, 16], strides = [1, 1]} : vector<14x448xf32> to vector<14x16xf32>
    %121 = vector.extract_strided_slice %95 {offsets = [0, 208], sizes = [14, 16], strides = [1, 1]} : vector<14x448xf32> to vector<14x16xf32>
    %122 = arith.maximumf %120, %121 : vector<14x16xf32>
    %c0_94 = arith.constant 0 : index
    %c96 = arith.constant 96 : index
    %123 = vector.load %arg17[%c0_94, %c96] : memref<14x224xf32, #tpu.memory_space<vmem>>, vector<14x16xf32>
    tpu.vector_store %arg17[%c0_94, %c96], %122 {strides = array<i32>} : memref<14x224xf32, #tpu.memory_space<vmem>>, vector<14x16xf32>,
    %124 = vector.extract_strided_slice %95 {offsets = [0, 224], sizes = [14, 16], strides = [1, 1]} : vector<14x448xf32> to vector<14x16xf32>
    %125 = vector.extract_strided_slice %95 {offsets = [0, 240], sizes = [14, 16], strides = [1, 1]} : vector<14x448xf32> to vector<14x16xf32>
    %126 = arith.maximumf %124, %125 : vector<14x16xf32>
    %c0_95 = arith.constant 0 : index
    %c112 = arith.constant 112 : index
    %127 = vector.load %arg17[%c0_95, %c112] : memref<14x224xf32, #tpu.memory_space<vmem>>, vector<14x16xf32>
    tpu.vector_store %arg17[%c0_95, %c112], %126 {strides = array<i32>} : memref<14x224xf32, #tpu.memory_space<vmem>>, vector<14x16xf32>,
    %128 = vector.extract_strided_slice %95 {offsets = [0, 256], sizes = [14, 16], strides = [1, 1]} : vector<14x448xf32> to vector<14x16xf32>
    %129 = vector.extract_strided_slice %95 {offsets = [0, 272], sizes = [14, 16], strides = [1, 1]} : vector<14x448xf32> to vector<14x16xf32>
    %130 = arith.maximumf %128, %129 : vector<14x16xf32>
    %c0_96 = arith.constant 0 : index
    %c128 = arith.constant 128 : index
    %131 = vector.load %arg17[%c0_96, %c128] : memref<14x224xf32, #tpu.memory_space<vmem>>, vector<14x16xf32>
    tpu.vector_store %arg17[%c0_96, %c128], %130 {strides = array<i32>} : memref<14x224xf32, #tpu.memory_space<vmem>>, vector<14x16xf32>,
    %132 = vector.extract_strided_slice %95 {offsets = [0, 288], sizes = [14, 16], strides = [1, 1]} : vector<14x448xf32> to vector<14x16xf32>
    %133 = vector.extract_strided_slice %95 {offsets = [0, 304], sizes = [14, 16], strides = [1, 1]} : vector<14x448xf32> to vector<14x16xf32>
    %134 = arith.maximumf %132, %133 : vector<14x16xf32>
    %c0_97 = arith.constant 0 : index
    %c144 = arith.constant 144 : index
    %135 = vector.load %arg17[%c0_97, %c144] : memref<14x224xf32, #tpu.memory_space<vmem>>, vector<14x16xf32>
    tpu.vector_store %arg17[%c0_97, %c144], %134 {strides = array<i32>} : memref<14x224xf32, #tpu.memory_space<vmem>>, vector<14x16xf32>,
    %136 = vector.extract_strided_slice %95 {offsets = [0, 320], sizes = [14, 16], strides = [1, 1]} : vector<14x448xf32> to vector<14x16xf32>
    %137 = vector.extract_strided_slice %95 {offsets = [0, 336], sizes = [14, 16], strides = [1, 1]} : vector<14x448xf32> to vector<14x16xf32>
    %138 = arith.maximumf %136, %137 : vector<14x16xf32>
    %c0_98 = arith.constant 0 : index
    %c160 = arith.constant 160 : index
    %139 = vector.load %arg17[%c0_98, %c160] : memref<14x224xf32, #tpu.memory_space<vmem>>, vector<14x16xf32>
    tpu.vector_store %arg17[%c0_98, %c160], %138 {strides = array<i32>} : memref<14x224xf32, #tpu.memory_space<vmem>>, vector<14x16xf32>,
    %140 = vector.extract_strided_slice %95 {offsets = [0, 352], sizes = [14, 16], strides = [1, 1]} : vector<14x448xf32> to vector<14x16xf32>
    %141 = vector.extract_strided_slice %95 {offsets = [0, 368], sizes = [14, 16], strides = [1, 1]} : vector<14x448xf32> to vector<14x16xf32>
    %142 = arith.maximumf %140, %141 : vector<14x16xf32>
    %c0_99 = arith.constant 0 : index
    %c176 = arith.constant 176 : index
    %143 = vector.load %arg17[%c0_99, %c176] : memref<14x224xf32, #tpu.memory_space<vmem>>, vector<14x16xf32>
    tpu.vector_store %arg17[%c0_99, %c176], %142 {strides = array<i32>} : memref<14x224xf32, #tpu.memory_space<vmem>>, vector<14x16xf32>,
    %144 = vector.extract_strided_slice %95 {offsets = [0, 384], sizes = [14, 16], strides = [1, 1]} : vector<14x448xf32> to vector<14x16xf32>
    %145 = vector.extract_strided_slice %95 {offsets = [0, 400], sizes = [14, 16], strides = [1, 1]} : vector<14x448xf32> to vector<14x16xf32>
    %146 = arith.maximumf %144, %145 : vector<14x16xf32>
    %c0_100 = arith.constant 0 : index
    %c192 = arith.constant 192 : index
    %147 = vector.load %arg17[%c0_100, %c192] : memref<14x224xf32, #tpu.memory_space<vmem>>, vector<14x16xf32>
    tpu.vector_store %arg17[%c0_100, %c192], %146 {strides = array<i32>} : memref<14x224xf32, #tpu.memory_space<vmem>>, vector<14x16xf32>,
    %148 = vector.extract_strided_slice %95 {offsets = [0, 416], sizes = [14, 16], strides = [1, 1]} : vector<14x448xf32> to vector<14x16xf32>
    %149 = vector.extract_strided_slice %95 {offsets = [0, 432], sizes = [14, 16], strides = [1, 1]} : vector<14x448xf32> to vector<14x16xf32>
    %150 = arith.maximumf %148, %149 : vector<14x16xf32>
    %c0_101 = arith.constant 0 : index
    %c208 = arith.constant 208 : index
    %151 = vector.load %arg17[%c0_101, %c208] : memref<14x224xf32, #tpu.memory_space<vmem>>, vector<14x16xf32>
    tpu.vector_store %arg17[%c0_101, %c208], %150 {strides = array<i32>} : memref<14x224xf32, #tpu.memory_space<vmem>>, vector<14x16xf32>,
    %c0_102 = arith.constant 0 : index
    %c0_103 = arith.constant 0 : index
    %152 = vector.load %arg17[%c0_102, %c0_103] : memref<14x224xf32, #tpu.memory_space<vmem>>, vector<14x224xf32>
    %cst_104 = arith.constant 0.000000e+00 : f32
    %153 = vector.broadcast %cst_104 : f32 to vector<10x320xf32>
    %154 = vector.extract_strided_slice %152 {offsets = [0, 0], sizes = [10, 224], strides = [1, 1]} : vector<14x224xf32> to vector<10x224xf32>
    %155 = arith.truncf %154 : vector<10x224xf32> to vector<10x224xbf16>
    %c0_105 = arith.constant 0 : index
    %c0_106 = arith.constant 0 : index
    %c0_107 = arith.constant 0 : index
    %156 = vector.load %arg4[%c0_105, %c0_106, %c0_107] : memref<5x224x320xbf16, #tpu.memory_space<vmem>>, vector<1x224x320xbf16>
    %157 = vector.shape_cast %156 : vector<1x224x320xbf16> to vector<224x320xbf16>
    %cst_108 = arith.constant dense<0.000000e+00> : vector<10x320xf32>
    %158 = tpu.matmul %155, %157, %cst_108 {dimension_numbers = #tpu.dot_dimension_numbers<[1], [0], [0], [1], [0, 0, 1, 1], [], []>} : vector<10x224xbf16>, vector<224x320xbf16>, vector<10x320xf32> -> vector<10x320xf32>
    %159 = arith.addf %153, %158 : vector<10x320xf32>
    %160 = vector.extract_strided_slice %152 {offsets = [1, 0], sizes = [10, 224], strides = [1, 1]} : vector<14x224xf32> to vector<10x224xf32>
    %161 = arith.truncf %160 : vector<10x224xf32> to vector<10x224xbf16>
    %c1_109 = arith.constant 1 : index
    %c0_110 = arith.constant 0 : index
    %c0_111 = arith.constant 0 : index
    %162 = vector.load %arg4[%c1_109, %c0_110, %c0_111] : memref<5x224x320xbf16, #tpu.memory_space<vmem>>, vector<1x224x320xbf16>
    %163 = vector.shape_cast %162 : vector<1x224x320xbf16> to vector<224x320xbf16>
    %cst_112 = arith.constant dense<0.000000e+00> : vector<10x320xf32>
    %164 = tpu.matmul %161, %163, %cst_112 {dimension_numbers = #tpu.dot_dimension_numbers<[1], [0], [0], [1], [0, 0, 1, 1], [], []>} : vector<10x224xbf16>, vector<224x320xbf16>, vector<10x320xf32> -> vector<10x320xf32>
    %165 = arith.addf %159, %164 : vector<10x320xf32>
    %166 = vector.extract_strided_slice %152 {offsets = [2, 0], sizes = [10, 224], strides = [1, 1]} : vector<14x224xf32> to vector<10x224xf32>
    %167 = arith.truncf %166 : vector<10x224xf32> to vector<10x224xbf16>
    %c2_113 = arith.constant 2 : index
    %c0_114 = arith.constant 0 : index
    %c0_115 = arith.constant 0 : index
    %168 = vector.load %arg4[%c2_113, %c0_114, %c0_115] : memref<5x224x320xbf16, #tpu.memory_space<vmem>>, vector<1x224x320xbf16>
    %169 = vector.shape_cast %168 : vector<1x224x320xbf16> to vector<224x320xbf16>
    %cst_116 = arith.constant dense<0.000000e+00> : vector<10x320xf32>
    %170 = tpu.matmul %167, %169, %cst_116 {dimension_numbers = #tpu.dot_dimension_numbers<[1], [0], [0], [1], [0, 0, 1, 1], [], []>} : vector<10x224xbf16>, vector<224x320xbf16>, vector<10x320xf32> -> vector<10x320xf32>
    %171 = arith.addf %165, %170 : vector<10x320xf32>
    %172 = vector.extract_strided_slice %152 {offsets = [3, 0], sizes = [10, 224], strides = [1, 1]} : vector<14x224xf32> to vector<10x224xf32>
    %173 = arith.truncf %172 : vector<10x224xf32> to vector<10x224xbf16>
    %c3_117 = arith.constant 3 : index
    %c0_118 = arith.constant 0 : index
    %c0_119 = arith.constant 0 : index
    %174 = vector.load %arg4[%c3_117, %c0_118, %c0_119] : memref<5x224x320xbf16, #tpu.memory_space<vmem>>, vector<1x224x320xbf16>
    %175 = vector.shape_cast %174 : vector<1x224x320xbf16> to vector<224x320xbf16>
    %cst_120 = arith.constant dense<0.000000e+00> : vector<10x320xf32>
    %176 = tpu.matmul %173, %175, %cst_120 {dimension_numbers = #tpu.dot_dimension_numbers<[1], [0], [0], [1], [0, 0, 1, 1], [], []>} : vector<10x224xbf16>, vector<224x320xbf16>, vector<10x320xf32> -> vector<10x320xf32>
    %177 = arith.addf %171, %176 : vector<10x320xf32>
    %178 = vector.extract_strided_slice %152 {offsets = [4, 0], sizes = [10, 224], strides = [1, 1]} : vector<14x224xf32> to vector<10x224xf32>
    %179 = arith.truncf %178 : vector<10x224xf32> to vector<10x224xbf16>
    %c4_121 = arith.constant 4 : index
    %c0_122 = arith.constant 0 : index
    %c0_123 = arith.constant 0 : index
    %180 = vector.load %arg4[%c4_121, %c0_122, %c0_123] : memref<5x224x320xbf16, #tpu.memory_space<vmem>>, vector<1x224x320xbf16>
    %181 = vector.shape_cast %180 : vector<1x224x320xbf16> to vector<224x320xbf16>
    %cst_124 = arith.constant dense<0.000000e+00> : vector<10x320xf32>
    %182 = tpu.matmul %179, %181, %cst_124 {dimension_numbers = #tpu.dot_dimension_numbers<[1], [0], [0], [1], [0, 0, 1, 1], [], []>} : vector<10x224xbf16>, vector<224x320xbf16>, vector<10x320xf32> -> vector<10x320xf32>
    %183 = arith.addf %177, %182 : vector<10x320xf32>
    %c0_125 = arith.constant 0 : index
    %c0_126 = arith.constant 0 : index
    %184 = vector.load %arg5[%c0_125, %c0_126] : memref<1x320xf32, #tpu.memory_space<vmem>>, vector<1x320xf32>
    %185 = vector.broadcast %184 : vector<1x320xf32> to vector<10x320xf32>
    %186 = arith.addf %183, %185 : vector<10x320xf32>
    %cst_127 = arith.constant 0.000000e+00 : f32
    %187 = vector.broadcast %cst_127 : f32 to vector<10x320xf32>
    %188 = arith.maximumf %186, %187 : vector<10x320xf32>
    %c0_128 = arith.constant 0 : index
    %c0_129 = arith.constant 0 : index
    %189 = vector.load %arg18[%c0_128, %c0_129] : memref<10x320xf32, #tpu.memory_space<vmem>>, vector<10x320xf32>
    tpu.vector_store %arg18[%c0_128, %c0_129], %188 {strides = array<i32>} : memref<10x320xf32, #tpu.memory_space<vmem>>, vector<10x320xf32>,
    %c0_130 = arith.constant 0 : index
    %c0_131 = arith.constant 0 : index
    %190 = vector.load %arg18[%c0_130, %c0_131] : memref<10x320xf32, #tpu.memory_space<vmem>>, vector<1x320xf32>
    %c1_132 = arith.constant 1 : index
    %c0_133 = arith.constant 0 : index
    %191 = vector.load %arg18[%c1_132, %c0_133] : memref<10x320xf32, #tpu.memory_space<vmem>>, vector<1x320xf32>
    %192 = arith.maximumf %190, %191 : vector<1x320xf32>
    %c0_134 = arith.constant 0 : index
    %c0_135 = arith.constant 0 : index
    %193 = vector.load %arg19[%c0_134, %c0_135] : memref<5x320xf32, #tpu.memory_space<vmem>>, vector<1x320xf32>
    tpu.vector_store %arg19[%c0_134, %c0_135], %192 {strides = array<i32>} : memref<5x320xf32, #tpu.memory_space<vmem>>, vector<1x320xf32>,
    %c2_136 = arith.constant 2 : index
    %c0_137 = arith.constant 0 : index
    %194 = vector.load %arg18[%c2_136, %c0_137] : memref<10x320xf32, #tpu.memory_space<vmem>>, vector<1x320xf32>
    %c3_138 = arith.constant 3 : index
    %c0_139 = arith.constant 0 : index
    %195 = vector.load %arg18[%c3_138, %c0_139] : memref<10x320xf32, #tpu.memory_space<vmem>>, vector<1x320xf32>
    %196 = arith.maximumf %194, %195 : vector<1x320xf32>
    %c1_140 = arith.constant 1 : index
    %c0_141 = arith.constant 0 : index
    %197 = vector.load %arg19[%c1_140, %c0_141] : memref<5x320xf32, #tpu.memory_space<vmem>>, vector<1x320xf32>
    tpu.vector_store %arg19[%c1_140, %c0_141], %196 {strides = array<i32>} : memref<5x320xf32, #tpu.memory_space<vmem>>, vector<1x320xf32>,
    %c4_142 = arith.constant 4 : index
    %c0_143 = arith.constant 0 : index
    %198 = vector.load %arg18[%c4_142, %c0_143] : memref<10x320xf32, #tpu.memory_space<vmem>>, vector<1x320xf32>
    %c5_144 = arith.constant 5 : index
    %c0_145 = arith.constant 0 : index
    %199 = vector.load %arg18[%c5_144, %c0_145] : memref<10x320xf32, #tpu.memory_space<vmem>>, vector<1x320xf32>
    %200 = arith.maximumf %198, %199 : vector<1x320xf32>
    %c2_146 = arith.constant 2 : index
    %c0_147 = arith.constant 0 : index
    %201 = vector.load %arg19[%c2_146, %c0_147] : memref<5x320xf32, #tpu.memory_space<vmem>>, vector<1x320xf32>
    tpu.vector_store %arg19[%c2_146, %c0_147], %200 {strides = array<i32>} : memref<5x320xf32, #tpu.memory_space<vmem>>, vector<1x320xf32>,
    %c6_148 = arith.constant 6 : index
    %c0_149 = arith.constant 0 : index
    %202 = vector.load %arg18[%c6_148, %c0_149] : memref<10x320xf32, #tpu.memory_space<vmem>>, vector<1x320xf32>
    %c7_150 = arith.constant 7 : index
    %c0_151 = arith.constant 0 : index
    %203 = vector.load %arg18[%c7_150, %c0_151] : memref<10x320xf32, #tpu.memory_space<vmem>>, vector<1x320xf32>
    %204 = arith.maximumf %202, %203 : vector<1x320xf32>
    %c3_152 = arith.constant 3 : index
    %c0_153 = arith.constant 0 : index
    %205 = vector.load %arg19[%c3_152, %c0_153] : memref<5x320xf32, #tpu.memory_space<vmem>>, vector<1x320xf32>
    tpu.vector_store %arg19[%c3_152, %c0_153], %204 {strides = array<i32>} : memref<5x320xf32, #tpu.memory_space<vmem>>, vector<1x320xf32>,
    %c8_154 = arith.constant 8 : index
    %c0_155 = arith.constant 0 : index
    %206 = vector.load %arg18[%c8_154, %c0_155] : memref<10x320xf32, #tpu.memory_space<vmem>>, vector<1x320xf32>
    %c9_156 = arith.constant 9 : index
    %c0_157 = arith.constant 0 : index
    %207 = vector.load %arg18[%c9_156, %c0_157] : memref<10x320xf32, #tpu.memory_space<vmem>>, vector<1x320xf32>
    %208 = arith.maximumf %206, %207 : vector<1x320xf32>
    %c4_158 = arith.constant 4 : index
    %c0_159 = arith.constant 0 : index
    %209 = vector.load %arg19[%c4_158, %c0_159] : memref<5x320xf32, #tpu.memory_space<vmem>>, vector<1x320xf32>
    tpu.vector_store %arg19[%c4_158, %c0_159], %208 {strides = array<i32>} : memref<5x320xf32, #tpu.memory_space<vmem>>, vector<1x320xf32>,
    %c0_160 = arith.constant 0 : index
    %c0_161 = arith.constant 0 : index
    %210 = vector.load %arg19[%c0_160, %c0_161] : memref<5x320xf32, #tpu.memory_space<vmem>>, vector<5x320xf32>
    %211 = vector.extract_strided_slice %210 {offsets = [0, 0], sizes = [5, 32], strides = [1, 1]} : vector<5x320xf32> to vector<5x32xf32>
    %212 = vector.extract_strided_slice %210 {offsets = [0, 32], sizes = [5, 32], strides = [1, 1]} : vector<5x320xf32> to vector<5x32xf32>
    %213 = arith.maximumf %211, %212 : vector<5x32xf32>
    %c0_162 = arith.constant 0 : index
    %c0_163 = arith.constant 0 : index
    %214 = vector.load %arg20[%c0_162, %c0_163] : memref<5x160xf32, #tpu.memory_space<vmem>>, vector<5x32xf32>
    tpu.vector_store %arg20[%c0_162, %c0_163], %213 {strides = array<i32>} : memref<5x160xf32, #tpu.memory_space<vmem>>, vector<5x32xf32>,
    %215 = vector.extract_strided_slice %210 {offsets = [0, 64], sizes = [5, 32], strides = [1, 1]} : vector<5x320xf32> to vector<5x32xf32>
    %216 = vector.extract_strided_slice %210 {offsets = [0, 96], sizes = [5, 32], strides = [1, 1]} : vector<5x320xf32> to vector<5x32xf32>
    %217 = arith.maximumf %215, %216 : vector<5x32xf32>
    %c0_164 = arith.constant 0 : index
    %c32_165 = arith.constant 32 : index
    %218 = vector.load %arg20[%c0_164, %c32_165] : memref<5x160xf32, #tpu.memory_space<vmem>>, vector<5x32xf32>
    tpu.vector_store %arg20[%c0_164, %c32_165], %217 {strides = array<i32>} : memref<5x160xf32, #tpu.memory_space<vmem>>, vector<5x32xf32>,
    %219 = vector.extract_strided_slice %210 {offsets = [0, 128], sizes = [5, 32], strides = [1, 1]} : vector<5x320xf32> to vector<5x32xf32>
    %220 = vector.extract_strided_slice %210 {offsets = [0, 160], sizes = [5, 32], strides = [1, 1]} : vector<5x320xf32> to vector<5x32xf32>
    %221 = arith.maximumf %219, %220 : vector<5x32xf32>
    %c0_166 = arith.constant 0 : index
    %c64_167 = arith.constant 64 : index
    %222 = vector.load %arg20[%c0_166, %c64_167] : memref<5x160xf32, #tpu.memory_space<vmem>>, vector<5x32xf32>
    tpu.vector_store %arg20[%c0_166, %c64_167], %221 {strides = array<i32>} : memref<5x160xf32, #tpu.memory_space<vmem>>, vector<5x32xf32>,
    %223 = vector.extract_strided_slice %210 {offsets = [0, 192], sizes = [5, 32], strides = [1, 1]} : vector<5x320xf32> to vector<5x32xf32>
    %224 = vector.extract_strided_slice %210 {offsets = [0, 224], sizes = [5, 32], strides = [1, 1]} : vector<5x320xf32> to vector<5x32xf32>
    %225 = arith.maximumf %223, %224 : vector<5x32xf32>
    %c0_168 = arith.constant 0 : index
    %c96_169 = arith.constant 96 : index
    %226 = vector.load %arg20[%c0_168, %c96_169] : memref<5x160xf32, #tpu.memory_space<vmem>>, vector<5x32xf32>
    tpu.vector_store %arg20[%c0_168, %c96_169], %225 {strides = array<i32>} : memref<5x160xf32, #tpu.memory_space<vmem>>, vector<5x32xf32>,
    %227 = vector.extract_strided_slice %210 {offsets = [0, 256], sizes = [5, 32], strides = [1, 1]} : vector<5x320xf32> to vector<5x32xf32>
    %228 = vector.extract_strided_slice %210 {offsets = [0, 288], sizes = [5, 32], strides = [1, 1]} : vector<5x320xf32> to vector<5x32xf32>
    %229 = arith.maximumf %227, %228 : vector<5x32xf32>
    %c0_170 = arith.constant 0 : index
    %c128_171 = arith.constant 128 : index
    %230 = vector.load %arg20[%c0_170, %c128_171] : memref<5x160xf32, #tpu.memory_space<vmem>>, vector<5x32xf32>
    tpu.vector_store %arg20[%c0_170, %c128_171], %229 {strides = array<i32>} : memref<5x160xf32, #tpu.memory_space<vmem>>, vector<5x32xf32>,
    %c0_172 = arith.constant 0 : index
    %c0_173 = arith.constant 0 : index
    %231 = vector.load %arg20[%c0_172, %c0_173] : memref<5x160xf32, #tpu.memory_space<vmem>>, vector<5x160xf32>
    %cst_174 = arith.constant 0.000000e+00 : f32
    %232 = vector.broadcast %cst_174 : f32 to vector<1x512xf32>
    %233 = vector.extract_strided_slice %231 {offsets = [0, 0], sizes = [1, 160], strides = [1, 1]} : vector<5x160xf32> to vector<1x160xf32>
    %234 = arith.truncf %233 : vector<1x160xf32> to vector<1x160xbf16>
    %c0_175 = arith.constant 0 : index
    %c0_176 = arith.constant 0 : index
    %c0_177 = arith.constant 0 : index
    %235 = vector.load %arg6[%c0_175, %c0_176, %c0_177] : memref<5x160x512xbf16, #tpu.memory_space<vmem>>, vector<1x160x512xbf16>
    %236 = vector.shape_cast %235 : vector<1x160x512xbf16> to vector<160x512xbf16>
    %cst_178 = arith.constant dense<0.000000e+00> : vector<1x512xf32>
    %237 = tpu.matmul %234, %236, %cst_178 {dimension_numbers = #tpu.dot_dimension_numbers<[1], [0], [0], [1], [0, 0, 1, 1], [], []>} : vector<1x160xbf16>, vector<160x512xbf16>, vector<1x512xf32> -> vector<1x512xf32>
    %238 = arith.addf %232, %237 : vector<1x512xf32>
    %239 = vector.extract_strided_slice %231 {offsets = [1, 0], sizes = [1, 160], strides = [1, 1]} : vector<5x160xf32> to vector<1x160xf32>
    %240 = arith.truncf %239 : vector<1x160xf32> to vector<1x160xbf16>
    %c1_179 = arith.constant 1 : index
    %c0_180 = arith.constant 0 : index
    %c0_181 = arith.constant 0 : index
    %241 = vector.load %arg6[%c1_179, %c0_180, %c0_181] : memref<5x160x512xbf16, #tpu.memory_space<vmem>>, vector<1x160x512xbf16>
    %242 = vector.shape_cast %241 : vector<1x160x512xbf16> to vector<160x512xbf16>
    %cst_182 = arith.constant dense<0.000000e+00> : vector<1x512xf32>
    %243 = tpu.matmul %240, %242, %cst_182 {dimension_numbers = #tpu.dot_dimension_numbers<[1], [0], [0], [1], [0, 0, 1, 1], [], []>} : vector<1x160xbf16>, vector<160x512xbf16>, vector<1x512xf32> -> vector<1x512xf32>
    %244 = arith.addf %238, %243 : vector<1x512xf32>
    %245 = vector.extract_strided_slice %231 {offsets = [2, 0], sizes = [1, 160], strides = [1, 1]} : vector<5x160xf32> to vector<1x160xf32>
    %246 = arith.truncf %245 : vector<1x160xf32> to vector<1x160xbf16>
    %c2_183 = arith.constant 2 : index
    %c0_184 = arith.constant 0 : index
    %c0_185 = arith.constant 0 : index
    %247 = vector.load %arg6[%c2_183, %c0_184, %c0_185] : memref<5x160x512xbf16, #tpu.memory_space<vmem>>, vector<1x160x512xbf16>
    %248 = vector.shape_cast %247 : vector<1x160x512xbf16> to vector<160x512xbf16>
    %cst_186 = arith.constant dense<0.000000e+00> : vector<1x512xf32>
    %249 = tpu.matmul %246, %248, %cst_186 {dimension_numbers = #tpu.dot_dimension_numbers<[1], [0], [0], [1], [0, 0, 1, 1], [], []>} : vector<1x160xbf16>, vector<160x512xbf16>, vector<1x512xf32> -> vector<1x512xf32>
    %250 = arith.addf %244, %249 : vector<1x512xf32>
    %251 = vector.extract_strided_slice %231 {offsets = [3, 0], sizes = [1, 160], strides = [1, 1]} : vector<5x160xf32> to vector<1x160xf32>
    %252 = arith.truncf %251 : vector<1x160xf32> to vector<1x160xbf16>
    %c3_187 = arith.constant 3 : index
    %c0_188 = arith.constant 0 : index
    %c0_189 = arith.constant 0 : index
    %253 = vector.load %arg6[%c3_187, %c0_188, %c0_189] : memref<5x160x512xbf16, #tpu.memory_space<vmem>>, vector<1x160x512xbf16>
    %254 = vector.shape_cast %253 : vector<1x160x512xbf16> to vector<160x512xbf16>
    %cst_190 = arith.constant dense<0.000000e+00> : vector<1x512xf32>
    %255 = tpu.matmul %252, %254, %cst_190 {dimension_numbers = #tpu.dot_dimension_numbers<[1], [0], [0], [1], [0, 0, 1, 1], [], []>} : vector<1x160xbf16>, vector<160x512xbf16>, vector<1x512xf32> -> vector<1x512xf32>
    %256 = arith.addf %250, %255 : vector<1x512xf32>
    %257 = vector.extract_strided_slice %231 {offsets = [4, 0], sizes = [1, 160], strides = [1, 1]} : vector<5x160xf32> to vector<1x160xf32>
    %258 = arith.truncf %257 : vector<1x160xf32> to vector<1x160xbf16>
    %c4_191 = arith.constant 4 : index
    %c0_192 = arith.constant 0 : index
    %c0_193 = arith.constant 0 : index
    %259 = vector.load %arg6[%c4_191, %c0_192, %c0_193] : memref<5x160x512xbf16, #tpu.memory_space<vmem>>, vector<1x160x512xbf16>
    %260 = vector.shape_cast %259 : vector<1x160x512xbf16> to vector<160x512xbf16>
    %cst_194 = arith.constant dense<0.000000e+00> : vector<1x512xf32>
    %261 = tpu.matmul %258, %260, %cst_194 {dimension_numbers = #tpu.dot_dimension_numbers<[1], [0], [0], [1], [0, 0, 1, 1], [], []>} : vector<1x160xbf16>, vector<160x512xbf16>, vector<1x512xf32> -> vector<1x512xf32>
    %262 = arith.addf %256, %261 : vector<1x512xf32>
    %c0_195 = arith.constant 0 : index
    %c0_196 = arith.constant 0 : index
    %263 = vector.load %arg7[%c0_195, %c0_196] : memref<1x512xf32, #tpu.memory_space<vmem>>, vector<1x512xf32>
    %264 = arith.addf %262, %263 : vector<1x512xf32>
    %cst_197 = arith.constant 0.000000e+00 : f32
    %265 = vector.broadcast %cst_197 : f32 to vector<1x512xf32>
    %266 = arith.maximumf %264, %265 : vector<1x512xf32>
    %267 = arith.truncf %266 : vector<1x512xf32> to vector<1x512xbf16>
    %c0_198 = arith.constant 0 : index
    %c0_199 = arith.constant 0 : index
    %268 = vector.load %arg8[%c0_198, %c0_199] : memref<512x512xbf16, #tpu.memory_space<vmem>>, vector<512x512xbf16>
    %cst_200 = arith.constant dense<0.000000e+00> : vector<1x512xf32>
    %269 = tpu.matmul %267, %268, %cst_200 {dimension_numbers = #tpu.dot_dimension_numbers<[1], [0], [0], [1], [0, 0, 1, 1], [], []>} : vector<1x512xbf16>, vector<512x512xbf16>, vector<1x512xf32> -> vector<1x512xf32>
    %c0_201 = arith.constant 0 : index
    %c0_202 = arith.constant 0 : index
    %270 = vector.load %arg9[%c0_201, %c0_202] : memref<1x512xf32, #tpu.memory_space<vmem>>, vector<1x512xf32>
    %271 = arith.addf %269, %270 : vector<1x512xf32>
    %cst_203 = arith.constant 0.000000e+00 : f32
    %272 = vector.broadcast %cst_203 : f32 to vector<1x512xf32>
    %273 = arith.maximumf %271, %272 : vector<1x512xf32>
    %c0_204 = arith.constant 0 : index
    %c0_205 = arith.constant 0 : index
    %c0_206 = arith.constant 0 : index
    %274 = vector.load %arg14[%c0_204, %c0_205, %c0_206] : memref<1x1x512xf32, #tpu.memory_space<vmem>>, vector<1x1x512xf32>
    %275 = vector.shape_cast %274 : vector<1x1x512xf32> to vector<1x512xf32>
    %276 = vector.shape_cast %273 : vector<1x512xf32> to vector<1x1x512xf32>
    tpu.vector_store %arg14[%c0_204, %c0_205, %c0_206], %276 {strides = array<i32>} : memref<1x1x512xf32, #tpu.memory_space<vmem>>, vector<1x1x512xf32>,
    %c0_207 = arith.constant 0 : index
    %c0_208 = arith.constant 0 : index
    %c0_209 = arith.constant 0 : index
    %277 = vector.load %arg12[%c0_207, %c0_208, %c0_209] : memref<1x1x512xf32, #tpu.memory_space<vmem>>, vector<1x1x512xf32>
    %278 = vector.shape_cast %277 : vector<1x1x512xf32> to vector<1x512xf32>
    %279 = arith.truncf %278 : vector<1x512xf32> to vector<1x512xbf16>
    %c0_210 = arith.constant 0 : index
    %c0_211 = arith.constant 0 : index
    %280 = vector.load %arg10[%c0_210, %c0_211] : memref<512x128xbf16, #tpu.memory_space<vmem>>, vector<512x128xbf16>
    %cst_212 = arith.constant dense<0.000000e+00> : vector<1x128xf32>
    %281 = tpu.matmul %279, %280, %cst_212 {dimension_numbers = #tpu.dot_dimension_numbers<[1], [0], [0], [1], [0, 0, 1, 1], [], []>} : vector<1x512xbf16>, vector<512x128xbf16>, vector<1x128xf32> -> vector<1x128xf32>
    %c0_213 = arith.constant 0 : index
    %c0_214 = arith.constant 0 : index
    %282 = vector.load %arg11[%c0_213, %c0_214] : memref<1x128xf32, #tpu.memory_space<vmem>>, vector<1x128xf32>
    %283 = arith.addf %281, %282 : vector<1x128xf32>
    %c0_215 = arith.constant 0 : index
    %c0_216 = arith.constant 0 : index
    %c0_217 = arith.constant 0 : index
    %284 = vector.load %arg13[%c0_215, %c0_216, %c0_217] : memref<1x1x128xf32, #tpu.memory_space<vmem>>, vector<1x1x128xf32>
    %285 = vector.shape_cast %284 : vector<1x1x128xf32> to vector<1x128xf32>
    %286 = vector.shape_cast %283 : vector<1x128xf32> to vector<1x1x128xf32>
    tpu.vector_store %arg13[%c0_215, %c0_216, %c0_217], %286 {strides = array<i32>} : memref<1x1x128xf32, #tpu.memory_space<vmem>>, vector<1x1x128xf32>,
    return
  }
  func.func @transform_0(%arg0: i32) -> (i32, i32, i32) {
    %c0_i32 = arith.constant 0 : i32
    %c0_i32_0 = arith.constant 0 : i32
    %c0_i32_1 = arith.constant 0 : i32
    return %arg0, %c0_i32, %c0_i32_0 : i32, i32, i32
  }
  func.func @transform_1(%arg0: i32) -> (i32, i32, i32) {
    %c0_i32 = arith.constant 0 : i32
    %c0_i32_0 = arith.constant 0 : i32
    %c0_i32_1 = arith.constant 0 : i32
    %c0_i32_2 = arith.constant 0 : i32
    return %c0_i32, %c0_i32_0, %c0_i32_1 : i32, i32, i32
  }
  func.func @transform_2(%arg0: i32) -> (i32, i32) {
    %c0_i32 = arith.constant 0 : i32
    %c0_i32_0 = arith.constant 0 : i32
    %c0_i32_1 = arith.constant 0 : i32
    return %c0_i32, %c0_i32_0 : i32, i32
  }
  func.func @transform_3(%arg0: i32) -> (i32, i32, i32) {
    %c0_i32 = arith.constant 0 : i32
    %c0_i32_0 = arith.constant 0 : i32
    %c0_i32_1 = arith.constant 0 : i32
    %c0_i32_2 = arith.constant 0 : i32
    return %c0_i32, %c0_i32_0, %c0_i32_1 : i32, i32, i32
  }
  func.func @transform_4(%arg0: i32) -> (i32, i32) {
    %c0_i32 = arith.constant 0 : i32
    %c0_i32_0 = arith.constant 0 : i32
    %c0_i32_1 = arith.constant 0 : i32
    return %c0_i32, %c0_i32_0 : i32, i32
  }
  func.func @transform_5(%arg0: i32) -> (i32, i32, i32) {
    %c0_i32 = arith.constant 0 : i32
    %c0_i32_0 = arith.constant 0 : i32
    %c0_i32_1 = arith.constant 0 : i32
    %c0_i32_2 = arith.constant 0 : i32
    return %c0_i32, %c0_i32_0, %c0_i32_1 : i32, i32, i32
  }
  func.func @transform_6(%arg0: i32) -> (i32, i32) {
    %c0_i32 = arith.constant 0 : i32
    %c0_i32_0 = arith.constant 0 : i32
    %c0_i32_1 = arith.constant 0 : i32
    return %c0_i32, %c0_i32_0 : i32, i32
  }
  func.func @transform_7(%arg0: i32) -> (i32, i32) {
    %c0_i32 = arith.constant 0 : i32
    %c0_i32_0 = arith.constant 0 : i32
    %c0_i32_1 = arith.constant 0 : i32
    return %c0_i32, %c0_i32_0 : i32, i32
  }
  func.func @transform_8(%arg0: i32) -> (i32, i32) {
    %c0_i32 = arith.constant 0 : i32
    %c0_i32_0 = arith.constant 0 : i32
    %c0_i32_1 = arith.constant 0 : i32
    return %c0_i32, %c0_i32_0 : i32, i32
  }
  func.func @transform_9(%arg0: i32) -> (i32, i32) {
    %c0_i32 = arith.constant 0 : i32
    %c0_i32_0 = arith.constant 0 : i32
    %c0_i32_1 = arith.constant 0 : i32
    return %c0_i32, %c0_i32_0 : i32, i32
  }
  func.func @transform_10(%arg0: i32) -> (i32, i32) {
    %c0_i32 = arith.constant 0 : i32
    %c0_i32_0 = arith.constant 0 : i32
    %c0_i32_1 = arith.constant 0 : i32
    return %c0_i32, %c0_i32_0 : i32, i32
  }
  func.func @transform_11(%arg0: i32) -> (i32, i32, i32) {
    %c0_i32 = arith.constant 0 : i32
    %c0_i32_0 = arith.constant 0 : i32
    %c0_i32_1 = arith.constant 0 : i32
    return %arg0, %c0_i32, %c0_i32_0 : i32, i32, i32
  }
  func.func @transform_12(%arg0: i32) -> (i32, i32, i32) {
    %c0_i32 = arith.constant 0 : i32
    %c0_i32_0 = arith.constant 0 : i32
    %c0_i32_1 = arith.constant 0 : i32
    return %arg0, %c0_i32, %c0_i32_0 : i32, i32, i32
  }
  func.func @transform_13(%arg0: i32) -> (i32, i32, i32) {
    %c0_i32 = arith.constant 0 : i32
    %c0_i32_0 = arith.constant 0 : i32
    %c0_i32_1 = arith.constant 0 : i32
    return %arg0, %c0_i32, %c0_i32_0 : i32, i32, i32
  }
}

</mosaic_0001>

<llo_original>
// kernel: cnn_5_large_forward.1
$region0: #{cnn_5_large_forward.1}
  #allocation0 [shape = 'u32[]', space=smem, size = 0x4, offset = 0x4, fixed_abs, tag = 'smem constant byte address 0x4 - core index']
  #allocation1 [shape = 'u32[144,128]{1,0:T(1,128)}', space=vmem, size = 0x12000, scoped, tag = 'internal scratch']
  #allocation2 [shape = 'f32[28,448]{1,0:T(8,128)}', space=vmem, size = 0x10000, scoped, tag = 'scratch operand']
  #allocation3 [shape = 'f32[14,448]{1,0:T(8,128)}', space=vmem, size = 0x8000, scoped, tag = 'scratch operand']
  #allocation4 [shape = 'f32[14,224]{1,0:T(8,128)}', space=vmem, size = 0x4000, scoped, tag = 'scratch operand']
  #allocation5 [shape = 'f32[10,320]{1,0:T(8,128)}', space=vmem, size = 0x6000, scoped, tag = 'scratch operand']
  #allocation6 [shape = 'f32[5,320]{1,0:T(8,128)}', space=vmem, size = 0x3000, scoped, tag = 'scratch operand']
  #allocation7 [shape = 'f32[5,160]{1,0:T(8,128)}', space=vmem, size = 0x2000, scoped, tag = 'scratch operand']
  %s0 = inlined_call_operand.vmem [shape: f32[2,32,96], index: 0, kind: input, shape index: {}]
  %s1 = inlined_call_operand.hbm [shape: bf16[5,96,448], index: 1, kind: input, shape index: {}]
  %s2 = inlined_call_operand.vmem [shape: f32[1,448], index: 2, kind: input, shape index: {}]
  %s3 = inlined_call_operand.hbm [shape: bf16[5,224,320], index: 3, kind: input, shape index: {}]
  %s4 = inlined_call_operand.vmem [shape: f32[1,320], index: 4, kind: input, shape index: {}]
  %s5 = inlined_call_operand.hbm [shape: bf16[5,160,512], index: 5, kind: input, shape index: {}]
  %s6 = inlined_call_operand.vmem [shape: f32[1,512], index: 6, kind: input, shape index: {}]
  %s7 = inlined_call_operand.hbm [shape: bf16[512,512], index: 7, kind: input, shape index: {}]
  %s8 = inlined_call_operand.vmem [shape: f32[1,512], index: 8, kind: input, shape index: {}]
  %s9 = inlined_call_operand.vmem [shape: bf16[512,128], index: 9, kind: input, shape index: {}]
  %s10 = inlined_call_operand.vmem [shape: f32[1,128], index: 10, kind: input, shape index: {}]
  %s11 = inlined_call_operand.vmem [shape: f32[2,1,512], index: 11, kind: input, shape index: {}]
  %s12 = inlined_call_operand.hbm [shape: f32[2,1,128], index: 12, kind: output, shape index: {0}]
  %s13 = inlined_call_operand.vmem [shape: f32[2,1,512], index: 13, kind: output, shape index: {1}]
  %14 = xla_tuple %s12, %s13
  %s15 = sld [smem:[#allocation0]]
  $region105: #{cnn_5_large_forward.1} parent=0
    _
  %s17 = ssub.s32 1, %s15
  %s18 = scalar_select 0, %s17, %s15
  $region1: #{cnn_5_large_forward.1} parent=0
    #allocation8 [shape = 'u8[491520]{0}', space=vmem, size = 0x78000, scoped, tag = 'input window, operand 1, single buffered']
    #allocation9 [shape = 's32[2]{0}', space=sflag, size = 0x8, scoped, tag = 'scoped memory for cnn_5_large_forward.1']
    #allocation10 [shape = 's32[2]{0}', space=sflag, size = 0x8, scoped, tag = 'scoped memory for cnn_5_large_forward.1']
    #allocation11 [shape = 'u8[860160]{0}', space=vmem, size = 0xd2000, scoped, tag = 'input window, operand 3, single buffered']
    #allocation12 [shape = 's32[1]{0}', space=sflag, size = 0x4, scoped, tag = 'scoped memory for cnn_5_large_forward.1']
    #allocation13 [shape = 'u8[819200]{0}', space=vmem, size = 0xc8000, scoped, tag = 'input window, operand 5, single buffered']
    #allocation14 [shape = 'u8[524288]{0}', space=vmem, size = 0x80000, scoped, tag = 'input window, operand 7, single buffered']
    #allocation15 [shape = 's32[1]{0}', space=sflag, size = 0x4, scoped, tag = 'scoped memory for cnn_5_large_forward.1']
    #allocation16 [shape = 'u8[1024]{0}', space=vmem, size = 0x400, scoped, tag = 'output window, operand 0']
    %19 = vsyncpa [#allocation9], 0
    %20 = vsyncpa [#allocation12], 0
    %21 = vsyncpa [#allocation15], 0
    %22 = vsyncpa [#allocation10], 0
    %s23 = scalar_lea.sflag [#allocation10], 1
    %24 = vsyncpa %s23, 0
    loop: start=0, step=1, limit=4
    $region2: #{cnn_5_large_forward.1} parent=1 // loop_pre_header
      _
    $region3: #{cnn_5_large_forward.1} parent=1 // loop_header
      %s26 = sphi 0, %s30
      %p27 = scmp.ge.s32.totalorder %s26, 4
      %s36 = sphi 0, %s38
      %s39 = sphi 0, %s36
      %s40 = sphi 0, %s39
      %s56 = sphi 0, %s40
      %s60 = sphi 0, %s60
      %s62 = sphi 0, %s60
      %s63 = sphi 0, %s62
      %s77 = sphi 0, %s63
      %s81 = sphi 0, %s81
      %s83 = sphi 0, %s81
      %s84 = sphi 0, %s83
      %s98 = sphi 0, %s84
      %s102 = sphi 0, %s102
      %s104 = sphi 0, %s102
      %s105 = sphi 0, %s104
      %s119 = sphi 0, %s105
      %s123 = sphi 0, %s123
      %s125 = sphi 0, %s123
      %s126 = sphi 0, %s125
      %s140 = sphi 0, %s126
      %s144 = sphi 0, %s144
      %s146 = sphi 0, %s144
      %s147 = sphi 0, %s146
      %s161 = sphi 0, %s147
      %s165 = sphi 0, %s165
      %s167 = sphi 0, %s165
      %s168 = sphi 0, %s167
      %s182 = sphi 0, %s168
      %s186 = sphi 0, %s186
      %s188 = sphi 0, %s186
      %s189 = sphi 0, %s188
      %s203 = sphi 0, %s189
      %s207 = sphi 0, %s207
      %s209 = sphi 0, %s207
      %s210 = sphi 0, %s209
      %s224 = sphi 0, %s210
      %s228 = sphi 0, %s228
      %s230 = sphi 0, %s228
      %s231 = sphi 0, %s230
      %s245 = sphi 0, %s231
      %s249 = sphi 0, %s249
      %s251 = sphi 0, %s249
      %s252 = sphi 0, %s251
      %s266 = sphi 0, %s252
      %s272 = sphi 0, %s274
      %s275 = sphi 0, %s272
      %s276 = sphi 0, %s275
      %s292 = sphi 0, %s276
      %s298 = sphi 0, %s300
      %s301 = sphi 0, %s298
      %s302 = sphi 0, %s301
      %s318 = sphi 0, %s302
      %s324 = sphi 0, %s326
      %s327 = sphi 0, %s324
      %s328 = sphi 0, %s327
      %s344 = sphi 0, %s328
    $region4: #{cnn_5_large_forward.1} parent=1 // loop_header_branch
      %29 = sbr.rel (%p27) target = $region8
    $region5: #{cnn_5_large_forward.1} parent=1 // loop_body
      %s31 = ssub.s32 %s26, 1
      %s32 = ssub.s32 %s26, 2
      %s33 = sadd.s32 %s26, 1
      %s34 = ssub.s32 %s26, %s33
      %p35 = scmp.eq.s32.totalorder %s34, 0
      %s37 = sadd.s32 %s36, 1
      %s38 = scalar_select %p35, %s36, %s37
      %p41 = pneg %p35
      %p42 = scmp.eq.s32.totalorder %s26, 1
      %p43 = por %p41, %p42
      %p44 = scmp.ne.s32.totalorder %s36, %s39
      %p45 = scmp.eq.s32.totalorder %s26, 0
      %p46 = por %p44, %p45
      %p47 = scmp.ne.s32.totalorder %s36, %s39
      %p48 = scmp.eq.s32.totalorder %s31, 1
      %p49 = por %p47, %p48
      %p50 = scmp.ne.s32.totalorder %s39, %s40
      %p51 = scmp.eq.s32.totalorder %s31, 0
      %p52 = por %p50, %p51
      %p53 = scmp.ne.s32.totalorder %s39, %s40
      %p54 = scmp.eq.s32.totalorder %s32, 1
      %p55 = por %p53, %p54
      %p57 = scmp.ne.s32.totalorder %s40, %s56
      %p58 = scmp.eq.s32.totalorder %s32, 0
      %p59 = por %p57, %p58
      %s61 = sadd.s32 %s60, 1
      %p64 = scmp.eq.s32.totalorder %s26, 1
      %p65 = scmp.ne.s32.totalorder %s60, %s62
      %p66 = scmp.eq.s32.totalorder %s26, 0
      %p67 = por %p65, %p66
      %p68 = scmp.ne.s32.totalorder %s60, %s62
      %p69 = scmp.eq.s32.totalorder %s31, 1
      %p70 = por %p68, %p69
      %p71 = scmp.ne.s32.totalorder %s62, %s63
      %p72 = scmp.eq.s32.totalorder %s31, 0
      %p73 = por %p71, %p72
      %p74 = scmp.ne.s32.totalorder %s62, %s63
      %p75 = scmp.eq.s32.totalorder %s32, 1
      %p76 = por %p74, %p75
      %p78 = scmp.ne.s32.totalorder %s63, %s77
      %p79 = scmp.eq.s32.totalorder %s32, 0
      %p80 = por %p78, %p79
      %s82 = sadd.s32 %s81, 1
      %p85 = scmp.eq.s32.totalorder %s26, 1
      %p86 = scmp.ne.s32.totalorder %s81, %s83
      %p87 = scmp.eq.s32.totalorder %s26, 0
      %p88 = por %p86, %p87
      %p89 = scmp.ne.s32.totalorder %s81, %s83
      %p90 = scmp.eq.s32.totalorder %s31, 1
      %p91 = por %p89, %p90
      %p92 = scmp.ne.s32.totalorder %s83, %s84
      %p93 = scmp.eq.s32.totalorder %s31, 0
      %p94 = por %p92, %p93
      %p95 = scmp.ne.s32.totalorder %s83, %s84
      %p96 = scmp.eq.s32.totalorder %s32, 1
      %p97 = por %p95, %p96
      %p99 = scmp.ne.s32.totalorder %s84, %s98
      %p100 = scmp.eq.s32.totalorder %s32, 0
      %p101 = por %p99, %p100
      %s103 = sadd.s32 %s102, 1
      %p106 = scmp.eq.s32.totalorder %s26, 1
      %p107 = scmp.ne.s32.totalorder %s102, %s104
      %p108 = scmp.eq.s32.totalorder %s26, 0
      %p109 = por %p107, %p108
      %p110 = scmp.ne.s32.totalorder %s102, %s104
      %p111 = scmp.eq.s32.totalorder %s31, 1
      %p112 = por %p110, %p111
      %p113 = scmp.ne.s32.totalorder %s104, %s105
      %p114 = scmp.eq.s32.totalorder %s31, 0
      %p115 = por %p113, %p114
      %p116 = scmp.ne.s32.totalorder %s104, %s105
      %p117 = scmp.eq.s32.totalorder %s32, 1
      %p118 = por %p116, %p117
      %p120 = scmp.ne.s32.totalorder %s105, %s119
      %p121 = scmp.eq.s32.totalorder %s32, 0
      %p122 = por %p120, %p121
      %s124 = sadd.s32 %s123, 1
      %p127 = scmp.eq.s32.totalorder %s26, 1
      %p128 = scmp.ne.s32.totalorder %s123, %s125
      %p129 = scmp.eq.s32.totalorder %s26, 0
      %p130 = por %p128, %p129
      %p131 = scmp.ne.s32.totalorder %s123, %s125
      %p132 = scmp.eq.s32.totalorder %s31, 1
      %p133 = por %p131, %p132
      %p134 = scmp.ne.s32.totalorder %s125, %s126
      %p135 = scmp.eq.s32.totalorder %s31, 0
      %p136 = por %p134, %p135
      %p137 = scmp.ne.s32.totalorder %s125, %s126
      %p138 = scmp.eq.s32.totalorder %s32, 1
      %p139 = por %p137, %p138
      %p141 = scmp.ne.s32.totalorder %s126, %s140
      %p142 = scmp.eq.s32.totalorder %s32, 0
      %p143 = por %p141, %p142
      %s145 = sadd.s32 %s144, 1
      %p148 = scmp.eq.s32.totalorder %s26, 1
      %p149 = scmp.ne.s32.totalorder %s144, %s146
      %p150 = scmp.eq.s32.totalorder %s26, 0
      %p151 = por %p149, %p150
      %p152 = scmp.ne.s32.totalorder %s144, %s146
      %p153 = scmp.eq.s32.totalorder %s31, 1
      %p154 = por %p152, %p153
      %p155 = scmp.ne.s32.totalorder %s146, %s147
      %p156 = scmp.eq.s32.totalorder %s31, 0
      %p157 = por %p155, %p156
      %p158 = scmp.ne.s32.totalorder %s146, %s147
      %p159 = scmp.eq.s32.totalorder %s32, 1
      %p160 = por %p158, %p159
      %p162 = scmp.ne.s32.totalorder %s147, %s161
      %p163 = scmp.eq.s32.totalorder %s32, 0
      %p164 = por %p162, %p163
      %s166 = sadd.s32 %s165, 1
      %p169 = scmp.eq.s32.totalorder %s26, 1
      %p170 = scmp.ne.s32.totalorder %s165, %s167
      %p171 = scmp.eq.s32.totalorder %s26, 0
      %p172 = por %p170, %p171
      %p173 = scmp.ne.s32.totalorder %s165, %s167
      %p174 = scmp.eq.s32.totalorder %s31, 1
      %p175 = por %p173, %p174
      %p176 = scmp.ne.s32.totalorder %s167, %s168
      %p177 = scmp.eq.s32.totalorder %s31, 0
      %p178 = por %p176, %p177
      %p179 = scmp.ne.s32.totalorder %s167, %s168
      %p180 = scmp.eq.s32.totalorder %s32, 1
      %p181 = por %p179, %p180
      %p183 = scmp.ne.s32.totalorder %s168, %s182
      %p184 = scmp.eq.s32.totalorder %s32, 0
      %p185 = por %p183, %p184
      %s187 = sadd.s32 %s186, 1
      %p190 = scmp.eq.s32.totalorder %s26, 1
      %p191 = scmp.ne.s32.totalorder %s186, %s188
      %p192 = scmp.eq.s32.totalorder %s26, 0
      %p193 = por %p191, %p192
      %p194 = scmp.ne.s32.totalorder %s186, %s188
      %p195 = scmp.eq.s32.totalorder %s31, 1
      %p196 = por %p194, %p195
      %p197 = scmp.ne.s32.totalorder %s188, %s189
      %p198 = scmp.eq.s32.totalorder %s31, 0
      %p199 = por %p197, %p198
      %p200 = scmp.ne.s32.totalorder %s188, %s189
      %p201 = scmp.eq.s32.totalorder %s32, 1
      %p202 = por %p200, %p201
      %p204 = scmp.ne.s32.totalorder %s189, %s203
      %p205 = scmp.eq.s32.totalorder %s32, 0
      %p206 = por %p204, %p205
      %s208 = sadd.s32 %s207, 1
      %p211 = scmp.eq.s32.totalorder %s26, 1
      %p212 = scmp.ne.s32.totalorder %s207, %s209
      %p213 = scmp.eq.s32.totalorder %s26, 0
      %p214 = por %p212, %p213
      %p215 = scmp.ne.s32.totalorder %s207, %s209
      %p216 = scmp.eq.s32.totalorder %s31, 1
      %p217 = por %p215, %p216
      %p218 = scmp.ne.s32.totalorder %s209, %s210
      %p219 = scmp.eq.s32.totalorder %s31, 0
      %p220 = por %p218, %p219
      %p221 = scmp.ne.s32.totalorder %s209, %s210
      %p222 = scmp.eq.s32.totalorder %s32, 1
      %p223 = por %p221, %p222
      %p225 = scmp.ne.s32.totalorder %s210, %s224
      %p226 = scmp.eq.s32.totalorder %s32, 0
      %p227 = por %p225, %p226
      %s229 = sadd.s32 %s228, 1
      %p232 = scmp.eq.s32.totalorder %s26, 1
      %p233 = scmp.ne.s32.totalorder %s228, %s230
      %p234 = scmp.eq.s32.totalorder %s26, 0
      %p235 = por %p233, %p234
      %p236 = scmp.ne.s32.totalorder %s228, %s230
      %p237 = scmp.eq.s32.totalorder %s31, 1
      %p238 = por %p236, %p237
      %p239 = scmp.ne.s32.totalorder %s230, %s231
      %p240 = scmp.eq.s32.totalorder %s31, 0
      %p241 = por %p239, %p240
      %p242 = scmp.ne.s32.totalorder %s230, %s231
      %p243 = scmp.eq.s32.totalorder %s32, 1
      %p244 = por %p242, %p243
      %p246 = scmp.ne.s32.totalorder %s231, %s245
      %p247 = scmp.eq.s32.totalorder %s32, 0
      %p248 = por %p246, %p247
      %s250 = sadd.s32 %s249, 1
      %p253 = scmp.eq.s32.totalorder %s26, 1
      %p254 = scmp.ne.s32.totalorder %s249, %s251
      %p255 = scmp.eq.s32.totalorder %s26, 0
      %p256 = por %p254, %p255
      %p257 = scmp.ne.s32.totalorder %s249, %s251
      %p258 = scmp.eq.s32.totalorder %s31, 1
      %p259 = por %p257, %p258
      %p260 = scmp.ne.s32.totalorder %s251, %s252
      %p261 = scmp.eq.s32.totalorder %s31, 0
      %p262 = por %p260, %p261
      %p263 = scmp.ne.s32.totalorder %s251, %s252
      %p264 = scmp.eq.s32.totalorder %s32, 1
      %p265 = por %p263, %p264
      %p267 = scmp.ne.s32.totalorder %s252, %s266
      %p268 = scmp.eq.s32.totalorder %s32, 0
      %p269 = por %p267, %p268
      %s270 = ssub.s32 %s26, %s33
      %p271 = scmp.eq.s32.totalorder %s270, 0
      %s273 = sadd.s32 %s272, 1
      %s274 = scalar_select %p271, %s272, %s273
      %p277 = pneg %p271
      %p278 = scmp.eq.s32.totalorder %s26, 1
      %p279 = por %p277, %p278
      %p280 = scmp.ne.s32.totalorder %s272, %s275
      %p281 = scmp.eq.s32.totalorder %s26, 0
      %p282 = por %p280, %p281
      %p283 = scmp.ne.s32.totalorder %s272, %s275
      %p284 = scmp.eq.s32.totalorder %s31, 1
      %p285 = por %p283, %p284
      %p286 = scmp.ne.s32.totalorder %s275, %s276
      %p287 = scmp.eq.s32.totalorder %s31, 0
      %p288 = por %p286, %p287
      %p289 = scmp.ne.s32.totalorder %s275, %s276
      %p290 = scmp.eq.s32.totalorder %s32, 1
      %p291 = por %p289, %p290
      %p293 = scmp.ne.s32.totalorder %s276, %s292
      %p294 = scmp.eq.s32.totalorder %s32, 0
      %p295 = por %p293, %p294
      %s296 = ssub.s32 %s26, %s33
      %p297 = scmp.eq.s32.totalorder %s296, 0
      %s299 = sadd.s32 %s298, 1
      %s300 = scalar_select %p297, %s298, %s299
      %p303 = pneg %p297
      %p304 = scmp.eq.s32.totalorder %s26, 1
      %p305 = por %p303, %p304
      %p306 = scmp.ne.s32.totalorder %s298, %s301
      %p307 = scmp.eq.s32.totalorder %s26, 0
      %p308 = por %p306, %p307
      %p309 = scmp.ne.s32.totalorder %s298, %s301
      %p310 = scmp.eq.s32.totalorder %s31, 1
      %p311 = por %p309, %p310
      %p312 = scmp.ne.s32.totalorder %s301, %s302
      %p313 = scmp.eq.s32.totalorder %s31, 0
      %p314 = por %p312, %p313
      %p315 = scmp.ne.s32.totalorder %s301, %s302
      %p316 = scmp.eq.s32.totalorder %s32, 1
      %p317 = por %p315, %p316
      %p319 = scmp.ne.s32.totalorder %s302, %s318
      %p320 = scmp.eq.s32.totalorder %s32, 0
      %p321 = por %p319, %p320
      %s322 = ssub.s32 %s26, %s33
      %p323 = scmp.eq.s32.totalorder %s322, 0
      %s325 = sadd.s32 %s324, 1
      %s326 = scalar_select %p323, %s324, %s325
      %p329 = pneg %p323
      %p330 = scmp.eq.s32.totalorder %s26, 1
      %p331 = por %p329, %p330
      %p332 = scmp.ne.s32.totalorder %s324, %s327
      %p333 = scmp.eq.s32.totalorder %s26, 0
      %p334 = por %p332, %p333
      %p335 = scmp.ne.s32.totalorder %s324, %s327
      %p336 = scmp.eq.s32.totalorder %s31, 1
      %p337 = por %p335, %p336
      %p338 = scmp.ne.s32.totalorder %s327, %s328
      %p339 = scmp.eq.s32.totalorder %s31, 0
      %p340 = por %p338, %p339
      %p341 = scmp.ne.s32.totalorder %s327, %s328
      %p342 = scmp.eq.s32.totalorder %s32, 1
      %p343 = por %p341, %p342
      %p345 = scmp.ne.s32.totalorder %s328, %s344
      %p346 = scmp.eq.s32.totalorder %s32, 0
      %p347 = por %p345, %p346
      %p348 = scmp.le.s32.totalorder 1, %s26
      %p349 = scmp.lt.s32.totalorder %s26, 3
      %p350 = pnand %p348, %p349
      %p351 = pneg %p350
      // Predicated region
      $region9: #{cnn_5_large_forward.1} parent=5 // pred_check
        _
      $region10: #{cnn_5_large_forward.1} parent=5 // pred_check_branch
        %353 = sbr.rel (%p350) target = $region12
      $region11: #{cnn_5_large_forward.1} parent=5 // pred_region
        %s354 = ssub.s32 %s26, 1
        // Predicated region
        $region13: #{cnn_5_large_forward.1} parent=11 // pred_check
          %p355 = pneg %p73
        $region14: #{cnn_5_large_forward.1} parent=11 // pred_check_branch
          %357 = sbr.rel (%p355) target = $region16
        $region15: #{cnn_5_large_forward.1} parent=11 // pred_region
          %s359 = ssub.s32 15360, 15360
          %360 = vsyncadd [#allocation9], %s359
          %s361 = sshll.u32 [#allocation8], 4
          %s362 = int_to_ptr.vmem [resolvable:$true] %s361
          %367 = dma.hbm_to_vmem [thread:$0]  %s1, 15360, %s362, [#allocation9], 256, 256, 16
        $region16: #{cnn_5_large_forward.1} parent=11 // pred_fallthru
          _
        // Predicated region
        $region17: #{cnn_5_large_forward.1} parent=11 // pred_check
          %p368 = pneg %p94
        $region18: #{cnn_5_large_forward.1} parent=11 // pred_check_branch
          %370 = sbr.rel (%p368) target = $region20
        $region19: #{cnn_5_large_forward.1} parent=11 // pred_region
          _
        $region20: #{cnn_5_large_forward.1} parent=11 // pred_fallthru
          _
        // Predicated region
        $region21: #{cnn_5_large_forward.1} parent=11 // pred_check
          %p371 = pneg %p115
        $region22: #{cnn_5_large_forward.1} parent=11 // pred_check_branch
          %373 = sbr.rel (%p371) target = $region24
        $region23: #{cnn_5_large_forward.1} parent=11 // pred_region
          %s375 = ssub.s32 26880, 26880
          %376 = vsyncadd [#allocation12], %s375
          %s377 = sshll.u32 [#allocation11], 4
          %s378 = int_to_ptr.vmem [resolvable:$true] %s377
          %383 = dma.hbm_to_vmem [thread:$0]  %s3, 26880, %s378, [#allocation12], 192, 192, 12
        $region24: #{cnn_5_large_forward.1} parent=11 // pred_fallthru
          _
        // Predicated region
        $region25: #{cnn_5_large_forward.1} parent=11 // pred_check
          %p384 = pneg %p136
        $region26: #{cnn_5_large_forward.1} parent=11 // pred_check_branch
          %386 = sbr.rel (%p384) target = $region28
        $region27: #{cnn_5_large_forward.1} parent=11 // pred_region
          _
        $region28: #{cnn_5_large_forward.1} parent=11 // pred_fallthru
          _
        // Predicated region
        $region29: #{cnn_5_large_forward.1} parent=11 // pred_check
          %p387 = pneg %p157
        $region30: #{cnn_5_large_forward.1} parent=11 // pred_check_branch
          %389 = sbr.rel (%p387) target = $region32
        $region31: #{cnn_5_large_forward.1} parent=11 // pred_region
          %s391 = ssub.s32 25600, 25600
          %392 = vsyncadd [#allocation12], %s391
          %s393 = sshll.u32 [#allocation13], 4
          %s394 = int_to_ptr.vmem [resolvable:$true] %s393
          %399 = dma.hbm_to_vmem [thread:$0]  %s5, 25600, %s394, [#allocation12], 256, 256, 16
        $region32: #{cnn_5_large_forward.1} parent=11 // pred_fallthru
          _
        // Predicated region
        $region33: #{cnn_5_large_forward.1} parent=11 // pred_check
          %p400 = pneg %p178
        $region34: #{cnn_5_large_forward.1} parent=11 // pred_check_branch
          %402 = sbr.rel (%p400) target = $region36
        $region35: #{cnn_5_large_forward.1} parent=11 // pred_region
          _
        $region36: #{cnn_5_large_forward.1} parent=11 // pred_fallthru
          _
        // Predicated region
        $region37: #{cnn_5_large_forward.1} parent=11 // pred_check
          %p403 = pneg %p199
        $region38: #{cnn_5_large_forward.1} parent=11 // pred_check_branch
          %405 = sbr.rel (%p403) target = $region40
        $region39: #{cnn_5_large_forward.1} parent=11 // pred_region
          %s407 = ssub.s32 16384, 16384
          %408 = vsyncadd [#allocation15], %s407
          %s409 = sshll.u32 [#allocation14], 4
          %s410 = int_to_ptr.vmem [resolvable:$true] %s409
          %415 = dma.hbm_to_vmem [thread:$0]  %s7, 16384, %s410, [#allocation15], 256, 256, 16
        $region40: #{cnn_5_large_forward.1} parent=11 // pred_fallthru
          _
        // Predicated region
        $region41: #{cnn_5_large_forward.1} parent=11 // pred_check
          %p416 = pneg %p220
        $region42: #{cnn_5_large_forward.1} parent=11 // pred_check_branch
          %418 = sbr.rel (%p416) target = $region44
        $region43: #{cnn_5_large_forward.1} parent=11 // pred_region
          _
        $region44: #{cnn_5_large_forward.1} parent=11 // pred_fallthru
          _
        // Predicated region
        $region45: #{cnn_5_large_forward.1} parent=11 // pred_check
          %p419 = pneg %p241
        $region46: #{cnn_5_large_forward.1} parent=11 // pred_check_branch
          %421 = sbr.rel (%p419) target = $region48
        $region47: #{cnn_5_large_forward.1} parent=11 // pred_region
          _
        $region48: #{cnn_5_large_forward.1} parent=11 // pred_fallthru
          _
        // Predicated region
        $region49: #{cnn_5_large_forward.1} parent=11 // pred_check
          %p422 = pneg %p262
        $region50: #{cnn_5_large_forward.1} parent=11 // pred_check_branch
          %424 = sbr.rel (%p422) target = $region52
        $region51: #{cnn_5_large_forward.1} parent=11 // pred_region
          _
        $region52: #{cnn_5_large_forward.1} parent=11 // pred_fallthru
          _
      $region12: #{cnn_5_large_forward.1} parent=5 // pred_fallthru
        _
      %p425 = scmp.lt.s32.totalorder %s26, 2
      // Predicated region
      $region53: #{cnn_5_large_forward.1} parent=5 // pred_check
        %p426 = pneg %p425
      $region54: #{cnn_5_large_forward.1} parent=5 // pred_check_branch
        %428 = sbr.rel (%p426) target = $region56
      $region55: #{cnn_5_large_forward.1} parent=5 // pred_region
        // Predicated region
        $region57: #{cnn_5_large_forward.1} parent=55 // pred_check
          %p429 = pneg %p46
        $region58: #{cnn_5_large_forward.1} parent=55 // pred_check_branch
          %431 = sbr.rel (%p429) target = $region60
        $region59: #{cnn_5_large_forward.1} parent=55 // pred_region
          %p432 = scmp.lt.s32.totalorder %s26, 1
          %s433 = scalar_select %p432, %s26, 1
          %s434 = smul.addr %s433, 4
          %s435 = smul.addr %s434, 8
          %s436 = scalar_lea.vmem %s0, %s435
        $region60: #{cnn_5_large_forward.1} parent=55 // pred_fallthru
          _
        // Predicated region
        $region61: #{cnn_5_large_forward.1} parent=55 // pred_check
          %p437 = pneg %p282
        $region62: #{cnn_5_large_forward.1} parent=55 // pred_check_branch
          %439 = sbr.rel (%p437) target = $region64
        $region63: #{cnn_5_large_forward.1} parent=55 // pred_region
          %p440 = scmp.lt.s32.totalorder %s26, 1
          %s441 = scalar_select %p440, %s26, 1
          %s442 = smul.addr %s441, 4
          %s443 = scalar_lea.vmem %s11, %s442
        $region64: #{cnn_5_large_forward.1} parent=55 // pred_fallthru
          _
      $region56: #{cnn_5_large_forward.1} parent=5 // pred_fallthru
        _
      %p444 = scmp.le.s32.totalorder 1, %s26
      %p445 = scmp.lt.s32.totalorder %s26, 3
      %p446 = pnand %p444, %p445
      %p447 = pneg %p446
      // Predicated region
      $region65: #{cnn_5_large_forward.1} parent=5 // pred_check
        _
      $region66: #{cnn_5_large_forward.1} parent=5 // pred_check_branch
        %449 = sbr.rel (%p446) target = $region68
      $region67: #{cnn_5_large_forward.1} parent=5 // pred_region
        %s450 = ssub.s32 %s26, 1
        // Predicated region
        $region69: #{cnn_5_large_forward.1} parent=67 // pred_check
          %p451 = pneg %p73
        $region70: #{cnn_5_large_forward.1} parent=67 // pred_check_branch
          %453 = sbr.rel (%p451) target = $region72
        $region71: #{cnn_5_large_forward.1} parent=67 // pred_region
          %454 = dma.done [#allocation9], 15360
        $region72: #{cnn_5_large_forward.1} parent=67 // pred_fallthru
          _
        // Predicated region
        $region73: #{cnn_5_large_forward.1} parent=67 // pred_check
          %p455 = pneg %p115
        $region74: #{cnn_5_large_forward.1} parent=67 // pred_check_branch
          %457 = sbr.rel (%p455) target = $region76
        $region75: #{cnn_5_large_forward.1} parent=67 // pred_region
          %458 = dma.done [#allocation12], 26880
        $region76: #{cnn_5_large_forward.1} parent=67 // pred_fallthru
          _
        // Predicated region
        $region77: #{cnn_5_large_forward.1} parent=67 // pred_check
          %p459 = pneg %p157
        $region78: #{cnn_5_large_forward.1} parent=67 // pred_check_branch
          %461 = sbr.rel (%p459) target = $region80
        $region79: #{cnn_5_large_forward.1} parent=67 // pred_region
          %462 = dma.done [#allocation12], 25600
        $region80: #{cnn_5_large_forward.1} parent=67 // pred_fallthru
          _
        // Predicated region
        $region81: #{cnn_5_large_forward.1} parent=67 // pred_check
          %p463 = pneg %p199
        $region82: #{cnn_5_large_forward.1} parent=67 // pred_check_branch
          %465 = sbr.rel (%p463) target = $region84
        $region83: #{cnn_5_large_forward.1} parent=67 // pred_region
          %466 = dma.done [#allocation15], 16384
        $region84: #{cnn_5_large_forward.1} parent=67 // pred_fallthru
          _
        %p467 = scmp.lt.s32.totalorder %s31, 1
        %s468 = scalar_select %p467, %s31, 1
        %s469 = smul.addr %s468, 4
        %s470 = smul.addr %s469, 8
        %s471 = scalar_lea.vmem %s0, %s470
        %p472 = pneg %p52
        %p473 = pneg %p49
        %p474 = pneg %p73
        %p475 = pneg %p70
        %p476 = pneg %p94
        %p477 = pneg %p91
        %p478 = pneg %p115
        %p479 = pneg %p112
        %p480 = pneg %p136
        %p481 = pneg %p133
        %p482 = pneg %p157
        %p483 = pneg %p154
        %p484 = pneg %p178
        %p485 = pneg %p175
        %p486 = pneg %p199
        %p487 = pneg %p196
        %p488 = pneg %p220
        %p489 = pneg %p217
        %p490 = pneg %p241
        %p491 = pneg %p238
        %p492 = pneg %p262
        %p493 = pneg %p259
        %p494 = scmp.lt.s32.totalorder %s31, 1
        %s495 = scalar_select %p494, %s31, 1
        %s496 = smul.addr %s495, 4
        %s497 = scalar_lea.vmem %s11, %s496
        %p498 = pneg %p288
        %p499 = pneg %p285
        %p500 = pneg %p314
        %p501 = pneg %p311
        %s502 = sand.u32 %s301, 1
        %s503 = scalar_lea.sflag [#allocation10], %s502
        %s504 = sand.u32 %s301, 1
        %s505 = scalar_lea.vmem [#allocation16], %s504
        %p506 = pneg %p340
        %p507 = pneg %p337
        %p508 = scmp.lt.s32.totalorder %s31, 1
        %s509 = scalar_select %p508, %s31, 1
        %s510 = smul.addr %s509, 4
        %s511 = scalar_lea.vmem %s13, %s510
        %p512 = scmp.lt.s32.totalorder %s31, 1
        %s513 = scalar_select %p512, %s31, 1
        %s514 = smul.addr %s513, 4
        %s515 = smul.addr %s514, 8
        %s516 = scalar_lea.vmem %s0, %s515
        %p517 = scmp.lt.s32.totalorder %s31, 1
        %s518 = scalar_select %p517, %s31, 1
        %s519 = smul.addr %s518, 4
        %s520 = scalar_lea.vmem %s11, %s519
        %p521 = scmp.lt.s32.totalorder %s31, 1
        %s522 = scalar_select %p521, %s31, 1
        %s523 = smul.addr %s522, 4
        %s524 = scalar_lea.vmem %s13, %s523
        %v526 = vld [vmem:[%s516] sm:$0xff]
        %v527 = vld [vmem:[%s516 + $0x8] sm:$0xff]
        %v528 = vld [vmem:[%s516 + $0x10] sm:$0xff]
        %v529 = vld [vmem:[%s516 + $0x18] sm:$0xff]
        %v530 = vpack.c.bf16 %v527, %v526
        %v531 = vpack.c.bf16 %v529, %v528
        %v532 = vld [vmem:[#allocation8] sm:$0xff]
        %v533 = vld [vmem:[#allocation8 + $0x8] sm:$0xff]
        %v534 = vld [vmem:[#allocation8 + $0x10] sm:$0xff]
        %v535 = vld [vmem:[#allocation8 + $0x18] sm:$0xff]
        %v536 = vld [vmem:[#allocation8 + $0x20] sm:$0xff]
        %v537 = vld [vmem:[#allocation8 + $0x28] sm:$0xff]
        %v538 = vld [vmem:[#allocation8 + $0x30] sm:$0xff]
        %v539 = vld [vmem:[#allocation8 + $0x38] sm:$0xff]
        %v540 = vld [vmem:[#allocation8 + $0x40] sm:$0xff]
        %v541 = vld [vmem:[#allocation8 + $0x48] sm:$0xff]
        %v542 = vld [vmem:[#allocation8 + $0x50] sm:$0xff]
        %v543 = vld [vmem:[#allocation8 + $0x58] sm:$0xff]
        %v544 = vld [vmem:[#allocation8 + $0x60] sm:$0xff]
        %v545 = vld [vmem:[#allocation8 + $0x68] sm:$0xff]
        %v546 = vld [vmem:[#allocation8 + $0x70] sm:$0xff]
        %v547 = vld [vmem:[#allocation8 + $0x78] sm:$0xff]
        %v548 = vld [vmem:[#allocation8 + $0x80] sm:$0xff]
        %v549 = vld [vmem:[#allocation8 + $0x88] sm:$0xff]
        %v550 = vld [vmem:[#allocation8 + $0x90] sm:$0xff]
        %v551 = vld [vmem:[#allocation8 + $0x98] sm:$0xff]
        %v552 = vld [vmem:[#allocation8 + $0xa0] sm:$0xff]
        %v553 = vld [vmem:[#allocation8 + $0xa8] sm:$0xff]
        %v554 = vld [vmem:[#allocation8 + $0xb0] sm:$0xff]
        %v555 = vld [vmem:[#allocation8 + $0xb8] sm:$0xff]
        %s556 = scalar_lea.vmem [#allocation8], 192
        %v557 = vld [vmem:[%s556] sm:$0xff]
        %v558 = vld [vmem:[%s556 + $0x8] sm:$0xff]
        %v559 = vld [vmem:[%s556 + $0x10] sm:$0xff]
        %v560 = vld [vmem:[%s556 + $0x18] sm:$0xff]
        %v561 = vld [vmem:[%s556 + $0x20] sm:$0xff]
        %v562 = vld [vmem:[%s556 + $0x28] sm:$0xff]
        %v563 = vld [vmem:[%s556 + $0x30] sm:$0xff]
        %v564 = vld [vmem:[%s556 + $0x38] sm:$0xff]
        %v565 = vld [vmem:[%s556 + $0x40] sm:$0xff]
        %v566 = vld [vmem:[%s556 + $0x48] sm:$0xff]
        %v567 = vld [vmem:[%s556 + $0x50] sm:$0xff]
        %v568 = vld [vmem:[%s556 + $0x58] sm:$0xff]
        %v569 = vld [vmem:[%s556 + $0x60] sm:$0xff]
        %v570 = vld [vmem:[%s556 + $0x68] sm:$0xff]
        %v571 = vld [vmem:[%s556 + $0x70] sm:$0xff]
        %v572 = vld [vmem:[%s556 + $0x78] sm:$0xff]
        %v573 = vld [vmem:[%s556 + $0x80] sm:$0xff]
        %v574 = vld [vmem:[%s556 + $0x88] sm:$0xff]
        %v575 = vld [vmem:[%s556 + $0x90] sm:$0xff]
        %v576 = vld [vmem:[%s556 + $0x98] sm:$0xff]
        %v577 = vld [vmem:[%s556 + $0xa0] sm:$0xff]
        %v578 = vld [vmem:[%s556 + $0xa8] sm:$0xff]
        %v579 = vld [vmem:[%s556 + $0xb0] sm:$0xff]
        %v580 = vld [vmem:[%s556 + $0xb8] sm:$0xff]
        %vm581 = vsmask.f32 7424
        %v583 = vshrl.u32 %v530, 16
        %v585 = vshll.u32 %v530, 16
        %v587 = vrot.slane %v585, 1
        %v588 = vor.u32 %v583, %v587
        %v590 = vshll.u32 %v531, 16
        %v592 = vrot.slane %v590, 1
        %v593 = vsel %vm581, %v588, %v592
        %v594 = vshrl.u32 %v531, 16
        %v596 = vor.u32 %v594, %v592
        %v621 = vunpack.c.l.b16 %v557
        %v622 = vunpack.c.h.b16 %v557
        %v623 = vunpack.c.l.b16 %v558
        %v624 = vunpack.c.h.b16 %v558
        %v625 = vunpack.c.l.b16 %v559
        %v626 = vunpack.c.h.b16 %v559
        %v627 = vunpack.c.l.b16 %v560
        %v628 = vunpack.c.h.b16 %v560
        %v629 = vunpack.c.l.b16 %v561
        %v630 = vunpack.c.h.b16 %v561
        %v631 = vunpack.c.l.b16 %v562
        %v632 = vunpack.c.h.b16 %v562
        %v633 = vunpack.c.l.b16 %v563
        %v634 = vunpack.c.h.b16 %v563
        %v635 = vunpack.c.l.b16 %v564
        %v636 = vunpack.c.h.b16 %v564
        %v637 = vunpack.c.l.b16 %v565
        %v638 = vunpack.c.h.b16 %v565
        %v639 = vunpack.c.l.b16 %v566
        %v640 = vunpack.c.h.b16 %v566
        %v641 = vunpack.c.l.b16 %v567
        %v642 = vunpack.c.h.b16 %v567
        %v643 = vunpack.c.l.b16 %v568
        %v644 = vunpack.c.h.b16 %v568
        %v645 = vunpack.c.l.b16 %v569
        %v646 = vunpack.c.h.b16 %v569
        %v647 = vunpack.c.l.b16 %v570
        %v648 = vunpack.c.h.b16 %v570
        %v649 = vunpack.c.l.b16 %v571
        %v650 = vunpack.c.h.b16 %v571
        %v651 = vunpack.c.l.b16 %v572
        %v652 = vunpack.c.h.b16 %v572
        %v653 = vunpack.c.l.b16 %v573
        %v654 = vunpack.c.h.b16 %v573
        %v655 = vunpack.c.l.b16 %v574
        %v656 = vunpack.c.h.b16 %v574
        %v657 = vunpack.c.l.b16 %v575
        %v658 = vunpack.c.h.b16 %v575
        %v659 = vunpack.c.l.b16 %v576
        %v660 = vunpack.c.h.b16 %v576
        %v661 = vunpack.c.l.b16 %v577
        %v662 = vunpack.c.h.b16 %v577
        %v663 = vunpack.c.l.b16 %v578
        %v664 = vunpack.c.h.b16 %v578
        %v665 = vunpack.c.l.b16 %v579
        %v666 = vunpack.c.h.b16 %v579
        %v667 = vunpack.c.l.b16 %v580
        %v668 = vunpack.c.h.b16 %v580
        %v669 = vpack.c.b16 %v625, %v621
        %v670 = vpack.c.b16 %v626, %v622
        %v671 = vpack.c.b16 %v627, %v623
        %v672 = vpack.c.b16 %v628, %v624
        %v673 = vpack.c.b16 %v633, %v629
        %v674 = vpack.c.b16 %v634, %v630
        %v675 = vpack.c.b16 %v635, %v631
        %v676 = vpack.c.b16 %v636, %v632
        %v677 = vpack.c.b16 %v641, %v637
        %v678 = vpack.c.b16 %v642, %v638
        %v679 = vpack.c.b16 %v643, %v639
        %v680 = vpack.c.b16 %v644, %v640
        %v681 = vpack.c.b16 %v649, %v645
        %v682 = vpack.c.b16 %v650, %v646
        %v683 = vpack.c.b16 %v651, %v647
        %v684 = vpack.c.b16 %v652, %v648
        %v685 = vpack.c.b16 %v657, %v653
        %v686 = vpack.c.b16 %v658, %v654
        %v687 = vpack.c.b16 %v659, %v655
        %v688 = vpack.c.b16 %v660, %v656
        %v689 = vpack.c.b16 %v665, %v661
        %v690 = vpack.c.b16 %v666, %v662
        %v691 = vpack.c.b16 %v667, %v663
        %v692 = vpack.c.b16 %v668, %v664
        %vm717 = vcmask 785408
        %v719 = vsel %vm717, %v593, 0
        %v722 = vsel %vm717, %v596, 0
        %724 = vmatprep.subr.bf16.mxu0 0
        %725 = vmatpush1.bf16.msra.mxu0 0
        %726 = vmatprep.subr.bf16.mxu0 0
        %727 = vmatpush1.bf16.msra.mxu0 0
        %728 = vmatprep.subr.bf16.mxu0 %v690
        %729 = vmatpush1.bf16.msra.mxu0 %v689
        %730 = vmatprep.subr.bf16.mxu0 %v686
        %731 = vmatpush1.bf16.msra.mxu0 %v685
        %732 = vmatprep.subr.bf16.mxu0 %v682
        %733 = vmatpush1.bf16.msra.mxu0 %v681
        %734 = vmatprep.subr.bf16.mxu0 %v678
        %735 = vmatpush1.bf16.msra.mxu0 %v677
        %736 = vmatprep.subr.bf16.mxu0 %v674
        %737 = vmatpush1.bf16.msra.mxu0 %v673
        %738 = vmatprep.subr.bf16.mxu0 %v670
        %739 = vmatpush1.bf16.msra.mxu0 %v669
        %740 = vmatprep.subr.bf16.mxu0 0
        %741 = vmatpush2.bf16.msra.mxu0 0
        %742 = vmatprep.subr.bf16.mxu0 0
        %743 = vmatpush2.bf16.msra.mxu0 0
        %744 = vmatprep.subr.bf16.mxu0 0
        %745 = vmatpush2.bf16.msra.mxu0 0
        %746 = vmatprep.subr.bf16.mxu0 0
        %747 = vmatpush2.bf16.msra.mxu0 0
        %748 = vmatprep.subr.bf16.mxu0 0
        %749 = vmatpush2.bf16.msra.mxu0 0
        %750 = vmatprep.subr.bf16.mxu0 0
        %751 = vmatpush2.bf16.msra.mxu0 0
        %752 = vmatprep.subr.bf16.mxu0 0
        %753 = vmatpush2.bf16.msra.mxu0 0
        %754 = vmatprep.subr.bf16.mxu0 0
        %755 = vmatpush2.bf16.msra.mxu0 0
        %756 = vmatprep.mubr.bf16.mxu0 0
        %757 = vmatmul.mubr.bf16.gmra.mxu0 %v719
        %v758 = vpop.f32.mrf.mxu0
        %v759 = vadd.f32 0.0, %v758
        %v760 = vpop.f32.mrf.mxu0
        %v761 = vadd.f32 0.0, %v760
        %v762 = vpop.f32.mrf.mxu0
        %v763 = vadd.f32 0.0, %v762
        %v764 = vpop.f32.mrf.mxu0
        %v765 = vadd.f32 0.0, %v764
        %766 = vmatprep.mubr.bf16.mxu0 0
        %767 = vmatmul.mubr.bf16.gmra.mxu0 %v722
        %v768 = vpop.f32.mrf.mxu0
        %v769 = vadd.f32 0.0, %v768
        %v770 = vpop.f32.mrf.mxu0
        %v771 = vadd.f32 0.0, %v770
        %v772 = vpop.f32.mrf.mxu0
        %v773 = vadd.f32 0.0, %v772
        %v774 = vpop.f32.mrf.mxu0
        %v775 = vadd.f32 0.0, %v774
        %776 = vdwg.mxu0
        %777 = vmatprep.subr.bf16.mxu0 0
        %778 = vmatpush1.bf16.msra.mxu0 0
        %779 = vmatprep.subr.bf16.mxu0 0
        %780 = vmatpush1.bf16.msra.mxu0 0
        %781 = vmatprep.subr.bf16.mxu0 %v692
        %782 = vmatpush1.bf16.msra.mxu0 %v691
        %783 = vmatprep.subr.bf16.mxu0 %v688
        %784 = vmatpush1.bf16.msra.mxu0 %v687
        %785 = vmatprep.subr.bf16.mxu0 %v684
        %786 = vmatpush1.bf16.msra.mxu0 %v683
        %787 = vmatprep.subr.bf16.mxu0 %v680
        %788 = vmatpush1.bf16.msra.mxu0 %v679
        %789 = vmatprep.subr.bf16.mxu0 %v676
        %790 = vmatpush1.bf16.msra.mxu0 %v675
        %791 = vmatprep.subr.bf16.mxu0 %v672
        %792 = vmatpush1.bf16.msra.mxu0 %v671
        %793 = vmatprep.subr.bf16.mxu0 0
        %794 = vmatpush2.bf16.msra.mxu0 0
        %795 = vmatprep.subr.bf16.mxu0 0
        %796 = vmatpush2.bf16.msra.mxu0 0
        %797 = vmatprep.subr.bf16.mxu0 0
        %798 = vmatpush2.bf16.msra.mxu0 0
        %799 = vmatprep.subr.bf16.mxu0 0
        %800 = vmatpush2.bf16.msra.mxu0 0
        %801 = vmatprep.subr.bf16.mxu0 0
        %802 = vmatpush2.bf16.msra.mxu0 0
        %803 = vmatprep.subr.bf16.mxu0 0
        %804 = vmatpush2.bf16.msra.mxu0 0
        %805 = vmatprep.subr.bf16.mxu0 0
        %806 = vmatpush2.bf16.msra.mxu0 0
        %807 = vmatprep.subr.bf16.mxu0 0
        %808 = vmatpush2.bf16.msra.mxu0 0
        %809 = vmatprep.mubr.bf16.mxu0 0
        %810 = vmatmul.mubr.bf16.gmra.mxu0 %v719
        %v811 = vpop.f32.mrf.mxu0
        %v812 = vadd.f32 0.0, %v811
        %v813 = vpop.f32.mrf.mxu0
        %v814 = vadd.f32 0.0, %v813
        %v815 = vpop.f32.mrf.mxu0
        %v816 = vadd.f32 0.0, %v815
        %v817 = vpop.f32.mrf.mxu0
        %v818 = vadd.f32 0.0, %v817
        %819 = vmatprep.mubr.bf16.mxu0 0
        %820 = vmatmul.mubr.bf16.gmra.mxu0 %v722
        %v821 = vpop.f32.mrf.mxu0
        %v822 = vadd.f32 0.0, %v821
        %v823 = vpop.f32.mrf.mxu0
        %v824 = vadd.f32 0.0, %v823
        %v825 = vpop.f32.mrf.mxu0
        %v826 = vadd.f32 0.0, %v825
        %v827 = vpop.f32.mrf.mxu0
        %v828 = vadd.f32 0.0, %v827
        %829 = vdwg.mxu0
        %v854 = vunpack.c.l.b16 %v532
        %v855 = vunpack.c.h.b16 %v532
        %v856 = vunpack.c.l.b16 %v533
        %v857 = vunpack.c.h.b16 %v533
        %v858 = vunpack.c.l.b16 %v534
        %v859 = vunpack.c.h.b16 %v534
        %v860 = vunpack.c.l.b16 %v535
        %v861 = vunpack.c.h.b16 %v535
        %v862 = vunpack.c.l.b16 %v536
        %v863 = vunpack.c.h.b16 %v536
        %v864 = vunpack.c.l.b16 %v537
        %v865 = vunpack.c.h.b16 %v537
        %v866 = vunpack.c.l.b16 %v538
        %v867 = vunpack.c.h.b16 %v538
        %v868 = vunpack.c.l.b16 %v539
        %v869 = vunpack.c.h.b16 %v539
        %v870 = vunpack.c.l.b16 %v540
        %v871 = vunpack.c.h.b16 %v540
        %v872 = vunpack.c.l.b16 %v541
        %v873 = vunpack.c.h.b16 %v541
        %v874 = vunpack.c.l.b16 %v542
        %v875 = vunpack.c.h.b16 %v542
        %v876 = vunpack.c.l.b16 %v543
        %v877 = vunpack.c.h.b16 %v543
        %v878 = vunpack.c.l.b16 %v544
        %v879 = vunpack.c.h.b16 %v544
        %v880 = vunpack.c.l.b16 %v545
        %v881 = vunpack.c.h.b16 %v545
        %v882 = vunpack.c.l.b16 %v546
        %v883 = vunpack.c.h.b16 %v546
        %v884 = vunpack.c.l.b16 %v547
        %v885 = vunpack.c.h.b16 %v547
        %v886 = vunpack.c.l.b16 %v548
        %v887 = vunpack.c.h.b16 %v548
        %v888 = vunpack.c.l.b16 %v549
        %v889 = vunpack.c.h.b16 %v549
        %v890 = vunpack.c.l.b16 %v550
        %v891 = vunpack.c.h.b16 %v550
        %v892 = vunpack.c.l.b16 %v551
        %v893 = vunpack.c.h.b16 %v551
        %v894 = vunpack.c.l.b16 %v552
        %v895 = vunpack.c.h.b16 %v552
        %v896 = vunpack.c.l.b16 %v553
        %v897 = vunpack.c.h.b16 %v553
        %v898 = vunpack.c.l.b16 %v554
        %v899 = vunpack.c.h.b16 %v554
        %v900 = vunpack.c.l.b16 %v555
        %v901 = vunpack.c.h.b16 %v555
        %v902 = vpack.c.b16 %v858, %v854
        %v903 = vpack.c.b16 %v859, %v855
        %v904 = vpack.c.b16 %v860, %v856
        %v905 = vpack.c.b16 %v861, %v857
        %v906 = vpack.c.b16 %v866, %v862
        %v907 = vpack.c.b16 %v867, %v863
        %v908 = vpack.c.b16 %v868, %v864
        %v909 = vpack.c.b16 %v869, %v865
        %v910 = vpack.c.b16 %v874, %v870
        %v911 = vpack.c.b16 %v875, %v871
        %v912 = vpack.c.b16 %v876, %v872
        %v913 = vpack.c.b16 %v877, %v873
        %v914 = vpack.c.b16 %v882, %v878
        %v915 = vpack.c.b16 %v883, %v879
        %v916 = vpack.c.b16 %v884, %v880
        %v917 = vpack.c.b16 %v885, %v881
        %v918 = vpack.c.b16 %v890, %v886
        %v919 = vpack.c.b16 %v891, %v887
        %v920 = vpack.c.b16 %v892, %v888
        %v921 = vpack.c.b16 %v893, %v889
        %v922 = vpack.c.b16 %v898, %v894
        %v923 = vpack.c.b16 %v899, %v895
        %v924 = vpack.c.b16 %v900, %v896
        %v925 = vpack.c.b16 %v901, %v897
        %v950 = vsel %vm717, %v530, 0
        %v952 = vsel %vm717, %v531, 0
        %954 = vmatprep.subr.bf16.mxu0 0
        %955 = vmatpush1.bf16.msra.mxu0 0
        %956 = vmatprep.subr.bf16.mxu0 0
        %957 = vmatpush1.bf16.msra.mxu0 0
        %958 = vmatprep.subr.bf16.mxu0 %v923
        %959 = vmatpush1.bf16.msra.mxu0 %v922
        %960 = vmatprep.subr.bf16.mxu0 %v919
        %961 = vmatpush1.bf16.msra.mxu0 %v918
        %962 = vmatprep.subr.bf16.mxu0 %v915
        %963 = vmatpush1.bf16.msra.mxu0 %v914
        %964 = vmatprep.subr.bf16.mxu0 %v911
        %965 = vmatpush1.bf16.msra.mxu0 %v910
        %966 = vmatprep.subr.bf16.mxu0 %v907
        %967 = vmatpush1.bf16.msra.mxu0 %v906
        %968 = vmatprep.subr.bf16.mxu0 %v903
        %969 = vmatpush1.bf16.msra.mxu0 %v902
        %970 = vmatprep.subr.bf16.mxu0 0
        %971 = vmatpush2.bf16.msra.mxu0 0
        %972 = vmatprep.subr.bf16.mxu0 0
        %973 = vmatpush2.bf16.msra.mxu0 0
        %974 = vmatprep.subr.bf16.mxu0 0
        %975 = vmatpush2.bf16.msra.mxu0 0
        %976 = vmatprep.subr.bf16.mxu0 0
        %977 = vmatpush2.bf16.msra.mxu0 0
        %978 = vmatprep.subr.bf16.mxu0 0
        %979 = vmatpush2.bf16.msra.mxu0 0
        %980 = vmatprep.subr.bf16.mxu0 0
        %981 = vmatpush2.bf16.msra.mxu0 0
        %982 = vmatprep.subr.bf16.mxu0 0
        %983 = vmatpush2.bf16.msra.mxu0 0
        %984 = vmatprep.subr.bf16.mxu0 0
        %985 = vmatpush2.bf16.msra.mxu0 0
        %986 = vmatprep.mubr.bf16.mxu0 0
        %987 = vmatmul.mubr.bf16.gmra.mxu0 %v950
        %v988 = vpop.f32.mrf.mxu0
        %v989 = vadd.f32 %v759, %v988
        %v990 = vpop.f32.mrf.mxu0
        %v991 = vadd.f32 %v761, %v990
        %v992 = vpop.f32.mrf.mxu0
        %v993 = vadd.f32 %v763, %v992
        %v994 = vpop.f32.mrf.mxu0
        %v995 = vadd.f32 %v765, %v994
        %996 = vmatprep.mubr.bf16.mxu0 0
        %997 = vmatmul.mubr.bf16.gmra.mxu0 %v952
        %v998 = vpop.f32.mrf.mxu0
        %v999 = vadd.f32 %v769, %v998
        %v1000 = vpop.f32.mrf.mxu0
        %v1001 = vadd.f32 %v771, %v1000
        %v1002 = vpop.f32.mrf.mxu0
        %v1003 = vadd.f32 %v773, %v1002
        %v1004 = vpop.f32.mrf.mxu0
        %v1005 = vadd.f32 %v775, %v1004
        %1006 = vdwg.mxu0
        %1007 = vmatprep.subr.bf16.mxu0 0
        %1008 = vmatpush1.bf16.msra.mxu0 0
        %1009 = vmatprep.subr.bf16.mxu0 0
        %1010 = vmatpush1.bf16.msra.mxu0 0
        %1011 = vmatprep.subr.bf16.mxu0 %v925
        %1012 = vmatpush1.bf16.msra.mxu0 %v924
        %1013 = vmatprep.subr.bf16.mxu0 %v921
        %1014 = vmatpush1.bf16.msra.mxu0 %v920
        %1015 = vmatprep.subr.bf16.mxu0 %v917
        %1016 = vmatpush1.bf16.msra.mxu0 %v916
        %1017 = vmatprep.subr.bf16.mxu0 %v913
        %1018 = vmatpush1.bf16.msra.mxu0 %v912
        %1019 = vmatprep.subr.bf16.mxu0 %v909
        %1020 = vmatpush1.bf16.msra.mxu0 %v908
        %1021 = vmatprep.subr.bf16.mxu0 %v905
        %1022 = vmatpush1.bf16.msra.mxu0 %v904
        %1023 = vmatprep.subr.bf16.mxu0 0
        %1024 = vmatpush2.bf16.msra.mxu0 0
        %1025 = vmatprep.subr.bf16.mxu0 0
        %1026 = vmatpush2.bf16.msra.mxu0 0
        %1027 = vmatprep.subr.bf16.mxu0 0
        %1028 = vmatpush2.bf16.msra.mxu0 0
        %1029 = vmatprep.subr.bf16.mxu0 0
        %1030 = vmatpush2.bf16.msra.mxu0 0
        %1031 = vmatprep.subr.bf16.mxu0 0
        %1032 = vmatpush2.bf16.msra.mxu0 0
        %1033 = vmatprep.subr.bf16.mxu0 0
        %1034 = vmatpush2.bf16.msra.mxu0 0
        %1035 = vmatprep.subr.bf16.mxu0 0
        %1036 = vmatpush2.bf16.msra.mxu0 0
        %1037 = vmatprep.subr.bf16.mxu0 0
        %1038 = vmatpush2.bf16.msra.mxu0 0
        %1039 = vmatprep.mubr.bf16.mxu0 0
        %1040 = vmatmul.mubr.bf16.gmra.mxu0 %v950
        %v1041 = vpop.f32.mrf.mxu0
        %v1042 = vadd.f32 %v812, %v1041
        %v1043 = vpop.f32.mrf.mxu0
        %v1044 = vadd.f32 %v814, %v1043
        %v1045 = vpop.f32.mrf.mxu0
        %v1046 = vadd.f32 %v816, %v1045
        %v1047 = vpop.f32.mrf.mxu0
        %v1048 = vadd.f32 %v818, %v1047
        %1049 = vmatprep.mubr.bf16.mxu0 0
        %1050 = vmatmul.mubr.bf16.gmra.mxu0 %v952
        %v1051 = vpop.f32.mrf.mxu0
        %v1052 = vadd.f32 %v822, %v1051
        %v1053 = vpop.f32.mrf.mxu0
        %v1054 = vadd.f32 %v824, %v1053
        %v1055 = vpop.f32.mrf.mxu0
        %v1056 = vadd.f32 %v826, %v1055
        %v1057 = vpop.f32.mrf.mxu0
        %v1058 = vadd.f32 %v828, %v1057
        %1059 = vdwg.mxu0
        %s1060 = scalar_lea.vmem [#allocation8], 384
        %v1061 = vld [vmem:[%s1060] sm:$0xff]
        %v1062 = vld [vmem:[%s1060 + $0x8] sm:$0xff]
        %v1063 = vld [vmem:[%s1060 + $0x10] sm:$0xff]
        %v1064 = vld [vmem:[%s1060 + $0x18] sm:$0xff]
        %v1065 = vld [vmem:[%s1060 + $0x20] sm:$0xff]
        %v1066 = vld [vmem:[%s1060 + $0x28] sm:$0xff]
        %v1067 = vld [vmem:[%s1060 + $0x30] sm:$0xff]
        %v1068 = vld [vmem:[%s1060 + $0x38] sm:$0xff]
        %v1069 = vld [vmem:[%s1060 + $0x40] sm:$0xff]
        %v1070 = vld [vmem:[%s1060 + $0x48] sm:$0xff]
        %v1071 = vld [vmem:[%s1060 + $0x50] sm:$0xff]
        %v1072 = vld [vmem:[%s1060 + $0x58] sm:$0xff]
        %v1073 = vld [vmem:[%s1060 + $0x60] sm:$0xff]
        %v1074 = vld [vmem:[%s1060 + $0x68] sm:$0xff]
        %v1075 = vld [vmem:[%s1060 + $0x70] sm:$0xff]
        %v1076 = vld [vmem:[%s1060 + $0x78] sm:$0xff]
        %v1077 = vld [vmem:[%s1060 + $0x80] sm:$0xff]
        %v1078 = vld [vmem:[%s1060 + $0x88] sm:$0xff]
        %v1079 = vld [vmem:[%s1060 + $0x90] sm:$0xff]
        %v1080 = vld [vmem:[%s1060 + $0x98] sm:$0xff]
        %v1081 = vld [vmem:[%s1060 + $0xa0] sm:$0xff]
        %v1082 = vld [vmem:[%s1060 + $0xa8] sm:$0xff]
        %v1083 = vld [vmem:[%s1060 + $0xb0] sm:$0xff]
        %v1084 = vld [vmem:[%s1060 + $0xb8] sm:$0xff]
        %vm1087 = vcmask 1046528
        %v1088 = vrot.slane %v530, 1
        %v1089 = vrot.slane %v531, 1
        %v1090 = vsel %vm1087, %v1088, %v1089
        %v1115 = vunpack.c.l.b16 %v1061
        %v1116 = vunpack.c.h.b16 %v1061
        %v1117 = vunpack.c.l.b16 %v1062
        %v1118 = vunpack.c.h.b16 %v1062
        %v1119 = vunpack.c.l.b16 %v1063
        %v1120 = vunpack.c.h.b16 %v1063
        %v1121 = vunpack.c.l.b16 %v1064
        %v1122 = vunpack.c.h.b16 %v1064
        %v1123 = vunpack.c.l.b16 %v1065
        %v1124 = vunpack.c.h.b16 %v1065
        %v1125 = vunpack.c.l.b16 %v1066
        %v1126 = vunpack.c.h.b16 %v1066
        %v1127 = vunpack.c.l.b16 %v1067
        %v1128 = vunpack.c.h.b16 %v1067
        %v1129 = vunpack.c.l.b16 %v1068
        %v1130 = vunpack.c.h.b16 %v1068
        %v1131 = vunpack.c.l.b16 %v1069
        %v1132 = vunpack.c.h.b16 %v1069
        %v1133 = vunpack.c.l.b16 %v1070
        %v1134 = vunpack.c.h.b16 %v1070
        %v1135 = vunpack.c.l.b16 %v1071
        %v1136 = vunpack.c.h.b16 %v1071
        %v1137 = vunpack.c.l.b16 %v1072
        %v1138 = vunpack.c.h.b16 %v1072
        %v1139 = vunpack.c.l.b16 %v1073
        %v1140 = vunpack.c.h.b16 %v1073
        %v1141 = vunpack.c.l.b16 %v1074
        %v1142 = vunpack.c.h.b16 %v1074
        %v1143 = vunpack.c.l.b16 %v1075
        %v1144 = vunpack.c.h.b16 %v1075
        %v1145 = vunpack.c.l.b16 %v1076
        %v1146 = vunpack.c.h.b16 %v1076
        %v1147 = vunpack.c.l.b16 %v1077
        %v1148 = vunpack.c.h.b16 %v1077
        %v1149 = vunpack.c.l.b16 %v1078
        %v1150 = vunpack.c.h.b16 %v1078
        %v1151 = vunpack.c.l.b16 %v1079
        %v1152 = vunpack.c.h.b16 %v1079
        %v1153 = vunpack.c.l.b16 %v1080
        %v1154 = vunpack.c.h.b16 %v1080
        %v1155 = vunpack.c.l.b16 %v1081
        %v1156 = vunpack.c.h.b16 %v1081
        %v1157 = vunpack.c.l.b16 %v1082
        %v1158 = vunpack.c.h.b16 %v1082
        %v1159 = vunpack.c.l.b16 %v1083
        %v1160 = vunpack.c.h.b16 %v1083
        %v1161 = vunpack.c.l.b16 %v1084
        %v1162 = vunpack.c.h.b16 %v1084
        %v1163 = vpack.c.b16 %v1119, %v1115
        %v1164 = vpack.c.b16 %v1120, %v1116
        %v1165 = vpack.c.b16 %v1121, %v1117
        %v1166 = vpack.c.b16 %v1122, %v1118
        %v1167 = vpack.c.b16 %v1127, %v1123
        %v1168 = vpack.c.b16 %v1128, %v1124
        %v1169 = vpack.c.b16 %v1129, %v1125
        %v1170 = vpack.c.b16 %v1130, %v1126
        %v1171 = vpack.c.b16 %v1135, %v1131
        %v1172 = vpack.c.b16 %v1136, %v1132
        %v1173 = vpack.c.b16 %v1137, %v1133
        %v1174 = vpack.c.b16 %v1138, %v1134
        %v1175 = vpack.c.b16 %v1143, %v1139
        %v1176 = vpack.c.b16 %v1144, %v1140
        %v1177 = vpack.c.b16 %v1145, %v1141
        %v1178 = vpack.c.b16 %v1146, %v1142
        %v1179 = vpack.c.b16 %v1151, %v1147
        %v1180 = vpack.c.b16 %v1152, %v1148
        %v1181 = vpack.c.b16 %v1153, %v1149
        %v1182 = vpack.c.b16 %v1154, %v1150
        %v1183 = vpack.c.b16 %v1159, %v1155
        %v1184 = vpack.c.b16 %v1160, %v1156
        %v1185 = vpack.c.b16 %v1161, %v1157
        %v1186 = vpack.c.b16 %v1162, %v1158
        %v1212 = vsel %vm717, %v1090, 0
        %v1215 = vsel %vm717, %v1089, 0
        %1217 = vmatprep.subr.bf16.mxu0 0
        %1218 = vmatpush1.bf16.msra.mxu0 0
        %1219 = vmatprep.subr.bf16.mxu0 0
        %1220 = vmatpush1.bf16.msra.mxu0 0
        %1221 = vmatprep.subr.bf16.mxu0 %v1184
        %1222 = vmatpush1.bf16.msra.mxu0 %v1183
        %1223 = vmatprep.subr.bf16.mxu0 %v1180
        %1224 = vmatpush1.bf16.msra.mxu0 %v1179
        %1225 = vmatprep.subr.bf16.mxu0 %v1176
        %1226 = vmatpush1.bf16.msra.mxu0 %v1175
        %1227 = vmatprep.subr.bf16.mxu0 %v1172
        %1228 = vmatpush1.bf16.msra.mxu0 %v1171
        %1229 = vmatprep.subr.bf16.mxu0 %v1168
        %1230 = vmatpush1.bf16.msra.mxu0 %v1167
        %1231 = vmatprep.subr.bf16.mxu0 %v1164
        %1232 = vmatpush1.bf16.msra.mxu0 %v1163
        %1233 = vmatprep.subr.bf16.mxu0 0
        %1234 = vmatpush2.bf16.msra.mxu0 0
        %1235 = vmatprep.subr.bf16.mxu0 0
        %1236 = vmatpush2.bf16.msra.mxu0 0
        %1237 = vmatprep.subr.bf16.mxu0 0
        %1238 = vmatpush2.bf16.msra.mxu0 0
        %1239 = vmatprep.subr.bf16.mxu0 0
        %1240 = vmatpush2.bf16.msra.mxu0 0
        %1241 = vmatprep.subr.bf16.mxu0 0
        %1242 = vmatpush2.bf16.msra.mxu0 0
        %1243 = vmatprep.subr.bf16.mxu0 0
        %1244 = vmatpush2.bf16.msra.mxu0 0
        %1245 = vmatprep.subr.bf16.mxu0 0
        %1246 = vmatpush2.bf16.msra.mxu0 0
        %1247 = vmatprep.subr.bf16.mxu0 0
        %1248 = vmatpush2.bf16.msra.mxu0 0
        %1249 = vmatprep.mubr.bf16.mxu0 0
        %1250 = vmatmul.mubr.bf16.gmra.mxu0 %v1212
        %v1251 = vpop.f32.mrf.mxu0
        %v1252 = vadd.f32 0.0, %v1251
        %v1253 = vpop.f32.mrf.mxu0
        %v1254 = vadd.f32 0.0, %v1253
        %v1255 = vpop.f32.mrf.mxu0
        %v1256 = vadd.f32 0.0, %v1255
        %v1257 = vpop.f32.mrf.mxu0
        %v1258 = vadd.f32 0.0, %v1257
        %1259 = vmatprep.mubr.bf16.mxu0 0
        %1260 = vmatmul.mubr.bf16.gmra.mxu0 %v1215
        %v1261 = vpop.f32.mrf.mxu0
        %v1262 = vadd.f32 0.0, %v1261
        %v1263 = vpop.f32.mrf.mxu0
        %v1264 = vadd.f32 0.0, %v1263
        %v1265 = vpop.f32.mrf.mxu0
        %v1266 = vadd.f32 0.0, %v1265
        %v1267 = vpop.f32.mrf.mxu0
        %v1268 = vadd.f32 0.0, %v1267
        %1269 = vdwg.mxu0
        %1270 = vmatprep.subr.bf16.mxu0 0
        %1271 = vmatpush1.bf16.msra.mxu0 0
        %1272 = vmatprep.subr.bf16.mxu0 0
        %1273 = vmatpush1.bf16.msra.mxu0 0
        %1274 = vmatprep.subr.bf16.mxu0 %v1186
        %1275 = vmatpush1.bf16.msra.mxu0 %v1185
        %1276 = vmatprep.subr.bf16.mxu0 %v1182
        %1277 = vmatpush1.bf16.msra.mxu0 %v1181
        %1278 = vmatprep.subr.bf16.mxu0 %v1178
        %1279 = vmatpush1.bf16.msra.mxu0 %v1177
        %1280 = vmatprep.subr.bf16.mxu0 %v1174
        %1281 = vmatpush1.bf16.msra.mxu0 %v1173
        %1282 = vmatprep.subr.bf16.mxu0 %v1170
        %1283 = vmatpush1.bf16.msra.mxu0 %v1169
        %1284 = vmatprep.subr.bf16.mxu0 %v1166
        %1285 = vmatpush1.bf16.msra.mxu0 %v1165
        %1286 = vmatprep.subr.bf16.mxu0 0
        %1287 = vmatpush2.bf16.msra.mxu0 0
        %1288 = vmatprep.subr.bf16.mxu0 0
        %1289 = vmatpush2.bf16.msra.mxu0 0
        %1290 = vmatprep.subr.bf16.mxu0 0
        %1291 = vmatpush2.bf16.msra.mxu0 0
        %1292 = vmatprep.subr.bf16.mxu0 0
        %1293 = vmatpush2.bf16.msra.mxu0 0
        %1294 = vmatprep.subr.bf16.mxu0 0
        %1295 = vmatpush2.bf16.msra.mxu0 0
        %1296 = vmatprep.subr.bf16.mxu0 0
        %1297 = vmatpush2.bf16.msra.mxu0 0
        %1298 = vmatprep.subr.bf16.mxu0 0
        %1299 = vmatpush2.bf16.msra.mxu0 0
        %1300 = vmatprep.subr.bf16.mxu0 0
        %1301 = vmatpush2.bf16.msra.mxu0 0
        %1302 = vmatprep.mubr.bf16.mxu0 0
        %1303 = vmatmul.mubr.bf16.gmra.mxu0 %v1212
        %v1304 = vpop.f32.mrf.mxu0
        %v1305 = vadd.f32 0.0, %v1304
        %v1306 = vpop.f32.mrf.mxu0
        %v1307 = vadd.f32 0.0, %v1306
        %v1308 = vpop.f32.mrf.mxu0
        %v1309 = vadd.f32 0.0, %v1308
        %v1310 = vpop.f32.mrf.mxu0
        %v1311 = vadd.f32 0.0, %v1310
        %1312 = vmatprep.mubr.bf16.mxu0 0
        %1313 = vmatmul.mubr.bf16.gmra.mxu0 %v1215
        %v1314 = vpop.f32.mrf.mxu0
        %v1315 = vadd.f32 0.0, %v1314
        %v1316 = vpop.f32.mrf.mxu0
        %v1317 = vadd.f32 0.0, %v1316
        %v1318 = vpop.f32.mrf.mxu0
        %v1319 = vadd.f32 0.0, %v1318
        %v1320 = vpop.f32.mrf.mxu0
        %v1321 = vadd.f32 0.0, %v1320
        %1322 = vdwg.mxu0
        %v1323 = vadd.f32 %v989, %v1252
        %v1324 = vadd.f32 %v991, %v1254
        %v1325 = vadd.f32 %v1042, %v1305
        %v1326 = vadd.f32 %v1044, %v1307
        %v1327 = vadd.f32 %v993, %v1256
        %v1328 = vadd.f32 %v995, %v1258
        %v1329 = vadd.f32 %v1046, %v1309
        %v1330 = vadd.f32 %v1048, %v1311
        %v1331 = vadd.f32 %v999, %v1262
        %v1332 = vadd.f32 %v1001, %v1264
        %v1333 = vadd.f32 %v1052, %v1315
        %v1334 = vadd.f32 %v1054, %v1317
        %v1335 = vadd.f32 %v1003, %v1266
        %v1336 = vadd.f32 %v1005, %v1268
        %v1337 = vadd.f32 %v1056, %v1319
        %v1338 = vadd.f32 %v1058, %v1321
        %s1339 = scalar_lea.vmem [#allocation8], 576
        %v1340 = vld [vmem:[%s1339] sm:$0xff]
        %v1341 = vld [vmem:[%s1339 + $0x8] sm:$0xff]
        %v1342 = vld [vmem:[%s1339 + $0x10] sm:$0xff]
        %v1343 = vld [vmem:[%s1339 + $0x18] sm:$0xff]
        %v1344 = vld [vmem:[%s1339 + $0x20] sm:$0xff]
        %v1345 = vld [vmem:[%s1339 + $0x28] sm:$0xff]
        %v1346 = vld [vmem:[%s1339 + $0x30] sm:$0xff]
        %v1347 = vld [vmem:[%s1339 + $0x38] sm:$0xff]
        %v1348 = vld [vmem:[%s1339 + $0x40] sm:$0xff]
        %v1349 = vld [vmem:[%s1339 + $0x48] sm:$0xff]
        %v1350 = vld [vmem:[%s1339 + $0x50] sm:$0xff]
        %v1351 = vld [vmem:[%s1339 + $0x58] sm:$0xff]
        %v1352 = vld [vmem:[%s1339 + $0x60] sm:$0xff]
        %v1353 = vld [vmem:[%s1339 + $0x68] sm:$0xff]
        %v1354 = vld [vmem:[%s1339 + $0x70] sm:$0xff]
        %v1355 = vld [vmem:[%s1339 + $0x78] sm:$0xff]
        %v1356 = vld [vmem:[%s1339 + $0x80] sm:$0xff]
        %v1357 = vld [vmem:[%s1339 + $0x88] sm:$0xff]
        %v1358 = vld [vmem:[%s1339 + $0x90] sm:$0xff]
        %v1359 = vld [vmem:[%s1339 + $0x98] sm:$0xff]
        %v1360 = vld [vmem:[%s1339 + $0xa0] sm:$0xff]
        %v1361 = vld [vmem:[%s1339 + $0xa8] sm:$0xff]
        %v1362 = vld [vmem:[%s1339 + $0xb0] sm:$0xff]
        %v1363 = vld [vmem:[%s1339 + $0xb8] sm:$0xff]
        %vm1364 = vsmask.f32 6400
        %v1365 = vrot.slane %v583, 1
        %v1366 = vrot.slane %v585, 2
        %v1367 = vor.u32 %v1365, %v1366
        %v1368 = vrot.slane %v594, 1
        %v1369 = vrot.slane %v590, 2
        %v1370 = vor.u32 %v1368, %v1369
        %v1371 = vsel %vm1364, %v1367, %v1370
        %v1396 = vunpack.c.l.b16 %v1340
        %v1397 = vunpack.c.h.b16 %v1340
        %v1398 = vunpack.c.l.b16 %v1341
        %v1399 = vunpack.c.h.b16 %v1341
        %v1400 = vunpack.c.l.b16 %v1342
        %v1401 = vunpack.c.h.b16 %v1342
        %v1402 = vunpack.c.l.b16 %v1343
        %v1403 = vunpack.c.h.b16 %v1343
        %v1404 = vunpack.c.l.b16 %v1344
        %v1405 = vunpack.c.h.b16 %v1344
        %v1406 = vunpack.c.l.b16 %v1345
        %v1407 = vunpack.c.h.b16 %v1345
        %v1408 = vunpack.c.l.b16 %v1346
        %v1409 = vunpack.c.h.b16 %v1346
        %v1410 = vunpack.c.l.b16 %v1347
        %v1411 = vunpack.c.h.b16 %v1347
        %v1412 = vunpack.c.l.b16 %v1348
        %v1413 = vunpack.c.h.b16 %v1348
        %v1414 = vunpack.c.l.b16 %v1349
        %v1415 = vunpack.c.h.b16 %v1349
        %v1416 = vunpack.c.l.b16 %v1350
        %v1417 = vunpack.c.h.b16 %v1350
        %v1418 = vunpack.c.l.b16 %v1351
        %v1419 = vunpack.c.h.b16 %v1351
        %v1420 = vunpack.c.l.b16 %v1352
        %v1421 = vunpack.c.h.b16 %v1352
        %v1422 = vunpack.c.l.b16 %v1353
        %v1423 = vunpack.c.h.b16 %v1353
        %v1424 = vunpack.c.l.b16 %v1354
        %v1425 = vunpack.c.h.b16 %v1354
        %v1426 = vunpack.c.l.b16 %v1355
        %v1427 = vunpack.c.h.b16 %v1355
        %v1428 = vunpack.c.l.b16 %v1356
        %v1429 = vunpack.c.h.b16 %v1356
        %v1430 = vunpack.c.l.b16 %v1357
        %v1431 = vunpack.c.h.b16 %v1357
        %v1432 = vunpack.c.l.b16 %v1358
        %v1433 = vunpack.c.h.b16 %v1358
        %v1434 = vunpack.c.l.b16 %v1359
        %v1435 = vunpack.c.h.b16 %v1359
        %v1436 = vunpack.c.l.b16 %v1360
        %v1437 = vunpack.c.h.b16 %v1360
        %v1438 = vunpack.c.l.b16 %v1361
        %v1439 = vunpack.c.h.b16 %v1361
        %v1440 = vunpack.c.l.b16 %v1362
        %v1441 = vunpack.c.h.b16 %v1362
        %v1442 = vunpack.c.l.b16 %v1363
        %v1443 = vunpack.c.h.b16 %v1363
        %v1444 = vpack.c.b16 %v1400, %v1396
        %v1445 = vpack.c.b16 %v1401, %v1397
        %v1446 = vpack.c.b16 %v1402, %v1398
        %v1447 = vpack.c.b16 %v1403, %v1399
        %v1448 = vpack.c.b16 %v1408, %v1404
        %v1449 = vpack.c.b16 %v1409, %v1405
        %v1450 = vpack.c.b16 %v1410, %v1406
        %v1451 = vpack.c.b16 %v1411, %v1407
        %v1452 = vpack.c.b16 %v1416, %v1412
        %v1453 = vpack.c.b16 %v1417, %v1413
        %v1454 = vpack.c.b16 %v1418, %v1414
        %v1455 = vpack.c.b16 %v1419, %v1415
        %v1456 = vpack.c.b16 %v1424, %v1420
        %v1457 = vpack.c.b16 %v1425, %v1421
        %v1458 = vpack.c.b16 %v1426, %v1422
        %v1459 = vpack.c.b16 %v1427, %v1423
        %v1460 = vpack.c.b16 %v1432, %v1428
        %v1461 = vpack.c.b16 %v1433, %v1429
        %v1462 = vpack.c.b16 %v1434, %v1430
        %v1463 = vpack.c.b16 %v1435, %v1431
        %v1464 = vpack.c.b16 %v1440, %v1436
        %v1465 = vpack.c.b16 %v1441, %v1437
        %v1466 = vpack.c.b16 %v1442, %v1438
        %v1467 = vpack.c.b16 %v1443, %v1439
        %v1493 = vsel %vm717, %v1371, 0
        %v1496 = vsel %vm717, %v1370, 0
        %1498 = vmatprep.subr.bf16.mxu0 0
        %1499 = vmatpush1.bf16.msra.mxu0 0
        %1500 = vmatprep.subr.bf16.mxu0 0
        %1501 = vmatpush1.bf16.msra.mxu0 0
        %1502 = vmatprep.subr.bf16.mxu0 %v1465
        %1503 = vmatpush1.bf16.msra.mxu0 %v1464
        %1504 = vmatprep.subr.bf16.mxu0 %v1461
        %1505 = vmatpush1.bf16.msra.mxu0 %v1460
        %1506 = vmatprep.subr.bf16.mxu0 %v1457
        %1507 = vmatpush1.bf16.msra.mxu0 %v1456
        %1508 = vmatprep.subr.bf16.mxu0 %v1453
        %1509 = vmatpush1.bf16.msra.mxu0 %v1452
        %1510 = vmatprep.subr.bf16.mxu0 %v1449
        %1511 = vmatpush1.bf16.msra.mxu0 %v1448
        %1512 = vmatprep.subr.bf16.mxu0 %v1445
        %1513 = vmatpush1.bf16.msra.mxu0 %v1444
        %1514 = vmatprep.subr.bf16.mxu0 0
        %1515 = vmatpush2.bf16.msra.mxu0 0
        %1516 = vmatprep.subr.bf16.mxu0 0
        %1517 = vmatpush2.bf16.msra.mxu0 0
        %1518 = vmatprep.subr.bf16.mxu0 0
        %1519 = vmatpush2.bf16.msra.mxu0 0
        %1520 = vmatprep.subr.bf16.mxu0 0
        %1521 = vmatpush2.bf16.msra.mxu0 0
        %1522 = vmatprep.subr.bf16.mxu0 0
        %1523 = vmatpush2.bf16.msra.mxu0 0
        %1524 = vmatprep.subr.bf16.mxu0 0
        %1525 = vmatpush2.bf16.msra.mxu0 0
        %1526 = vmatprep.subr.bf16.mxu0 0
        %1527 = vmatpush2.bf16.msra.mxu0 0
        %1528 = vmatprep.subr.bf16.mxu0 0
        %1529 = vmatpush2.bf16.msra.mxu0 0
        %1530 = vmatprep.mubr.bf16.mxu0 0
        %1531 = vmatmul.mubr.bf16.gmra.mxu0 %v1493
        %v1532 = vpop.f32.mrf.mxu0
        %v1533 = vadd.f32 0.0, %v1532
        %v1534 = vpop.f32.mrf.mxu0
        %v1535 = vadd.f32 0.0, %v1534
        %v1536 = vpop.f32.mrf.mxu0
        %v1537 = vadd.f32 0.0, %v1536
        %v1538 = vpop.f32.mrf.mxu0
        %v1539 = vadd.f32 0.0, %v1538
        %1540 = vmatprep.mubr.bf16.mxu0 0
        %1541 = vmatmul.mubr.bf16.gmra.mxu0 %v1496
        %v1542 = vpop.f32.mrf.mxu0
        %v1543 = vadd.f32 0.0, %v1542
        %v1544 = vpop.f32.mrf.mxu0
        %v1545 = vadd.f32 0.0, %v1544
        %v1546 = vpop.f32.mrf.mxu0
        %v1547 = vadd.f32 0.0, %v1546
        %v1548 = vpop.f32.mrf.mxu0
        %v1549 = vadd.f32 0.0, %v1548
        %1550 = vdwg.mxu0
        %1551 = vmatprep.subr.bf16.mxu0 0
        %1552 = vmatpush1.bf16.msra.mxu0 0
        %1553 = vmatprep.subr.bf16.mxu0 0
        %1554 = vmatpush1.bf16.msra.mxu0 0
        %1555 = vmatprep.subr.bf16.mxu0 %v1467
        %1556 = vmatpush1.bf16.msra.mxu0 %v1466
        %1557 = vmatprep.subr.bf16.mxu0 %v1463
        %1558 = vmatpush1.bf16.msra.mxu0 %v1462
        %1559 = vmatprep.subr.bf16.mxu0 %v1459
        %1560 = vmatpush1.bf16.msra.mxu0 %v1458
        %1561 = vmatprep.subr.bf16.mxu0 %v1455
        %1562 = vmatpush1.bf16.msra.mxu0 %v1454
        %1563 = vmatprep.subr.bf16.mxu0 %v1451
        %1564 = vmatpush1.bf16.msra.mxu0 %v1450
        %1565 = vmatprep.subr.bf16.mxu0 %v1447
        %1566 = vmatpush1.bf16.msra.mxu0 %v1446
        %1567 = vmatprep.subr.bf16.mxu0 0
        %1568 = vmatpush2.bf16.msra.mxu0 0
        %1569 = vmatprep.subr.bf16.mxu0 0
        %1570 = vmatpush2.bf16.msra.mxu0 0
        %1571 = vmatprep.subr.bf16.mxu0 0
        %1572 = vmatpush2.bf16.msra.mxu0 0
        %1573 = vmatprep.subr.bf16.mxu0 0
        %1574 = vmatpush2.bf16.msra.mxu0 0
        %1575 = vmatprep.subr.bf16.mxu0 0
        %1576 = vmatpush2.bf16.msra.mxu0 0
        %1577 = vmatprep.subr.bf16.mxu0 0
        %1578 = vmatpush2.bf16.msra.mxu0 0
        %1579 = vmatprep.subr.bf16.mxu0 0
        %1580 = vmatpush2.bf16.msra.mxu0 0
        %1581 = vmatprep.subr.bf16.mxu0 0
        %1582 = vmatpush2.bf16.msra.mxu0 0
        %1583 = vmatprep.mubr.bf16.mxu0 0
        %1584 = vmatmul.mubr.bf16.gmra.mxu0 %v1493
        %v1585 = vpop.f32.mrf.mxu0
        %v1586 = vadd.f32 0.0, %v1585
        %v1587 = vpop.f32.mrf.mxu0
        %v1588 = vadd.f32 0.0, %v1587
        %v1589 = vpop.f32.mrf.mxu0
        %v1590 = vadd.f32 0.0, %v1589
        %v1591 = vpop.f32.mrf.mxu0
        %v1592 = vadd.f32 0.0, %v1591
        %1593 = vmatprep.mubr.bf16.mxu0 0
        %1594 = vmatmul.mubr.bf16.gmra.mxu0 %v1496
        %v1595 = vpop.f32.mrf.mxu0
        %v1596 = vadd.f32 0.0, %v1595
        %v1597 = vpop.f32.mrf.mxu0
        %v1598 = vadd.f32 0.0, %v1597
        %v1599 = vpop.f32.mrf.mxu0
        %v1600 = vadd.f32 0.0, %v1599
        %v1601 = vpop.f32.mrf.mxu0
        %v1602 = vadd.f32 0.0, %v1601
        %1603 = vdwg.mxu0
        %v1604 = vadd.f32 %v1323, %v1533
        %v1605 = vadd.f32 %v1324, %v1535
        %v1606 = vadd.f32 %v1325, %v1586
        %v1607 = vadd.f32 %v1326, %v1588
        %v1608 = vadd.f32 %v1327, %v1537
        %v1609 = vadd.f32 %v1328, %v1539
        %v1610 = vadd.f32 %v1329, %v1590
        %v1611 = vadd.f32 %v1330, %v1592
        %v1612 = vadd.f32 %v1331, %v1543
        %v1613 = vadd.f32 %v1332, %v1545
        %v1614 = vadd.f32 %v1333, %v1596
        %v1615 = vadd.f32 %v1334, %v1598
        %v1616 = vadd.f32 %v1335, %v1547
        %v1617 = vadd.f32 %v1336, %v1549
        %v1618 = vadd.f32 %v1337, %v1600
        %v1619 = vadd.f32 %v1338, %v1602
        %s1620 = scalar_lea.vmem [#allocation8], 768
        %v1621 = vld [vmem:[%s1620] sm:$0xff]
        %v1622 = vld [vmem:[%s1620 + $0x8] sm:$0xff]
        %v1623 = vld [vmem:[%s1620 + $0x10] sm:$0xff]
        %v1624 = vld [vmem:[%s1620 + $0x18] sm:$0xff]
        %v1625 = vld [vmem:[%s1620 + $0x20] sm:$0xff]
        %v1626 = vld [vmem:[%s1620 + $0x28] sm:$0xff]
        %v1627 = vld [vmem:[%s1620 + $0x30] sm:$0xff]
        %v1628 = vld [vmem:[%s1620 + $0x38] sm:$0xff]
        %v1629 = vld [vmem:[%s1620 + $0x40] sm:$0xff]
        %v1630 = vld [vmem:[%s1620 + $0x48] sm:$0xff]
        %v1631 = vld [vmem:[%s1620 + $0x50] sm:$0xff]
        %v1632 = vld [vmem:[%s1620 + $0x58] sm:$0xff]
        %v1633 = vld [vmem:[%s1620 + $0x60] sm:$0xff]
        %v1634 = vld [vmem:[%s1620 + $0x68] sm:$0xff]
        %v1635 = vld [vmem:[%s1620 + $0x70] sm:$0xff]
        %v1636 = vld [vmem:[%s1620 + $0x78] sm:$0xff]
        %v1637 = vld [vmem:[%s1620 + $0x80] sm:$0xff]
        %v1638 = vld [vmem:[%s1620 + $0x88] sm:$0xff]
        %v1639 = vld [vmem:[%s1620 + $0x90] sm:$0xff]
        %v1640 = vld [vmem:[%s1620 + $0x98] sm:$0xff]
        %v1641 = vld [vmem:[%s1620 + $0xa0] sm:$0xff]
        %v1642 = vld [vmem:[%s1620 + $0xa8] sm:$0xff]
        %v1643 = vld [vmem:[%s1620 + $0xb0] sm:$0xff]
        %v1644 = vld [vmem:[%s1620 + $0xb8] sm:$0xff]
        %vm1645 = vcmask 1045504
        %v1646 = vrot.slane %v530, 2
        %v1647 = vrot.slane %v531, 2
        %v1648 = vsel %vm1645, %v1646, %v1647
        %v1673 = vunpack.c.l.b16 %v1621
        %v1674 = vunpack.c.h.b16 %v1621
        %v1675 = vunpack.c.l.b16 %v1622
        %v1676 = vunpack.c.h.b16 %v1622
        %v1677 = vunpack.c.l.b16 %v1623
        %v1678 = vunpack.c.h.b16 %v1623
        %v1679 = vunpack.c.l.b16 %v1624
        %v1680 = vunpack.c.h.b16 %v1624
        %v1681 = vunpack.c.l.b16 %v1625
        %v1682 = vunpack.c.h.b16 %v1625
        %v1683 = vunpack.c.l.b16 %v1626
        %v1684 = vunpack.c.h.b16 %v1626
        %v1685 = vunpack.c.l.b16 %v1627
        %v1686 = vunpack.c.h.b16 %v1627
        %v1687 = vunpack.c.l.b16 %v1628
        %v1688 = vunpack.c.h.b16 %v1628
        %v1689 = vunpack.c.l.b16 %v1629
        %v1690 = vunpack.c.h.b16 %v1629
        %v1691 = vunpack.c.l.b16 %v1630
        %v1692 = vunpack.c.h.b16 %v1630
        %v1693 = vunpack.c.l.b16 %v1631
        %v1694 = vunpack.c.h.b16 %v1631
        %v1695 = vunpack.c.l.b16 %v1632
        %v1696 = vunpack.c.h.b16 %v1632
        %v1697 = vunpack.c.l.b16 %v1633
        %v1698 = vunpack.c.h.b16 %v1633
        %v1699 = vunpack.c.l.b16 %v1634
        %v1700 = vunpack.c.h.b16 %v1634
        %v1701 = vunpack.c.l.b16 %v1635
        %v1702 = vunpack.c.h.b16 %v1635
        %v1703 = vunpack.c.l.b16 %v1636
        %v1704 = vunpack.c.h.b16 %v1636
        %v1705 = vunpack.c.l.b16 %v1637
        %v1706 = vunpack.c.h.b16 %v1637
        %v1707 = vunpack.c.l.b16 %v1638
        %v1708 = vunpack.c.h.b16 %v1638
        %v1709 = vunpack.c.l.b16 %v1639
        %v1710 = vunpack.c.h.b16 %v1639
        %v1711 = vunpack.c.l.b16 %v1640
        %v1712 = vunpack.c.h.b16 %v1640
        %v1713 = vunpack.c.l.b16 %v1641
        %v1714 = vunpack.c.h.b16 %v1641
        %v1715 = vunpack.c.l.b16 %v1642
        %v1716 = vunpack.c.h.b16 %v1642
        %v1717 = vunpack.c.l.b16 %v1643
        %v1718 = vunpack.c.h.b16 %v1643
        %v1719 = vunpack.c.l.b16 %v1644
        %v1720 = vunpack.c.h.b16 %v1644
        %v1721 = vpack.c.b16 %v1677, %v1673
        %v1722 = vpack.c.b16 %v1678, %v1674
        %v1723 = vpack.c.b16 %v1679, %v1675
        %v1724 = vpack.c.b16 %v1680, %v1676
        %v1725 = vpack.c.b16 %v1685, %v1681
        %v1726 = vpack.c.b16 %v1686, %v1682
        %v1727 = vpack.c.b16 %v1687, %v1683
        %v1728 = vpack.c.b16 %v1688, %v1684
        %v1729 = vpack.c.b16 %v1693, %v1689
        %v1730 = vpack.c.b16 %v1694, %v1690
        %v1731 = vpack.c.b16 %v1695, %v1691
        %v1732 = vpack.c.b16 %v1696, %v1692
        %v1733 = vpack.c.b16 %v1701, %v1697
        %v1734 = vpack.c.b16 %v1702, %v1698
        %v1735 = vpack.c.b16 %v1703, %v1699
        %v1736 = vpack.c.b16 %v1704, %v1700
        %v1737 = vpack.c.b16 %v1709, %v1705
        %v1738 = vpack.c.b16 %v1710, %v1706
        %v1739 = vpack.c.b16 %v1711, %v1707
        %v1740 = vpack.c.b16 %v1712, %v1708
        %v1741 = vpack.c.b16 %v1717, %v1713
        %v1742 = vpack.c.b16 %v1718, %v1714
        %v1743 = vpack.c.b16 %v1719, %v1715
        %v1744 = vpack.c.b16 %v1720, %v1716
        %v1770 = vsel %vm717, %v1648, 0
        %v1773 = vsel %vm717, %v1647, 0
        %1775 = vmatprep.subr.bf16.mxu0 0
        %1776 = vmatpush1.bf16.msra.mxu0 0
        %1777 = vmatprep.subr.bf16.mxu0 0
        %1778 = vmatpush1.bf16.msra.mxu0 0
        %1779 = vmatprep.subr.bf16.mxu0 %v1742
        %1780 = vmatpush1.bf16.msra.mxu0 %v1741
        %1781 = vmatprep.subr.bf16.mxu0 %v1738
        %1782 = vmatpush1.bf16.msra.mxu0 %v1737
        %1783 = vmatprep.subr.bf16.mxu0 %v1734
        %1784 = vmatpush1.bf16.msra.mxu0 %v1733
        %1785 = vmatprep.subr.bf16.mxu0 %v1730
        %1786 = vmatpush1.bf16.msra.mxu0 %v1729
        %1787 = vmatprep.subr.bf16.mxu0 %v1726
        %1788 = vmatpush1.bf16.msra.mxu0 %v1725
        %1789 = vmatprep.subr.bf16.mxu0 %v1722
        %1790 = vmatpush1.bf16.msra.mxu0 %v1721
        %1791 = vmatprep.subr.bf16.mxu0 0
        %1792 = vmatpush2.bf16.msra.mxu0 0
        %1793 = vmatprep.subr.bf16.mxu0 0
        %1794 = vmatpush2.bf16.msra.mxu0 0
        %1795 = vmatprep.subr.bf16.mxu0 0
        %1796 = vmatpush2.bf16.msra.mxu0 0
        %1797 = vmatprep.subr.bf16.mxu0 0
        %1798 = vmatpush2.bf16.msra.mxu0 0
        %1799 = vmatprep.subr.bf16.mxu0 0
        %1800 = vmatpush2.bf16.msra.mxu0 0
        %1801 = vmatprep.subr.bf16.mxu0 0
        %1802 = vmatpush2.bf16.msra.mxu0 0
        %1803 = vmatprep.subr.bf16.mxu0 0
        %1804 = vmatpush2.bf16.msra.mxu0 0
        %1805 = vmatprep.subr.bf16.mxu0 0
        %1806 = vmatpush2.bf16.msra.mxu0 0
        %1807 = vmatprep.mubr.bf16.mxu0 0
        %1808 = vmatmul.mubr.bf16.gmra.mxu0 %v1770
        %v1809 = vpop.f32.mrf.mxu0
        %v1810 = vadd.f32 0.0, %v1809
        %v1811 = vpop.f32.mrf.mxu0
        %v1812 = vadd.f32 0.0, %v1811
        %v1813 = vpop.f32.mrf.mxu0
        %v1814 = vadd.f32 0.0, %v1813
        %v1815 = vpop.f32.mrf.mxu0
        %v1816 = vadd.f32 0.0, %v1815
        %1817 = vmatprep.mubr.bf16.mxu0 0
        %1818 = vmatmul.mubr.bf16.gmra.mxu0 %v1773
        %v1819 = vpop.f32.mrf.mxu0
        %v1820 = vadd.f32 0.0, %v1819
        %v1821 = vpop.f32.mrf.mxu0
        %v1822 = vadd.f32 0.0, %v1821
        %v1823 = vpop.f32.mrf.mxu0
        %v1824 = vadd.f32 0.0, %v1823
        %v1825 = vpop.f32.mrf.mxu0
        %v1826 = vadd.f32 0.0, %v1825
        %1827 = vdwg.mxu0
        %1828 = vmatprep.subr.bf16.mxu0 0
        %1829 = vmatpush1.bf16.msra.mxu0 0
        %1830 = vmatprep.subr.bf16.mxu0 0
        %1831 = vmatpush1.bf16.msra.mxu0 0
        %1832 = vmatprep.subr.bf16.mxu0 %v1744
        %1833 = vmatpush1.bf16.msra.mxu0 %v1743
        %1834 = vmatprep.subr.bf16.mxu0 %v1740
        %1835 = vmatpush1.bf16.msra.mxu0 %v1739
        %1836 = vmatprep.subr.bf16.mxu0 %v1736
        %1837 = vmatpush1.bf16.msra.mxu0 %v1735
        %1838 = vmatprep.subr.bf16.mxu0 %v1732
        %1839 = vmatpush1.bf16.msra.mxu0 %v1731
        %1840 = vmatprep.subr.bf16.mxu0 %v1728
        %1841 = vmatpush1.bf16.msra.mxu0 %v1727
        %1842 = vmatprep.subr.bf16.mxu0 %v1724
        %1843 = vmatpush1.bf16.msra.mxu0 %v1723
        %1844 = vmatprep.subr.bf16.mxu0 0
        %1845 = vmatpush2.bf16.msra.mxu0 0
        %1846 = vmatprep.subr.bf16.mxu0 0
        %1847 = vmatpush2.bf16.msra.mxu0 0
        %1848 = vmatprep.subr.bf16.mxu0 0
        %1849 = vmatpush2.bf16.msra.mxu0 0
        %1850 = vmatprep.subr.bf16.mxu0 0
        %1851 = vmatpush2.bf16.msra.mxu0 0
        %1852 = vmatprep.subr.bf16.mxu0 0
        %1853 = vmatpush2.bf16.msra.mxu0 0
        %1854 = vmatprep.subr.bf16.mxu0 0
        %1855 = vmatpush2.bf16.msra.mxu0 0
        %1856 = vmatprep.subr.bf16.mxu0 0
        %1857 = vmatpush2.bf16.msra.mxu0 0
        %1858 = vmatprep.subr.bf16.mxu0 0
        %1859 = vmatpush2.bf16.msra.mxu0 0
        %1860 = vmatprep.mubr.bf16.mxu0 0
        %1861 = vmatmul.mubr.bf16.gmra.mxu0 %v1770
        %v1862 = vpop.f32.mrf.mxu0
        %v1863 = vadd.f32 0.0, %v1862
        %v1864 = vpop.f32.mrf.mxu0
        %v1865 = vadd.f32 0.0, %v1864
        %v1866 = vpop.f32.mrf.mxu0
        %v1867 = vadd.f32 0.0, %v1866
        %v1868 = vpop.f32.mrf.mxu0
        %v1869 = vadd.f32 0.0, %v1868
        %1870 = vmatprep.mubr.bf16.mxu0 0
        %1871 = vmatmul.mubr.bf16.gmra.mxu0 %v1773
        %v1872 = vpop.f32.mrf.mxu0
        %v1873 = vadd.f32 0.0, %v1872
        %v1874 = vpop.f32.mrf.mxu0
        %v1875 = vadd.f32 0.0, %v1874
        %v1876 = vpop.f32.mrf.mxu0
        %v1877 = vadd.f32 0.0, %v1876
        %v1878 = vpop.f32.mrf.mxu0
        %v1879 = vadd.f32 0.0, %v1878
        %1880 = vdwg.mxu0
        %v1881 = vadd.f32 %v1604, %v1810
        %v1882 = vadd.f32 %v1605, %v1812
        %v1883 = vadd.f32 %v1606, %v1863
        %v1884 = vadd.f32 %v1607, %v1865
        %v1885 = vadd.f32 %v1608, %v1814
        %v1886 = vadd.f32 %v1609, %v1816
        %v1887 = vadd.f32 %v1610, %v1867
        %v1888 = vadd.f32 %v1611, %v1869
        %v1889 = vadd.f32 %v1612, %v1820
        %v1890 = vadd.f32 %v1613, %v1822
        %v1891 = vadd.f32 %v1614, %v1873
        %v1892 = vadd.f32 %v1615, %v1875
        %v1893 = vadd.f32 %v1616, %v1824
        %v1894 = vadd.f32 %v1617, %v1826
        %v1895 = vadd.f32 %v1618, %v1877
        %v1896 = vadd.f32 %v1619, %v1879
        %v1897 = vld [vmem:[%s2] sm:$0xf]
        %v1899 = vlaneseq
        %v1900 = vshrl.u32 %v1899, 7
        %v1901 = vsub.s32 0, %v1900
        %v1902 = vrot.slane %v1897, %v1901
        %v1903 = vlaneseq
        %v1904 = vshrl.u32 %v1903, 7
        %v1905 = vsub.s32 1, %v1904
        %v1906 = vrot.slane %v1897, %v1905
        %v1907 = vlaneseq
        %v1908 = vshrl.u32 %v1907, 7
        %v1909 = vsub.s32 2, %v1908
        %v1910 = vrot.slane %v1897, %v1909
        %v1911 = vlaneseq
        %v1912 = vshrl.u32 %v1911, 7
        %v1913 = vsub.s32 3, %v1912
        %v1914 = vrot.slane %v1897, %v1913
        %v1919 = vadd.f32 %v1881, %v1902
        %v1920 = vadd.f32 %v1882, %v1906
        %v1921 = vadd.f32 %v1883, %v1910
        %v1922 = vadd.f32 %v1884, %v1914
        %v1923 = vadd.f32 %v1885, %v1902
        %v1924 = vadd.f32 %v1886, %v1906
        %v1925 = vadd.f32 %v1887, %v1910
        %v1926 = vadd.f32 %v1888, %v1914
        %v1927 = vadd.f32 %v1889, %v1902
        %v1928 = vadd.f32 %v1890, %v1906
        %v1929 = vadd.f32 %v1891, %v1910
        %v1930 = vadd.f32 %v1892, %v1914
        %v1931 = vadd.f32 %v1893, %v1902
        %v1932 = vadd.f32 %v1894, %v1906
        %v1933 = vadd.f32 %v1895, %v1910
        %v1934 = vadd.f32 %v1896, %v1914
        %v1935 = vmax.f32 %v1919, 0.0
        %v1936 = vmax.f32 %v1920, 0.0
        %v1937 = vmax.f32 %v1921, 0.0
        %v1938 = vmax.f32 %v1922, 0.0
        %v1939 = vmax.f32 %v1923, 0.0
        %v1940 = vmax.f32 %v1924, 0.0
        %v1941 = vmax.f32 %v1925, 0.0
        %v1942 = vmax.f32 %v1926, 0.0
        %v1943 = vmax.f32 %v1927, 0.0
        %v1944 = vmax.f32 %v1928, 0.0
        %v1945 = vmax.f32 %v1929, 0.0
        %v1946 = vmax.f32 %v1930, 0.0
        %v1947 = vmax.f32 %v1931, 0.0
        %v1948 = vmax.f32 %v1932, 0.0
        %v1949 = vmax.f32 %v1933, 0.0
        %v1950 = vmax.f32 %v1934, 0.0
        %1951 = vst [vmem:[#allocation2] sm:$0xff] %v1935
        %1952 = vst [vmem:[#allocation2 + $0x8] sm:$0xff] %v1936
        %1953 = vst [vmem:[#allocation2 + $0x10] sm:$0xff] %v1937
        %vm1954 = vcmask 523264
        %1955 = vst.msk [vmem:[#allocation2 + $0x18] sm:$0xff] %vm1954, %v1938
        %1956 = vst [vmem:[#allocation2 + $0x20] sm:$0xff] %v1939
        %1957 = vst [vmem:[#allocation2 + $0x28] sm:$0xff] %v1940
        %1958 = vst [vmem:[#allocation2 + $0x30] sm:$0xff] %v1941
        %1959 = vst.msk [vmem:[#allocation2 + $0x38] sm:$0xff] %vm1954, %v1942
        %1960 = vst [vmem:[#allocation2 + $0x40] sm:$0xff] %v1943
        %1961 = vst [vmem:[#allocation2 + $0x48] sm:$0xff] %v1944
        %1962 = vst [vmem:[#allocation2 + $0x50] sm:$0xff] %v1945
        %1963 = vst.msk [vmem:[#allocation2 + $0x58] sm:$0xff] %vm1954, %v1946
        %1964 = vst [vmem:[#allocation2 + $0x60] sm:$0xf] %v1947
        %1965 = vst [vmem:[#allocation2 + $0x68] sm:$0xf] %v1948
        %1966 = vst [vmem:[#allocation2 + $0x70] sm:$0xf] %v1949
        %vm1967 = vcmask 519168
        %1968 = vst.msk [vmem:[#allocation2 + $0x78] sm:$0xf] %vm1967, %v1950
        %v1969 = vld [vmem:[#allocation2] ss:$8 sm:$0xf]
        %s1970 = scalar_lea.vmem [#allocation2], 1
        %v1971 = vld [vmem:[%s1970] ss:$8 sm:$0xf]
        %v1972 = vmax.f32 %v1969, %v1971
        %v1973 = vlaneseq
        %vm1974 = vcmp.ge.s32.totalorder %v1973, 0
        %vm1975 = vcmp.lt.s32.totalorder %v1973, 448
        %vm1976 = vmand %vm1974, %vm1975
        %1977 = vst.msk [vmem:[#allocation3] ss:$8 sm:$0xf] %vm1976, %v1972
        %1978 = vst.msk [vmem:[#allocation3] ss:$8 sm:$0x0] %vm1976, %v1972
        %s1979 = scalar_lea.vmem [#allocation2], 2
        %v1980 = vld [vmem:[%s1979] ss:$8 sm:$0xf]
        %s1981 = scalar_lea.vmem [#allocation2], 3
        %v1982 = vld [vmem:[%s1981] ss:$8 sm:$0xf]
        %v1983 = vmax.f32 %v1980, %v1982
        %s1984 = scalar_lea.vmem [#allocation3], 1
        %1985 = vst.msk [vmem:[%s1984] ss:$8 sm:$0xf] %vm1976, %v1983
        %1986 = vst.msk [vmem:[%s1984] ss:$8 sm:$0x0] %vm1976, %v1983
        %s1987 = scalar_lea.vmem [#allocation2], 4
        %v1988 = vld [vmem:[%s1987] ss:$8 sm:$0xf]
        %s1989 = scalar_lea.vmem [#allocation2], 5
        %v1990 = vld [vmem:[%s1989] ss:$8 sm:$0xf]
        %v1991 = vmax.f32 %v1988, %v1990
        %s1992 = scalar_lea.vmem [#allocation3], 2
        %1993 = vst.msk [vmem:[%s1992] ss:$8 sm:$0xf] %vm1976, %v1991
        %1994 = vst.msk [vmem:[%s1992] ss:$8 sm:$0x0] %vm1976, %v1991
        %s1995 = scalar_lea.vmem [#allocation2], 6
        %v1996 = vld [vmem:[%s1995] ss:$8 sm:$0xf]
        %s1997 = scalar_lea.vmem [#allocation2], 7
        %v1998 = vld [vmem:[%s1997] ss:$8 sm:$0xf]
        %v1999 = vmax.f32 %v1996, %v1998
        %s2000 = scalar_lea.vmem [#allocation3], 3
        %2001 = vst.msk [vmem:[%s2000] ss:$8 sm:$0xf] %vm1976, %v1999
        %2002 = vst.msk [vmem:[%s2000] ss:$8 sm:$0x0] %vm1976, %v1999
        %s2003 = scalar_lea.vmem [#allocation2], 32
        %v2004 = vld [vmem:[%s2003] ss:$8 sm:$0xf]
        %s2005 = scalar_lea.vmem [#allocation2], 33
        %v2006 = vld [vmem:[%s2005] ss:$8 sm:$0xf]
        %v2007 = vmax.f32 %v2004, %v2006
        %s2008 = scalar_lea.vmem [#allocation3], 4
        %2009 = vst.msk [vmem:[%s2008] ss:$8 sm:$0xf] %vm1976, %v2007
        %2010 = vst.msk [vmem:[%s2008] ss:$8 sm:$0x0] %vm1976, %v2007
        %s2011 = scalar_lea.vmem [#allocation2], 34
        %v2012 = vld [vmem:[%s2011] ss:$8 sm:$0xf]
        %s2013 = scalar_lea.vmem [#allocation2], 35
        %v2014 = vld [vmem:[%s2013] ss:$8 sm:$0xf]
        %v2015 = vmax.f32 %v2012, %v2014
        %s2016 = scalar_lea.vmem [#allocation3], 5
        %2017 = vst.msk [vmem:[%s2016] ss:$8 sm:$0xf] %vm1976, %v2015
        %2018 = vst.msk [vmem:[%s2016] ss:$8 sm:$0x0] %vm1976, %v2015
        %s2019 = scalar_lea.vmem [#allocation2], 36
        %v2020 = vld [vmem:[%s2019] ss:$8 sm:$0xf]
        %s2021 = scalar_lea.vmem [#allocation2], 37
        %v2022 = vld [vmem:[%s2021] ss:$8 sm:$0xf]
        %v2023 = vmax.f32 %v2020, %v2022
        %s2024 = scalar_lea.vmem [#allocation3], 6
        %2025 = vst.msk [vmem:[%s2024] ss:$8 sm:$0xf] %vm1976, %v2023
        %2026 = vst.msk [vmem:[%s2024] ss:$8 sm:$0x0] %vm1976, %v2023
        %s2027 = scalar_lea.vmem [#allocation2], 38
        %v2028 = vld [vmem:[%s2027] ss:$8 sm:$0xf]
        %s2029 = scalar_lea.vmem [#allocation2], 39
        %v2030 = vld [vmem:[%s2029] ss:$8 sm:$0xf]
        %v2031 = vmax.f32 %v2028, %v2030
        %s2032 = scalar_lea.vmem [#allocation3], 7
        %2033 = vst.msk [vmem:[%s2032] ss:$8 sm:$0xf] %vm1976, %v2031
        %2034 = vst.msk [vmem:[%s2032] ss:$8 sm:$0x0] %vm1976, %v2031
        %s2035 = scalar_lea.vmem [#allocation2], 64
        %v2036 = vld [vmem:[%s2035] ss:$8 sm:$0xf]
        %s2037 = scalar_lea.vmem [#allocation2], 65
        %v2038 = vld [vmem:[%s2037] ss:$8 sm:$0xf]
        %v2039 = vmax.f32 %v2036, %v2038
        %s2040 = scalar_lea.vmem [#allocation3], 32
        %2041 = vst.msk [vmem:[%s2040] ss:$8 sm:$0xf] %vm1976, %v2039
        %2042 = vst.msk [vmem:[%s2040] ss:$8 sm:$0x0] %vm1976, %v2039
        %s2043 = scalar_lea.vmem [#allocation2], 66
        %v2044 = vld [vmem:[%s2043] ss:$8 sm:$0xf]
        %s2045 = scalar_lea.vmem [#allocation2], 67
        %v2046 = vld [vmem:[%s2045] ss:$8 sm:$0xf]
        %v2047 = vmax.f32 %v2044, %v2046
        %s2048 = scalar_lea.vmem [#allocation3], 33
        %2049 = vst.msk [vmem:[%s2048] ss:$8 sm:$0xf] %vm1976, %v2047
        %2050 = vst.msk [vmem:[%s2048] ss:$8 sm:$0x0] %vm1976, %v2047
        %s2051 = scalar_lea.vmem [#allocation2], 68
        %v2052 = vld [vmem:[%s2051] ss:$8 sm:$0xf]
        %s2053 = scalar_lea.vmem [#allocation2], 69
        %v2054 = vld [vmem:[%s2053] ss:$8 sm:$0xf]
        %v2055 = vmax.f32 %v2052, %v2054
        %s2056 = scalar_lea.vmem [#allocation3], 34
        %2057 = vst.msk [vmem:[%s2056] ss:$8 sm:$0xf] %vm1976, %v2055
        %2058 = vst.msk [vmem:[%s2056] ss:$8 sm:$0x0] %vm1976, %v2055
        %s2059 = scalar_lea.vmem [#allocation2], 70
        %v2060 = vld [vmem:[%s2059] ss:$8 sm:$0xf]
        %s2061 = scalar_lea.vmem [#allocation2], 71
        %v2062 = vld [vmem:[%s2061] ss:$8 sm:$0xf]
        %v2063 = vmax.f32 %v2060, %v2062
        %s2064 = scalar_lea.vmem [#allocation3], 35
        %2065 = vst.msk [vmem:[%s2064] ss:$8 sm:$0xf] %vm1976, %v2063
        %2066 = vst.msk [vmem:[%s2064] ss:$8 sm:$0x0] %vm1976, %v2063
        %s2067 = scalar_lea.vmem [#allocation2], 96
        %v2068 = vld [vmem:[%s2067] ss:$8 sm:$0xf]
        %s2069 = scalar_lea.vmem [#allocation2], 97
        %v2070 = vld [vmem:[%s2069] ss:$8 sm:$0xf]
        %v2071 = vmax.f32 %v2068, %v2070
        %s2072 = scalar_lea.vmem [#allocation3], 36
        %2073 = vst.msk [vmem:[%s2072] ss:$8 sm:$0xf] %vm1976, %v2071
        %2074 = vst.msk [vmem:[%s2072] ss:$8 sm:$0x0] %vm1976, %v2071
        %s2075 = scalar_lea.vmem [#allocation2], 98
        %v2076 = vld [vmem:[%s2075] ss:$8 sm:$0xf]
        %s2077 = scalar_lea.vmem [#allocation2], 99
        %v2078 = vld [vmem:[%s2077] ss:$8 sm:$0xf]
        %v2079 = vmax.f32 %v2076, %v2078
        %s2080 = scalar_lea.vmem [#allocation3], 37
        %2081 = vst.msk [vmem:[%s2080] ss:$8 sm:$0xf] %vm1976, %v2079
        %2082 = vst.msk [vmem:[%s2080] ss:$8 sm:$0x0] %vm1976, %v2079
        %v2083 = vld [vmem:[#allocation3] sm:$0xff]
        %v2084 = vld [vmem:[#allocation3 + $0x8] sm:$0xff]
        %v2085 = vld [vmem:[#allocation3 + $0x10] sm:$0xff]
        %v2086 = vld [vmem:[#allocation3 + $0x18] sm:$0xff]
        %v2087 = vld [vmem:[#allocation3 + $0x20] sm:$0x3f]
        %v2088 = vld [vmem:[#allocation3 + $0x28] sm:$0x3f]
        %v2089 = vld [vmem:[#allocation3 + $0x30] sm:$0x3f]
        %v2090 = vld [vmem:[#allocation3 + $0x38] sm:$0x3f]
        %2093 = vrot.lane.b32.xlu0 %v2083, 112
        %v2094 = vpop.permute.xlu0 %2093
        %2095 = vrot.lane.b32.xlu0 %v2087, 112
        %v2096 = vpop.permute.xlu0 %2095
        %v2099 = vmax.f32 %v2083, %v2094
        %v2100 = vmax.f32 %v2087, %v2096
        %vm2101 = vcmask 130048
        %2102 = vst.msk [vmem:[#allocation4] sm:$0xff] %vm2101, %v2099
        %vm2103 = vcmask 128000
        %2104 = vst.msk [vmem:[#allocation4 + $0x10] sm:$0x3f] %vm2103, %v2100
        %2107 = vrot.lane.b32.xlu0 %v2099, 112
        %v2108 = vpop.permute.xlu0 %2107
        %2109 = vrot.lane.b32.xlu0 %v2100, 112
        %v2110 = vpop.permute.xlu0 %2109
        %vm2113 = vcmask 261248
        %2114 = vst.msk [vmem:[#allocation4] sm:$0xff] %vm2113, %v2108
        %vm2115 = vcmask 259200
        %2116 = vst.msk [vmem:[#allocation4 + $0x10] sm:$0x3f] %vm2115, %v2110
        %2117 = vrot.lane.b32.xlu0 %v2099, 96
        %v2118 = vpop.permute.xlu0 %2117
        %2119 = vrot.lane.b32.xlu0 %v2100, 96
        %v2120 = vpop.permute.xlu0 %2119
        %vm2123 = vcmask 392448
        %2124 = vst.msk [vmem:[#allocation4] sm:$0xff] %vm2123, %v2118
        %vm2125 = vcmask 390400
        %2126 = vst.msk [vmem:[#allocation4 + $0x10] sm:$0x3f] %vm2125, %v2120
        %2127 = vrot.lane.b32.xlu0 %v2099, 80
        %v2128 = vpop.permute.xlu0 %2127
        %2129 = vrot.lane.b32.xlu0 %v2100, 80
        %v2130 = vpop.permute.xlu0 %2129
        %vm2133 = vcmask 523648
        %2134 = vst.msk [vmem:[#allocation4] sm:$0xff] %vm2133, %v2128
        %vm2135 = vcmask 521600
        %2136 = vst.msk [vmem:[#allocation4 + $0x10] sm:$0x3f] %vm2135, %v2130
        %2139 = vrot.lane.b32.xlu0 %v2084, 112
        %v2140 = vpop.permute.xlu0 %2139
        %2141 = vrot.lane.b32.xlu0 %v2088, 112
        %v2142 = vpop.permute.xlu0 %2141
        %v2145 = vmax.f32 %v2084, %v2140
        %v2146 = vmax.f32 %v2088, %v2142
        %2149 = vrot.lane.b32.xlu0 %v2145, 64
        %v2150 = vpop.permute.xlu0 %2149
        %2151 = vrot.lane.b32.xlu0 %v2146, 64
        %v2152 = vpop.permute.xlu0 %2151
        %vm2155 = vcmask 654848
        %2156 = vst.msk [vmem:[#allocation4] sm:$0xff] %vm2155, %v2150
        %vm2157 = vcmask 652800
        %2158 = vst.msk [vmem:[#allocation4 + $0x10] sm:$0x3f] %vm2157, %v2152
        %2159 = vrot.lane.b32.xlu0 %v2145, 48
        %v2160 = vpop.permute.xlu0 %2159
        %2161 = vrot.lane.b32.xlu0 %v2146, 48
        %v2162 = vpop.permute.xlu0 %2161
        %vm2165 = vcmask 786048
        %2166 = vst.msk [vmem:[#allocation4] sm:$0xff] %vm2165, %v2160
        %vm2167 = vcmask 784000
        %2168 = vst.msk [vmem:[#allocation4 + $0x10] sm:$0x3f] %vm2167, %v2162
        %2169 = vrot.lane.b32.xlu0 %v2145, 32
        %v2170 = vpop.permute.xlu0 %2169
        %2171 = vrot.lane.b32.xlu0 %v2146, 32
        %v2172 = vpop.permute.xlu0 %2171
        %vm2175 = vcmask 917248
        %2176 = vst.msk [vmem:[#allocation4] sm:$0xff] %vm2175, %v2170
        %vm2177 = vcmask 915200
        %2178 = vst.msk [vmem:[#allocation4 + $0x10] sm:$0x3f] %vm2177, %v2172
        %2179 = vrot.lane.b32.xlu0 %v2145, 16
        %v2180 = vpop.permute.xlu0 %2179
        %2181 = vrot.lane.b32.xlu0 %v2146, 16
        %v2182 = vpop.permute.xlu0 %2181
        %vm2185 = vcmask 1048448
        %2186 = vst.msk [vmem:[#allocation4] sm:$0xff] %vm2185, %v2180
        %vm2187 = vcmask 1046400
        %2188 = vst.msk [vmem:[#allocation4 + $0x10] sm:$0x3f] %vm2187, %v2182
        %2191 = vrot.lane.b32.xlu0 %v2085, 112
        %v2192 = vpop.permute.xlu0 %2191
        %2193 = vrot.lane.b32.xlu0 %v2089, 112
        %v2194 = vpop.permute.xlu0 %2193
        %v2197 = vmax.f32 %v2085, %v2192
        %v2198 = vmax.f32 %v2089, %v2194
        %2199 = vst.msk [vmem:[#allocation4 + $0x8] sm:$0xff] %vm2101, %v2197
        %2200 = vst.msk [vmem:[#allocation4 + $0x18] sm:$0x3f] %vm2103, %v2198
        %2203 = vrot.lane.b32.xlu0 %v2197, 112
        %v2204 = vpop.permute.xlu0 %2203
        %2205 = vrot.lane.b32.xlu0 %v2198, 112
        %v2206 = vpop.permute.xlu0 %2205
        %2209 = vst.msk [vmem:[#allocation4 + $0x8] sm:$0xff] %vm2113, %v2204
        %2210 = vst.msk [vmem:[#allocation4 + $0x18] sm:$0x3f] %vm2115, %v2206
        %2211 = vrot.lane.b32.xlu0 %v2197, 96
        %v2212 = vpop.permute.xlu0 %2211
        %2213 = vrot.lane.b32.xlu0 %v2198, 96
        %v2214 = vpop.permute.xlu0 %2213
        %2217 = vst.msk [vmem:[#allocation4 + $0x8] sm:$0xff] %vm2123, %v2212
        %2218 = vst.msk [vmem:[#allocation4 + $0x18] sm:$0x3f] %vm2125, %v2214
        %2219 = vrot.lane.b32.xlu0 %v2197, 80
        %v2220 = vpop.permute.xlu0 %2219
        %2221 = vrot.lane.b32.xlu0 %v2198, 80
        %v2222 = vpop.permute.xlu0 %2221
        %2225 = vst.msk [vmem:[#allocation4 + $0x8] sm:$0xff] %vm2133, %v2220
        %2226 = vst.msk [vmem:[#allocation4 + $0x18] sm:$0x3f] %vm2135, %v2222
        %2229 = vrot.lane.b32.xlu0 %v2086, 112
        %v2230 = vpop.permute.xlu0 %2229
        %2231 = vrot.lane.b32.xlu0 %v2090, 112
        %v2232 = vpop.permute.xlu0 %2231
        %v2235 = vmax.f32 %v2086, %v2230
        %v2236 = vmax.f32 %v2090, %v2232
        %2239 = vrot.lane.b32.xlu0 %v2235, 64
        %v2240 = vpop.permute.xlu0 %2239
        %2241 = vrot.lane.b32.xlu0 %v2236, 64
        %v2242 = vpop.permute.xlu0 %2241
        %2245 = vst.msk [vmem:[#allocation4 + $0x8] sm:$0xff] %vm2155, %v2240
        %2246 = vst.msk [vmem:[#allocation4 + $0x18] sm:$0x3f] %vm2157, %v2242
        %2247 = vrot.lane.b32.xlu0 %v2235, 48
        %v2248 = vpop.permute.xlu0 %2247
        %2249 = vrot.lane.b32.xlu0 %v2236, 48
        %v2250 = vpop.permute.xlu0 %2249
        %2253 = vst.msk [vmem:[#allocation4 + $0x8] sm:$0xff] %vm2165, %v2248
        %2254 = vst.msk [vmem:[#allocation4 + $0x18] sm:$0x3f] %vm2167, %v2250
        %v2255 = vld [vmem:[#allocation4] sm:$0xff]
        %v2256 = vld [vmem:[#allocation4 + $0x8] sm:$0xff]
        %v2257 = vld [vmem:[#allocation4 + $0x10] sm:$0x3f]
        %v2258 = vld [vmem:[#allocation4 + $0x18] sm:$0x3f]
        %v2259 = vpack.c.bf16 %v2257, %v2255
        %v2260 = vpack.c.bf16 %v2258, %v2256
        %v2261 = vld [vmem:[#allocation11] sm:$0xff]
        %v2262 = vld [vmem:[#allocation11 + $0x8] sm:$0xf]
        %v2263 = vld [vmem:[#allocation11 + $0xc] sm:$0xff]
        %v2264 = vld [vmem:[#allocation11 + $0x14] sm:$0xf]
        %v2265 = vld [vmem:[#allocation11 + $0x18] sm:$0xff]
        %v2266 = vld [vmem:[#allocation11 + $0x20] sm:$0xf]
        %v2267 = vld [vmem:[#allocation11 + $0x24] sm:$0xff]
        %v2268 = vld [vmem:[#allocation11 + $0x2c] sm:$0xf]
        %v2269 = vld [vmem:[#allocation11 + $0x30] sm:$0xff]
        %v2270 = vld [vmem:[#allocation11 + $0x38] sm:$0xf]
        %v2271 = vld [vmem:[#allocation11 + $0x3c] sm:$0xff]
        %v2272 = vld [vmem:[#allocation11 + $0x44] sm:$0xf]
        %v2273 = vld [vmem:[#allocation11 + $0x48] sm:$0xff]
        %v2274 = vld [vmem:[#allocation11 + $0x50] sm:$0xf]
        %v2275 = vld [vmem:[#allocation11 + $0x54] sm:$0xff]
        %v2276 = vld [vmem:[#allocation11 + $0x5c] sm:$0xf]
        %v2277 = vld [vmem:[#allocation11 + $0x60] sm:$0xff]
        %v2278 = vld [vmem:[#allocation11 + $0x68] sm:$0xf]
        %v2279 = vld [vmem:[#allocation11 + $0x6c] sm:$0xff]
        %v2280 = vld [vmem:[#allocation11 + $0x74] sm:$0xf]
        %v2281 = vld [vmem:[#allocation11 + $0x78] sm:$0xff]
        %v2282 = vld [vmem:[#allocation11 + $0x80] sm:$0xf]
        %v2283 = vld [vmem:[#allocation11 + $0x84] sm:$0xff]
        %v2284 = vld [vmem:[#allocation11 + $0x8c] sm:$0xf]
        %v2285 = vld [vmem:[#allocation11 + $0x90] sm:$0xff]
        %v2286 = vld [vmem:[#allocation11 + $0x98] sm:$0xf]
        %v2287 = vld [vmem:[#allocation11 + $0x9c] sm:$0xff]
        %v2288 = vld [vmem:[#allocation11 + $0xa4] sm:$0xf]
        %v2289 = vld [vmem:[#allocation11 + $0xa8] sm:$0xff]
        %v2290 = vld [vmem:[#allocation11 + $0xb0] sm:$0xf]
        %v2291 = vld [vmem:[#allocation11 + $0xb4] sm:$0xff]
        %v2292 = vld [vmem:[#allocation11 + $0xbc] sm:$0xf]
        %v2293 = vld [vmem:[#allocation11 + $0xc0] sm:$0xff]
        %v2294 = vld [vmem:[#allocation11 + $0xc8] sm:$0xf]
        %v2295 = vld [vmem:[#allocation11 + $0xcc] sm:$0xff]
        %v2296 = vld [vmem:[#allocation11 + $0xd4] sm:$0xf]
        %v2297 = vld [vmem:[#allocation11 + $0xd8] sm:$0xff]
        %v2298 = vld [vmem:[#allocation11 + $0xe0] sm:$0xf]
        %v2299 = vld [vmem:[#allocation11 + $0xe4] sm:$0xff]
        %v2300 = vld [vmem:[#allocation11 + $0xec] sm:$0xf]
        %v2301 = vld [vmem:[#allocation11 + $0xf0] sm:$0xff]
        %v2302 = vld [vmem:[#allocation11 + $0xf8] sm:$0xf]
        %v2303 = vld [vmem:[#allocation11 + $0xfc] sm:$0xff]
        %v2304 = vld [vmem:[#allocation11 + $0x104] sm:$0xf]
        %v2305 = vld [vmem:[#allocation11 + $0x108] sm:$0xff]
        %v2306 = vld [vmem:[#allocation11 + $0x110] sm:$0xf]
        %v2307 = vld [vmem:[#allocation11 + $0x114] sm:$0xff]
        %v2308 = vld [vmem:[#allocation11 + $0x11c] sm:$0xf]
        %v2309 = vld [vmem:[#allocation11 + $0x120] sm:$0xff]
        %v2310 = vld [vmem:[#allocation11 + $0x128] sm:$0xf]
        %v2311 = vld [vmem:[#allocation11 + $0x12c] sm:$0xff]
        %v2312 = vld [vmem:[#allocation11 + $0x134] sm:$0xf]
        %v2313 = vld [vmem:[#allocation11 + $0x138] sm:$0xff]
        %v2314 = vld [vmem:[#allocation11 + $0x140] sm:$0xf]
        %v2315 = vld [vmem:[#allocation11 + $0x144] sm:$0xff]
        %v2316 = vld [vmem:[#allocation11 + $0x14c] sm:$0xf]
        %s2317 = scalar_lea.vmem [#allocation11], 336
        %v2318 = vld [vmem:[%s2317] sm:$0xff]
        %v2319 = vld [vmem:[%s2317 + $0x8] sm:$0xf]
        %v2320 = vld [vmem:[%s2317 + $0xc] sm:$0xff]
        %v2321 = vld [vmem:[%s2317 + $0x14] sm:$0xf]
        %v2322 = vld [vmem:[%s2317 + $0x18] sm:$0xff]
        %v2323 = vld [vmem:[%s2317 + $0x20] sm:$0xf]
        %v2324 = vld [vmem:[%s2317 + $0x24] sm:$0xff]
        %v2325 = vld [vmem:[%s2317 + $0x2c] sm:$0xf]
        %v2326 = vld [vmem:[%s2317 + $0x30] sm:$0xff]
        %v2327 = vld [vmem:[%s2317 + $0x38] sm:$0xf]
        %v2328 = vld [vmem:[%s2317 + $0x3c] sm:$0xff]
        %v2329 = vld [vmem:[%s2317 + $0x44] sm:$0xf]
        %v2330 = vld [vmem:[%s2317 + $0x48] sm:$0xff]
        %v2331 = vld [vmem:[%s2317 + $0x50] sm:$0xf]
        %v2332 = vld [vmem:[%s2317 + $0x54] sm:$0xff]
        %v2333 = vld [vmem:[%s2317 + $0x5c] sm:$0xf]
        %v2334 = vld [vmem:[%s2317 + $0x60] sm:$0xff]
        %v2335 = vld [vmem:[%s2317 + $0x68] sm:$0xf]
        %v2336 = vld [vmem:[%s2317 + $0x6c] sm:$0xff]
        %v2337 = vld [vmem:[%s2317 + $0x74] sm:$0xf]
        %v2338 = vld [vmem:[%s2317 + $0x78] sm:$0xff]
        %v2339 = vld [vmem:[%s2317 + $0x80] sm:$0xf]
        %v2340 = vld [vmem:[%s2317 + $0x84] sm:$0xff]
        %v2341 = vld [vmem:[%s2317 + $0x8c] sm:$0xf]
        %v2342 = vld [vmem:[%s2317 + $0x90] sm:$0xff]
        %v2343 = vld [vmem:[%s2317 + $0x98] sm:$0xf]
        %v2344 = vld [vmem:[%s2317 + $0x9c] sm:$0xff]
        %v2345 = vld [vmem:[%s2317 + $0xa4] sm:$0xf]
        %v2346 = vld [vmem:[%s2317 + $0xa8] sm:$0xff]
        %v2347 = vld [vmem:[%s2317 + $0xb0] sm:$0xf]
        %v2348 = vld [vmem:[%s2317 + $0xb4] sm:$0xff]
        %v2349 = vld [vmem:[%s2317 + $0xbc] sm:$0xf]
        %v2350 = vld [vmem:[%s2317 + $0xc0] sm:$0xff]
        %v2351 = vld [vmem:[%s2317 + $0xc8] sm:$0xf]
        %v2352 = vld [vmem:[%s2317 + $0xcc] sm:$0xff]
        %v2353 = vld [vmem:[%s2317 + $0xd4] sm:$0xf]
        %v2354 = vld [vmem:[%s2317 + $0xd8] sm:$0xff]
        %v2355 = vld [vmem:[%s2317 + $0xe0] sm:$0xf]
        %v2356 = vld [vmem:[%s2317 + $0xe4] sm:$0xff]
        %v2357 = vld [vmem:[%s2317 + $0xec] sm:$0xf]
        %v2358 = vld [vmem:[%s2317 + $0xf0] sm:$0xff]
        %v2359 = vld [vmem:[%s2317 + $0xf8] sm:$0xf]
        %v2360 = vld [vmem:[%s2317 + $0xfc] sm:$0xff]
        %v2361 = vld [vmem:[%s2317 + $0x104] sm:$0xf]
        %v2362 = vld [vmem:[%s2317 + $0x108] sm:$0xff]
        %v2363 = vld [vmem:[%s2317 + $0x110] sm:$0xf]
        %v2364 = vld [vmem:[%s2317 + $0x114] sm:$0xff]
        %v2365 = vld [vmem:[%s2317 + $0x11c] sm:$0xf]
        %v2366 = vld [vmem:[%s2317 + $0x120] sm:$0xff]
        %v2367 = vld [vmem:[%s2317 + $0x128] sm:$0xf]
        %v2368 = vld [vmem:[%s2317 + $0x12c] sm:$0xff]
        %v2369 = vld [vmem:[%s2317 + $0x134] sm:$0xf]
        %v2370 = vld [vmem:[%s2317 + $0x138] sm:$0xff]
        %v2371 = vld [vmem:[%s2317 + $0x140] sm:$0xf]
        %v2372 = vld [vmem:[%s2317 + $0x144] sm:$0xff]
        %v2373 = vld [vmem:[%s2317 + $0x14c] sm:$0xf]
        %v2375 = vshrl.u32 %v2259, 16
        %v2377 = vshll.u32 %v2259, 16
        %v2379 = vrot.slane %v2377, 1
        %v2380 = vor.u32 %v2375, %v2379
        %v2382 = vshrl.u32 %v2260, 16
        %v2384 = vshll.u32 %v2260, 16
        %v2386 = vrot.slane %v2384, 1
        %v2387 = vor.u32 %v2382, %v2386
        %v2445 = vunpack.c.l.b16 %v2318
        %v2446 = vunpack.c.h.b16 %v2318
        %v2447 = vunpack.c.l.b16 %v2319
        %v2448 = vunpack.c.l.b16 %v2320
        %v2449 = vunpack.c.h.b16 %v2320
        %v2450 = vunpack.c.l.b16 %v2321
        %v2451 = vunpack.c.l.b16 %v2322
        %v2452 = vunpack.c.h.b16 %v2322
        %v2453 = vunpack.c.l.b16 %v2323
        %v2454 = vunpack.c.l.b16 %v2324
        %v2455 = vunpack.c.h.b16 %v2324
        %v2456 = vunpack.c.l.b16 %v2325
        %v2457 = vunpack.c.l.b16 %v2326
        %v2458 = vunpack.c.h.b16 %v2326
        %v2459 = vunpack.c.l.b16 %v2327
        %v2460 = vunpack.c.l.b16 %v2328
        %v2461 = vunpack.c.h.b16 %v2328
        %v2462 = vunpack.c.l.b16 %v2329
        %v2463 = vunpack.c.l.b16 %v2330
        %v2464 = vunpack.c.h.b16 %v2330
        %v2465 = vunpack.c.l.b16 %v2331
        %v2466 = vunpack.c.l.b16 %v2332
        %v2467 = vunpack.c.h.b16 %v2332
        %v2468 = vunpack.c.l.b16 %v2333
        %v2469 = vunpack.c.l.b16 %v2334
        %v2470 = vunpack.c.h.b16 %v2334
        %v2471 = vunpack.c.l.b16 %v2335
        %v2472 = vunpack.c.l.b16 %v2336
        %v2473 = vunpack.c.h.b16 %v2336
        %v2474 = vunpack.c.l.b16 %v2337
        %v2475 = vunpack.c.l.b16 %v2338
        %v2476 = vunpack.c.h.b16 %v2338
        %v2477 = vunpack.c.l.b16 %v2339
        %v2478 = vunpack.c.l.b16 %v2340
        %v2479 = vunpack.c.h.b16 %v2340
        %v2480 = vunpack.c.l.b16 %v2341
        %v2481 = vunpack.c.l.b16 %v2342
        %v2482 = vunpack.c.h.b16 %v2342
        %v2483 = vunpack.c.l.b16 %v2343
        %v2484 = vunpack.c.l.b16 %v2344
        %v2485 = vunpack.c.h.b16 %v2344
        %v2486 = vunpack.c.l.b16 %v2345
        %v2487 = vunpack.c.l.b16 %v2346
        %v2488 = vunpack.c.h.b16 %v2346
        %v2489 = vunpack.c.l.b16 %v2347
        %v2490 = vunpack.c.l.b16 %v2348
        %v2491 = vunpack.c.h.b16 %v2348
        %v2492 = vunpack.c.l.b16 %v2349
        %v2493 = vunpack.c.l.b16 %v2350
        %v2494 = vunpack.c.h.b16 %v2350
        %v2495 = vunpack.c.l.b16 %v2351
        %v2496 = vunpack.c.l.b16 %v2352
        %v2497 = vunpack.c.h.b16 %v2352
        %v2498 = vunpack.c.l.b16 %v2353
        %v2499 = vunpack.c.l.b16 %v2354
        %v2500 = vunpack.c.h.b16 %v2354
        %v2501 = vunpack.c.l.b16 %v2355
        %v2502 = vunpack.c.l.b16 %v2356
        %v2503 = vunpack.c.h.b16 %v2356
        %v2504 = vunpack.c.l.b16 %v2357
        %v2505 = vunpack.c.l.b16 %v2358
        %v2506 = vunpack.c.h.b16 %v2358
        %v2507 = vunpack.c.l.b16 %v2359
        %v2508 = vunpack.c.l.b16 %v2360
        %v2509 = vunpack.c.h.b16 %v2360
        %v2510 = vunpack.c.l.b16 %v2361
        %v2511 = vunpack.c.l.b16 %v2362
        %v2512 = vunpack.c.h.b16 %v2362
        %v2513 = vunpack.c.l.b16 %v2363
        %v2514 = vunpack.c.l.b16 %v2364
        %v2515 = vunpack.c.h.b16 %v2364
        %v2516 = vunpack.c.l.b16 %v2365
        %v2517 = vunpack.c.l.b16 %v2366
        %v2518 = vunpack.c.h.b16 %v2366
        %v2519 = vunpack.c.l.b16 %v2367
        %v2520 = vunpack.c.l.b16 %v2368
        %v2521 = vunpack.c.h.b16 %v2368
        %v2522 = vunpack.c.l.b16 %v2369
        %v2523 = vunpack.c.l.b16 %v2370
        %v2524 = vunpack.c.h.b16 %v2370
        %v2525 = vunpack.c.l.b16 %v2371
        %v2526 = vunpack.c.l.b16 %v2372
        %v2527 = vunpack.c.h.b16 %v2372
        %v2528 = vunpack.c.l.b16 %v2373
        %v2529 = vpack.c.b16 %v2448, %v2445
        %v2530 = vpack.c.b16 %v2449, %v2446
        %v2531 = vpack.c.b16 %v2450, %v2447
        %v2532 = vpack.c.b16 %v2454, %v2451
        %v2533 = vpack.c.b16 %v2455, %v2452
        %v2534 = vpack.c.b16 %v2456, %v2453
        %v2535 = vpack.c.b16 %v2460, %v2457
        %v2536 = vpack.c.b16 %v2461, %v2458
        %v2537 = vpack.c.b16 %v2462, %v2459
        %v2538 = vpack.c.b16 %v2466, %v2463
        %v2539 = vpack.c.b16 %v2467, %v2464
        %v2540 = vpack.c.b16 %v2468, %v2465
        %v2541 = vpack.c.b16 %v2472, %v2469
        %v2542 = vpack.c.b16 %v2473, %v2470
        %v2543 = vpack.c.b16 %v2474, %v2471
        %v2544 = vpack.c.b16 %v2478, %v2475
        %v2545 = vpack.c.b16 %v2479, %v2476
        %v2546 = vpack.c.b16 %v2480, %v2477
        %v2547 = vpack.c.b16 %v2484, %v2481
        %v2548 = vpack.c.b16 %v2485, %v2482
        %v2549 = vpack.c.b16 %v2486, %v2483
        %v2550 = vpack.c.b16 %v2490, %v2487
        %v2551 = vpack.c.b16 %v2491, %v2488
        %v2552 = vpack.c.b16 %v2492, %v2489
        %v2553 = vpack.c.b16 %v2496, %v2493
        %v2554 = vpack.c.b16 %v2497, %v2494
        %v2555 = vpack.c.b16 %v2498, %v2495
        %v2556 = vpack.c.b16 %v2502, %v2499
        %v2557 = vpack.c.b16 %v2503, %v2500
        %v2558 = vpack.c.b16 %v2504, %v2501
        %v2559 = vpack.c.b16 %v2508, %v2505
        %v2560 = vpack.c.b16 %v2509, %v2506
        %v2561 = vpack.c.b16 %v2510, %v2507
        %v2562 = vpack.c.b16 %v2514, %v2511
        %v2563 = vpack.c.b16 %v2515, %v2512
        %v2564 = vpack.c.b16 %v2516, %v2513
        %v2565 = vpack.c.b16 %v2520, %v2517
        %v2566 = vpack.c.b16 %v2521, %v2518
        %v2567 = vpack.c.b16 %v2522, %v2519
        %v2568 = vpack.c.b16 %v2526, %v2523
        %v2569 = vpack.c.b16 %v2527, %v2524
        %v2570 = vpack.c.b16 %v2528, %v2525
        %v2614 = vsel %vm717, %v2387, 0
        %2616 = vmatprep.subr.bf16.mxu0 %v2551
        %2617 = vmatpush1.bf16.msra.mxu0 %v2550
        %2618 = vmatprep.subr.bf16.mxu0 %v2548
        %2619 = vmatpush1.bf16.msra.mxu0 %v2547
        %2620 = vmatprep.subr.bf16.mxu0 %v2545
        %2621 = vmatpush1.bf16.msra.mxu0 %v2544
        %2622 = vmatprep.subr.bf16.mxu0 %v2542
        %2623 = vmatpush1.bf16.msra.mxu0 %v2541
        %2624 = vmatprep.subr.bf16.mxu0 %v2539
        %2625 = vmatpush1.bf16.msra.mxu0 %v2538
        %2626 = vmatprep.subr.bf16.mxu0 %v2536
        %2627 = vmatpush1.bf16.msra.mxu0 %v2535
        %2628 = vmatprep.subr.bf16.mxu0 %v2533
        %2629 = vmatpush1.bf16.msra.mxu0 %v2532
        %2630 = vmatprep.subr.bf16.mxu0 %v2530
        %2631 = vmatpush1.bf16.msra.mxu0 %v2529
        %2632 = vmatprep.subr.bf16.mxu0 0
        %2633 = vmatpush2.bf16.msra.mxu0 0
        %2634 = vmatprep.subr.bf16.mxu0 0
        %2635 = vmatpush2.bf16.msra.mxu0 0
        %2636 = vmatprep.subr.bf16.mxu0 %v2569
        %2637 = vmatpush2.bf16.msra.mxu0 %v2568
        %2638 = vmatprep.subr.bf16.mxu0 %v2566
        %2639 = vmatpush2.bf16.msra.mxu0 %v2565
        %2640 = vmatprep.subr.bf16.mxu0 %v2563
        %2641 = vmatpush2.bf16.msra.mxu0 %v2562
        %2642 = vmatprep.subr.bf16.mxu0 %v2560
        %2643 = vmatpush2.bf16.msra.mxu0 %v2559
        %2644 = vmatprep.subr.bf16.mxu0 %v2557
        %2645 = vmatpush2.bf16.msra.mxu0 %v2556
        %2646 = vmatprep.subr.bf16.mxu0 %v2554
        %2647 = vmatpush2.bf16.msra.mxu0 %v2553
        %2648 = vmatprep.mubr.bf16.mxu0 %v2614
        %2649 = vmatmul.mubr.bf16.gmra.mxu0 %v2380
        %v2650 = vpop.f32.mrf.mxu0
        %v2651 = vadd.f32 0.0, %v2650
        %v2652 = vpop.f32.mrf.mxu0
        %v2653 = vadd.f32 0.0, %v2652
        %v2654 = vpop.f32.mrf.mxu0
        %v2655 = vadd.f32 0.0, %v2654
        %v2656 = vpop.f32.mrf.mxu0
        %v2657 = vadd.f32 0.0, %v2656
        %2658 = vdwg.mxu0
        %2659 = vmatprep.subr.bf16.mxu0 0
        %2660 = vmatpush1.bf16.msra.mxu0 %v2552
        %2661 = vmatprep.subr.bf16.mxu0 0
        %2662 = vmatpush1.bf16.msra.mxu0 %v2549
        %2663 = vmatprep.subr.bf16.mxu0 0
        %2664 = vmatpush1.bf16.msra.mxu0 %v2546
        %2665 = vmatprep.subr.bf16.mxu0 0
        %2666 = vmatpush1.bf16.msra.mxu0 %v2543
        %2667 = vmatprep.subr.bf16.mxu0 0
        %2668 = vmatpush1.bf16.msra.mxu0 %v2540
        %2669 = vmatprep.subr.bf16.mxu0 0
        %2670 = vmatpush1.bf16.msra.mxu0 %v2537
        %2671 = vmatprep.subr.bf16.mxu0 0
        %2672 = vmatpush1.bf16.msra.mxu0 %v2534
        %2673 = vmatprep.subr.bf16.mxu0 0
        %2674 = vmatpush1.bf16.msra.mxu0 %v2531
        %2675 = vmatprep.subr.bf16.mxu0 0
        %2676 = vmatpush2.bf16.msra.mxu0 0
        %2677 = vmatprep.subr.bf16.mxu0 0
        %2678 = vmatpush2.bf16.msra.mxu0 0
        %2679 = vmatprep.subr.bf16.mxu0 0
        %2680 = vmatpush2.bf16.msra.mxu0 %v2570
        %2681 = vmatprep.subr.bf16.mxu0 0
        %2682 = vmatpush2.bf16.msra.mxu0 %v2567
        %2683 = vmatprep.subr.bf16.mxu0 0
        %2684 = vmatpush2.bf16.msra.mxu0 %v2564
        %2685 = vmatprep.subr.bf16.mxu0 0
        %2686 = vmatpush2.bf16.msra.mxu0 %v2561
        %2687 = vmatprep.subr.bf16.mxu0 0
        %2688 = vmatpush2.bf16.msra.mxu0 %v2558
        %2689 = vmatprep.subr.bf16.mxu0 0
        %2690 = vmatpush2.bf16.msra.mxu0 %v2555
        %2691 = vmatprep.mubr.bf16.mxu0 %v2614
        %2692 = vmatmul.mubr.bf16.gmra.mxu0 %v2380
        %v2693 = vpop.f32.mrf.mxu0
        %v2694 = vadd.f32 0.0, %v2693
        %v2695 = vpop.f32.mrf.mxu0
        %v2696 = vpop.f32.mrf.mxu0
        %v2697 = vadd.f32 0.0, %v2696
        %v2698 = vpop.f32.mrf.mxu0
        %2699 = vdwg.mxu0
        %v2756 = vunpack.c.l.b16 %v2261
        %v2757 = vunpack.c.h.b16 %v2261
        %v2758 = vunpack.c.l.b16 %v2262
        %v2759 = vunpack.c.l.b16 %v2263
        %v2760 = vunpack.c.h.b16 %v2263
        %v2761 = vunpack.c.l.b16 %v2264
        %v2762 = vunpack.c.l.b16 %v2265
        %v2763 = vunpack.c.h.b16 %v2265
        %v2764 = vunpack.c.l.b16 %v2266
        %v2765 = vunpack.c.l.b16 %v2267
        %v2766 = vunpack.c.h.b16 %v2267
        %v2767 = vunpack.c.l.b16 %v2268
        %v2768 = vunpack.c.l.b16 %v2269
        %v2769 = vunpack.c.h.b16 %v2269
        %v2770 = vunpack.c.l.b16 %v2270
        %v2771 = vunpack.c.l.b16 %v2271
        %v2772 = vunpack.c.h.b16 %v2271
        %v2773 = vunpack.c.l.b16 %v2272
        %v2774 = vunpack.c.l.b16 %v2273
        %v2775 = vunpack.c.h.b16 %v2273
        %v2776 = vunpack.c.l.b16 %v2274
        %v2777 = vunpack.c.l.b16 %v2275
        %v2778 = vunpack.c.h.b16 %v2275
        %v2779 = vunpack.c.l.b16 %v2276
        %v2780 = vunpack.c.l.b16 %v2277
        %v2781 = vunpack.c.h.b16 %v2277
        %v2782 = vunpack.c.l.b16 %v2278
        %v2783 = vunpack.c.l.b16 %v2279
        %v2784 = vunpack.c.h.b16 %v2279
        %v2785 = vunpack.c.l.b16 %v2280
        %v2786 = vunpack.c.l.b16 %v2281
        %v2787 = vunpack.c.h.b16 %v2281
        %v2788 = vunpack.c.l.b16 %v2282
        %v2789 = vunpack.c.l.b16 %v2283
        %v2790 = vunpack.c.h.b16 %v2283
        %v2791 = vunpack.c.l.b16 %v2284
        %v2792 = vunpack.c.l.b16 %v2285
        %v2793 = vunpack.c.h.b16 %v2285
        %v2794 = vunpack.c.l.b16 %v2286
        %v2795 = vunpack.c.l.b16 %v2287
        %v2796 = vunpack.c.h.b16 %v2287
        %v2797 = vunpack.c.l.b16 %v2288
        %v2798 = vunpack.c.l.b16 %v2289
        %v2799 = vunpack.c.h.b16 %v2289
        %v2800 = vunpack.c.l.b16 %v2290
        %v2801 = vunpack.c.l.b16 %v2291
        %v2802 = vunpack.c.h.b16 %v2291
        %v2803 = vunpack.c.l.b16 %v2292
        %v2804 = vunpack.c.l.b16 %v2293
        %v2805 = vunpack.c.h.b16 %v2293
        %v2806 = vunpack.c.l.b16 %v2294
        %v2807 = vunpack.c.l.b16 %v2295
        %v2808 = vunpack.c.h.b16 %v2295
        %v2809 = vunpack.c.l.b16 %v2296
        %v2810 = vunpack.c.l.b16 %v2297
        %v2811 = vunpack.c.h.b16 %v2297
        %v2812 = vunpack.c.l.b16 %v2298
        %v2813 = vunpack.c.l.b16 %v2299
        %v2814 = vunpack.c.h.b16 %v2299
        %v2815 = vunpack.c.l.b16 %v2300
        %v2816 = vunpack.c.l.b16 %v2301
        %v2817 = vunpack.c.h.b16 %v2301
        %v2818 = vunpack.c.l.b16 %v2302
        %v2819 = vunpack.c.l.b16 %v2303
        %v2820 = vunpack.c.h.b16 %v2303
        %v2821 = vunpack.c.l.b16 %v2304
        %v2822 = vunpack.c.l.b16 %v2305
        %v2823 = vunpack.c.h.b16 %v2305
        %v2824 = vunpack.c.l.b16 %v2306
        %v2825 = vunpack.c.l.b16 %v2307
        %v2826 = vunpack.c.h.b16 %v2307
        %v2827 = vunpack.c.l.b16 %v2308
        %v2828 = vunpack.c.l.b16 %v2309
        %v2829 = vunpack.c.h.b16 %v2309
        %v2830 = vunpack.c.l.b16 %v2310
        %v2831 = vunpack.c.l.b16 %v2311
        %v2832 = vunpack.c.h.b16 %v2311
        %v2833 = vunpack.c.l.b16 %v2312
        %v2834 = vunpack.c.l.b16 %v2313
        %v2835 = vunpack.c.h.b16 %v2313
        %v2836 = vunpack.c.l.b16 %v2314
        %v2837 = vunpack.c.l.b16 %v2315
        %v2838 = vunpack.c.h.b16 %v2315
        %v2839 = vunpack.c.l.b16 %v2316
        %v2840 = vpack.c.b16 %v2759, %v2756
        %v2841 = vpack.c.b16 %v2760, %v2757
        %v2842 = vpack.c.b16 %v2761, %v2758
        %v2843 = vpack.c.b16 %v2765, %v2762
        %v2844 = vpack.c.b16 %v2766, %v2763
        %v2845 = vpack.c.b16 %v2767, %v2764
        %v2846 = vpack.c.b16 %v2771, %v2768
        %v2847 = vpack.c.b16 %v2772, %v2769
        %v2848 = vpack.c.b16 %v2773, %v2770
        %v2849 = vpack.c.b16 %v2777, %v2774
        %v2850 = vpack.c.b16 %v2778, %v2775
        %v2851 = vpack.c.b16 %v2779, %v2776
        %v2852 = vpack.c.b16 %v2783, %v2780
        %v2853 = vpack.c.b16 %v2784, %v2781
        %v2854 = vpack.c.b16 %v2785, %v2782
        %v2855 = vpack.c.b16 %v2789, %v2786
        %v2856 = vpack.c.b16 %v2790, %v2787
        %v2857 = vpack.c.b16 %v2791, %v2788
        %v2858 = vpack.c.b16 %v2795, %v2792
        %v2859 = vpack.c.b16 %v2796, %v2793
        %v2860 = vpack.c.b16 %v2797, %v2794
        %v2861 = vpack.c.b16 %v2801, %v2798
        %v2862 = vpack.c.b16 %v2802, %v2799
        %v2863 = vpack.c.b16 %v2803, %v2800
        %v2864 = vpack.c.b16 %v2807, %v2804
        %v2865 = vpack.c.b16 %v2808, %v2805
        %v2866 = vpack.c.b16 %v2809, %v2806
        %v2867 = vpack.c.b16 %v2813, %v2810
        %v2868 = vpack.c.b16 %v2814, %v2811
        %v2869 = vpack.c.b16 %v2815, %v2812
        %v2870 = vpack.c.b16 %v2819, %v2816
        %v2871 = vpack.c.b16 %v2820, %v2817
        %v2872 = vpack.c.b16 %v2821, %v2818
        %v2873 = vpack.c.b16 %v2825, %v2822
        %v2874 = vpack.c.b16 %v2826, %v2823
        %v2875 = vpack.c.b16 %v2827, %v2824
        %v2876 = vpack.c.b16 %v2831, %v2828
        %v2877 = vpack.c.b16 %v2832, %v2829
        %v2878 = vpack.c.b16 %v2833, %v2830
        %v2879 = vpack.c.b16 %v2837, %v2834
        %v2880 = vpack.c.b16 %v2838, %v2835
        %v2881 = vpack.c.b16 %v2839, %v2836
        %v2924 = vsel %vm717, %v2260, 0
        %2926 = vmatprep.subr.bf16.mxu0 %v2862
        %2927 = vmatpush1.bf16.msra.mxu0 %v2861
        %2928 = vmatprep.subr.bf16.mxu0 %v2859
        %2929 = vmatpush1.bf16.msra.mxu0 %v2858
        %2930 = vmatprep.subr.bf16.mxu0 %v2856
        %2931 = vmatpush1.bf16.msra.mxu0 %v2855
        %2932 = vmatprep.subr.bf16.mxu0 %v2853
        %2933 = vmatpush1.bf16.msra.mxu0 %v2852
        %2934 = vmatprep.subr.bf16.mxu0 %v2850
        %2935 = vmatpush1.bf16.msra.mxu0 %v2849
        %2936 = vmatprep.subr.bf16.mxu0 %v2847
        %2937 = vmatpush1.bf16.msra.mxu0 %v2846
        %2938 = vmatprep.subr.bf16.mxu0 %v2844
        %2939 = vmatpush1.bf16.msra.mxu0 %v2843
        %2940 = vmatprep.subr.bf16.mxu0 %v2841
        %2941 = vmatpush1.bf16.msra.mxu0 %v2840
        %2942 = vmatprep.subr.bf16.mxu0 0
        %2943 = vmatpush2.bf16.msra.mxu0 0
        %2944 = vmatprep.subr.bf16.mxu0 0
        %2945 = vmatpush2.bf16.msra.mxu0 0
        %2946 = vmatprep.subr.bf16.mxu0 %v2880
        %2947 = vmatpush2.bf16.msra.mxu0 %v2879
        %2948 = vmatprep.subr.bf16.mxu0 %v2877
        %2949 = vmatpush2.bf16.msra.mxu0 %v2876
        %2950 = vmatprep.subr.bf16.mxu0 %v2874
        %2951 = vmatpush2.bf16.msra.mxu0 %v2873
        %2952 = vmatprep.subr.bf16.mxu0 %v2871
        %2953 = vmatpush2.bf16.msra.mxu0 %v2870
        %2954 = vmatprep.subr.bf16.mxu0 %v2868
        %2955 = vmatpush2.bf16.msra.mxu0 %v2867
        %2956 = vmatprep.subr.bf16.mxu0 %v2865
        %2957 = vmatpush2.bf16.msra.mxu0 %v2864
        %2958 = vmatprep.mubr.bf16.mxu0 %v2924
        %2959 = vmatmul.mubr.bf16.gmra.mxu0 %v2259
        %v2960 = vpop.f32.mrf.mxu0
        %v2961 = vadd.f32 %v2651, %v2960
        %v2962 = vpop.f32.mrf.mxu0
        %v2963 = vadd.f32 %v2653, %v2962
        %v2964 = vpop.f32.mrf.mxu0
        %v2965 = vadd.f32 %v2655, %v2964
        %v2966 = vpop.f32.mrf.mxu0
        %v2967 = vadd.f32 %v2657, %v2966
        %2968 = vdwg.mxu0
        %2969 = vmatprep.subr.bf16.mxu0 0
        %2970 = vmatpush1.bf16.msra.mxu0 %v2863
        %2971 = vmatprep.subr.bf16.mxu0 0
        %2972 = vmatpush1.bf16.msra.mxu0 %v2860
        %2973 = vmatprep.subr.bf16.mxu0 0
        %2974 = vmatpush1.bf16.msra.mxu0 %v2857
        %2975 = vmatprep.subr.bf16.mxu0 0
        %2976 = vmatpush1.bf16.msra.mxu0 %v2854
        %2977 = vmatprep.subr.bf16.mxu0 0
        %2978 = vmatpush1.bf16.msra.mxu0 %v2851
        %2979 = vmatprep.subr.bf16.mxu0 0
        %2980 = vmatpush1.bf16.msra.mxu0 %v2848
        %2981 = vmatprep.subr.bf16.mxu0 0
        %2982 = vmatpush1.bf16.msra.mxu0 %v2845
        %2983 = vmatprep.subr.bf16.mxu0 0
        %2984 = vmatpush1.bf16.msra.mxu0 %v2842
        %2985 = vmatprep.subr.bf16.mxu0 0
        %2986 = vmatpush2.bf16.msra.mxu0 0
        %2987 = vmatprep.subr.bf16.mxu0 0
        %2988 = vmatpush2.bf16.msra.mxu0 0
        %2989 = vmatprep.subr.bf16.mxu0 0
        %2990 = vmatpush2.bf16.msra.mxu0 %v2881
        %2991 = vmatprep.subr.bf16.mxu0 0
        %2992 = vmatpush2.bf16.msra.mxu0 %v2878
        %2993 = vmatprep.subr.bf16.mxu0 0
        %2994 = vmatpush2.bf16.msra.mxu0 %v2875
        %2995 = vmatprep.subr.bf16.mxu0 0
        %2996 = vmatpush2.bf16.msra.mxu0 %v2872
        %2997 = vmatprep.subr.bf16.mxu0 0
        %2998 = vmatpush2.bf16.msra.mxu0 %v2869
        %2999 = vmatprep.subr.bf16.mxu0 0
        %3000 = vmatpush2.bf16.msra.mxu0 %v2866
        %3001 = vmatprep.mubr.bf16.mxu0 %v2924
        %3002 = vmatmul.mubr.bf16.gmra.mxu0 %v2259
        %v3003 = vpop.f32.mrf.mxu0
        %v3004 = vadd.f32 %v2694, %v3003
        %v3005 = vpop.f32.mrf.mxu0
        %v3006 = vpop.f32.mrf.mxu0
        %v3007 = vadd.f32 %v2697, %v3006
        %v3008 = vpop.f32.mrf.mxu0
        %3009 = vdwg.mxu0
        %s3010 = scalar_lea.vmem [#allocation11], 672
        %v3011 = vld [vmem:[%s3010] sm:$0xff]
        %v3012 = vld [vmem:[%s3010 + $0x8] sm:$0xf]
        %v3013 = vld [vmem:[%s3010 + $0xc] sm:$0xff]
        %v3014 = vld [vmem:[%s3010 + $0x14] sm:$0xf]
        %v3015 = vld [vmem:[%s3010 + $0x18] sm:$0xff]
        %v3016 = vld [vmem:[%s3010 + $0x20] sm:$0xf]
        %v3017 = vld [vmem:[%s3010 + $0x24] sm:$0xff]
        %v3018 = vld [vmem:[%s3010 + $0x2c] sm:$0xf]
        %v3019 = vld [vmem:[%s3010 + $0x30] sm:$0xff]
        %v3020 = vld [vmem:[%s3010 + $0x38] sm:$0xf]
        %v3021 = vld [vmem:[%s3010 + $0x3c] sm:$0xff]
        %v3022 = vld [vmem:[%s3010 + $0x44] sm:$0xf]
        %v3023 = vld [vmem:[%s3010 + $0x48] sm:$0xff]
        %v3024 = vld [vmem:[%s3010 + $0x50] sm:$0xf]
        %v3025 = vld [vmem:[%s3010 + $0x54] sm:$0xff]
        %v3026 = vld [vmem:[%s3010 + $0x5c] sm:$0xf]
        %v3027 = vld [vmem:[%s3010 + $0x60] sm:$0xff]
        %v3028 = vld [vmem:[%s3010 + $0x68] sm:$0xf]
        %v3029 = vld [vmem:[%s3010 + $0x6c] sm:$0xff]
        %v3030 = vld [vmem:[%s3010 + $0x74] sm:$0xf]
        %v3031 = vld [vmem:[%s3010 + $0x78] sm:$0xff]
        %v3032 = vld [vmem:[%s3010 + $0x80] sm:$0xf]
        %v3033 = vld [vmem:[%s3010 + $0x84] sm:$0xff]
        %v3034 = vld [vmem:[%s3010 + $0x8c] sm:$0xf]
        %v3035 = vld [vmem:[%s3010 + $0x90] sm:$0xff]
        %v3036 = vld [vmem:[%s3010 + $0x98] sm:$0xf]
        %v3037 = vld [vmem:[%s3010 + $0x9c] sm:$0xff]
        %v3038 = vld [vmem:[%s3010 + $0xa4] sm:$0xf]
        %v3039 = vld [vmem:[%s3010 + $0xa8] sm:$0xff]
        %v3040 = vld [vmem:[%s3010 + $0xb0] sm:$0xf]
        %v3041 = vld [vmem:[%s3010 + $0xb4] sm:$0xff]
        %v3042 = vld [vmem:[%s3010 + $0xbc] sm:$0xf]
        %v3043 = vld [vmem:[%s3010 + $0xc0] sm:$0xff]
        %v3044 = vld [vmem:[%s3010 + $0xc8] sm:$0xf]
        %v3045 = vld [vmem:[%s3010 + $0xcc] sm:$0xff]
        %v3046 = vld [vmem:[%s3010 + $0xd4] sm:$0xf]
        %v3047 = vld [vmem:[%s3010 + $0xd8] sm:$0xff]
        %v3048 = vld [vmem:[%s3010 + $0xe0] sm:$0xf]
        %v3049 = vld [vmem:[%s3010 + $0xe4] sm:$0xff]
        %v3050 = vld [vmem:[%s3010 + $0xec] sm:$0xf]
        %v3051 = vld [vmem:[%s3010 + $0xf0] sm:$0xff]
        %v3052 = vld [vmem:[%s3010 + $0xf8] sm:$0xf]
        %v3053 = vld [vmem:[%s3010 + $0xfc] sm:$0xff]
        %v3054 = vld [vmem:[%s3010 + $0x104] sm:$0xf]
        %v3055 = vld [vmem:[%s3010 + $0x108] sm:$0xff]
        %v3056 = vld [vmem:[%s3010 + $0x110] sm:$0xf]
        %v3057 = vld [vmem:[%s3010 + $0x114] sm:$0xff]
        %v3058 = vld [vmem:[%s3010 + $0x11c] sm:$0xf]
        %v3059 = vld [vmem:[%s3010 + $0x120] sm:$0xff]
        %v3060 = vld [vmem:[%s3010 + $0x128] sm:$0xf]
        %v3061 = vld [vmem:[%s3010 + $0x12c] sm:$0xff]
        %v3062 = vld [vmem:[%s3010 + $0x134] sm:$0xf]
        %v3063 = vld [vmem:[%s3010 + $0x138] sm:$0xff]
        %v3064 = vld [vmem:[%s3010 + $0x140] sm:$0xf]
        %v3065 = vld [vmem:[%s3010 + $0x144] sm:$0xff]
        %v3066 = vld [vmem:[%s3010 + $0x14c] sm:$0xf]
        %v3069 = vrot.slane %v2259, 1
        %v3070 = vrot.slane %v2260, 1
        %v3128 = vunpack.c.l.b16 %v3011
        %v3129 = vunpack.c.h.b16 %v3011
        %v3130 = vunpack.c.l.b16 %v3012
        %v3131 = vunpack.c.l.b16 %v3013
        %v3132 = vunpack.c.h.b16 %v3013
        %v3133 = vunpack.c.l.b16 %v3014
        %v3134 = vunpack.c.l.b16 %v3015
        %v3135 = vunpack.c.h.b16 %v3015
        %v3136 = vunpack.c.l.b16 %v3016
        %v3137 = vunpack.c.l.b16 %v3017
        %v3138 = vunpack.c.h.b16 %v3017
        %v3139 = vunpack.c.l.b16 %v3018
        %v3140 = vunpack.c.l.b16 %v3019
        %v3141 = vunpack.c.h.b16 %v3019
        %v3142 = vunpack.c.l.b16 %v3020
        %v3143 = vunpack.c.l.b16 %v3021
        %v3144 = vunpack.c.h.b16 %v3021
        %v3145 = vunpack.c.l.b16 %v3022
        %v3146 = vunpack.c.l.b16 %v3023
        %v3147 = vunpack.c.h.b16 %v3023
        %v3148 = vunpack.c.l.b16 %v3024
        %v3149 = vunpack.c.l.b16 %v3025
        %v3150 = vunpack.c.h.b16 %v3025
        %v3151 = vunpack.c.l.b16 %v3026
        %v3152 = vunpack.c.l.b16 %v3027
        %v3153 = vunpack.c.h.b16 %v3027
        %v3154 = vunpack.c.l.b16 %v3028
        %v3155 = vunpack.c.l.b16 %v3029
        %v3156 = vunpack.c.h.b16 %v3029
        %v3157 = vunpack.c.l.b16 %v3030
        %v3158 = vunpack.c.l.b16 %v3031
        %v3159 = vunpack.c.h.b16 %v3031
        %v3160 = vunpack.c.l.b16 %v3032
        %v3161 = vunpack.c.l.b16 %v3033
        %v3162 = vunpack.c.h.b16 %v3033
        %v3163 = vunpack.c.l.b16 %v3034
        %v3164 = vunpack.c.l.b16 %v3035
        %v3165 = vunpack.c.h.b16 %v3035
        %v3166 = vunpack.c.l.b16 %v3036
        %v3167 = vunpack.c.l.b16 %v3037
        %v3168 = vunpack.c.h.b16 %v3037
        %v3169 = vunpack.c.l.b16 %v3038
        %v3170 = vunpack.c.l.b16 %v3039
        %v3171 = vunpack.c.h.b16 %v3039
        %v3172 = vunpack.c.l.b16 %v3040
        %v3173 = vunpack.c.l.b16 %v3041
        %v3174 = vunpack.c.h.b16 %v3041
        %v3175 = vunpack.c.l.b16 %v3042
        %v3176 = vunpack.c.l.b16 %v3043
        %v3177 = vunpack.c.h.b16 %v3043
        %v3178 = vunpack.c.l.b16 %v3044
        %v3179 = vunpack.c.l.b16 %v3045
        %v3180 = vunpack.c.h.b16 %v3045
        %v3181 = vunpack.c.l.b16 %v3046
        %v3182 = vunpack.c.l.b16 %v3047
        %v3183 = vunpack.c.h.b16 %v3047
        %v3184 = vunpack.c.l.b16 %v3048
        %v3185 = vunpack.c.l.b16 %v3049
        %v3186 = vunpack.c.h.b16 %v3049
        %v3187 = vunpack.c.l.b16 %v3050
        %v3188 = vunpack.c.l.b16 %v3051
        %v3189 = vunpack.c.h.b16 %v3051
        %v3190 = vunpack.c.l.b16 %v3052
        %v3191 = vunpack.c.l.b16 %v3053
        %v3192 = vunpack.c.h.b16 %v3053
        %v3193 = vunpack.c.l.b16 %v3054
        %v3194 = vunpack.c.l.b16 %v3055
        %v3195 = vunpack.c.h.b16 %v3055
        %v3196 = vunpack.c.l.b16 %v3056
        %v3197 = vunpack.c.l.b16 %v3057
        %v3198 = vunpack.c.h.b16 %v3057
        %v3199 = vunpack.c.l.b16 %v3058
        %v3200 = vunpack.c.l.b16 %v3059
        %v3201 = vunpack.c.h.b16 %v3059
        %v3202 = vunpack.c.l.b16 %v3060
        %v3203 = vunpack.c.l.b16 %v3061
        %v3204 = vunpack.c.h.b16 %v3061
        %v3205 = vunpack.c.l.b16 %v3062
        %v3206 = vunpack.c.l.b16 %v3063
        %v3207 = vunpack.c.h.b16 %v3063
        %v3208 = vunpack.c.l.b16 %v3064
        %v3209 = vunpack.c.l.b16 %v3065
        %v3210 = vunpack.c.h.b16 %v3065
        %v3211 = vunpack.c.l.b16 %v3066
        %v3212 = vpack.c.b16 %v3131, %v3128
        %v3213 = vpack.c.b16 %v3132, %v3129
        %v3214 = vpack.c.b16 %v3133, %v3130
        %v3215 = vpack.c.b16 %v3137, %v3134
        %v3216 = vpack.c.b16 %v3138, %v3135
        %v3217 = vpack.c.b16 %v3139, %v3136
        %v3218 = vpack.c.b16 %v3143, %v3140
        %v3219 = vpack.c.b16 %v3144, %v3141
        %v3220 = vpack.c.b16 %v3145, %v3142
        %v3221 = vpack.c.b16 %v3149, %v3146
        %v3222 = vpack.c.b16 %v3150, %v3147
        %v3223 = vpack.c.b16 %v3151, %v3148
        %v3224 = vpack.c.b16 %v3155, %v3152
        %v3225 = vpack.c.b16 %v3156, %v3153
        %v3226 = vpack.c.b16 %v3157, %v3154
        %v3227 = vpack.c.b16 %v3161, %v3158
        %v3228 = vpack.c.b16 %v3162, %v3159
        %v3229 = vpack.c.b16 %v3163, %v3160
        %v3230 = vpack.c.b16 %v3167, %v3164
        %v3231 = vpack.c.b16 %v3168, %v3165
        %v3232 = vpack.c.b16 %v3169, %v3166
        %v3233 = vpack.c.b16 %v3173, %v3170
        %v3234 = vpack.c.b16 %v3174, %v3171
        %v3235 = vpack.c.b16 %v3175, %v3172
        %v3236 = vpack.c.b16 %v3179, %v3176
        %v3237 = vpack.c.b16 %v3180, %v3177
        %v3238 = vpack.c.b16 %v3181, %v3178
        %v3239 = vpack.c.b16 %v3185, %v3182
        %v3240 = vpack.c.b16 %v3186, %v3183
        %v3241 = vpack.c.b16 %v3187, %v3184
        %v3242 = vpack.c.b16 %v3191, %v3188
        %v3243 = vpack.c.b16 %v3192, %v3189
        %v3244 = vpack.c.b16 %v3193, %v3190
        %v3245 = vpack.c.b16 %v3197, %v3194
        %v3246 = vpack.c.b16 %v3198, %v3195
        %v3247 = vpack.c.b16 %v3199, %v3196
        %v3248 = vpack.c.b16 %v3203, %v3200
        %v3249 = vpack.c.b16 %v3204, %v3201
        %v3250 = vpack.c.b16 %v3205, %v3202
        %v3251 = vpack.c.b16 %v3209, %v3206
        %v3252 = vpack.c.b16 %v3210, %v3207
        %v3253 = vpack.c.b16 %v3211, %v3208
        %v3297 = vsel %vm717, %v3070, 0
        %3299 = vmatprep.subr.bf16.mxu0 %v3234
        %3300 = vmatpush1.bf16.msra.mxu0 %v3233
        %3301 = vmatprep.subr.bf16.mxu0 %v3231
        %3302 = vmatpush1.bf16.msra.mxu0 %v3230
        %3303 = vmatprep.subr.bf16.mxu0 %v3228
        %3304 = vmatpush1.bf16.msra.mxu0 %v3227
        %3305 = vmatprep.subr.bf16.mxu0 %v3225
        %3306 = vmatpush1.bf16.msra.mxu0 %v3224
        %3307 = vmatprep.subr.bf16.mxu0 %v3222
        %3308 = vmatpush1.bf16.msra.mxu0 %v3221
        %3309 = vmatprep.subr.bf16.mxu0 %v3219
        %3310 = vmatpush1.bf16.msra.mxu0 %v3218
        %3311 = vmatprep.subr.bf16.mxu0 %v3216
        %3312 = vmatpush1.bf16.msra.mxu0 %v3215
        %3313 = vmatprep.subr.bf16.mxu0 %v3213
        %3314 = vmatpush1.bf16.msra.mxu0 %v3212
        %3315 = vmatprep.subr.bf16.mxu0 0
        %3316 = vmatpush2.bf16.msra.mxu0 0
        %3317 = vmatprep.subr.bf16.mxu0 0
        %3318 = vmatpush2.bf16.msra.mxu0 0
        %3319 = vmatprep.subr.bf16.mxu0 %v3252
        %3320 = vmatpush2.bf16.msra.mxu0 %v3251
        %3321 = vmatprep.subr.bf16.mxu0 %v3249
        %3322 = vmatpush2.bf16.msra.mxu0 %v3248
        %3323 = vmatprep.subr.bf16.mxu0 %v3246
        %3324 = vmatpush2.bf16.msra.mxu0 %v3245
        %3325 = vmatprep.subr.bf16.mxu0 %v3243
        %3326 = vmatpush2.bf16.msra.mxu0 %v3242
        %3327 = vmatprep.subr.bf16.mxu0 %v3240
        %3328 = vmatpush2.bf16.msra.mxu0 %v3239
        %3329 = vmatprep.subr.bf16.mxu0 %v3237
        %3330 = vmatpush2.bf16.msra.mxu0 %v3236
        %3331 = vmatprep.mubr.bf16.mxu0 %v3297
        %3332 = vmatmul.mubr.bf16.gmra.mxu0 %v3069
        %v3333 = vpop.f32.mrf.mxu0
        %v3334 = vadd.f32 0.0, %v3333
        %v3335 = vpop.f32.mrf.mxu0
        %v3336 = vadd.f32 0.0, %v3335
        %v3337 = vpop.f32.mrf.mxu0
        %v3338 = vadd.f32 0.0, %v3337
        %v3339 = vpop.f32.mrf.mxu0
        %v3340 = vadd.f32 0.0, %v3339
        %3341 = vdwg.mxu0
        %3342 = vmatprep.subr.bf16.mxu0 0
        %3343 = vmatpush1.bf16.msra.mxu0 %v3235
        %3344 = vmatprep.subr.bf16.mxu0 0
        %3345 = vmatpush1.bf16.msra.mxu0 %v3232
        %3346 = vmatprep.subr.bf16.mxu0 0
        %3347 = vmatpush1.bf16.msra.mxu0 %v3229
        %3348 = vmatprep.subr.bf16.mxu0 0
        %3349 = vmatpush1.bf16.msra.mxu0 %v3226
        %3350 = vmatprep.subr.bf16.mxu0 0
        %3351 = vmatpush1.bf16.msra.mxu0 %v3223
        %3352 = vmatprep.subr.bf16.mxu0 0
        %3353 = vmatpush1.bf16.msra.mxu0 %v3220
        %3354 = vmatprep.subr.bf16.mxu0 0
        %3355 = vmatpush1.bf16.msra.mxu0 %v3217
        %3356 = vmatprep.subr.bf16.mxu0 0
        %3357 = vmatpush1.bf16.msra.mxu0 %v3214
        %3358 = vmatprep.subr.bf16.mxu0 0
        %3359 = vmatpush2.bf16.msra.mxu0 0
        %3360 = vmatprep.subr.bf16.mxu0 0
        %3361 = vmatpush2.bf16.msra.mxu0 0
        %3362 = vmatprep.subr.bf16.mxu0 0
        %3363 = vmatpush2.bf16.msra.mxu0 %v3253
        %3364 = vmatprep.subr.bf16.mxu0 0
        %3365 = vmatpush2.bf16.msra.mxu0 %v3250
        %3366 = vmatprep.subr.bf16.mxu0 0
        %3367 = vmatpush2.bf16.msra.mxu0 %v3247
        %3368 = vmatprep.subr.bf16.mxu0 0
        %3369 = vmatpush2.bf16.msra.mxu0 %v3244
        %3370 = vmatprep.subr.bf16.mxu0 0
        %3371 = vmatpush2.bf16.msra.mxu0 %v3241
        %3372 = vmatprep.subr.bf16.mxu0 0
        %3373 = vmatpush2.bf16.msra.mxu0 %v3238
        %3374 = vmatprep.mubr.bf16.mxu0 %v3297
        %3375 = vmatmul.mubr.bf16.gmra.mxu0 %v3069
        %v3376 = vpop.f32.mrf.mxu0
        %v3377 = vadd.f32 0.0, %v3376
        %v3378 = vpop.f32.mrf.mxu0
        %v3379 = vpop.f32.mrf.mxu0
        %v3380 = vadd.f32 0.0, %v3379
        %v3381 = vpop.f32.mrf.mxu0
        %3382 = vdwg.mxu0
        %v3383 = vadd.f32 %v2961, %v3334
        %v3384 = vadd.f32 %v2963, %v3336
        %v3385 = vadd.f32 %v3004, %v3377
        %v3386 = vadd.f32 %v2965, %v3338
        %v3387 = vadd.f32 %v2967, %v3340
        %v3388 = vadd.f32 %v3007, %v3380
        %s3389 = scalar_lea.vmem [#allocation11], 1008
        %v3390 = vld [vmem:[%s3389] sm:$0xff]
        %v3391 = vld [vmem:[%s3389 + $0x8] sm:$0xf]
        %v3392 = vld [vmem:[%s3389 + $0xc] sm:$0xff]
        %v3393 = vld [vmem:[%s3389 + $0x14] sm:$0xf]
        %v3394 = vld [vmem:[%s3389 + $0x18] sm:$0xff]
        %v3395 = vld [vmem:[%s3389 + $0x20] sm:$0xf]
        %v3396 = vld [vmem:[%s3389 + $0x24] sm:$0xff]
        %v3397 = vld [vmem:[%s3389 + $0x2c] sm:$0xf]
        %v3398 = vld [vmem:[%s3389 + $0x30] sm:$0xff]
        %v3399 = vld [vmem:[%s3389 + $0x38] sm:$0xf]
        %v3400 = vld [vmem:[%s3389 + $0x3c] sm:$0xff]
        %v3401 = vld [vmem:[%s3389 + $0x44] sm:$0xf]
        %v3402 = vld [vmem:[%s3389 + $0x48] sm:$0xff]
        %v3403 = vld [vmem:[%s3389 + $0x50] sm:$0xf]
        %v3404 = vld [vmem:[%s3389 + $0x54] sm:$0xff]
        %v3405 = vld [vmem:[%s3389 + $0x5c] sm:$0xf]
        %v3406 = vld [vmem:[%s3389 + $0x60] sm:$0xff]
        %v3407 = vld [vmem:[%s3389 + $0x68] sm:$0xf]
        %v3408 = vld [vmem:[%s3389 + $0x6c] sm:$0xff]
        %v3409 = vld [vmem:[%s3389 + $0x74] sm:$0xf]
        %v3410 = vld [vmem:[%s3389 + $0x78] sm:$0xff]
        %v3411 = vld [vmem:[%s3389 + $0x80] sm:$0xf]
        %v3412 = vld [vmem:[%s3389 + $0x84] sm:$0xff]
        %v3413 = vld [vmem:[%s3389 + $0x8c] sm:$0xf]
        %v3414 = vld [vmem:[%s3389 + $0x90] sm:$0xff]
        %v3415 = vld [vmem:[%s3389 + $0x98] sm:$0xf]
        %v3416 = vld [vmem:[%s3389 + $0x9c] sm:$0xff]
        %v3417 = vld [vmem:[%s3389 + $0xa4] sm:$0xf]
        %v3418 = vld [vmem:[%s3389 + $0xa8] sm:$0xff]
        %v3419 = vld [vmem:[%s3389 + $0xb0] sm:$0xf]
        %v3420 = vld [vmem:[%s3389 + $0xb4] sm:$0xff]
        %v3421 = vld [vmem:[%s3389 + $0xbc] sm:$0xf]
        %v3422 = vld [vmem:[%s3389 + $0xc0] sm:$0xff]
        %v3423 = vld [vmem:[%s3389 + $0xc8] sm:$0xf]
        %v3424 = vld [vmem:[%s3389 + $0xcc] sm:$0xff]
        %v3425 = vld [vmem:[%s3389 + $0xd4] sm:$0xf]
        %v3426 = vld [vmem:[%s3389 + $0xd8] sm:$0xff]
        %v3427 = vld [vmem:[%s3389 + $0xe0] sm:$0xf]
        %v3428 = vld [vmem:[%s3389 + $0xe4] sm:$0xff]
        %v3429 = vld [vmem:[%s3389 + $0xec] sm:$0xf]
        %v3430 = vld [vmem:[%s3389 + $0xf0] sm:$0xff]
        %v3431 = vld [vmem:[%s3389 + $0xf8] sm:$0xf]
        %v3432 = vld [vmem:[%s3389 + $0xfc] sm:$0xff]
        %v3433 = vld [vmem:[%s3389 + $0x104] sm:$0xf]
        %v3434 = vld [vmem:[%s3389 + $0x108] sm:$0xff]
        %v3435 = vld [vmem:[%s3389 + $0x110] sm:$0xf]
        %v3436 = vld [vmem:[%s3389 + $0x114] sm:$0xff]
        %v3437 = vld [vmem:[%s3389 + $0x11c] sm:$0xf]
        %v3438 = vld [vmem:[%s3389 + $0x120] sm:$0xff]
        %v3439 = vld [vmem:[%s3389 + $0x128] sm:$0xf]
        %v3440 = vld [vmem:[%s3389 + $0x12c] sm:$0xff]
        %v3441 = vld [vmem:[%s3389 + $0x134] sm:$0xf]
        %v3442 = vld [vmem:[%s3389 + $0x138] sm:$0xff]
        %v3443 = vld [vmem:[%s3389 + $0x140] sm:$0xf]
        %v3444 = vld [vmem:[%s3389 + $0x144] sm:$0xff]
        %v3445 = vld [vmem:[%s3389 + $0x14c] sm:$0xf]
        %v3446 = vrot.slane %v2375, 1
        %v3447 = vrot.slane %v2377, 2
        %v3448 = vor.u32 %v3446, %v3447
        %v3449 = vrot.slane %v2382, 1
        %v3450 = vrot.slane %v2384, 2
        %v3451 = vor.u32 %v3449, %v3450
        %v3509 = vunpack.c.l.b16 %v3390
        %v3510 = vunpack.c.h.b16 %v3390
        %v3511 = vunpack.c.l.b16 %v3391
        %v3512 = vunpack.c.l.b16 %v3392
        %v3513 = vunpack.c.h.b16 %v3392
        %v3514 = vunpack.c.l.b16 %v3393
        %v3515 = vunpack.c.l.b16 %v3394
        %v3516 = vunpack.c.h.b16 %v3394
        %v3517 = vunpack.c.l.b16 %v3395
        %v3518 = vunpack.c.l.b16 %v3396
        %v3519 = vunpack.c.h.b16 %v3396
        %v3520 = vunpack.c.l.b16 %v3397
        %v3521 = vunpack.c.l.b16 %v3398
        %v3522 = vunpack.c.h.b16 %v3398
        %v3523 = vunpack.c.l.b16 %v3399
        %v3524 = vunpack.c.l.b16 %v3400
        %v3525 = vunpack.c.h.b16 %v3400
        %v3526 = vunpack.c.l.b16 %v3401
        %v3527 = vunpack.c.l.b16 %v3402
        %v3528 = vunpack.c.h.b16 %v3402
        %v3529 = vunpack.c.l.b16 %v3403
        %v3530 = vunpack.c.l.b16 %v3404
        %v3531 = vunpack.c.h.b16 %v3404
        %v3532 = vunpack.c.l.b16 %v3405
        %v3533 = vunpack.c.l.b16 %v3406
        %v3534 = vunpack.c.h.b16 %v3406
        %v3535 = vunpack.c.l.b16 %v3407
        %v3536 = vunpack.c.l.b16 %v3408
        %v3537 = vunpack.c.h.b16 %v3408
        %v3538 = vunpack.c.l.b16 %v3409
        %v3539 = vunpack.c.l.b16 %v3410
        %v3540 = vunpack.c.h.b16 %v3410
        %v3541 = vunpack.c.l.b16 %v3411
        %v3542 = vunpack.c.l.b16 %v3412
        %v3543 = vunpack.c.h.b16 %v3412
        %v3544 = vunpack.c.l.b16 %v3413
        %v3545 = vunpack.c.l.b16 %v3414
        %v3546 = vunpack.c.h.b16 %v3414
        %v3547 = vunpack.c.l.b16 %v3415
        %v3548 = vunpack.c.l.b16 %v3416
        %v3549 = vunpack.c.h.b16 %v3416
        %v3550 = vunpack.c.l.b16 %v3417
        %v3551 = vunpack.c.l.b16 %v3418
        %v3552 = vunpack.c.h.b16 %v3418
        %v3553 = vunpack.c.l.b16 %v3419
        %v3554 = vunpack.c.l.b16 %v3420
        %v3555 = vunpack.c.h.b16 %v3420
        %v3556 = vunpack.c.l.b16 %v3421
        %v3557 = vunpack.c.l.b16 %v3422
        %v3558 = vunpack.c.h.b16 %v3422
        %v3559 = vunpack.c.l.b16 %v3423
        %v3560 = vunpack.c.l.b16 %v3424
        %v3561 = vunpack.c.h.b16 %v3424
        %v3562 = vunpack.c.l.b16 %v3425
        %v3563 = vunpack.c.l.b16 %v3426
        %v3564 = vunpack.c.h.b16 %v3426
        %v3565 = vunpack.c.l.b16 %v3427
        %v3566 = vunpack.c.l.b16 %v3428
        %v3567 = vunpack.c.h.b16 %v3428
        %v3568 = vunpack.c.l.b16 %v3429
        %v3569 = vunpack.c.l.b16 %v3430
        %v3570 = vunpack.c.h.b16 %v3430
        %v3571 = vunpack.c.l.b16 %v3431
        %v3572 = vunpack.c.l.b16 %v3432
        %v3573 = vunpack.c.h.b16 %v3432
        %v3574 = vunpack.c.l.b16 %v3433
        %v3575 = vunpack.c.l.b16 %v3434
        %v3576 = vunpack.c.h.b16 %v3434
        %v3577 = vunpack.c.l.b16 %v3435
        %v3578 = vunpack.c.l.b16 %v3436
        %v3579 = vunpack.c.h.b16 %v3436
        %v3580 = vunpack.c.l.b16 %v3437
        %v3581 = vunpack.c.l.b16 %v3438
        %v3582 = vunpack.c.h.b16 %v3438
        %v3583 = vunpack.c.l.b16 %v3439
        %v3584 = vunpack.c.l.b16 %v3440
        %v3585 = vunpack.c.h.b16 %v3440
        %v3586 = vunpack.c.l.b16 %v3441
        %v3587 = vunpack.c.l.b16 %v3442
        %v3588 = vunpack.c.h.b16 %v3442
        %v3589 = vunpack.c.l.b16 %v3443
        %v3590 = vunpack.c.l.b16 %v3444
        %v3591 = vunpack.c.h.b16 %v3444
        %v3592 = vunpack.c.l.b16 %v3445
        %v3593 = vpack.c.b16 %v3512, %v3509
        %v3594 = vpack.c.b16 %v3513, %v3510
        %v3595 = vpack.c.b16 %v3514, %v3511
        %v3596 = vpack.c.b16 %v3518, %v3515
        %v3597 = vpack.c.b16 %v3519, %v3516
        %v3598 = vpack.c.b16 %v3520, %v3517
        %v3599 = vpack.c.b16 %v3524, %v3521
        %v3600 = vpack.c.b16 %v3525, %v3522
        %v3601 = vpack.c.b16 %v3526, %v3523
        %v3602 = vpack.c.b16 %v3530, %v3527
        %v3603 = vpack.c.b16 %v3531, %v3528
        %v3604 = vpack.c.b16 %v3532, %v3529
        %v3605 = vpack.c.b16 %v3536, %v3533
        %v3606 = vpack.c.b16 %v3537, %v3534
        %v3607 = vpack.c.b16 %v3538, %v3535
        %v3608 = vpack.c.b16 %v3542, %v3539
        %v3609 = vpack.c.b16 %v3543, %v3540
        %v3610 = vpack.c.b16 %v3544, %v3541
        %v3611 = vpack.c.b16 %v3548, %v3545
        %v3612 = vpack.c.b16 %v3549, %v3546
        %v3613 = vpack.c.b16 %v3550, %v3547
        %v3614 = vpack.c.b16 %v3554, %v3551
        %v3615 = vpack.c.b16 %v3555, %v3552
        %v3616 = vpack.c.b16 %v3556, %v3553
        %v3617 = vpack.c.b16 %v3560, %v3557
        %v3618 = vpack.c.b16 %v3561, %v3558
        %v3619 = vpack.c.b16 %v3562, %v3559
        %v3620 = vpack.c.b16 %v3566, %v3563
        %v3621 = vpack.c.b16 %v3567, %v3564
        %v3622 = vpack.c.b16 %v3568, %v3565
        %v3623 = vpack.c.b16 %v3572, %v3569
        %v3624 = vpack.c.b16 %v3573, %v3570
        %v3625 = vpack.c.b16 %v3574, %v3571
        %v3626 = vpack.c.b16 %v3578, %v3575
        %v3627 = vpack.c.b16 %v3579, %v3576
        %v3628 = vpack.c.b16 %v3580, %v3577
        %v3629 = vpack.c.b16 %v3584, %v3581
        %v3630 = vpack.c.b16 %v3585, %v3582
        %v3631 = vpack.c.b16 %v3586, %v3583
        %v3632 = vpack.c.b16 %v3590, %v3587
        %v3633 = vpack.c.b16 %v3591, %v3588
        %v3634 = vpack.c.b16 %v3592, %v3589
        %v3678 = vsel %vm717, %v3451, 0
        %3680 = vmatprep.subr.bf16.mxu0 %v3615
        %3681 = vmatpush1.bf16.msra.mxu0 %v3614
        %3682 = vmatprep.subr.bf16.mxu0 %v3612
        %3683 = vmatpush1.bf16.msra.mxu0 %v3611
        %3684 = vmatprep.subr.bf16.mxu0 %v3609
        %3685 = vmatpush1.bf16.msra.mxu0 %v3608
        %3686 = vmatprep.subr.bf16.mxu0 %v3606
        %3687 = vmatpush1.bf16.msra.mxu0 %v3605
        %3688 = vmatprep.subr.bf16.mxu0 %v3603
        %3689 = vmatpush1.bf16.msra.mxu0 %v3602
        %3690 = vmatprep.subr.bf16.mxu0 %v3600
        %3691 = vmatpush1.bf16.msra.mxu0 %v3599
        %3692 = vmatprep.subr.bf16.mxu0 %v3597
        %3693 = vmatpush1.bf16.msra.mxu0 %v3596
        %3694 = vmatprep.subr.bf16.mxu0 %v3594
        %3695 = vmatpush1.bf16.msra.mxu0 %v3593
        %3696 = vmatprep.subr.bf16.mxu0 0
        %3697 = vmatpush2.bf16.msra.mxu0 0
        %3698 = vmatprep.subr.bf16.mxu0 0
        %3699 = vmatpush2.bf16.msra.mxu0 0
        %3700 = vmatprep.subr.bf16.mxu0 %v3633
        %3701 = vmatpush2.bf16.msra.mxu0 %v3632
        %3702 = vmatprep.subr.bf16.mxu0 %v3630
        %3703 = vmatpush2.bf16.msra.mxu0 %v3629
        %3704 = vmatprep.subr.bf16.mxu0 %v3627
        %3705 = vmatpush2.bf16.msra.mxu0 %v3626
        %3706 = vmatprep.subr.bf16.mxu0 %v3624
        %3707 = vmatpush2.bf16.msra.mxu0 %v3623
        %3708 = vmatprep.subr.bf16.mxu0 %v3621
        %3709 = vmatpush2.bf16.msra.mxu0 %v3620
        %3710 = vmatprep.subr.bf16.mxu0 %v3618
        %3711 = vmatpush2.bf16.msra.mxu0 %v3617
        %3712 = vmatprep.mubr.bf16.mxu0 %v3678
        %3713 = vmatmul.mubr.bf16.gmra.mxu0 %v3448
        %v3714 = vpop.f32.mrf.mxu0
        %v3715 = vadd.f32 0.0, %v3714
        %v3716 = vpop.f32.mrf.mxu0
        %v3717 = vadd.f32 0.0, %v3716
        %v3718 = vpop.f32.mrf.mxu0
        %v3719 = vadd.f32 0.0, %v3718
        %v3720 = vpop.f32.mrf.mxu0
        %v3721 = vadd.f32 0.0, %v3720
        %3722 = vdwg.mxu0
        %3723 = vmatprep.subr.bf16.mxu0 0
        %3724 = vmatpush1.bf16.msra.mxu0 %v3616
        %3725 = vmatprep.subr.bf16.mxu0 0
        %3726 = vmatpush1.bf16.msra.mxu0 %v3613
        %3727 = vmatprep.subr.bf16.mxu0 0
        %3728 = vmatpush1.bf16.msra.mxu0 %v3610
        %3729 = vmatprep.subr.bf16.mxu0 0
        %3730 = vmatpush1.bf16.msra.mxu0 %v3607
        %3731 = vmatprep.subr.bf16.mxu0 0
        %3732 = vmatpush1.bf16.msra.mxu0 %v3604
        %3733 = vmatprep.subr.bf16.mxu0 0
        %3734 = vmatpush1.bf16.msra.mxu0 %v3601
        %3735 = vmatprep.subr.bf16.mxu0 0
        %3736 = vmatpush1.bf16.msra.mxu0 %v3598
        %3737 = vmatprep.subr.bf16.mxu0 0
        %3738 = vmatpush1.bf16.msra.mxu0 %v3595
        %3739 = vmatprep.subr.bf16.mxu0 0
        %3740 = vmatpush2.bf16.msra.mxu0 0
        %3741 = vmatprep.subr.bf16.mxu0 0
        %3742 = vmatpush2.bf16.msra.mxu0 0
        %3743 = vmatprep.subr.bf16.mxu0 0
        %3744 = vmatpush2.bf16.msra.mxu0 %v3634
        %3745 = vmatprep.subr.bf16.mxu0 0
        %3746 = vmatpush2.bf16.msra.mxu0 %v3631
        %3747 = vmatprep.subr.bf16.mxu0 0
        %3748 = vmatpush2.bf16.msra.mxu0 %v3628
        %3749 = vmatprep.subr.bf16.mxu0 0
        %3750 = vmatpush2.bf16.msra.mxu0 %v3625
        %3751 = vmatprep.subr.bf16.mxu0 0
        %3752 = vmatpush2.bf16.msra.mxu0 %v3622
        %3753 = vmatprep.subr.bf16.mxu0 0
        %3754 = vmatpush2.bf16.msra.mxu0 %v3619
        %3755 = vmatprep.mubr.bf16.mxu0 %v3678
        %3756 = vmatmul.mubr.bf16.gmra.mxu0 %v3448
        %v3757 = vpop.f32.mrf.mxu0
        %v3758 = vadd.f32 0.0, %v3757
        %v3759 = vpop.f32.mrf.mxu0
        %v3760 = vpop.f32.mrf.mxu0
        %v3761 = vadd.f32 0.0, %v3760
        %v3762 = vpop.f32.mrf.mxu0
        %3763 = vdwg.mxu0
        %v3764 = vadd.f32 %v3383, %v3715
        %v3765 = vadd.f32 %v3384, %v3717
        %v3766 = vadd.f32 %v3385, %v3758
        %v3767 = vadd.f32 %v3386, %v3719
        %v3768 = vadd.f32 %v3387, %v3721
        %v3769 = vadd.f32 %v3388, %v3761
        %s3770 = scalar_lea.vmem [#allocation11], 1344
        %v3771 = vld [vmem:[%s3770] sm:$0xff]
        %v3772 = vld [vmem:[%s3770 + $0x8] sm:$0xf]
        %v3773 = vld [vmem:[%s3770 + $0xc] sm:$0xff]
        %v3774 = vld [vmem:[%s3770 + $0x14] sm:$0xf]
        %v3775 = vld [vmem:[%s3770 + $0x18] sm:$0xff]
        %v3776 = vld [vmem:[%s3770 + $0x20] sm:$0xf]
        %v3777 = vld [vmem:[%s3770 + $0x24] sm:$0xff]
        %v3778 = vld [vmem:[%s3770 + $0x2c] sm:$0xf]
        %v3779 = vld [vmem:[%s3770 + $0x30] sm:$0xff]
        %v3780 = vld [vmem:[%s3770 + $0x38] sm:$0xf]
        %v3781 = vld [vmem:[%s3770 + $0x3c] sm:$0xff]
        %v3782 = vld [vmem:[%s3770 + $0x44] sm:$0xf]
        %v3783 = vld [vmem:[%s3770 + $0x48] sm:$0xff]
        %v3784 = vld [vmem:[%s3770 + $0x50] sm:$0xf]
        %v3785 = vld [vmem:[%s3770 + $0x54] sm:$0xff]
        %v3786 = vld [vmem:[%s3770 + $0x5c] sm:$0xf]
        %v3787 = vld [vmem:[%s3770 + $0x60] sm:$0xff]
        %v3788 = vld [vmem:[%s3770 + $0x68] sm:$0xf]
        %v3789 = vld [vmem:[%s3770 + $0x6c] sm:$0xff]
        %v3790 = vld [vmem:[%s3770 + $0x74] sm:$0xf]
        %v3791 = vld [vmem:[%s3770 + $0x78] sm:$0xff]
        %v3792 = vld [vmem:[%s3770 + $0x80] sm:$0xf]
        %v3793 = vld [vmem:[%s3770 + $0x84] sm:$0xff]
        %v3794 = vld [vmem:[%s3770 + $0x8c] sm:$0xf]
        %v3795 = vld [vmem:[%s3770 + $0x90] sm:$0xff]
        %v3796 = vld [vmem:[%s3770 + $0x98] sm:$0xf]
        %v3797 = vld [vmem:[%s3770 + $0x9c] sm:$0xff]
        %v3798 = vld [vmem:[%s3770 + $0xa4] sm:$0xf]
        %v3799 = vld [vmem:[%s3770 + $0xa8] sm:$0xff]
        %v3800 = vld [vmem:[%s3770 + $0xb0] sm:$0xf]
        %v3801 = vld [vmem:[%s3770 + $0xb4] sm:$0xff]
        %v3802 = vld [vmem:[%s3770 + $0xbc] sm:$0xf]
        %v3803 = vld [vmem:[%s3770 + $0xc0] sm:$0xff]
        %v3804 = vld [vmem:[%s3770 + $0xc8] sm:$0xf]
        %v3805 = vld [vmem:[%s3770 + $0xcc] sm:$0xff]
        %v3806 = vld [vmem:[%s3770 + $0xd4] sm:$0xf]
        %v3807 = vld [vmem:[%s3770 + $0xd8] sm:$0xff]
        %v3808 = vld [vmem:[%s3770 + $0xe0] sm:$0xf]
        %v3809 = vld [vmem:[%s3770 + $0xe4] sm:$0xff]
        %v3810 = vld [vmem:[%s3770 + $0xec] sm:$0xf]
        %v3811 = vld [vmem:[%s3770 + $0xf0] sm:$0xff]
        %v3812 = vld [vmem:[%s3770 + $0xf8] sm:$0xf]
        %v3813 = vld [vmem:[%s3770 + $0xfc] sm:$0xff]
        %v3814 = vld [vmem:[%s3770 + $0x104] sm:$0xf]
        %v3815 = vld [vmem:[%s3770 + $0x108] sm:$0xff]
        %v3816 = vld [vmem:[%s3770 + $0x110] sm:$0xf]
        %v3817 = vld [vmem:[%s3770 + $0x114] sm:$0xff]
        %v3818 = vld [vmem:[%s3770 + $0x11c] sm:$0xf]
        %v3819 = vld [vmem:[%s3770 + $0x120] sm:$0xff]
        %v3820 = vld [vmem:[%s3770 + $0x128] sm:$0xf]
        %v3821 = vld [vmem:[%s3770 + $0x12c] sm:$0xff]
        %v3822 = vld [vmem:[%s3770 + $0x134] sm:$0xf]
        %v3823 = vld [vmem:[%s3770 + $0x138] sm:$0xff]
        %v3824 = vld [vmem:[%s3770 + $0x140] sm:$0xf]
        %v3825 = vld [vmem:[%s3770 + $0x144] sm:$0xff]
        %v3826 = vld [vmem:[%s3770 + $0x14c] sm:$0xf]
        %v3827 = vrot.slane %v2259, 2
        %v3828 = vrot.slane %v2260, 2
        %v3886 = vunpack.c.l.b16 %v3771
        %v3887 = vunpack.c.h.b16 %v3771
        %v3888 = vunpack.c.l.b16 %v3772
        %v3889 = vunpack.c.l.b16 %v3773
        %v3890 = vunpack.c.h.b16 %v3773
        %v3891 = vunpack.c.l.b16 %v3774
        %v3892 = vunpack.c.l.b16 %v3775
        %v3893 = vunpack.c.h.b16 %v3775
        %v3894 = vunpack.c.l.b16 %v3776
        %v3895 = vunpack.c.l.b16 %v3777
        %v3896 = vunpack.c.h.b16 %v3777
        %v3897 = vunpack.c.l.b16 %v3778
        %v3898 = vunpack.c.l.b16 %v3779
        %v3899 = vunpack.c.h.b16 %v3779
        %v3900 = vunpack.c.l.b16 %v3780
        %v3901 = vunpack.c.l.b16 %v3781
        %v3902 = vunpack.c.h.b16 %v3781
        %v3903 = vunpack.c.l.b16 %v3782
        %v3904 = vunpack.c.l.b16 %v3783
        %v3905 = vunpack.c.h.b16 %v3783
        %v3906 = vunpack.c.l.b16 %v3784
        %v3907 = vunpack.c.l.b16 %v3785
        %v3908 = vunpack.c.h.b16 %v3785
        %v3909 = vunpack.c.l.b16 %v3786
        %v3910 = vunpack.c.l.b16 %v3787
        %v3911 = vunpack.c.h.b16 %v3787
        %v3912 = vunpack.c.l.b16 %v3788
        %v3913 = vunpack.c.l.b16 %v3789
        %v3914 = vunpack.c.h.b16 %v3789
        %v3915 = vunpack.c.l.b16 %v3790
        %v3916 = vunpack.c.l.b16 %v3791
        %v3917 = vunpack.c.h.b16 %v3791
        %v3918 = vunpack.c.l.b16 %v3792
        %v3919 = vunpack.c.l.b16 %v3793
        %v3920 = vunpack.c.h.b16 %v3793
        %v3921 = vunpack.c.l.b16 %v3794
        %v3922 = vunpack.c.l.b16 %v3795
        %v3923 = vunpack.c.h.b16 %v3795
        %v3924 = vunpack.c.l.b16 %v3796
        %v3925 = vunpack.c.l.b16 %v3797
        %v3926 = vunpack.c.h.b16 %v3797
        %v3927 = vunpack.c.l.b16 %v3798
        %v3928 = vunpack.c.l.b16 %v3799
        %v3929 = vunpack.c.h.b16 %v3799
        %v3930 = vunpack.c.l.b16 %v3800
        %v3931 = vunpack.c.l.b16 %v3801
        %v3932 = vunpack.c.h.b16 %v3801
        %v3933 = vunpack.c.l.b16 %v3802
        %v3934 = vunpack.c.l.b16 %v3803
        %v3935 = vunpack.c.h.b16 %v3803
        %v3936 = vunpack.c.l.b16 %v3804
        %v3937 = vunpack.c.l.b16 %v3805
        %v3938 = vunpack.c.h.b16 %v3805
        %v3939 = vunpack.c.l.b16 %v3806
        %v3940 = vunpack.c.l.b16 %v3807
        %v3941 = vunpack.c.h.b16 %v3807
        %v3942 = vunpack.c.l.b16 %v3808
        %v3943 = vunpack.c.l.b16 %v3809
        %v3944 = vunpack.c.h.b16 %v3809
        %v3945 = vunpack.c.l.b16 %v3810
        %v3946 = vunpack.c.l.b16 %v3811
        %v3947 = vunpack.c.h.b16 %v3811
        %v3948 = vunpack.c.l.b16 %v3812
        %v3949 = vunpack.c.l.b16 %v3813
        %v3950 = vunpack.c.h.b16 %v3813
        %v3951 = vunpack.c.l.b16 %v3814
        %v3952 = vunpack.c.l.b16 %v3815
        %v3953 = vunpack.c.h.b16 %v3815
        %v3954 = vunpack.c.l.b16 %v3816
        %v3955 = vunpack.c.l.b16 %v3817
        %v3956 = vunpack.c.h.b16 %v3817
        %v3957 = vunpack.c.l.b16 %v3818
        %v3958 = vunpack.c.l.b16 %v3819
        %v3959 = vunpack.c.h.b16 %v3819
        %v3960 = vunpack.c.l.b16 %v3820
        %v3961 = vunpack.c.l.b16 %v3821
        %v3962 = vunpack.c.h.b16 %v3821
        %v3963 = vunpack.c.l.b16 %v3822
        %v3964 = vunpack.c.l.b16 %v3823
        %v3965 = vunpack.c.h.b16 %v3823
        %v3966 = vunpack.c.l.b16 %v3824
        %v3967 = vunpack.c.l.b16 %v3825
        %v3968 = vunpack.c.h.b16 %v3825
        %v3969 = vunpack.c.l.b16 %v3826
        %v3970 = vpack.c.b16 %v3889, %v3886
        %v3971 = vpack.c.b16 %v3890, %v3887
        %v3972 = vpack.c.b16 %v3891, %v3888
        %v3973 = vpack.c.b16 %v3895, %v3892
        %v3974 = vpack.c.b16 %v3896, %v3893
        %v3975 = vpack.c.b16 %v3897, %v3894
        %v3976 = vpack.c.b16 %v3901, %v3898
        %v3977 = vpack.c.b16 %v3902, %v3899
        %v3978 = vpack.c.b16 %v3903, %v3900
        %v3979 = vpack.c.b16 %v3907, %v3904
        %v3980 = vpack.c.b16 %v3908, %v3905
        %v3981 = vpack.c.b16 %v3909, %v3906
        %v3982 = vpack.c.b16 %v3913, %v3910
        %v3983 = vpack.c.b16 %v3914, %v3911
        %v3984 = vpack.c.b16 %v3915, %v3912
        %v3985 = vpack.c.b16 %v3919, %v3916
        %v3986 = vpack.c.b16 %v3920, %v3917
        %v3987 = vpack.c.b16 %v3921, %v3918
        %v3988 = vpack.c.b16 %v3925, %v3922
        %v3989 = vpack.c.b16 %v3926, %v3923
        %v3990 = vpack.c.b16 %v3927, %v3924
        %v3991 = vpack.c.b16 %v3931, %v3928
        %v3992 = vpack.c.b16 %v3932, %v3929
        %v3993 = vpack.c.b16 %v3933, %v3930
        %v3994 = vpack.c.b16 %v3937, %v3934
        %v3995 = vpack.c.b16 %v3938, %v3935
        %v3996 = vpack.c.b16 %v3939, %v3936
        %v3997 = vpack.c.b16 %v3943, %v3940
        %v3998 = vpack.c.b16 %v3944, %v3941
        %v3999 = vpack.c.b16 %v3945, %v3942
        %v4000 = vpack.c.b16 %v3949, %v3946
        %v4001 = vpack.c.b16 %v3950, %v3947
        %v4002 = vpack.c.b16 %v3951, %v3948
        %v4003 = vpack.c.b16 %v3955, %v3952
        %v4004 = vpack.c.b16 %v3956, %v3953
        %v4005 = vpack.c.b16 %v3957, %v3954
        %v4006 = vpack.c.b16 %v3961, %v3958
        %v4007 = vpack.c.b16 %v3962, %v3959
        %v4008 = vpack.c.b16 %v3963, %v3960
        %v4009 = vpack.c.b16 %v3967, %v3964
        %v4010 = vpack.c.b16 %v3968, %v3965
        %v4011 = vpack.c.b16 %v3969, %v3966
        %v4055 = vsel %vm717, %v3828, 0
        %4057 = vmatprep.subr.bf16.mxu0 %v3992
        %4058 = vmatpush1.bf16.msra.mxu0 %v3991
        %4059 = vmatprep.subr.bf16.mxu0 %v3989
        %4060 = vmatpush1.bf16.msra.mxu0 %v3988
        %4061 = vmatprep.subr.bf16.mxu0 %v3986
        %4062 = vmatpush1.bf16.msra.mxu0 %v3985
        %4063 = vmatprep.subr.bf16.mxu0 %v3983
        %4064 = vmatpush1.bf16.msra.mxu0 %v3982
        %4065 = vmatprep.subr.bf16.mxu0 %v3980
        %4066 = vmatpush1.bf16.msra.mxu0 %v3979
        %4067 = vmatprep.subr.bf16.mxu0 %v3977
        %4068 = vmatpush1.bf16.msra.mxu0 %v3976
        %4069 = vmatprep.subr.bf16.mxu0 %v3974
        %4070 = vmatpush1.bf16.msra.mxu0 %v3973
        %4071 = vmatprep.subr.bf16.mxu0 %v3971
        %4072 = vmatpush1.bf16.msra.mxu0 %v3970
        %4073 = vmatprep.subr.bf16.mxu0 0
        %4074 = vmatpush2.bf16.msra.mxu0 0
        %4075 = vmatprep.subr.bf16.mxu0 0
        %4076 = vmatpush2.bf16.msra.mxu0 0
        %4077 = vmatprep.subr.bf16.mxu0 %v4010
        %4078 = vmatpush2.bf16.msra.mxu0 %v4009
        %4079 = vmatprep.subr.bf16.mxu0 %v4007
        %4080 = vmatpush2.bf16.msra.mxu0 %v4006
        %4081 = vmatprep.subr.bf16.mxu0 %v4004
        %4082 = vmatpush2.bf16.msra.mxu0 %v4003
        %4083 = vmatprep.subr.bf16.mxu0 %v4001
        %4084 = vmatpush2.bf16.msra.mxu0 %v4000
        %4085 = vmatprep.subr.bf16.mxu0 %v3998
        %4086 = vmatpush2.bf16.msra.mxu0 %v3997
        %4087 = vmatprep.subr.bf16.mxu0 %v3995
        %4088 = vmatpush2.bf16.msra.mxu0 %v3994
        %4089 = vmatprep.mubr.bf16.mxu0 %v4055
        %4090 = vmatmul.mubr.bf16.gmra.mxu0 %v3827
        %v4091 = vpop.f32.mrf.mxu0
        %v4092 = vadd.f32 0.0, %v4091
        %v4093 = vpop.f32.mrf.mxu0
        %v4094 = vadd.f32 0.0, %v4093
        %v4095 = vpop.f32.mrf.mxu0
        %v4096 = vadd.f32 0.0, %v4095
        %v4097 = vpop.f32.mrf.mxu0
        %v4098 = vadd.f32 0.0, %v4097
        %4099 = vdwg.mxu0
        %4100 = vmatprep.subr.bf16.mxu0 0
        %4101 = vmatpush1.bf16.msra.mxu0 %v3993
        %4102 = vmatprep.subr.bf16.mxu0 0
        %4103 = vmatpush1.bf16.msra.mxu0 %v3990
        %4104 = vmatprep.subr.bf16.mxu0 0
        %4105 = vmatpush1.bf16.msra.mxu0 %v3987
        %4106 = vmatprep.subr.bf16.mxu0 0
        %4107 = vmatpush1.bf16.msra.mxu0 %v3984
        %4108 = vmatprep.subr.bf16.mxu0 0
        %4109 = vmatpush1.bf16.msra.mxu0 %v3981
        %4110 = vmatprep.subr.bf16.mxu0 0
        %4111 = vmatpush1.bf16.msra.mxu0 %v3978
        %4112 = vmatprep.subr.bf16.mxu0 0
        %4113 = vmatpush1.bf16.msra.mxu0 %v3975
        %4114 = vmatprep.subr.bf16.mxu0 0
        %4115 = vmatpush1.bf16.msra.mxu0 %v3972
        %4116 = vmatprep.subr.bf16.mxu0 0
        %4117 = vmatpush2.bf16.msra.mxu0 0
        %4118 = vmatprep.subr.bf16.mxu0 0
        %4119 = vmatpush2.bf16.msra.mxu0 0
        %4120 = vmatprep.subr.bf16.mxu0 0
        %4121 = vmatpush2.bf16.msra.mxu0 %v4011
        %4122 = vmatprep.subr.bf16.mxu0 0
        %4123 = vmatpush2.bf16.msra.mxu0 %v4008
        %4124 = vmatprep.subr.bf16.mxu0 0
        %4125 = vmatpush2.bf16.msra.mxu0 %v4005
        %4126 = vmatprep.subr.bf16.mxu0 0
        %4127 = vmatpush2.bf16.msra.mxu0 %v4002
        %4128 = vmatprep.subr.bf16.mxu0 0
        %4129 = vmatpush2.bf16.msra.mxu0 %v3999
        %4130 = vmatprep.subr.bf16.mxu0 0
        %4131 = vmatpush2.bf16.msra.mxu0 %v3996
        %4132 = vmatprep.mubr.bf16.mxu0 %v4055
        %4133 = vmatmul.mubr.bf16.gmra.mxu0 %v3827
        %v4134 = vpop.f32.mrf.mxu0
        %v4135 = vadd.f32 0.0, %v4134
        %v4136 = vpop.f32.mrf.mxu0
        %v4137 = vpop.f32.mrf.mxu0
        %v4138 = vadd.f32 0.0, %v4137
        %v4139 = vpop.f32.mrf.mxu0
        %4140 = vdwg.mxu0
        %v4141 = vadd.f32 %v3764, %v4092
        %v4142 = vadd.f32 %v3765, %v4094
        %v4143 = vadd.f32 %v3766, %v4135
        %v4144 = vadd.f32 %v3767, %v4096
        %v4145 = vadd.f32 %v3768, %v4098
        %v4146 = vadd.f32 %v3769, %v4138
        %v4147 = vld [vmem:[%s4] sm:$0x7]
        %v4149 = vlaneseq
        %v4150 = vshrl.u32 %v4149, 7
        %v4151 = vsub.s32 0, %v4150
        %v4152 = vrot.slane %v4147, %v4151
        %v4153 = vlaneseq
        %v4154 = vshrl.u32 %v4153, 7
        %v4155 = vsub.s32 1, %v4154
        %v4156 = vrot.slane %v4147, %v4155
        %v4157 = vlaneseq
        %v4158 = vshrl.u32 %v4157, 7
        %v4159 = vsub.s32 2, %v4158
        %v4160 = vrot.slane %v4147, %v4159
        %v4164 = vadd.f32 %v4141, %v4152
        %v4165 = vadd.f32 %v4142, %v4156
        %v4166 = vadd.f32 %v4143, %v4160
        %v4167 = vadd.f32 %v4144, %v4152
        %v4168 = vadd.f32 %v4145, %v4156
        %v4169 = vadd.f32 %v4146, %v4160
        %v4170 = vmax.f32 %v4164, 0.0
        %v4171 = vmax.f32 %v4165, 0.0
        %v4172 = vmax.f32 %v4166, 0.0
        %v4173 = vmax.f32 %v4167, 0.0
        %v4174 = vmax.f32 %v4168, 0.0
        %v4175 = vmax.f32 %v4169, 0.0
        %4176 = vst [vmem:[#allocation5] sm:$0xff] %v4170
        %4177 = vst [vmem:[#allocation5 + $0x8] sm:$0xff] %v4171
        %4178 = vst.msk [vmem:[#allocation5 + $0x10] sm:$0xff] %vm1954, %v4172
        %4179 = vst [vmem:[#allocation5 + $0x18] sm:$0x3] %v4173
        %4180 = vst [vmem:[#allocation5 + $0x20] sm:$0x3] %v4174
        %vm4181 = vcmask 517120
        %4182 = vst.msk [vmem:[#allocation5 + $0x28] sm:$0x3] %vm4181, %v4175
        %v4183 = vld [vmem:[#allocation5] ss:$8 sm:$0x7]
        %s4184 = scalar_lea.vmem [#allocation5], 1
        %v4185 = vld [vmem:[%s4184] ss:$8 sm:$0x7]
        %v4186 = vmax.f32 %v4183, %v4185
        %vm4187 = vcmp.lt.s32.totalorder %v1973, 320
        %vm4188 = vmand %vm1974, %vm4187
        %4189 = vst.msk [vmem:[#allocation6] ss:$8 sm:$0x7] %vm4188, %v4186
        %4190 = vst.msk [vmem:[#allocation6] ss:$8 sm:$0x0] %vm4188, %v4186
        %s4191 = scalar_lea.vmem [#allocation5], 2
        %v4192 = vld [vmem:[%s4191] ss:$8 sm:$0x7]
        %s4193 = scalar_lea.vmem [#allocation5], 3
        %v4194 = vld [vmem:[%s4193] ss:$8 sm:$0x7]
        %v4195 = vmax.f32 %v4192, %v4194
        %s4196 = scalar_lea.vmem [#allocation6], 1
        %4197 = vst.msk [vmem:[%s4196] ss:$8 sm:$0x7] %vm4188, %v4195
        %4198 = vst.msk [vmem:[%s4196] ss:$8 sm:$0x0] %vm4188, %v4195
        %s4199 = scalar_lea.vmem [#allocation5], 4
        %v4200 = vld [vmem:[%s4199] ss:$8 sm:$0x7]
        %s4201 = scalar_lea.vmem [#allocation5], 5
        %v4202 = vld [vmem:[%s4201] ss:$8 sm:$0x7]
        %v4203 = vmax.f32 %v4200, %v4202
        %s4204 = scalar_lea.vmem [#allocation6], 2
        %4205 = vst.msk [vmem:[%s4204] ss:$8 sm:$0x7] %vm4188, %v4203
        %4206 = vst.msk [vmem:[%s4204] ss:$8 sm:$0x0] %vm4188, %v4203
        %s4207 = scalar_lea.vmem [#allocation5], 6
        %v4208 = vld [vmem:[%s4207] ss:$8 sm:$0x7]
        %s4209 = scalar_lea.vmem [#allocation5], 7
        %v4210 = vld [vmem:[%s4209] ss:$8 sm:$0x7]
        %v4211 = vmax.f32 %v4208, %v4210
        %s4212 = scalar_lea.vmem [#allocation6], 3
        %4213 = vst.msk [vmem:[%s4212] ss:$8 sm:$0x7] %vm4188, %v4211
        %4214 = vst.msk [vmem:[%s4212] ss:$8 sm:$0x0] %vm4188, %v4211
        %s4215 = scalar_lea.vmem [#allocation5], 24
        %v4216 = vld [vmem:[%s4215] ss:$8 sm:$0x7]
        %s4217 = scalar_lea.vmem [#allocation5], 25
        %v4218 = vld [vmem:[%s4217] ss:$8 sm:$0x7]
        %v4219 = vmax.f32 %v4216, %v4218
        %s4220 = scalar_lea.vmem [#allocation6], 4
        %4221 = vst.msk [vmem:[%s4220] ss:$8 sm:$0x7] %vm4188, %v4219
        %4222 = vst.msk [vmem:[%s4220] ss:$8 sm:$0x0] %vm4188, %v4219
        %v4223 = vld [vmem:[#allocation6] sm:$0x1f]
        %v4224 = vld [vmem:[#allocation6 + $0x8] sm:$0x1f]
        %v4225 = vld [vmem:[#allocation6 + $0x10] sm:$0x1f]
        %4227 = vrot.lane.b32.xlu0 %v4223, 96
        %v4228 = vpop.permute.xlu0 %4227
        %v4230 = vmax.f32 %v4223, %v4228
        %vm4231 = vcmask 258048
        %4232 = vst.msk [vmem:[#allocation7] sm:$0x1f] %vm4231, %v4230
        %4234 = vrot.lane.b32.xlu0 %v4230, 96
        %v4235 = vpop.permute.xlu0 %4234
        %vm4237 = vcmask 520448
        %4238 = vst.msk [vmem:[#allocation7] sm:$0x1f] %vm4237, %v4235
        %4240 = vrot.lane.b32.xlu0 %v4224, 96
        %v4241 = vpop.permute.xlu0 %4240
        %v4243 = vmax.f32 %v4224, %v4241
        %4245 = vrot.lane.b32.xlu0 %v4243, 64
        %v4246 = vpop.permute.xlu0 %4245
        %vm4248 = vcmask 782848
        %4249 = vst.msk [vmem:[#allocation7] sm:$0x1f] %vm4248, %v4246
        %4250 = vrot.lane.b32.xlu0 %v4243, 32
        %v4251 = vpop.permute.xlu0 %4250
        %vm4253 = vcmask 1045248
        %4254 = vst.msk [vmem:[#allocation7] sm:$0x1f] %vm4253, %v4251
        %4256 = vrot.lane.b32.xlu0 %v4225, 96
        %v4257 = vpop.permute.xlu0 %4256
        %v4259 = vmax.f32 %v4225, %v4257
        %4260 = vst.msk [vmem:[#allocation7 + $0x8] sm:$0x1f] %vm4231, %v4259
        %v4261 = vld [vmem:[#allocation7] sm:$0x1f]
        %v4262 = vld [vmem:[#allocation7 + $0x8] sm:$0x1f]
        %v4263 = vpack.c.bf16 %v4261, %v4261
        %v4264 = vpack.c.bf16 %v4262, %v4262
        %v4265 = vld [vmem:[#allocation13] sm:$0xff]
        %v4266 = vld [vmem:[#allocation13 + $0x8] sm:$0xff]
        %v4267 = vld [vmem:[#allocation13 + $0x10] sm:$0xff]
        %v4268 = vld [vmem:[#allocation13 + $0x18] sm:$0xff]
        %v4269 = vld [vmem:[#allocation13 + $0x20] sm:$0xff]
        %v4270 = vld [vmem:[#allocation13 + $0x28] sm:$0xff]
        %v4271 = vld [vmem:[#allocation13 + $0x30] sm:$0xff]
        %v4272 = vld [vmem:[#allocation13 + $0x38] sm:$0xff]
        %v4273 = vld [vmem:[#allocation13 + $0x40] sm:$0xff]
        %v4274 = vld [vmem:[#allocation13 + $0x48] sm:$0xff]
        %v4275 = vld [vmem:[#allocation13 + $0x50] sm:$0xff]
        %v4276 = vld [vmem:[#allocation13 + $0x58] sm:$0xff]
        %v4277 = vld [vmem:[#allocation13 + $0x60] sm:$0xff]
        %v4278 = vld [vmem:[#allocation13 + $0x68] sm:$0xff]
        %v4279 = vld [vmem:[#allocation13 + $0x70] sm:$0xff]
        %v4280 = vld [vmem:[#allocation13 + $0x78] sm:$0xff]
        %v4281 = vld [vmem:[#allocation13 + $0x80] sm:$0xff]
        %v4282 = vld [vmem:[#allocation13 + $0x88] sm:$0xff]
        %v4283 = vld [vmem:[#allocation13 + $0x90] sm:$0xff]
        %v4284 = vld [vmem:[#allocation13 + $0x98] sm:$0xff]
        %v4285 = vld [vmem:[#allocation13 + $0xa0] sm:$0xff]
        %v4286 = vld [vmem:[#allocation13 + $0xa8] sm:$0xff]
        %v4287 = vld [vmem:[#allocation13 + $0xb0] sm:$0xff]
        %v4288 = vld [vmem:[#allocation13 + $0xb8] sm:$0xff]
        %v4289 = vld [vmem:[#allocation13 + $0xc0] sm:$0xff]
        %v4290 = vld [vmem:[#allocation13 + $0xc8] sm:$0xff]
        %v4291 = vld [vmem:[#allocation13 + $0xd0] sm:$0xff]
        %v4292 = vld [vmem:[#allocation13 + $0xd8] sm:$0xff]
        %v4293 = vld [vmem:[#allocation13 + $0xe0] sm:$0xff]
        %v4294 = vld [vmem:[#allocation13 + $0xe8] sm:$0xff]
        %v4295 = vld [vmem:[#allocation13 + $0xf0] sm:$0xff]
        %v4296 = vld [vmem:[#allocation13 + $0xf8] sm:$0xff]
        %v4297 = vld [vmem:[#allocation13 + $0x100] sm:$0xff]
        %v4298 = vld [vmem:[#allocation13 + $0x108] sm:$0xff]
        %v4299 = vld [vmem:[#allocation13 + $0x110] sm:$0xff]
        %v4300 = vld [vmem:[#allocation13 + $0x118] sm:$0xff]
        %v4301 = vld [vmem:[#allocation13 + $0x120] sm:$0xff]
        %v4302 = vld [vmem:[#allocation13 + $0x128] sm:$0xff]
        %v4303 = vld [vmem:[#allocation13 + $0x130] sm:$0xff]
        %v4304 = vld [vmem:[#allocation13 + $0x138] sm:$0xff]
        %s4305 = scalar_lea.vmem [#allocation13], 320
        %v4306 = vld [vmem:[%s4305] sm:$0xff]
        %v4307 = vld [vmem:[%s4305 + $0x8] sm:$0xff]
        %v4308 = vld [vmem:[%s4305 + $0x10] sm:$0xff]
        %v4309 = vld [vmem:[%s4305 + $0x18] sm:$0xff]
        %v4310 = vld [vmem:[%s4305 + $0x20] sm:$0xff]
        %v4311 = vld [vmem:[%s4305 + $0x28] sm:$0xff]
        %v4312 = vld [vmem:[%s4305 + $0x30] sm:$0xff]
        %v4313 = vld [vmem:[%s4305 + $0x38] sm:$0xff]
        %v4314 = vld [vmem:[%s4305 + $0x40] sm:$0xff]
        %v4315 = vld [vmem:[%s4305 + $0x48] sm:$0xff]
        %v4316 = vld [vmem:[%s4305 + $0x50] sm:$0xff]
        %v4317 = vld [vmem:[%s4305 + $0x58] sm:$0xff]
        %v4318 = vld [vmem:[%s4305 + $0x60] sm:$0xff]
        %v4319 = vld [vmem:[%s4305 + $0x68] sm:$0xff]
        %v4320 = vld [vmem:[%s4305 + $0x70] sm:$0xff]
        %v4321 = vld [vmem:[%s4305 + $0x78] sm:$0xff]
        %v4322 = vld [vmem:[%s4305 + $0x80] sm:$0xff]
        %v4323 = vld [vmem:[%s4305 + $0x88] sm:$0xff]
        %v4324 = vld [vmem:[%s4305 + $0x90] sm:$0xff]
        %v4325 = vld [vmem:[%s4305 + $0x98] sm:$0xff]
        %v4326 = vld [vmem:[%s4305 + $0xa0] sm:$0xff]
        %v4327 = vld [vmem:[%s4305 + $0xa8] sm:$0xff]
        %v4328 = vld [vmem:[%s4305 + $0xb0] sm:$0xff]
        %v4329 = vld [vmem:[%s4305 + $0xb8] sm:$0xff]
        %v4330 = vld [vmem:[%s4305 + $0xc0] sm:$0xff]
        %v4331 = vld [vmem:[%s4305 + $0xc8] sm:$0xff]
        %v4332 = vld [vmem:[%s4305 + $0xd0] sm:$0xff]
        %v4333 = vld [vmem:[%s4305 + $0xd8] sm:$0xff]
        %v4334 = vld [vmem:[%s4305 + $0xe0] sm:$0xff]
        %v4335 = vld [vmem:[%s4305 + $0xe8] sm:$0xff]
        %v4336 = vld [vmem:[%s4305 + $0xf0] sm:$0xff]
        %v4337 = vld [vmem:[%s4305 + $0xf8] sm:$0xff]
        %v4338 = vld [vmem:[%s4305 + $0x100] sm:$0xff]
        %v4339 = vld [vmem:[%s4305 + $0x108] sm:$0xff]
        %v4340 = vld [vmem:[%s4305 + $0x110] sm:$0xff]
        %v4341 = vld [vmem:[%s4305 + $0x118] sm:$0xff]
        %v4342 = vld [vmem:[%s4305 + $0x120] sm:$0xff]
        %v4343 = vld [vmem:[%s4305 + $0x128] sm:$0xff]
        %v4344 = vld [vmem:[%s4305 + $0x130] sm:$0xff]
        %v4345 = vld [vmem:[%s4305 + $0x138] sm:$0xff]
        %v4347 = vshrl.u32 %v4263, 16
        %v4350 = vshrl.u32 %v4264, 16
        %v4393 = vunpack.c.l.b16 %v4306
        %v4394 = vunpack.c.h.b16 %v4306
        %v4395 = vunpack.c.l.b16 %v4307
        %v4396 = vunpack.c.h.b16 %v4307
        %v4397 = vunpack.c.l.b16 %v4308
        %v4398 = vunpack.c.h.b16 %v4308
        %v4399 = vunpack.c.l.b16 %v4309
        %v4400 = vunpack.c.h.b16 %v4309
        %v4401 = vunpack.c.l.b16 %v4310
        %v4402 = vunpack.c.h.b16 %v4310
        %v4403 = vunpack.c.l.b16 %v4311
        %v4404 = vunpack.c.h.b16 %v4311
        %v4405 = vunpack.c.l.b16 %v4312
        %v4406 = vunpack.c.h.b16 %v4312
        %v4407 = vunpack.c.l.b16 %v4313
        %v4408 = vunpack.c.h.b16 %v4313
        %v4409 = vunpack.c.l.b16 %v4314
        %v4410 = vunpack.c.h.b16 %v4314
        %v4411 = vunpack.c.l.b16 %v4315
        %v4412 = vunpack.c.h.b16 %v4315
        %v4413 = vunpack.c.l.b16 %v4316
        %v4414 = vunpack.c.h.b16 %v4316
        %v4415 = vunpack.c.l.b16 %v4317
        %v4416 = vunpack.c.h.b16 %v4317
        %v4417 = vunpack.c.l.b16 %v4318
        %v4418 = vunpack.c.h.b16 %v4318
        %v4419 = vunpack.c.l.b16 %v4319
        %v4420 = vunpack.c.h.b16 %v4319
        %v4421 = vunpack.c.l.b16 %v4320
        %v4422 = vunpack.c.h.b16 %v4320
        %v4423 = vunpack.c.l.b16 %v4321
        %v4424 = vunpack.c.h.b16 %v4321
        %v4425 = vunpack.c.l.b16 %v4322
        %v4426 = vunpack.c.h.b16 %v4322
        %v4427 = vunpack.c.l.b16 %v4323
        %v4428 = vunpack.c.h.b16 %v4323
        %v4429 = vunpack.c.l.b16 %v4324
        %v4430 = vunpack.c.h.b16 %v4324
        %v4431 = vunpack.c.l.b16 %v4325
        %v4432 = vunpack.c.h.b16 %v4325
        %v4433 = vunpack.c.l.b16 %v4326
        %v4434 = vunpack.c.h.b16 %v4326
        %v4435 = vunpack.c.l.b16 %v4327
        %v4436 = vunpack.c.h.b16 %v4327
        %v4437 = vunpack.c.l.b16 %v4328
        %v4438 = vunpack.c.h.b16 %v4328
        %v4439 = vunpack.c.l.b16 %v4329
        %v4440 = vunpack.c.h.b16 %v4329
        %v4441 = vunpack.c.l.b16 %v4330
        %v4442 = vunpack.c.h.b16 %v4330
        %v4443 = vunpack.c.l.b16 %v4331
        %v4444 = vunpack.c.h.b16 %v4331
        %v4445 = vunpack.c.l.b16 %v4332
        %v4446 = vunpack.c.h.b16 %v4332
        %v4447 = vunpack.c.l.b16 %v4333
        %v4448 = vunpack.c.h.b16 %v4333
        %v4449 = vunpack.c.l.b16 %v4334
        %v4450 = vunpack.c.h.b16 %v4334
        %v4451 = vunpack.c.l.b16 %v4335
        %v4452 = vunpack.c.h.b16 %v4335
        %v4453 = vunpack.c.l.b16 %v4336
        %v4454 = vunpack.c.h.b16 %v4336
        %v4455 = vunpack.c.l.b16 %v4337
        %v4456 = vunpack.c.h.b16 %v4337
        %v4457 = vunpack.c.l.b16 %v4338
        %v4458 = vunpack.c.h.b16 %v4338
        %v4459 = vunpack.c.l.b16 %v4339
        %v4460 = vunpack.c.h.b16 %v4339
        %v4461 = vunpack.c.l.b16 %v4340
        %v4462 = vunpack.c.h.b16 %v4340
        %v4463 = vunpack.c.l.b16 %v4341
        %v4464 = vunpack.c.h.b16 %v4341
        %v4465 = vunpack.c.l.b16 %v4342
        %v4466 = vunpack.c.h.b16 %v4342
        %v4467 = vunpack.c.l.b16 %v4343
        %v4468 = vunpack.c.h.b16 %v4343
        %v4469 = vunpack.c.l.b16 %v4344
        %v4470 = vunpack.c.h.b16 %v4344
        %v4471 = vunpack.c.l.b16 %v4345
        %v4472 = vunpack.c.h.b16 %v4345
        %v4473 = vpack.c.b16 %v4397, %v4393
        %v4474 = vpack.c.b16 %v4398, %v4394
        %v4475 = vpack.c.b16 %v4399, %v4395
        %v4476 = vpack.c.b16 %v4400, %v4396
        %v4477 = vpack.c.b16 %v4405, %v4401
        %v4478 = vpack.c.b16 %v4406, %v4402
        %v4479 = vpack.c.b16 %v4407, %v4403
        %v4480 = vpack.c.b16 %v4408, %v4404
        %v4481 = vpack.c.b16 %v4413, %v4409
        %v4482 = vpack.c.b16 %v4414, %v4410
        %v4483 = vpack.c.b16 %v4415, %v4411
        %v4484 = vpack.c.b16 %v4416, %v4412
        %v4485 = vpack.c.b16 %v4421, %v4417
        %v4486 = vpack.c.b16 %v4422, %v4418
        %v4487 = vpack.c.b16 %v4423, %v4419
        %v4488 = vpack.c.b16 %v4424, %v4420
        %v4489 = vpack.c.b16 %v4429, %v4425
        %v4490 = vpack.c.b16 %v4430, %v4426
        %v4491 = vpack.c.b16 %v4431, %v4427
        %v4492 = vpack.c.b16 %v4432, %v4428
        %v4493 = vpack.c.b16 %v4437, %v4433
        %v4494 = vpack.c.b16 %v4438, %v4434
        %v4495 = vpack.c.b16 %v4439, %v4435
        %v4496 = vpack.c.b16 %v4440, %v4436
        %v4497 = vpack.c.b16 %v4445, %v4441
        %v4498 = vpack.c.b16 %v4446, %v4442
        %v4499 = vpack.c.b16 %v4447, %v4443
        %v4500 = vpack.c.b16 %v4448, %v4444
        %v4501 = vpack.c.b16 %v4453, %v4449
        %v4502 = vpack.c.b16 %v4454, %v4450
        %v4503 = vpack.c.b16 %v4455, %v4451
        %v4504 = vpack.c.b16 %v4456, %v4452
        %v4505 = vpack.c.b16 %v4461, %v4457
        %v4506 = vpack.c.b16 %v4462, %v4458
        %v4507 = vpack.c.b16 %v4463, %v4459
        %v4508 = vpack.c.b16 %v4464, %v4460
        %v4509 = vpack.c.b16 %v4469, %v4465
        %v4510 = vpack.c.b16 %v4470, %v4466
        %v4511 = vpack.c.b16 %v4471, %v4467
        %v4512 = vpack.c.b16 %v4472, %v4468
        %vm4553 = vcmask 261120
        %v4555 = vsel %vm4553, %v4350, 0
        %4557 = vmatprep.subr.bf16.mxu0 %v4502
        %4558 = vmatpush1.bf16.msra.mxu0 %v4501
        %4559 = vmatprep.subr.bf16.mxu0 %v4498
        %4560 = vmatpush1.bf16.msra.mxu0 %v4497
        %4561 = vmatprep.subr.bf16.mxu0 %v4494
        %4562 = vmatpush1.bf16.msra.mxu0 %v4493
        %4563 = vmatprep.subr.bf16.mxu0 %v4490
        %4564 = vmatpush1.bf16.msra.mxu0 %v4489
        %4565 = vmatprep.subr.bf16.mxu0 %v4486
        %4566 = vmatpush1.bf16.msra.mxu0 %v4485
        %4567 = vmatprep.subr.bf16.mxu0 %v4482
        %4568 = vmatpush1.bf16.msra.mxu0 %v4481
        %4569 = vmatprep.subr.bf16.mxu0 %v4478
        %4570 = vmatpush1.bf16.msra.mxu0 %v4477
        %4571 = vmatprep.subr.bf16.mxu0 %v4474
        %4572 = vmatpush1.bf16.msra.mxu0 %v4473
        %4573 = vmatprep.subr.bf16.mxu0 0
        %4574 = vmatpush2.bf16.msra.mxu0 0
        %4575 = vmatprep.subr.bf16.mxu0 0
        %4576 = vmatpush2.bf16.msra.mxu0 0
        %4577 = vmatprep.subr.bf16.mxu0 0
        %4578 = vmatpush2.bf16.msra.mxu0 0
        %4579 = vmatprep.subr.bf16.mxu0 0
        %4580 = vmatpush2.bf16.msra.mxu0 0
        %4581 = vmatprep.subr.bf16.mxu0 0
        %4582 = vmatpush2.bf16.msra.mxu0 0
        %4583 = vmatprep.subr.bf16.mxu0 0
        %4584 = vmatpush2.bf16.msra.mxu0 0
        %4585 = vmatprep.subr.bf16.mxu0 %v4510
        %4586 = vmatpush2.bf16.msra.mxu0 %v4509
        %4587 = vmatprep.subr.bf16.mxu0 %v4506
        %4588 = vmatpush2.bf16.msra.mxu0 %v4505
        %4589 = vmatprep.mubr.bf16.mxu0 %v4555
        %4590 = vmatmul.mubr.bf16.gmra.mxu0 %v4347
        %v4591 = vpop.f32.mrf.mxu0
        %v4592 = vadd.f32 0.0, %v4591
        %v4593 = vpop.f32.mrf.mxu0
        %v4594 = vadd.f32 0.0, %v4593
        %v4595 = vpop.f32.mrf.mxu0
        %v4596 = vpop.f32.mrf.mxu0
        %4597 = vdwg.mxu0
        %4598 = vmatprep.subr.bf16.mxu0 %v4504
        %4599 = vmatpush1.bf16.msra.mxu0 %v4503
        %4600 = vmatprep.subr.bf16.mxu0 %v4500
        %4601 = vmatpush1.bf16.msra.mxu0 %v4499
        %4602 = vmatprep.subr.bf16.mxu0 %v4496
        %4603 = vmatpush1.bf16.msra.mxu0 %v4495
        %4604 = vmatprep.subr.bf16.mxu0 %v4492
        %4605 = vmatpush1.bf16.msra.mxu0 %v4491
        %4606 = vmatprep.subr.bf16.mxu0 %v4488
        %4607 = vmatpush1.bf16.msra.mxu0 %v4487
        %4608 = vmatprep.subr.bf16.mxu0 %v4484
        %4609 = vmatpush1.bf16.msra.mxu0 %v4483
        %4610 = vmatprep.subr.bf16.mxu0 %v4480
        %4611 = vmatpush1.bf16.msra.mxu0 %v4479
        %4612 = vmatprep.subr.bf16.mxu0 %v4476
        %4613 = vmatpush1.bf16.msra.mxu0 %v4475
        %4614 = vmatprep.subr.bf16.mxu0 0
        %4615 = vmatpush2.bf16.msra.mxu0 0
        %4616 = vmatprep.subr.bf16.mxu0 0
        %4617 = vmatpush2.bf16.msra.mxu0 0
        %4618 = vmatprep.subr.bf16.mxu0 0
        %4619 = vmatpush2.bf16.msra.mxu0 0
        %4620 = vmatprep.subr.bf16.mxu0 0
        %4621 = vmatpush2.bf16.msra.mxu0 0
        %4622 = vmatprep.subr.bf16.mxu0 0
        %4623 = vmatpush2.bf16.msra.mxu0 0
        %4624 = vmatprep.subr.bf16.mxu0 0
        %4625 = vmatpush2.bf16.msra.mxu0 0
        %4626 = vmatprep.subr.bf16.mxu0 %v4512
        %4627 = vmatpush2.bf16.msra.mxu0 %v4511
        %4628 = vmatprep.subr.bf16.mxu0 %v4508
        %4629 = vmatpush2.bf16.msra.mxu0 %v4507
        %4630 = vmatprep.mubr.bf16.mxu0 %v4555
        %4631 = vmatmul.mubr.bf16.gmra.mxu0 %v4347
        %v4632 = vpop.f32.mrf.mxu0
        %v4633 = vadd.f32 0.0, %v4632
        %v4634 = vpop.f32.mrf.mxu0
        %v4635 = vadd.f32 0.0, %v4634
        %v4636 = vpop.f32.mrf.mxu0
        %v4637 = vpop.f32.mrf.mxu0
        %4638 = vdwg.mxu0
        %v4679 = vunpack.c.l.b16 %v4265
        %v4680 = vunpack.c.h.b16 %v4265
        %v4681 = vunpack.c.l.b16 %v4266
        %v4682 = vunpack.c.h.b16 %v4266
        %v4683 = vunpack.c.l.b16 %v4267
        %v4684 = vunpack.c.h.b16 %v4267
        %v4685 = vunpack.c.l.b16 %v4268
        %v4686 = vunpack.c.h.b16 %v4268
        %v4687 = vunpack.c.l.b16 %v4269
        %v4688 = vunpack.c.h.b16 %v4269
        %v4689 = vunpack.c.l.b16 %v4270
        %v4690 = vunpack.c.h.b16 %v4270
        %v4691 = vunpack.c.l.b16 %v4271
        %v4692 = vunpack.c.h.b16 %v4271
        %v4693 = vunpack.c.l.b16 %v4272
        %v4694 = vunpack.c.h.b16 %v4272
        %v4695 = vunpack.c.l.b16 %v4273
        %v4696 = vunpack.c.h.b16 %v4273
        %v4697 = vunpack.c.l.b16 %v4274
        %v4698 = vunpack.c.h.b16 %v4274
        %v4699 = vunpack.c.l.b16 %v4275
        %v4700 = vunpack.c.h.b16 %v4275
        %v4701 = vunpack.c.l.b16 %v4276
        %v4702 = vunpack.c.h.b16 %v4276
        %v4703 = vunpack.c.l.b16 %v4277
        %v4704 = vunpack.c.h.b16 %v4277
        %v4705 = vunpack.c.l.b16 %v4278
        %v4706 = vunpack.c.h.b16 %v4278
        %v4707 = vunpack.c.l.b16 %v4279
        %v4708 = vunpack.c.h.b16 %v4279
        %v4709 = vunpack.c.l.b16 %v4280
        %v4710 = vunpack.c.h.b16 %v4280
        %v4711 = vunpack.c.l.b16 %v4281
        %v4712 = vunpack.c.h.b16 %v4281
        %v4713 = vunpack.c.l.b16 %v4282
        %v4714 = vunpack.c.h.b16 %v4282
        %v4715 = vunpack.c.l.b16 %v4283
        %v4716 = vunpack.c.h.b16 %v4283
        %v4717 = vunpack.c.l.b16 %v4284
        %v4718 = vunpack.c.h.b16 %v4284
        %v4719 = vunpack.c.l.b16 %v4285
        %v4720 = vunpack.c.h.b16 %v4285
        %v4721 = vunpack.c.l.b16 %v4286
        %v4722 = vunpack.c.h.b16 %v4286
        %v4723 = vunpack.c.l.b16 %v4287
        %v4724 = vunpack.c.h.b16 %v4287
        %v4725 = vunpack.c.l.b16 %v4288
        %v4726 = vunpack.c.h.b16 %v4288
        %v4727 = vunpack.c.l.b16 %v4289
        %v4728 = vunpack.c.h.b16 %v4289
        %v4729 = vunpack.c.l.b16 %v4290
        %v4730 = vunpack.c.h.b16 %v4290
        %v4731 = vunpack.c.l.b16 %v4291
        %v4732 = vunpack.c.h.b16 %v4291
        %v4733 = vunpack.c.l.b16 %v4292
        %v4734 = vunpack.c.h.b16 %v4292
        %v4735 = vunpack.c.l.b16 %v4293
        %v4736 = vunpack.c.h.b16 %v4293
        %v4737 = vunpack.c.l.b16 %v4294
        %v4738 = vunpack.c.h.b16 %v4294
        %v4739 = vunpack.c.l.b16 %v4295
        %v4740 = vunpack.c.h.b16 %v4295
        %v4741 = vunpack.c.l.b16 %v4296
        %v4742 = vunpack.c.h.b16 %v4296
        %v4743 = vunpack.c.l.b16 %v4297
        %v4744 = vunpack.c.h.b16 %v4297
        %v4745 = vunpack.c.l.b16 %v4298
        %v4746 = vunpack.c.h.b16 %v4298
        %v4747 = vunpack.c.l.b16 %v4299
        %v4748 = vunpack.c.h.b16 %v4299
        %v4749 = vunpack.c.l.b16 %v4300
        %v4750 = vunpack.c.h.b16 %v4300
        %v4751 = vunpack.c.l.b16 %v4301
        %v4752 = vunpack.c.h.b16 %v4301
        %v4753 = vunpack.c.l.b16 %v4302
        %v4754 = vunpack.c.h.b16 %v4302
        %v4755 = vunpack.c.l.b16 %v4303
        %v4756 = vunpack.c.h.b16 %v4303
        %v4757 = vunpack.c.l.b16 %v4304
        %v4758 = vunpack.c.h.b16 %v4304
        %v4759 = vpack.c.b16 %v4683, %v4679
        %v4760 = vpack.c.b16 %v4684, %v4680
        %v4761 = vpack.c.b16 %v4685, %v4681
        %v4762 = vpack.c.b16 %v4686, %v4682
        %v4763 = vpack.c.b16 %v4691, %v4687
        %v4764 = vpack.c.b16 %v4692, %v4688
        %v4765 = vpack.c.b16 %v4693, %v4689
        %v4766 = vpack.c.b16 %v4694, %v4690
        %v4767 = vpack.c.b16 %v4699, %v4695
        %v4768 = vpack.c.b16 %v4700, %v4696
        %v4769 = vpack.c.b16 %v4701, %v4697
        %v4770 = vpack.c.b16 %v4702, %v4698
        %v4771 = vpack.c.b16 %v4707, %v4703
        %v4772 = vpack.c.b16 %v4708, %v4704
        %v4773 = vpack.c.b16 %v4709, %v4705
        %v4774 = vpack.c.b16 %v4710, %v4706
        %v4775 = vpack.c.b16 %v4715, %v4711
        %v4776 = vpack.c.b16 %v4716, %v4712
        %v4777 = vpack.c.b16 %v4717, %v4713
        %v4778 = vpack.c.b16 %v4718, %v4714
        %v4779 = vpack.c.b16 %v4723, %v4719
        %v4780 = vpack.c.b16 %v4724, %v4720
        %v4781 = vpack.c.b16 %v4725, %v4721
        %v4782 = vpack.c.b16 %v4726, %v4722
        %v4783 = vpack.c.b16 %v4731, %v4727
        %v4784 = vpack.c.b16 %v4732, %v4728
        %v4785 = vpack.c.b16 %v4733, %v4729
        %v4786 = vpack.c.b16 %v4734, %v4730
        %v4787 = vpack.c.b16 %v4739, %v4735
        %v4788 = vpack.c.b16 %v4740, %v4736
        %v4789 = vpack.c.b16 %v4741, %v4737
        %v4790 = vpack.c.b16 %v4742, %v4738
        %v4791 = vpack.c.b16 %v4747, %v4743
        %v4792 = vpack.c.b16 %v4748, %v4744
        %v4793 = vpack.c.b16 %v4749, %v4745
        %v4794 = vpack.c.b16 %v4750, %v4746
        %v4795 = vpack.c.b16 %v4755, %v4751
        %v4796 = vpack.c.b16 %v4756, %v4752
        %v4797 = vpack.c.b16 %v4757, %v4753
        %v4798 = vpack.c.b16 %v4758, %v4754
        %v4839 = vsel %vm4553, %v4264, 0
        %4841 = vmatprep.subr.bf16.mxu0 %v4788
        %4842 = vmatpush1.bf16.msra.mxu0 %v4787
        %4843 = vmatprep.subr.bf16.mxu0 %v4784
        %4844 = vmatpush1.bf16.msra.mxu0 %v4783
        %4845 = vmatprep.subr.bf16.mxu0 %v4780
        %4846 = vmatpush1.bf16.msra.mxu0 %v4779
        %4847 = vmatprep.subr.bf16.mxu0 %v4776
        %4848 = vmatpush1.bf16.msra.mxu0 %v4775
        %4849 = vmatprep.subr.bf16.mxu0 %v4772
        %4850 = vmatpush1.bf16.msra.mxu0 %v4771
        %4851 = vmatprep.subr.bf16.mxu0 %v4768
        %4852 = vmatpush1.bf16.msra.mxu0 %v4767
        %4853 = vmatprep.subr.bf16.mxu0 %v4764
        %4854 = vmatpush1.bf16.msra.mxu0 %v4763
        %4855 = vmatprep.subr.bf16.mxu0 %v4760
        %4856 = vmatpush1.bf16.msra.mxu0 %v4759
        %4857 = vmatprep.subr.bf16.mxu0 0
        %4858 = vmatpush2.bf16.msra.mxu0 0
        %4859 = vmatprep.subr.bf16.mxu0 0
        %4860 = vmatpush2.bf16.msra.mxu0 0
        %4861 = vmatprep.subr.bf16.mxu0 0
        %4862 = vmatpush2.bf16.msra.mxu0 0
        %4863 = vmatprep.subr.bf16.mxu0 0
        %4864 = vmatpush2.bf16.msra.mxu0 0
        %4865 = vmatprep.subr.bf16.mxu0 0
        %4866 = vmatpush2.bf16.msra.mxu0 0
        %4867 = vmatprep.subr.bf16.mxu0 0
        %4868 = vmatpush2.bf16.msra.mxu0 0
        %4869 = vmatprep.subr.bf16.mxu0 %v4796
        %4870 = vmatpush2.bf16.msra.mxu0 %v4795
        %4871 = vmatprep.subr.bf16.mxu0 %v4792
        %4872 = vmatpush2.bf16.msra.mxu0 %v4791
        %4873 = vmatprep.mubr.bf16.mxu0 %v4839
        %4874 = vmatmul.mubr.bf16.gmra.mxu0 %v4263
        %v4875 = vpop.f32.mrf.mxu0
        %v4876 = vadd.f32 %v4592, %v4875
        %v4877 = vpop.f32.mrf.mxu0
        %v4878 = vadd.f32 %v4594, %v4877
        %v4879 = vpop.f32.mrf.mxu0
        %v4880 = vpop.f32.mrf.mxu0
        %4881 = vdwg.mxu0
        %4882 = vmatprep.subr.bf16.mxu0 %v4790
        %4883 = vmatpush1.bf16.msra.mxu0 %v4789
        %4884 = vmatprep.subr.bf16.mxu0 %v4786
        %4885 = vmatpush1.bf16.msra.mxu0 %v4785
        %4886 = vmatprep.subr.bf16.mxu0 %v4782
        %4887 = vmatpush1.bf16.msra.mxu0 %v4781
        %4888 = vmatprep.subr.bf16.mxu0 %v4778
        %4889 = vmatpush1.bf16.msra.mxu0 %v4777
        %4890 = vmatprep.subr.bf16.mxu0 %v4774
        %4891 = vmatpush1.bf16.msra.mxu0 %v4773
        %4892 = vmatprep.subr.bf16.mxu0 %v4770
        %4893 = vmatpush1.bf16.msra.mxu0 %v4769
        %4894 = vmatprep.subr.bf16.mxu0 %v4766
        %4895 = vmatpush1.bf16.msra.mxu0 %v4765
        %4896 = vmatprep.subr.bf16.mxu0 %v4762
        %4897 = vmatpush1.bf16.msra.mxu0 %v4761
        %4898 = vmatprep.subr.bf16.mxu0 0
        %4899 = vmatpush2.bf16.msra.mxu0 0
        %4900 = vmatprep.subr.bf16.mxu0 0
        %4901 = vmatpush2.bf16.msra.mxu0 0
        %4902 = vmatprep.subr.bf16.mxu0 0
        %4903 = vmatpush2.bf16.msra.mxu0 0
        %4904 = vmatprep.subr.bf16.mxu0 0
        %4905 = vmatpush2.bf16.msra.mxu0 0
        %4906 = vmatprep.subr.bf16.mxu0 0
        %4907 = vmatpush2.bf16.msra.mxu0 0
        %4908 = vmatprep.subr.bf16.mxu0 0
        %4909 = vmatpush2.bf16.msra.mxu0 0
        %4910 = vmatprep.subr.bf16.mxu0 %v4798
        %4911 = vmatpush2.bf16.msra.mxu0 %v4797
        %4912 = vmatprep.subr.bf16.mxu0 %v4794
        %4913 = vmatpush2.bf16.msra.mxu0 %v4793
        %4914 = vmatprep.mubr.bf16.mxu0 %v4839
        %4915 = vmatmul.mubr.bf16.gmra.mxu0 %v4263
        %v4916 = vpop.f32.mrf.mxu0
        %v4917 = vadd.f32 %v4633, %v4916
        %v4918 = vpop.f32.mrf.mxu0
        %v4919 = vadd.f32 %v4635, %v4918
        %v4920 = vpop.f32.mrf.mxu0
        %v4921 = vpop.f32.mrf.mxu0
        %4922 = vdwg.mxu0
        %s4923 = scalar_lea.vmem [#allocation13], 640
        %v4924 = vld [vmem:[%s4923] sm:$0xff]
        %v4925 = vld [vmem:[%s4923 + $0x8] sm:$0xff]
        %v4926 = vld [vmem:[%s4923 + $0x10] sm:$0xff]
        %v4927 = vld [vmem:[%s4923 + $0x18] sm:$0xff]
        %v4928 = vld [vmem:[%s4923 + $0x20] sm:$0xff]
        %v4929 = vld [vmem:[%s4923 + $0x28] sm:$0xff]
        %v4930 = vld [vmem:[%s4923 + $0x30] sm:$0xff]
        %v4931 = vld [vmem:[%s4923 + $0x38] sm:$0xff]
        %v4932 = vld [vmem:[%s4923 + $0x40] sm:$0xff]
        %v4933 = vld [vmem:[%s4923 + $0x48] sm:$0xff]
        %v4934 = vld [vmem:[%s4923 + $0x50] sm:$0xff]
        %v4935 = vld [vmem:[%s4923 + $0x58] sm:$0xff]
        %v4936 = vld [vmem:[%s4923 + $0x60] sm:$0xff]
        %v4937 = vld [vmem:[%s4923 + $0x68] sm:$0xff]
        %v4938 = vld [vmem:[%s4923 + $0x70] sm:$0xff]
        %v4939 = vld [vmem:[%s4923 + $0x78] sm:$0xff]
        %v4940 = vld [vmem:[%s4923 + $0x80] sm:$0xff]
        %v4941 = vld [vmem:[%s4923 + $0x88] sm:$0xff]
        %v4942 = vld [vmem:[%s4923 + $0x90] sm:$0xff]
        %v4943 = vld [vmem:[%s4923 + $0x98] sm:$0xff]
        %v4944 = vld [vmem:[%s4923 + $0xa0] sm:$0xff]
        %v4945 = vld [vmem:[%s4923 + $0xa8] sm:$0xff]
        %v4946 = vld [vmem:[%s4923 + $0xb0] sm:$0xff]
        %v4947 = vld [vmem:[%s4923 + $0xb8] sm:$0xff]
        %v4948 = vld [vmem:[%s4923 + $0xc0] sm:$0xff]
        %v4949 = vld [vmem:[%s4923 + $0xc8] sm:$0xff]
        %v4950 = vld [vmem:[%s4923 + $0xd0] sm:$0xff]
        %v4951 = vld [vmem:[%s4923 + $0xd8] sm:$0xff]
        %v4952 = vld [vmem:[%s4923 + $0xe0] sm:$0xff]
        %v4953 = vld [vmem:[%s4923 + $0xe8] sm:$0xff]
        %v4954 = vld [vmem:[%s4923 + $0xf0] sm:$0xff]
        %v4955 = vld [vmem:[%s4923 + $0xf8] sm:$0xff]
        %v4956 = vld [vmem:[%s4923 + $0x100] sm:$0xff]
        %v4957 = vld [vmem:[%s4923 + $0x108] sm:$0xff]
        %v4958 = vld [vmem:[%s4923 + $0x110] sm:$0xff]
        %v4959 = vld [vmem:[%s4923 + $0x118] sm:$0xff]
        %v4960 = vld [vmem:[%s4923 + $0x120] sm:$0xff]
        %v4961 = vld [vmem:[%s4923 + $0x128] sm:$0xff]
        %v4962 = vld [vmem:[%s4923 + $0x130] sm:$0xff]
        %v4963 = vld [vmem:[%s4923 + $0x138] sm:$0xff]
        %v4966 = vrot.slane %v4263, 1
        %v4967 = vrot.slane %v4264, 1
        %v5009 = vunpack.c.l.b16 %v4924
        %v5010 = vunpack.c.h.b16 %v4924
        %v5011 = vunpack.c.l.b16 %v4925
        %v5012 = vunpack.c.h.b16 %v4925
        %v5013 = vunpack.c.l.b16 %v4926
        %v5014 = vunpack.c.h.b16 %v4926
        %v5015 = vunpack.c.l.b16 %v4927
        %v5016 = vunpack.c.h.b16 %v4927
        %v5017 = vunpack.c.l.b16 %v4928
        %v5018 = vunpack.c.h.b16 %v4928
        %v5019 = vunpack.c.l.b16 %v4929
        %v5020 = vunpack.c.h.b16 %v4929
        %v5021 = vunpack.c.l.b16 %v4930
        %v5022 = vunpack.c.h.b16 %v4930
        %v5023 = vunpack.c.l.b16 %v4931
        %v5024 = vunpack.c.h.b16 %v4931
        %v5025 = vunpack.c.l.b16 %v4932
        %v5026 = vunpack.c.h.b16 %v4932
        %v5027 = vunpack.c.l.b16 %v4933
        %v5028 = vunpack.c.h.b16 %v4933
        %v5029 = vunpack.c.l.b16 %v4934
        %v5030 = vunpack.c.h.b16 %v4934
        %v5031 = vunpack.c.l.b16 %v4935
        %v5032 = vunpack.c.h.b16 %v4935
        %v5033 = vunpack.c.l.b16 %v4936
        %v5034 = vunpack.c.h.b16 %v4936
        %v5035 = vunpack.c.l.b16 %v4937
        %v5036 = vunpack.c.h.b16 %v4937
        %v5037 = vunpack.c.l.b16 %v4938
        %v5038 = vunpack.c.h.b16 %v4938
        %v5039 = vunpack.c.l.b16 %v4939
        %v5040 = vunpack.c.h.b16 %v4939
        %v5041 = vunpack.c.l.b16 %v4940
        %v5042 = vunpack.c.h.b16 %v4940
        %v5043 = vunpack.c.l.b16 %v4941
        %v5044 = vunpack.c.h.b16 %v4941
        %v5045 = vunpack.c.l.b16 %v4942
        %v5046 = vunpack.c.h.b16 %v4942
        %v5047 = vunpack.c.l.b16 %v4943
        %v5048 = vunpack.c.h.b16 %v4943
        %v5049 = vunpack.c.l.b16 %v4944
        %v5050 = vunpack.c.h.b16 %v4944
        %v5051 = vunpack.c.l.b16 %v4945
        %v5052 = vunpack.c.h.b16 %v4945
        %v5053 = vunpack.c.l.b16 %v4946
        %v5054 = vunpack.c.h.b16 %v4946
        %v5055 = vunpack.c.l.b16 %v4947
        %v5056 = vunpack.c.h.b16 %v4947
        %v5057 = vunpack.c.l.b16 %v4948
        %v5058 = vunpack.c.h.b16 %v4948
        %v5059 = vunpack.c.l.b16 %v4949
        %v5060 = vunpack.c.h.b16 %v4949
        %v5061 = vunpack.c.l.b16 %v4950
        %v5062 = vunpack.c.h.b16 %v4950
        %v5063 = vunpack.c.l.b16 %v4951
        %v5064 = vunpack.c.h.b16 %v4951
        %v5065 = vunpack.c.l.b16 %v4952
        %v5066 = vunpack.c.h.b16 %v4952
        %v5067 = vunpack.c.l.b16 %v4953
        %v5068 = vunpack.c.h.b16 %v4953
        %v5069 = vunpack.c.l.b16 %v4954
        %v5070 = vunpack.c.h.b16 %v4954
        %v5071 = vunpack.c.l.b16 %v4955
        %v5072 = vunpack.c.h.b16 %v4955
        %v5073 = vunpack.c.l.b16 %v4956
        %v5074 = vunpack.c.h.b16 %v4956
        %v5075 = vunpack.c.l.b16 %v4957
        %v5076 = vunpack.c.h.b16 %v4957
        %v5077 = vunpack.c.l.b16 %v4958
        %v5078 = vunpack.c.h.b16 %v4958
        %v5079 = vunpack.c.l.b16 %v4959
        %v5080 = vunpack.c.h.b16 %v4959
        %v5081 = vunpack.c.l.b16 %v4960
        %v5082 = vunpack.c.h.b16 %v4960
        %v5083 = vunpack.c.l.b16 %v4961
        %v5084 = vunpack.c.h.b16 %v4961
        %v5085 = vunpack.c.l.b16 %v4962
        %v5086 = vunpack.c.h.b16 %v4962
        %v5087 = vunpack.c.l.b16 %v4963
        %v5088 = vunpack.c.h.b16 %v4963
        %v5089 = vpack.c.b16 %v5013, %v5009
        %v5090 = vpack.c.b16 %v5014, %v5010
        %v5091 = vpack.c.b16 %v5015, %v5011
        %v5092 = vpack.c.b16 %v5016, %v5012
        %v5093 = vpack.c.b16 %v5021, %v5017
        %v5094 = vpack.c.b16 %v5022, %v5018
        %v5095 = vpack.c.b16 %v5023, %v5019
        %v5096 = vpack.c.b16 %v5024, %v5020
        %v5097 = vpack.c.b16 %v5029, %v5025
        %v5098 = vpack.c.b16 %v5030, %v5026
        %v5099 = vpack.c.b16 %v5031, %v5027
        %v5100 = vpack.c.b16 %v5032, %v5028
        %v5101 = vpack.c.b16 %v5037, %v5033
        %v5102 = vpack.c.b16 %v5038, %v5034
        %v5103 = vpack.c.b16 %v5039, %v5035
        %v5104 = vpack.c.b16 %v5040, %v5036
        %v5105 = vpack.c.b16 %v5045, %v5041
        %v5106 = vpack.c.b16 %v5046, %v5042
        %v5107 = vpack.c.b16 %v5047, %v5043
        %v5108 = vpack.c.b16 %v5048, %v5044
        %v5109 = vpack.c.b16 %v5053, %v5049
        %v5110 = vpack.c.b16 %v5054, %v5050
        %v5111 = vpack.c.b16 %v5055, %v5051
        %v5112 = vpack.c.b16 %v5056, %v5052
        %v5113 = vpack.c.b16 %v5061, %v5057
        %v5114 = vpack.c.b16 %v5062, %v5058
        %v5115 = vpack.c.b16 %v5063, %v5059
        %v5116 = vpack.c.b16 %v5064, %v5060
        %v5117 = vpack.c.b16 %v5069, %v5065
        %v5118 = vpack.c.b16 %v5070, %v5066
        %v5119 = vpack.c.b16 %v5071, %v5067
        %v5120 = vpack.c.b16 %v5072, %v5068
        %v5121 = vpack.c.b16 %v5077, %v5073
        %v5122 = vpack.c.b16 %v5078, %v5074
        %v5123 = vpack.c.b16 %v5079, %v5075
        %v5124 = vpack.c.b16 %v5080, %v5076
        %v5125 = vpack.c.b16 %v5085, %v5081
        %v5126 = vpack.c.b16 %v5086, %v5082
        %v5127 = vpack.c.b16 %v5087, %v5083
        %v5128 = vpack.c.b16 %v5088, %v5084
        %v5170 = vsel %vm4553, %v4967, 0
        %5172 = vmatprep.subr.bf16.mxu0 %v5118
        %5173 = vmatpush1.bf16.msra.mxu0 %v5117
        %5174 = vmatprep.subr.bf16.mxu0 %v5114
        %5175 = vmatpush1.bf16.msra.mxu0 %v5113
        %5176 = vmatprep.subr.bf16.mxu0 %v5110
        %5177 = vmatpush1.bf16.msra.mxu0 %v5109
        %5178 = vmatprep.subr.bf16.mxu0 %v5106
        %5179 = vmatpush1.bf16.msra.mxu0 %v5105
        %5180 = vmatprep.subr.bf16.mxu0 %v5102
        %5181 = vmatpush1.bf16.msra.mxu0 %v5101
        %5182 = vmatprep.subr.bf16.mxu0 %v5098
        %5183 = vmatpush1.bf16.msra.mxu0 %v5097
        %5184 = vmatprep.subr.bf16.mxu0 %v5094
        %5185 = vmatpush1.bf16.msra.mxu0 %v5093
        %5186 = vmatprep.subr.bf16.mxu0 %v5090
        %5187 = vmatpush1.bf16.msra.mxu0 %v5089
        %5188 = vmatprep.subr.bf16.mxu0 0
        %5189 = vmatpush2.bf16.msra.mxu0 0
        %5190 = vmatprep.subr.bf16.mxu0 0
        %5191 = vmatpush2.bf16.msra.mxu0 0
        %5192 = vmatprep.subr.bf16.mxu0 0
        %5193 = vmatpush2.bf16.msra.mxu0 0
        %5194 = vmatprep.subr.bf16.mxu0 0
        %5195 = vmatpush2.bf16.msra.mxu0 0
        %5196 = vmatprep.subr.bf16.mxu0 0
        %5197 = vmatpush2.bf16.msra.mxu0 0
        %5198 = vmatprep.subr.bf16.mxu0 0
        %5199 = vmatpush2.bf16.msra.mxu0 0
        %5200 = vmatprep.subr.bf16.mxu0 %v5126
        %5201 = vmatpush2.bf16.msra.mxu0 %v5125
        %5202 = vmatprep.subr.bf16.mxu0 %v5122
        %5203 = vmatpush2.bf16.msra.mxu0 %v5121
        %5204 = vmatprep.mubr.bf16.mxu0 %v5170
        %5205 = vmatmul.mubr.bf16.gmra.mxu0 %v4966
        %v5206 = vpop.f32.mrf.mxu0
        %v5207 = vadd.f32 0.0, %v5206
        %v5208 = vpop.f32.mrf.mxu0
        %v5209 = vadd.f32 0.0, %v5208
        %v5210 = vpop.f32.mrf.mxu0
        %v5211 = vpop.f32.mrf.mxu0
        %5212 = vdwg.mxu0
        %5213 = vmatprep.subr.bf16.mxu0 %v5120
        %5214 = vmatpush1.bf16.msra.mxu0 %v5119
        %5215 = vmatprep.subr.bf16.mxu0 %v5116
        %5216 = vmatpush1.bf16.msra.mxu0 %v5115
        %5217 = vmatprep.subr.bf16.mxu0 %v5112
        %5218 = vmatpush1.bf16.msra.mxu0 %v5111
        %5219 = vmatprep.subr.bf16.mxu0 %v5108
        %5220 = vmatpush1.bf16.msra.mxu0 %v5107
        %5221 = vmatprep.subr.bf16.mxu0 %v5104
        %5222 = vmatpush1.bf16.msra.mxu0 %v5103
        %5223 = vmatprep.subr.bf16.mxu0 %v5100
        %5224 = vmatpush1.bf16.msra.mxu0 %v5099
        %5225 = vmatprep.subr.bf16.mxu0 %v5096
        %5226 = vmatpush1.bf16.msra.mxu0 %v5095
        %5227 = vmatprep.subr.bf16.mxu0 %v5092
        %5228 = vmatpush1.bf16.msra.mxu0 %v5091
        %5229 = vmatprep.subr.bf16.mxu0 0
        %5230 = vmatpush2.bf16.msra.mxu0 0
        %5231 = vmatprep.subr.bf16.mxu0 0
        %5232 = vmatpush2.bf16.msra.mxu0 0
        %5233 = vmatprep.subr.bf16.mxu0 0
        %5234 = vmatpush2.bf16.msra.mxu0 0
        %5235 = vmatprep.subr.bf16.mxu0 0
        %5236 = vmatpush2.bf16.msra.mxu0 0
        %5237 = vmatprep.subr.bf16.mxu0 0
        %5238 = vmatpush2.bf16.msra.mxu0 0
        %5239 = vmatprep.subr.bf16.mxu0 0
        %5240 = vmatpush2.bf16.msra.mxu0 0
        %5241 = vmatprep.subr.bf16.mxu0 %v5128
        %5242 = vmatpush2.bf16.msra.mxu0 %v5127
        %5243 = vmatprep.subr.bf16.mxu0 %v5124
        %5244 = vmatpush2.bf16.msra.mxu0 %v5123
        %5245 = vmatprep.mubr.bf16.mxu0 %v5170
        %5246 = vmatmul.mubr.bf16.gmra.mxu0 %v4966
        %v5247 = vpop.f32.mrf.mxu0
        %v5248 = vadd.f32 0.0, %v5247
        %v5249 = vpop.f32.mrf.mxu0
        %v5250 = vadd.f32 0.0, %v5249
        %v5251 = vpop.f32.mrf.mxu0
        %v5252 = vpop.f32.mrf.mxu0
        %5253 = vdwg.mxu0
        %v5254 = vadd.f32 %v4876, %v5207
        %v5255 = vadd.f32 %v4878, %v5209
        %v5256 = vadd.f32 %v4917, %v5248
        %v5257 = vadd.f32 %v4919, %v5250
        %s5258 = scalar_lea.vmem [#allocation13], 960
        %v5259 = vld [vmem:[%s5258] sm:$0xff]
        %v5260 = vld [vmem:[%s5258 + $0x8] sm:$0xff]
        %v5261 = vld [vmem:[%s5258 + $0x10] sm:$0xff]
        %v5262 = vld [vmem:[%s5258 + $0x18] sm:$0xff]
        %v5263 = vld [vmem:[%s5258 + $0x20] sm:$0xff]
        %v5264 = vld [vmem:[%s5258 + $0x28] sm:$0xff]
        %v5265 = vld [vmem:[%s5258 + $0x30] sm:$0xff]
        %v5266 = vld [vmem:[%s5258 + $0x38] sm:$0xff]
        %v5267 = vld [vmem:[%s5258 + $0x40] sm:$0xff]
        %v5268 = vld [vmem:[%s5258 + $0x48] sm:$0xff]
        %v5269 = vld [vmem:[%s5258 + $0x50] sm:$0xff]
        %v5270 = vld [vmem:[%s5258 + $0x58] sm:$0xff]
        %v5271 = vld [vmem:[%s5258 + $0x60] sm:$0xff]
        %v5272 = vld [vmem:[%s5258 + $0x68] sm:$0xff]
        %v5273 = vld [vmem:[%s5258 + $0x70] sm:$0xff]
        %v5274 = vld [vmem:[%s5258 + $0x78] sm:$0xff]
        %v5275 = vld [vmem:[%s5258 + $0x80] sm:$0xff]
        %v5276 = vld [vmem:[%s5258 + $0x88] sm:$0xff]
        %v5277 = vld [vmem:[%s5258 + $0x90] sm:$0xff]
        %v5278 = vld [vmem:[%s5258 + $0x98] sm:$0xff]
        %v5279 = vld [vmem:[%s5258 + $0xa0] sm:$0xff]
        %v5280 = vld [vmem:[%s5258 + $0xa8] sm:$0xff]
        %v5281 = vld [vmem:[%s5258 + $0xb0] sm:$0xff]
        %v5282 = vld [vmem:[%s5258 + $0xb8] sm:$0xff]
        %v5283 = vld [vmem:[%s5258 + $0xc0] sm:$0xff]
        %v5284 = vld [vmem:[%s5258 + $0xc8] sm:$0xff]
        %v5285 = vld [vmem:[%s5258 + $0xd0] sm:$0xff]
        %v5286 = vld [vmem:[%s5258 + $0xd8] sm:$0xff]
        %v5287 = vld [vmem:[%s5258 + $0xe0] sm:$0xff]
        %v5288 = vld [vmem:[%s5258 + $0xe8] sm:$0xff]
        %v5289 = vld [vmem:[%s5258 + $0xf0] sm:$0xff]
        %v5290 = vld [vmem:[%s5258 + $0xf8] sm:$0xff]
        %v5291 = vld [vmem:[%s5258 + $0x100] sm:$0xff]
        %v5292 = vld [vmem:[%s5258 + $0x108] sm:$0xff]
        %v5293 = vld [vmem:[%s5258 + $0x110] sm:$0xff]
        %v5294 = vld [vmem:[%s5258 + $0x118] sm:$0xff]
        %v5295 = vld [vmem:[%s5258 + $0x120] sm:$0xff]
        %v5296 = vld [vmem:[%s5258 + $0x128] sm:$0xff]
        %v5297 = vld [vmem:[%s5258 + $0x130] sm:$0xff]
        %v5298 = vld [vmem:[%s5258 + $0x138] sm:$0xff]
        %v5299 = vrot.slane %v4347, 1
        %v5300 = vrot.slane %v4350, 1
        %v5342 = vunpack.c.l.b16 %v5259
        %v5343 = vunpack.c.h.b16 %v5259
        %v5344 = vunpack.c.l.b16 %v5260
        %v5345 = vunpack.c.h.b16 %v5260
        %v5346 = vunpack.c.l.b16 %v5261
        %v5347 = vunpack.c.h.b16 %v5261
        %v5348 = vunpack.c.l.b16 %v5262
        %v5349 = vunpack.c.h.b16 %v5262
        %v5350 = vunpack.c.l.b16 %v5263
        %v5351 = vunpack.c.h.b16 %v5263
        %v5352 = vunpack.c.l.b16 %v5264
        %v5353 = vunpack.c.h.b16 %v5264
        %v5354 = vunpack.c.l.b16 %v5265
        %v5355 = vunpack.c.h.b16 %v5265
        %v5356 = vunpack.c.l.b16 %v5266
        %v5357 = vunpack.c.h.b16 %v5266
        %v5358 = vunpack.c.l.b16 %v5267
        %v5359 = vunpack.c.h.b16 %v5267
        %v5360 = vunpack.c.l.b16 %v5268
        %v5361 = vunpack.c.h.b16 %v5268
        %v5362 = vunpack.c.l.b16 %v5269
        %v5363 = vunpack.c.h.b16 %v5269
        %v5364 = vunpack.c.l.b16 %v5270
        %v5365 = vunpack.c.h.b16 %v5270
        %v5366 = vunpack.c.l.b16 %v5271
        %v5367 = vunpack.c.h.b16 %v5271
        %v5368 = vunpack.c.l.b16 %v5272
        %v5369 = vunpack.c.h.b16 %v5272
        %v5370 = vunpack.c.l.b16 %v5273
        %v5371 = vunpack.c.h.b16 %v5273
        %v5372 = vunpack.c.l.b16 %v5274
        %v5373 = vunpack.c.h.b16 %v5274
        %v5374 = vunpack.c.l.b16 %v5275
        %v5375 = vunpack.c.h.b16 %v5275
        %v5376 = vunpack.c.l.b16 %v5276
        %v5377 = vunpack.c.h.b16 %v5276
        %v5378 = vunpack.c.l.b16 %v5277
        %v5379 = vunpack.c.h.b16 %v5277
        %v5380 = vunpack.c.l.b16 %v5278
        %v5381 = vunpack.c.h.b16 %v5278
        %v5382 = vunpack.c.l.b16 %v5279
        %v5383 = vunpack.c.h.b16 %v5279
        %v5384 = vunpack.c.l.b16 %v5280
        %v5385 = vunpack.c.h.b16 %v5280
        %v5386 = vunpack.c.l.b16 %v5281
        %v5387 = vunpack.c.h.b16 %v5281
        %v5388 = vunpack.c.l.b16 %v5282
        %v5389 = vunpack.c.h.b16 %v5282
        %v5390 = vunpack.c.l.b16 %v5283
        %v5391 = vunpack.c.h.b16 %v5283
        %v5392 = vunpack.c.l.b16 %v5284
        %v5393 = vunpack.c.h.b16 %v5284
        %v5394 = vunpack.c.l.b16 %v5285
        %v5395 = vunpack.c.h.b16 %v5285
        %v5396 = vunpack.c.l.b16 %v5286
        %v5397 = vunpack.c.h.b16 %v5286
        %v5398 = vunpack.c.l.b16 %v5287
        %v5399 = vunpack.c.h.b16 %v5287
        %v5400 = vunpack.c.l.b16 %v5288
        %v5401 = vunpack.c.h.b16 %v5288
        %v5402 = vunpack.c.l.b16 %v5289
        %v5403 = vunpack.c.h.b16 %v5289
        %v5404 = vunpack.c.l.b16 %v5290
        %v5405 = vunpack.c.h.b16 %v5290
        %v5406 = vunpack.c.l.b16 %v5291
        %v5407 = vunpack.c.h.b16 %v5291
        %v5408 = vunpack.c.l.b16 %v5292
        %v5409 = vunpack.c.h.b16 %v5292
        %v5410 = vunpack.c.l.b16 %v5293
        %v5411 = vunpack.c.h.b16 %v5293
        %v5412 = vunpack.c.l.b16 %v5294
        %v5413 = vunpack.c.h.b16 %v5294
        %v5414 = vunpack.c.l.b16 %v5295
        %v5415 = vunpack.c.h.b16 %v5295
        %v5416 = vunpack.c.l.b16 %v5296
        %v5417 = vunpack.c.h.b16 %v5296
        %v5418 = vunpack.c.l.b16 %v5297
        %v5419 = vunpack.c.h.b16 %v5297
        %v5420 = vunpack.c.l.b16 %v5298
        %v5421 = vunpack.c.h.b16 %v5298
        %v5422 = vpack.c.b16 %v5346, %v5342
        %v5423 = vpack.c.b16 %v5347, %v5343
        %v5424 = vpack.c.b16 %v5348, %v5344
        %v5425 = vpack.c.b16 %v5349, %v5345
        %v5426 = vpack.c.b16 %v5354, %v5350
        %v5427 = vpack.c.b16 %v5355, %v5351
        %v5428 = vpack.c.b16 %v5356, %v5352
        %v5429 = vpack.c.b16 %v5357, %v5353
        %v5430 = vpack.c.b16 %v5362, %v5358
        %v5431 = vpack.c.b16 %v5363, %v5359
        %v5432 = vpack.c.b16 %v5364, %v5360
        %v5433 = vpack.c.b16 %v5365, %v5361
        %v5434 = vpack.c.b16 %v5370, %v5366
        %v5435 = vpack.c.b16 %v5371, %v5367
        %v5436 = vpack.c.b16 %v5372, %v5368
        %v5437 = vpack.c.b16 %v5373, %v5369
        %v5438 = vpack.c.b16 %v5378, %v5374
        %v5439 = vpack.c.b16 %v5379, %v5375
        %v5440 = vpack.c.b16 %v5380, %v5376
        %v5441 = vpack.c.b16 %v5381, %v5377
        %v5442 = vpack.c.b16 %v5386, %v5382
        %v5443 = vpack.c.b16 %v5387, %v5383
        %v5444 = vpack.c.b16 %v5388, %v5384
        %v5445 = vpack.c.b16 %v5389, %v5385
        %v5446 = vpack.c.b16 %v5394, %v5390
        %v5447 = vpack.c.b16 %v5395, %v5391
        %v5448 = vpack.c.b16 %v5396, %v5392
        %v5449 = vpack.c.b16 %v5397, %v5393
        %v5450 = vpack.c.b16 %v5402, %v5398
        %v5451 = vpack.c.b16 %v5403, %v5399
        %v5452 = vpack.c.b16 %v5404, %v5400
        %v5453 = vpack.c.b16 %v5405, %v5401
        %v5454 = vpack.c.b16 %v5410, %v5406
        %v5455 = vpack.c.b16 %v5411, %v5407
        %v5456 = vpack.c.b16 %v5412, %v5408
        %v5457 = vpack.c.b16 %v5413, %v5409
        %v5458 = vpack.c.b16 %v5418, %v5414
        %v5459 = vpack.c.b16 %v5419, %v5415
        %v5460 = vpack.c.b16 %v5420, %v5416
        %v5461 = vpack.c.b16 %v5421, %v5417
        %v5503 = vsel %vm4553, %v5300, 0
        %5505 = vmatprep.subr.bf16.mxu0 %v5451
        %5506 = vmatpush1.bf16.msra.mxu0 %v5450
        %5507 = vmatprep.subr.bf16.mxu0 %v5447
        %5508 = vmatpush1.bf16.msra.mxu0 %v5446
        %5509 = vmatprep.subr.bf16.mxu0 %v5443
        %5510 = vmatpush1.bf16.msra.mxu0 %v5442
        %5511 = vmatprep.subr.bf16.mxu0 %v5439
        %5512 = vmatpush1.bf16.msra.mxu0 %v5438
        %5513 = vmatprep.subr.bf16.mxu0 %v5435
        %5514 = vmatpush1.bf16.msra.mxu0 %v5434
        %5515 = vmatprep.subr.bf16.mxu0 %v5431
        %5516 = vmatpush1.bf16.msra.mxu0 %v5430
        %5517 = vmatprep.subr.bf16.mxu0 %v5427
        %5518 = vmatpush1.bf16.msra.mxu0 %v5426
        %5519 = vmatprep.subr.bf16.mxu0 %v5423
        %5520 = vmatpush1.bf16.msra.mxu0 %v5422
        %5521 = vmatprep.subr.bf16.mxu0 0
        %5522 = vmatpush2.bf16.msra.mxu0 0
        %5523 = vmatprep.subr.bf16.mxu0 0
        %5524 = vmatpush2.bf16.msra.mxu0 0
        %5525 = vmatprep.subr.bf16.mxu0 0
        %5526 = vmatpush2.bf16.msra.mxu0 0
        %5527 = vmatprep.subr.bf16.mxu0 0
        %5528 = vmatpush2.bf16.msra.mxu0 0
        %5529 = vmatprep.subr.bf16.mxu0 0
        %5530 = vmatpush2.bf16.msra.mxu0 0
        %5531 = vmatprep.subr.bf16.mxu0 0
        %5532 = vmatpush2.bf16.msra.mxu0 0
        %5533 = vmatprep.subr.bf16.mxu0 %v5459
        %5534 = vmatpush2.bf16.msra.mxu0 %v5458
        %5535 = vmatprep.subr.bf16.mxu0 %v5455
        %5536 = vmatpush2.bf16.msra.mxu0 %v5454
        %5537 = vmatprep.mubr.bf16.mxu0 %v5503
        %5538 = vmatmul.mubr.bf16.gmra.mxu0 %v5299
        %v5539 = vpop.f32.mrf.mxu0
        %v5540 = vadd.f32 0.0, %v5539
        %v5541 = vpop.f32.mrf.mxu0
        %v5542 = vadd.f32 0.0, %v5541
        %v5543 = vpop.f32.mrf.mxu0
        %v5544 = vpop.f32.mrf.mxu0
        %5545 = vdwg.mxu0
        %5546 = vmatprep.subr.bf16.mxu0 %v5453
        %5547 = vmatpush1.bf16.msra.mxu0 %v5452
        %5548 = vmatprep.subr.bf16.mxu0 %v5449
        %5549 = vmatpush1.bf16.msra.mxu0 %v5448
        %5550 = vmatprep.subr.bf16.mxu0 %v5445
        %5551 = vmatpush1.bf16.msra.mxu0 %v5444
        %5552 = vmatprep.subr.bf16.mxu0 %v5441
        %5553 = vmatpush1.bf16.msra.mxu0 %v5440
        %5554 = vmatprep.subr.bf16.mxu0 %v5437
        %5555 = vmatpush1.bf16.msra.mxu0 %v5436
        %5556 = vmatprep.subr.bf16.mxu0 %v5433
        %5557 = vmatpush1.bf16.msra.mxu0 %v5432
        %5558 = vmatprep.subr.bf16.mxu0 %v5429
        %5559 = vmatpush1.bf16.msra.mxu0 %v5428
        %5560 = vmatprep.subr.bf16.mxu0 %v5425
        %5561 = vmatpush1.bf16.msra.mxu0 %v5424
        %5562 = vmatprep.subr.bf16.mxu0 0
        %5563 = vmatpush2.bf16.msra.mxu0 0
        %5564 = vmatprep.subr.bf16.mxu0 0
        %5565 = vmatpush2.bf16.msra.mxu0 0
        %5566 = vmatprep.subr.bf16.mxu0 0
        %5567 = vmatpush2.bf16.msra.mxu0 0
        %5568 = vmatprep.subr.bf16.mxu0 0
        %5569 = vmatpush2.bf16.msra.mxu0 0
        %5570 = vmatprep.subr.bf16.mxu0 0
        %5571 = vmatpush2.bf16.msra.mxu0 0
        %5572 = vmatprep.subr.bf16.mxu0 0
        %5573 = vmatpush2.bf16.msra.mxu0 0
        %5574 = vmatprep.subr.bf16.mxu0 %v5461
        %5575 = vmatpush2.bf16.msra.mxu0 %v5460
        %5576 = vmatprep.subr.bf16.mxu0 %v5457
        %5577 = vmatpush2.bf16.msra.mxu0 %v5456
        %5578 = vmatprep.mubr.bf16.mxu0 %v5503
        %5579 = vmatmul.mubr.bf16.gmra.mxu0 %v5299
        %v5580 = vpop.f32.mrf.mxu0
        %v5581 = vadd.f32 0.0, %v5580
        %v5582 = vpop.f32.mrf.mxu0
        %v5583 = vadd.f32 0.0, %v5582
        %v5584 = vpop.f32.mrf.mxu0
        %v5585 = vpop.f32.mrf.mxu0
        %5586 = vdwg.mxu0
        %v5587 = vadd.f32 %v5254, %v5540
        %v5588 = vadd.f32 %v5255, %v5542
        %v5589 = vadd.f32 %v5256, %v5581
        %v5590 = vadd.f32 %v5257, %v5583
        %s5591 = scalar_lea.vmem [#allocation13], 1280
        %v5592 = vld [vmem:[%s5591] sm:$0xff]
        %v5593 = vld [vmem:[%s5591 + $0x8] sm:$0xff]
        %v5594 = vld [vmem:[%s5591 + $0x10] sm:$0xff]
        %v5595 = vld [vmem:[%s5591 + $0x18] sm:$0xff]
        %v5596 = vld [vmem:[%s5591 + $0x20] sm:$0xff]
        %v5597 = vld [vmem:[%s5591 + $0x28] sm:$0xff]
        %v5598 = vld [vmem:[%s5591 + $0x30] sm:$0xff]
        %v5599 = vld [vmem:[%s5591 + $0x38] sm:$0xff]
        %v5600 = vld [vmem:[%s5591 + $0x40] sm:$0xff]
        %v5601 = vld [vmem:[%s5591 + $0x48] sm:$0xff]
        %v5602 = vld [vmem:[%s5591 + $0x50] sm:$0xff]
        %v5603 = vld [vmem:[%s5591 + $0x58] sm:$0xff]
        %v5604 = vld [vmem:[%s5591 + $0x60] sm:$0xff]
        %v5605 = vld [vmem:[%s5591 + $0x68] sm:$0xff]
        %v5606 = vld [vmem:[%s5591 + $0x70] sm:$0xff]
        %v5607 = vld [vmem:[%s5591 + $0x78] sm:$0xff]
        %v5608 = vld [vmem:[%s5591 + $0x80] sm:$0xff]
        %v5609 = vld [vmem:[%s5591 + $0x88] sm:$0xff]
        %v5610 = vld [vmem:[%s5591 + $0x90] sm:$0xff]
        %v5611 = vld [vmem:[%s5591 + $0x98] sm:$0xff]
        %v5612 = vld [vmem:[%s5591 + $0xa0] sm:$0xff]
        %v5613 = vld [vmem:[%s5591 + $0xa8] sm:$0xff]
        %v5614 = vld [vmem:[%s5591 + $0xb0] sm:$0xff]
        %v5615 = vld [vmem:[%s5591 + $0xb8] sm:$0xff]
        %v5616 = vld [vmem:[%s5591 + $0xc0] sm:$0xff]
        %v5617 = vld [vmem:[%s5591 + $0xc8] sm:$0xff]
        %v5618 = vld [vmem:[%s5591 + $0xd0] sm:$0xff]
        %v5619 = vld [vmem:[%s5591 + $0xd8] sm:$0xff]
        %v5620 = vld [vmem:[%s5591 + $0xe0] sm:$0xff]
        %v5621 = vld [vmem:[%s5591 + $0xe8] sm:$0xff]
        %v5622 = vld [vmem:[%s5591 + $0xf0] sm:$0xff]
        %v5623 = vld [vmem:[%s5591 + $0xf8] sm:$0xff]
        %v5624 = vld [vmem:[%s5591 + $0x100] sm:$0xff]
        %v5625 = vld [vmem:[%s5591 + $0x108] sm:$0xff]
        %v5626 = vld [vmem:[%s5591 + $0x110] sm:$0xff]
        %v5627 = vld [vmem:[%s5591 + $0x118] sm:$0xff]
        %v5628 = vld [vmem:[%s5591 + $0x120] sm:$0xff]
        %v5629 = vld [vmem:[%s5591 + $0x128] sm:$0xff]
        %v5630 = vld [vmem:[%s5591 + $0x130] sm:$0xff]
        %v5631 = vld [vmem:[%s5591 + $0x138] sm:$0xff]
        %v5632 = vrot.slane %v4263, 2
        %v5633 = vrot.slane %v4264, 2
        %v5675 = vunpack.c.l.b16 %v5592
        %v5676 = vunpack.c.h.b16 %v5592
        %v5677 = vunpack.c.l.b16 %v5593
        %v5678 = vunpack.c.h.b16 %v5593
        %v5679 = vunpack.c.l.b16 %v5594
        %v5680 = vunpack.c.h.b16 %v5594
        %v5681 = vunpack.c.l.b16 %v5595
        %v5682 = vunpack.c.h.b16 %v5595
        %v5683 = vunpack.c.l.b16 %v5596
        %v5684 = vunpack.c.h.b16 %v5596
        %v5685 = vunpack.c.l.b16 %v5597
        %v5686 = vunpack.c.h.b16 %v5597
        %v5687 = vunpack.c.l.b16 %v5598
        %v5688 = vunpack.c.h.b16 %v5598
        %v5689 = vunpack.c.l.b16 %v5599
        %v5690 = vunpack.c.h.b16 %v5599
        %v5691 = vunpack.c.l.b16 %v5600
        %v5692 = vunpack.c.h.b16 %v5600
        %v5693 = vunpack.c.l.b16 %v5601
        %v5694 = vunpack.c.h.b16 %v5601
        %v5695 = vunpack.c.l.b16 %v5602
        %v5696 = vunpack.c.h.b16 %v5602
        %v5697 = vunpack.c.l.b16 %v5603
        %v5698 = vunpack.c.h.b16 %v5603
        %v5699 = vunpack.c.l.b16 %v5604
        %v5700 = vunpack.c.h.b16 %v5604
        %v5701 = vunpack.c.l.b16 %v5605
        %v5702 = vunpack.c.h.b16 %v5605
        %v5703 = vunpack.c.l.b16 %v5606
        %v5704 = vunpack.c.h.b16 %v5606
        %v5705 = vunpack.c.l.b16 %v5607
        %v5706 = vunpack.c.h.b16 %v5607
        %v5707 = vunpack.c.l.b16 %v5608
        %v5708 = vunpack.c.h.b16 %v5608
        %v5709 = vunpack.c.l.b16 %v5609
        %v5710 = vunpack.c.h.b16 %v5609
        %v5711 = vunpack.c.l.b16 %v5610
        %v5712 = vunpack.c.h.b16 %v5610
        %v5713 = vunpack.c.l.b16 %v5611
        %v5714 = vunpack.c.h.b16 %v5611
        %v5715 = vunpack.c.l.b16 %v5612
        %v5716 = vunpack.c.h.b16 %v5612
        %v5717 = vunpack.c.l.b16 %v5613
        %v5718 = vunpack.c.h.b16 %v5613
        %v5719 = vunpack.c.l.b16 %v5614
        %v5720 = vunpack.c.h.b16 %v5614
        %v5721 = vunpack.c.l.b16 %v5615
        %v5722 = vunpack.c.h.b16 %v5615
        %v5723 = vunpack.c.l.b16 %v5616
        %v5724 = vunpack.c.h.b16 %v5616
        %v5725 = vunpack.c.l.b16 %v5617
        %v5726 = vunpack.c.h.b16 %v5617
        %v5727 = vunpack.c.l.b16 %v5618
        %v5728 = vunpack.c.h.b16 %v5618
        %v5729 = vunpack.c.l.b16 %v5619
        %v5730 = vunpack.c.h.b16 %v5619
        %v5731 = vunpack.c.l.b16 %v5620
        %v5732 = vunpack.c.h.b16 %v5620
        %v5733 = vunpack.c.l.b16 %v5621
        %v5734 = vunpack.c.h.b16 %v5621
        %v5735 = vunpack.c.l.b16 %v5622
        %v5736 = vunpack.c.h.b16 %v5622
        %v5737 = vunpack.c.l.b16 %v5623
        %v5738 = vunpack.c.h.b16 %v5623
        %v5739 = vunpack.c.l.b16 %v5624
        %v5740 = vunpack.c.h.b16 %v5624
        %v5741 = vunpack.c.l.b16 %v5625
        %v5742 = vunpack.c.h.b16 %v5625
        %v5743 = vunpack.c.l.b16 %v5626
        %v5744 = vunpack.c.h.b16 %v5626
        %v5745 = vunpack.c.l.b16 %v5627
        %v5746 = vunpack.c.h.b16 %v5627
        %v5747 = vunpack.c.l.b16 %v5628
        %v5748 = vunpack.c.h.b16 %v5628
        %v5749 = vunpack.c.l.b16 %v5629
        %v5750 = vunpack.c.h.b16 %v5629
        %v5751 = vunpack.c.l.b16 %v5630
        %v5752 = vunpack.c.h.b16 %v5630
        %v5753 = vunpack.c.l.b16 %v5631
        %v5754 = vunpack.c.h.b16 %v5631
        %v5755 = vpack.c.b16 %v5679, %v5675
        %v5756 = vpack.c.b16 %v5680, %v5676
        %v5757 = vpack.c.b16 %v5681, %v5677
        %v5758 = vpack.c.b16 %v5682, %v5678
        %v5759 = vpack.c.b16 %v5687, %v5683
        %v5760 = vpack.c.b16 %v5688, %v5684
        %v5761 = vpack.c.b16 %v5689, %v5685
        %v5762 = vpack.c.b16 %v5690, %v5686
        %v5763 = vpack.c.b16 %v5695, %v5691
        %v5764 = vpack.c.b16 %v5696, %v5692
        %v5765 = vpack.c.b16 %v5697, %v5693
        %v5766 = vpack.c.b16 %v5698, %v5694
        %v5767 = vpack.c.b16 %v5703, %v5699
        %v5768 = vpack.c.b16 %v5704, %v5700
        %v5769 = vpack.c.b16 %v5705, %v5701
        %v5770 = vpack.c.b16 %v5706, %v5702
        %v5771 = vpack.c.b16 %v5711, %v5707
        %v5772 = vpack.c.b16 %v5712, %v5708
        %v5773 = vpack.c.b16 %v5713, %v5709
        %v5774 = vpack.c.b16 %v5714, %v5710
        %v5775 = vpack.c.b16 %v5719, %v5715
        %v5776 = vpack.c.b16 %v5720, %v5716
        %v5777 = vpack.c.b16 %v5721, %v5717
        %v5778 = vpack.c.b16 %v5722, %v5718
        %v5779 = vpack.c.b16 %v5727, %v5723
        %v5780 = vpack.c.b16 %v5728, %v5724
        %v5781 = vpack.c.b16 %v5729, %v5725
        %v5782 = vpack.c.b16 %v5730, %v5726
        %v5783 = vpack.c.b16 %v5735, %v5731
        %v5784 = vpack.c.b16 %v5736, %v5732
        %v5785 = vpack.c.b16 %v5737, %v5733
        %v5786 = vpack.c.b16 %v5738, %v5734
        %v5787 = vpack.c.b16 %v5743, %v5739
        %v5788 = vpack.c.b16 %v5744, %v5740
        %v5789 = vpack.c.b16 %v5745, %v5741
        %v5790 = vpack.c.b16 %v5746, %v5742
        %v5791 = vpack.c.b16 %v5751, %v5747
        %v5792 = vpack.c.b16 %v5752, %v5748
        %v5793 = vpack.c.b16 %v5753, %v5749
        %v5794 = vpack.c.b16 %v5754, %v5750
        %v5836 = vsel %vm4553, %v5633, 0
        %5838 = vmatprep.subr.bf16.mxu0 %v5784
        %5839 = vmatpush1.bf16.msra.mxu0 %v5783
        %5840 = vmatprep.subr.bf16.mxu0 %v5780
        %5841 = vmatpush1.bf16.msra.mxu0 %v5779
        %5842 = vmatprep.subr.bf16.mxu0 %v5776
        %5843 = vmatpush1.bf16.msra.mxu0 %v5775
        %5844 = vmatprep.subr.bf16.mxu0 %v5772
        %5845 = vmatpush1.bf16.msra.mxu0 %v5771
        %5846 = vmatprep.subr.bf16.mxu0 %v5768
        %5847 = vmatpush1.bf16.msra.mxu0 %v5767
        %5848 = vmatprep.subr.bf16.mxu0 %v5764
        %5849 = vmatpush1.bf16.msra.mxu0 %v5763
        %5850 = vmatprep.subr.bf16.mxu0 %v5760
        %5851 = vmatpush1.bf16.msra.mxu0 %v5759
        %5852 = vmatprep.subr.bf16.mxu0 %v5756
        %5853 = vmatpush1.bf16.msra.mxu0 %v5755
        %5854 = vmatprep.subr.bf16.mxu0 0
        %5855 = vmatpush2.bf16.msra.mxu0 0
        %5856 = vmatprep.subr.bf16.mxu0 0
        %5857 = vmatpush2.bf16.msra.mxu0 0
        %5858 = vmatprep.subr.bf16.mxu0 0
        %5859 = vmatpush2.bf16.msra.mxu0 0
        %5860 = vmatprep.subr.bf16.mxu0 0
        %5861 = vmatpush2.bf16.msra.mxu0 0
        %5862 = vmatprep.subr.bf16.mxu0 0
        %5863 = vmatpush2.bf16.msra.mxu0 0
        %5864 = vmatprep.subr.bf16.mxu0 0
        %5865 = vmatpush2.bf16.msra.mxu0 0
        %5866 = vmatprep.subr.bf16.mxu0 %v5792
        %5867 = vmatpush2.bf16.msra.mxu0 %v5791
        %5868 = vmatprep.subr.bf16.mxu0 %v5788
        %5869 = vmatpush2.bf16.msra.mxu0 %v5787
        %5870 = vmatprep.mubr.bf16.mxu0 %v5836
        %5871 = vmatmul.mubr.bf16.gmra.mxu0 %v5632
        %v5872 = vpop.f32.mrf.mxu0
        %v5873 = vadd.f32 0.0, %v5872
        %v5874 = vpop.f32.mrf.mxu0
        %v5875 = vadd.f32 0.0, %v5874
        %v5876 = vpop.f32.mrf.mxu0
        %v5877 = vpop.f32.mrf.mxu0
        %5878 = vdwg.mxu0
        %5879 = vmatprep.subr.bf16.mxu0 %v5786
        %5880 = vmatpush1.bf16.msra.mxu0 %v5785
        %5881 = vmatprep.subr.bf16.mxu0 %v5782
        %5882 = vmatpush1.bf16.msra.mxu0 %v5781
        %5883 = vmatprep.subr.bf16.mxu0 %v5778
        %5884 = vmatpush1.bf16.msra.mxu0 %v5777
        %5885 = vmatprep.subr.bf16.mxu0 %v5774
        %5886 = vmatpush1.bf16.msra.mxu0 %v5773
        %5887 = vmatprep.subr.bf16.mxu0 %v5770
        %5888 = vmatpush1.bf16.msra.mxu0 %v5769
        %5889 = vmatprep.subr.bf16.mxu0 %v5766
        %5890 = vmatpush1.bf16.msra.mxu0 %v5765
        %5891 = vmatprep.subr.bf16.mxu0 %v5762
        %5892 = vmatpush1.bf16.msra.mxu0 %v5761
        %5893 = vmatprep.subr.bf16.mxu0 %v5758
        %5894 = vmatpush1.bf16.msra.mxu0 %v5757
        %5895 = vmatprep.subr.bf16.mxu0 0
        %5896 = vmatpush2.bf16.msra.mxu0 0
        %5897 = vmatprep.subr.bf16.mxu0 0
        %5898 = vmatpush2.bf16.msra.mxu0 0
        %5899 = vmatprep.subr.bf16.mxu0 0
        %5900 = vmatpush2.bf16.msra.mxu0 0
        %5901 = vmatprep.subr.bf16.mxu0 0
        %5902 = vmatpush2.bf16.msra.mxu0 0
        %5903 = vmatprep.subr.bf16.mxu0 0
        %5904 = vmatpush2.bf16.msra.mxu0 0
        %5905 = vmatprep.subr.bf16.mxu0 0
        %5906 = vmatpush2.bf16.msra.mxu0 0
        %5907 = vmatprep.subr.bf16.mxu0 %v5794
        %5908 = vmatpush2.bf16.msra.mxu0 %v5793
        %5909 = vmatprep.subr.bf16.mxu0 %v5790
        %5910 = vmatpush2.bf16.msra.mxu0 %v5789
        %5911 = vmatprep.mubr.bf16.mxu0 %v5836
        %5912 = vmatmul.mubr.bf16.gmra.mxu0 %v5632
        %v5913 = vpop.f32.mrf.mxu0
        %v5914 = vadd.f32 0.0, %v5913
        %v5915 = vpop.f32.mrf.mxu0
        %v5916 = vadd.f32 0.0, %v5915
        %v5917 = vpop.f32.mrf.mxu0
        %v5918 = vpop.f32.mrf.mxu0
        %5919 = vdwg.mxu0
        %v5920 = vadd.f32 %v5587, %v5873
        %v5921 = vadd.f32 %v5588, %v5875
        %v5922 = vadd.f32 %v5589, %v5914
        %v5923 = vadd.f32 %v5590, %v5916
        %v5924 = vld [vmem:[%s6] sm:$0xf]
        %v5926 = vlaneseq
        %v5927 = vshrl.u32 %v5926, 7
        %v5928 = vsub.s32 0, %v5927
        %v5929 = vrot.slane %v5924, %v5928
        %v5930 = vlaneseq
        %v5931 = vshrl.u32 %v5930, 7
        %v5932 = vsub.s32 1, %v5931
        %v5933 = vrot.slane %v5924, %v5932
        %v5934 = vlaneseq
        %v5935 = vshrl.u32 %v5934, 7
        %v5936 = vsub.s32 2, %v5935
        %v5937 = vrot.slane %v5924, %v5936
        %v5938 = vlaneseq
        %v5939 = vshrl.u32 %v5938, 7
        %v5940 = vsub.s32 3, %v5939
        %v5941 = vrot.slane %v5924, %v5940
        %v5946 = vadd.f32 %v5920, %v5929
        %v5947 = vadd.f32 %v5921, %v5933
        %v5948 = vadd.f32 %v5922, %v5937
        %v5949 = vadd.f32 %v5923, %v5941
        %v5950 = vmax.f32 %v5946, 0.0
        %v5951 = vmax.f32 %v5947, 0.0
        %v5952 = vmax.f32 %v5948, 0.0
        %v5953 = vmax.f32 %v5949, 0.0
        %v5954 = vpack.c.bf16 %v5950, %v5950
        %v5955 = vpack.c.bf16 %v5951, %v5951
        %v5956 = vpack.c.bf16 %v5952, %v5952
        %v5957 = vpack.c.bf16 %v5953, %v5953
        %v5958 = vld [vmem:[#allocation14] sm:$0xff]
        %v5959 = vld [vmem:[#allocation14 + $0x8] sm:$0xff]
        %v5960 = vld [vmem:[#allocation14 + $0x10] sm:$0xff]
        %v5961 = vld [vmem:[#allocation14 + $0x18] sm:$0xff]
        %v5962 = vld [vmem:[#allocation14 + $0x20] sm:$0xff]
        %v5963 = vld [vmem:[#allocation14 + $0x28] sm:$0xff]
        %v5964 = vld [vmem:[#allocation14 + $0x30] sm:$0xff]
        %v5965 = vld [vmem:[#allocation14 + $0x38] sm:$0xff]
        %v5966 = vld [vmem:[#allocation14 + $0x40] sm:$0xff]
        %v5967 = vld [vmem:[#allocation14 + $0x48] sm:$0xff]
        %v5968 = vld [vmem:[#allocation14 + $0x50] sm:$0xff]
        %v5969 = vld [vmem:[#allocation14 + $0x58] sm:$0xff]
        %v5970 = vld [vmem:[#allocation14 + $0x60] sm:$0xff]
        %v5971 = vld [vmem:[#allocation14 + $0x68] sm:$0xff]
        %v5972 = vld [vmem:[#allocation14 + $0x70] sm:$0xff]
        %v5973 = vld [vmem:[#allocation14 + $0x78] sm:$0xff]
        %v5974 = vld [vmem:[#allocation14 + $0x80] sm:$0xff]
        %v5975 = vld [vmem:[#allocation14 + $0x88] sm:$0xff]
        %v5976 = vld [vmem:[#allocation14 + $0x90] sm:$0xff]
        %v5977 = vld [vmem:[#allocation14 + $0x98] sm:$0xff]
        %v5978 = vld [vmem:[#allocation14 + $0xa0] sm:$0xff]
        %v5979 = vld [vmem:[#allocation14 + $0xa8] sm:$0xff]
        %v5980 = vld [vmem:[#allocation14 + $0xb0] sm:$0xff]
        %v5981 = vld [vmem:[#allocation14 + $0xb8] sm:$0xff]
        %v5982 = vld [vmem:[#allocation14 + $0xc0] sm:$0xff]
        %v5983 = vld [vmem:[#allocation14 + $0xc8] sm:$0xff]
        %v5984 = vld [vmem:[#allocation14 + $0xd0] sm:$0xff]
        %v5985 = vld [vmem:[#allocation14 + $0xd8] sm:$0xff]
        %v5986 = vld [vmem:[#allocation14 + $0xe0] sm:$0xff]
        %v5987 = vld [vmem:[#allocation14 + $0xe8] sm:$0xff]
        %v5988 = vld [vmem:[#allocation14 + $0xf0] sm:$0xff]
        %v5989 = vld [vmem:[#allocation14 + $0xf8] sm:$0xff]
        %v5990 = vld [vmem:[#allocation14 + $0x100] sm:$0xff]
        %v5991 = vld [vmem:[#allocation14 + $0x108] sm:$0xff]
        %v5992 = vld [vmem:[#allocation14 + $0x110] sm:$0xff]
        %v5993 = vld [vmem:[#allocation14 + $0x118] sm:$0xff]
        %v5994 = vld [vmem:[#allocation14 + $0x120] sm:$0xff]
        %v5995 = vld [vmem:[#allocation14 + $0x128] sm:$0xff]
        %v5996 = vld [vmem:[#allocation14 + $0x130] sm:$0xff]
        %v5997 = vld [vmem:[#allocation14 + $0x138] sm:$0xff]
        %v5998 = vld [vmem:[#allocation14 + $0x140] sm:$0xff]
        %v5999 = vld [vmem:[#allocation14 + $0x148] sm:$0xff]
        %v6000 = vld [vmem:[#allocation14 + $0x150] sm:$0xff]
        %v6001 = vld [vmem:[#allocation14 + $0x158] sm:$0xff]
        %v6002 = vld [vmem:[#allocation14 + $0x160] sm:$0xff]
        %v6003 = vld [vmem:[#allocation14 + $0x168] sm:$0xff]
        %v6004 = vld [vmem:[#allocation14 + $0x170] sm:$0xff]
        %v6005 = vld [vmem:[#allocation14 + $0x178] sm:$0xff]
        %v6006 = vld [vmem:[#allocation14 + $0x180] sm:$0xff]
        %v6007 = vld [vmem:[#allocation14 + $0x188] sm:$0xff]
        %v6008 = vld [vmem:[#allocation14 + $0x190] sm:$0xff]
        %v6009 = vld [vmem:[#allocation14 + $0x198] sm:$0xff]
        %v6010 = vld [vmem:[#allocation14 + $0x1a0] sm:$0xff]
        %v6011 = vld [vmem:[#allocation14 + $0x1a8] sm:$0xff]
        %v6012 = vld [vmem:[#allocation14 + $0x1b0] sm:$0xff]
        %v6013 = vld [vmem:[#allocation14 + $0x1b8] sm:$0xff]
        %v6014 = vld [vmem:[#allocation14 + $0x1c0] sm:$0xff]
        %v6015 = vld [vmem:[#allocation14 + $0x1c8] sm:$0xff]
        %v6016 = vld [vmem:[#allocation14 + $0x1d0] sm:$0xff]
        %v6017 = vld [vmem:[#allocation14 + $0x1d8] sm:$0xff]
        %v6018 = vld [vmem:[#allocation14 + $0x1e0] sm:$0xff]
        %v6019 = vld [vmem:[#allocation14 + $0x1e8] sm:$0xff]
        %v6020 = vld [vmem:[#allocation14 + $0x1f0] sm:$0xff]
        %v6021 = vld [vmem:[#allocation14 + $0x1f8] sm:$0xff]
        %v6022 = vld [vmem:[#allocation14 + $0x200] sm:$0xff]
        %v6023 = vld [vmem:[#allocation14 + $0x208] sm:$0xff]
        %v6024 = vld [vmem:[#allocation14 + $0x210] sm:$0xff]
        %v6025 = vld [vmem:[#allocation14 + $0x218] sm:$0xff]
        %v6026 = vld [vmem:[#allocation14 + $0x220] sm:$0xff]
        %v6027 = vld [vmem:[#allocation14 + $0x228] sm:$0xff]
        %v6028 = vld [vmem:[#allocation14 + $0x230] sm:$0xff]
        %v6029 = vld [vmem:[#allocation14 + $0x238] sm:$0xff]
        %v6030 = vld [vmem:[#allocation14 + $0x240] sm:$0xff]
        %v6031 = vld [vmem:[#allocation14 + $0x248] sm:$0xff]
        %v6032 = vld [vmem:[#allocation14 + $0x250] sm:$0xff]
        %v6033 = vld [vmem:[#allocation14 + $0x258] sm:$0xff]
        %v6034 = vld [vmem:[#allocation14 + $0x260] sm:$0xff]
        %v6035 = vld [vmem:[#allocation14 + $0x268] sm:$0xff]
        %v6036 = vld [vmem:[#allocation14 + $0x270] sm:$0xff]
        %v6037 = vld [vmem:[#allocation14 + $0x278] sm:$0xff]
        %v6038 = vld [vmem:[#allocation14 + $0x280] sm:$0xff]
        %v6039 = vld [vmem:[#allocation14 + $0x288] sm:$0xff]
        %v6040 = vld [vmem:[#allocation14 + $0x290] sm:$0xff]
        %v6041 = vld [vmem:[#allocation14 + $0x298] sm:$0xff]
        %v6042 = vld [vmem:[#allocation14 + $0x2a0] sm:$0xff]
        %v6043 = vld [vmem:[#allocation14 + $0x2a8] sm:$0xff]
        %v6044 = vld [vmem:[#allocation14 + $0x2b0] sm:$0xff]
        %v6045 = vld [vmem:[#allocation14 + $0x2b8] sm:$0xff]
        %v6046 = vld [vmem:[#allocation14 + $0x2c0] sm:$0xff]
        %v6047 = vld [vmem:[#allocation14 + $0x2c8] sm:$0xff]
        %v6048 = vld [vmem:[#allocation14 + $0x2d0] sm:$0xff]
        %v6049 = vld [vmem:[#allocation14 + $0x2d8] sm:$0xff]
        %v6050 = vld [vmem:[#allocation14 + $0x2e0] sm:$0xff]
        %v6051 = vld [vmem:[#allocation14 + $0x2e8] sm:$0xff]
        %v6052 = vld [vmem:[#allocation14 + $0x2f0] sm:$0xff]
        %v6053 = vld [vmem:[#allocation14 + $0x2f8] sm:$0xff]
        %v6054 = vld [vmem:[#allocation14 + $0x300] sm:$0xff]
        %v6055 = vld [vmem:[#allocation14 + $0x308] sm:$0xff]
        %v6056 = vld [vmem:[#allocation14 + $0x310] sm:$0xff]
        %v6057 = vld [vmem:[#allocation14 + $0x318] sm:$0xff]
        %v6058 = vld [vmem:[#allocation14 + $0x320] sm:$0xff]
        %v6059 = vld [vmem:[#allocation14 + $0x328] sm:$0xff]
        %v6060 = vld [vmem:[#allocation14 + $0x330] sm:$0xff]
        %v6061 = vld [vmem:[#allocation14 + $0x338] sm:$0xff]
        %v6062 = vld [vmem:[#allocation14 + $0x340] sm:$0xff]
        %v6063 = vld [vmem:[#allocation14 + $0x348] sm:$0xff]
        %v6064 = vld [vmem:[#allocation14 + $0x350] sm:$0xff]
        %v6065 = vld [vmem:[#allocation14 + $0x358] sm:$0xff]
        %v6066 = vld [vmem:[#allocation14 + $0x360] sm:$0xff]
        %v6067 = vld [vmem:[#allocation14 + $0x368] sm:$0xff]
        %v6068 = vld [vmem:[#allocation14 + $0x370] sm:$0xff]
        %v6069 = vld [vmem:[#allocation14 + $0x378] sm:$0xff]
        %v6070 = vld [vmem:[#allocation14 + $0x380] sm:$0xff]
        %v6071 = vld [vmem:[#allocation14 + $0x388] sm:$0xff]
        %v6072 = vld [vmem:[#allocation14 + $0x390] sm:$0xff]
        %v6073 = vld [vmem:[#allocation14 + $0x398] sm:$0xff]
        %v6074 = vld [vmem:[#allocation14 + $0x3a0] sm:$0xff]
        %v6075 = vld [vmem:[#allocation14 + $0x3a8] sm:$0xff]
        %v6076 = vld [vmem:[#allocation14 + $0x3b0] sm:$0xff]
        %v6077 = vld [vmem:[#allocation14 + $0x3b8] sm:$0xff]
        %v6078 = vld [vmem:[#allocation14 + $0x3c0] sm:$0xff]
        %v6079 = vld [vmem:[#allocation14 + $0x3c8] sm:$0xff]
        %v6080 = vld [vmem:[#allocation14 + $0x3d0] sm:$0xff]
        %v6081 = vld [vmem:[#allocation14 + $0x3d8] sm:$0xff]
        %v6082 = vld [vmem:[#allocation14 + $0x3e0] sm:$0xff]
        %v6083 = vld [vmem:[#allocation14 + $0x3e8] sm:$0xff]
        %v6084 = vld [vmem:[#allocation14 + $0x3f0] sm:$0xff]
        %v6085 = vld [vmem:[#allocation14 + $0x3f8] sm:$0xff]
        %v6086 = vld [vmem:[%s8] sm:$0xf]
        %v6215 = vunpack.c.l.b16 %v5958
        %v6216 = vunpack.c.h.b16 %v5958
        %v6217 = vunpack.c.l.b16 %v5959
        %v6218 = vunpack.c.h.b16 %v5959
        %v6219 = vunpack.c.l.b16 %v5960
        %v6220 = vunpack.c.h.b16 %v5960
        %v6221 = vunpack.c.l.b16 %v5961
        %v6222 = vunpack.c.h.b16 %v5961
        %v6223 = vunpack.c.l.b16 %v5962
        %v6224 = vunpack.c.h.b16 %v5962
        %v6225 = vunpack.c.l.b16 %v5963
        %v6226 = vunpack.c.h.b16 %v5963
        %v6227 = vunpack.c.l.b16 %v5964
        %v6228 = vunpack.c.h.b16 %v5964
        %v6229 = vunpack.c.l.b16 %v5965
        %v6230 = vunpack.c.h.b16 %v5965
        %v6231 = vunpack.c.l.b16 %v5966
        %v6232 = vunpack.c.h.b16 %v5966
        %v6233 = vunpack.c.l.b16 %v5967
        %v6234 = vunpack.c.h.b16 %v5967
        %v6235 = vunpack.c.l.b16 %v5968
        %v6236 = vunpack.c.h.b16 %v5968
        %v6237 = vunpack.c.l.b16 %v5969
        %v6238 = vunpack.c.h.b16 %v5969
        %v6239 = vunpack.c.l.b16 %v5970
        %v6240 = vunpack.c.h.b16 %v5970
        %v6241 = vunpack.c.l.b16 %v5971
        %v6242 = vunpack.c.h.b16 %v5971
        %v6243 = vunpack.c.l.b16 %v5972
        %v6244 = vunpack.c.h.b16 %v5972
        %v6245 = vunpack.c.l.b16 %v5973
        %v6246 = vunpack.c.h.b16 %v5973
        %v6247 = vunpack.c.l.b16 %v5974
        %v6248 = vunpack.c.h.b16 %v5974
        %v6249 = vunpack.c.l.b16 %v5975
        %v6250 = vunpack.c.h.b16 %v5975
        %v6251 = vunpack.c.l.b16 %v5976
        %v6252 = vunpack.c.h.b16 %v5976
        %v6253 = vunpack.c.l.b16 %v5977
        %v6254 = vunpack.c.h.b16 %v5977
        %v6255 = vunpack.c.l.b16 %v5978
        %v6256 = vunpack.c.h.b16 %v5978
        %v6257 = vunpack.c.l.b16 %v5979
        %v6258 = vunpack.c.h.b16 %v5979
        %v6259 = vunpack.c.l.b16 %v5980
        %v6260 = vunpack.c.h.b16 %v5980
        %v6261 = vunpack.c.l.b16 %v5981
        %v6262 = vunpack.c.h.b16 %v5981
        %v6263 = vunpack.c.l.b16 %v5982
        %v6264 = vunpack.c.h.b16 %v5982
        %v6265 = vunpack.c.l.b16 %v5983
        %v6266 = vunpack.c.h.b16 %v5983
        %v6267 = vunpack.c.l.b16 %v5984
        %v6268 = vunpack.c.h.b16 %v5984
        %v6269 = vunpack.c.l.b16 %v5985
        %v6270 = vunpack.c.h.b16 %v5985
        %v6271 = vunpack.c.l.b16 %v5986
        %v6272 = vunpack.c.h.b16 %v5986
        %v6273 = vunpack.c.l.b16 %v5987
        %v6274 = vunpack.c.h.b16 %v5987
        %v6275 = vunpack.c.l.b16 %v5988
        %v6276 = vunpack.c.h.b16 %v5988
        %v6277 = vunpack.c.l.b16 %v5989
        %v6278 = vunpack.c.h.b16 %v5989
        %v6279 = vunpack.c.l.b16 %v5990
        %v6280 = vunpack.c.h.b16 %v5990
        %v6281 = vunpack.c.l.b16 %v5991
        %v6282 = vunpack.c.h.b16 %v5991
        %v6283 = vunpack.c.l.b16 %v5992
        %v6284 = vunpack.c.h.b16 %v5992
        %v6285 = vunpack.c.l.b16 %v5993
        %v6286 = vunpack.c.h.b16 %v5993
        %v6287 = vunpack.c.l.b16 %v5994
        %v6288 = vunpack.c.h.b16 %v5994
        %v6289 = vunpack.c.l.b16 %v5995
        %v6290 = vunpack.c.h.b16 %v5995
        %v6291 = vunpack.c.l.b16 %v5996
        %v6292 = vunpack.c.h.b16 %v5996
        %v6293 = vunpack.c.l.b16 %v5997
        %v6294 = vunpack.c.h.b16 %v5997
        %v6295 = vunpack.c.l.b16 %v5998
        %v6296 = vunpack.c.h.b16 %v5998
        %v6297 = vunpack.c.l.b16 %v5999
        %v6298 = vunpack.c.h.b16 %v5999
        %v6299 = vunpack.c.l.b16 %v6000
        %v6300 = vunpack.c.h.b16 %v6000
        %v6301 = vunpack.c.l.b16 %v6001
        %v6302 = vunpack.c.h.b16 %v6001
        %v6303 = vunpack.c.l.b16 %v6002
        %v6304 = vunpack.c.h.b16 %v6002
        %v6305 = vunpack.c.l.b16 %v6003
        %v6306 = vunpack.c.h.b16 %v6003
        %v6307 = vunpack.c.l.b16 %v6004
        %v6308 = vunpack.c.h.b16 %v6004
        %v6309 = vunpack.c.l.b16 %v6005
        %v6310 = vunpack.c.h.b16 %v6005
        %v6311 = vunpack.c.l.b16 %v6006
        %v6312 = vunpack.c.h.b16 %v6006
        %v6313 = vunpack.c.l.b16 %v6007
        %v6314 = vunpack.c.h.b16 %v6007
        %v6315 = vunpack.c.l.b16 %v6008
        %v6316 = vunpack.c.h.b16 %v6008
        %v6317 = vunpack.c.l.b16 %v6009
        %v6318 = vunpack.c.h.b16 %v6009
        %v6319 = vunpack.c.l.b16 %v6010
        %v6320 = vunpack.c.h.b16 %v6010
        %v6321 = vunpack.c.l.b16 %v6011
        %v6322 = vunpack.c.h.b16 %v6011
        %v6323 = vunpack.c.l.b16 %v6012
        %v6324 = vunpack.c.h.b16 %v6012
        %v6325 = vunpack.c.l.b16 %v6013
        %v6326 = vunpack.c.h.b16 %v6013
        %v6327 = vunpack.c.l.b16 %v6014
        %v6328 = vunpack.c.h.b16 %v6014
        %v6329 = vunpack.c.l.b16 %v6015
        %v6330 = vunpack.c.h.b16 %v6015
        %v6331 = vunpack.c.l.b16 %v6016
        %v6332 = vunpack.c.h.b16 %v6016
        %v6333 = vunpack.c.l.b16 %v6017
        %v6334 = vunpack.c.h.b16 %v6017
        %v6335 = vunpack.c.l.b16 %v6018
        %v6336 = vunpack.c.h.b16 %v6018
        %v6337 = vunpack.c.l.b16 %v6019
        %v6338 = vunpack.c.h.b16 %v6019
        %v6339 = vunpack.c.l.b16 %v6020
        %v6340 = vunpack.c.h.b16 %v6020
        %v6341 = vunpack.c.l.b16 %v6021
        %v6342 = vunpack.c.h.b16 %v6021
        %v6343 = vunpack.c.l.b16 %v6022
        %v6344 = vunpack.c.h.b16 %v6022
        %v6345 = vunpack.c.l.b16 %v6023
        %v6346 = vunpack.c.h.b16 %v6023
        %v6347 = vunpack.c.l.b16 %v6024
        %v6348 = vunpack.c.h.b16 %v6024
        %v6349 = vunpack.c.l.b16 %v6025
        %v6350 = vunpack.c.h.b16 %v6025
        %v6351 = vunpack.c.l.b16 %v6026
        %v6352 = vunpack.c.h.b16 %v6026
        %v6353 = vunpack.c.l.b16 %v6027
        %v6354 = vunpack.c.h.b16 %v6027
        %v6355 = vunpack.c.l.b16 %v6028
        %v6356 = vunpack.c.h.b16 %v6028
        %v6357 = vunpack.c.l.b16 %v6029
        %v6358 = vunpack.c.h.b16 %v6029
        %v6359 = vunpack.c.l.b16 %v6030
        %v6360 = vunpack.c.h.b16 %v6030
        %v6361 = vunpack.c.l.b16 %v6031
        %v6362 = vunpack.c.h.b16 %v6031
        %v6363 = vunpack.c.l.b16 %v6032
        %v6364 = vunpack.c.h.b16 %v6032
        %v6365 = vunpack.c.l.b16 %v6033
        %v6366 = vunpack.c.h.b16 %v6033
        %v6367 = vunpack.c.l.b16 %v6034
        %v6368 = vunpack.c.h.b16 %v6034
        %v6369 = vunpack.c.l.b16 %v6035
        %v6370 = vunpack.c.h.b16 %v6035
        %v6371 = vunpack.c.l.b16 %v6036
        %v6372 = vunpack.c.h.b16 %v6036
        %v6373 = vunpack.c.l.b16 %v6037
        %v6374 = vunpack.c.h.b16 %v6037
        %v6375 = vunpack.c.l.b16 %v6038
        %v6376 = vunpack.c.h.b16 %v6038
        %v6377 = vunpack.c.l.b16 %v6039
        %v6378 = vunpack.c.h.b16 %v6039
        %v6379 = vunpack.c.l.b16 %v6040
        %v6380 = vunpack.c.h.b16 %v6040
        %v6381 = vunpack.c.l.b16 %v6041
        %v6382 = vunpack.c.h.b16 %v6041
        %v6383 = vunpack.c.l.b16 %v6042
        %v6384 = vunpack.c.h.b16 %v6042
        %v6385 = vunpack.c.l.b16 %v6043
        %v6386 = vunpack.c.h.b16 %v6043
        %v6387 = vunpack.c.l.b16 %v6044
        %v6388 = vunpack.c.h.b16 %v6044
        %v6389 = vunpack.c.l.b16 %v6045
        %v6390 = vunpack.c.h.b16 %v6045
        %v6391 = vunpack.c.l.b16 %v6046
        %v6392 = vunpack.c.h.b16 %v6046
        %v6393 = vunpack.c.l.b16 %v6047
        %v6394 = vunpack.c.h.b16 %v6047
        %v6395 = vunpack.c.l.b16 %v6048
        %v6396 = vunpack.c.h.b16 %v6048
        %v6397 = vunpack.c.l.b16 %v6049
        %v6398 = vunpack.c.h.b16 %v6049
        %v6399 = vunpack.c.l.b16 %v6050
        %v6400 = vunpack.c.h.b16 %v6050
        %v6401 = vunpack.c.l.b16 %v6051
        %v6402 = vunpack.c.h.b16 %v6051
        %v6403 = vunpack.c.l.b16 %v6052
        %v6404 = vunpack.c.h.b16 %v6052
        %v6405 = vunpack.c.l.b16 %v6053
        %v6406 = vunpack.c.h.b16 %v6053
        %v6407 = vunpack.c.l.b16 %v6054
        %v6408 = vunpack.c.h.b16 %v6054
        %v6409 = vunpack.c.l.b16 %v6055
        %v6410 = vunpack.c.h.b16 %v6055
        %v6411 = vunpack.c.l.b16 %v6056
        %v6412 = vunpack.c.h.b16 %v6056
        %v6413 = vunpack.c.l.b16 %v6057
        %v6414 = vunpack.c.h.b16 %v6057
        %v6415 = vunpack.c.l.b16 %v6058
        %v6416 = vunpack.c.h.b16 %v6058
        %v6417 = vunpack.c.l.b16 %v6059
        %v6418 = vunpack.c.h.b16 %v6059
        %v6419 = vunpack.c.l.b16 %v6060
        %v6420 = vunpack.c.h.b16 %v6060
        %v6421 = vunpack.c.l.b16 %v6061
        %v6422 = vunpack.c.h.b16 %v6061
        %v6423 = vunpack.c.l.b16 %v6062
        %v6424 = vunpack.c.h.b16 %v6062
        %v6425 = vunpack.c.l.b16 %v6063
        %v6426 = vunpack.c.h.b16 %v6063
        %v6427 = vunpack.c.l.b16 %v6064
        %v6428 = vunpack.c.h.b16 %v6064
        %v6429 = vunpack.c.l.b16 %v6065
        %v6430 = vunpack.c.h.b16 %v6065
        %v6431 = vunpack.c.l.b16 %v6066
        %v6432 = vunpack.c.h.b16 %v6066
        %v6433 = vunpack.c.l.b16 %v6067
        %v6434 = vunpack.c.h.b16 %v6067
        %v6435 = vunpack.c.l.b16 %v6068
        %v6436 = vunpack.c.h.b16 %v6068
        %v6437 = vunpack.c.l.b16 %v6069
        %v6438 = vunpack.c.h.b16 %v6069
        %v6439 = vunpack.c.l.b16 %v6070
        %v6440 = vunpack.c.h.b16 %v6070
        %v6441 = vunpack.c.l.b16 %v6071
        %v6442 = vunpack.c.h.b16 %v6071
        %v6443 = vunpack.c.l.b16 %v6072
        %v6444 = vunpack.c.h.b16 %v6072
        %v6445 = vunpack.c.l.b16 %v6073
        %v6446 = vunpack.c.h.b16 %v6073
        %v6447 = vunpack.c.l.b16 %v6074
        %v6448 = vunpack.c.h.b16 %v6074
        %v6449 = vunpack.c.l.b16 %v6075
        %v6450 = vunpack.c.h.b16 %v6075
        %v6451 = vunpack.c.l.b16 %v6076
        %v6452 = vunpack.c.h.b16 %v6076
        %v6453 = vunpack.c.l.b16 %v6077
        %v6454 = vunpack.c.h.b16 %v6077
        %v6455 = vunpack.c.l.b16 %v6078
        %v6456 = vunpack.c.h.b16 %v6078
        %v6457 = vunpack.c.l.b16 %v6079
        %v6458 = vunpack.c.h.b16 %v6079
        %v6459 = vunpack.c.l.b16 %v6080
        %v6460 = vunpack.c.h.b16 %v6080
        %v6461 = vunpack.c.l.b16 %v6081
        %v6462 = vunpack.c.h.b16 %v6081
        %v6463 = vunpack.c.l.b16 %v6082
        %v6464 = vunpack.c.h.b16 %v6082
        %v6465 = vunpack.c.l.b16 %v6083
        %v6466 = vunpack.c.h.b16 %v6083
        %v6467 = vunpack.c.l.b16 %v6084
        %v6468 = vunpack.c.h.b16 %v6084
        %v6469 = vunpack.c.l.b16 %v6085
        %v6470 = vunpack.c.h.b16 %v6085
        %v6471 = vpack.c.b16 %v6219, %v6215
        %v6472 = vpack.c.b16 %v6220, %v6216
        %v6473 = vpack.c.b16 %v6221, %v6217
        %v6474 = vpack.c.b16 %v6222, %v6218
        %v6475 = vpack.c.b16 %v6227, %v6223
        %v6476 = vpack.c.b16 %v6228, %v6224
        %v6477 = vpack.c.b16 %v6229, %v6225
        %v6478 = vpack.c.b16 %v6230, %v6226
        %v6479 = vpack.c.b16 %v6235, %v6231
        %v6480 = vpack.c.b16 %v6236, %v6232
        %v6481 = vpack.c.b16 %v6237, %v6233
        %v6482 = vpack.c.b16 %v6238, %v6234
        %v6483 = vpack.c.b16 %v6243, %v6239
        %v6484 = vpack.c.b16 %v6244, %v6240
        %v6485 = vpack.c.b16 %v6245, %v6241
        %v6486 = vpack.c.b16 %v6246, %v6242
        %v6487 = vpack.c.b16 %v6251, %v6247
        %v6488 = vpack.c.b16 %v6252, %v6248
        %v6489 = vpack.c.b16 %v6253, %v6249
        %v6490 = vpack.c.b16 %v6254, %v6250
        %v6491 = vpack.c.b16 %v6259, %v6255
        %v6492 = vpack.c.b16 %v6260, %v6256
        %v6493 = vpack.c.b16 %v6261, %v6257
        %v6494 = vpack.c.b16 %v6262, %v6258
        %v6495 = vpack.c.b16 %v6267, %v6263
        %v6496 = vpack.c.b16 %v6268, %v6264
        %v6497 = vpack.c.b16 %v6269, %v6265
        %v6498 = vpack.c.b16 %v6270, %v6266
        %v6499 = vpack.c.b16 %v6275, %v6271
        %v6500 = vpack.c.b16 %v6276, %v6272
        %v6501 = vpack.c.b16 %v6277, %v6273
        %v6502 = vpack.c.b16 %v6278, %v6274
        %v6503 = vpack.c.b16 %v6283, %v6279
        %v6504 = vpack.c.b16 %v6284, %v6280
        %v6505 = vpack.c.b16 %v6285, %v6281
        %v6506 = vpack.c.b16 %v6286, %v6282
        %v6507 = vpack.c.b16 %v6291, %v6287
        %v6508 = vpack.c.b16 %v6292, %v6288
        %v6509 = vpack.c.b16 %v6293, %v6289
        %v6510 = vpack.c.b16 %v6294, %v6290
        %v6511 = vpack.c.b16 %v6299, %v6295
        %v6512 = vpack.c.b16 %v6300, %v6296
        %v6513 = vpack.c.b16 %v6301, %v6297
        %v6514 = vpack.c.b16 %v6302, %v6298
        %v6515 = vpack.c.b16 %v6307, %v6303
        %v6516 = vpack.c.b16 %v6308, %v6304
        %v6517 = vpack.c.b16 %v6309, %v6305
        %v6518 = vpack.c.b16 %v6310, %v6306
        %v6519 = vpack.c.b16 %v6315, %v6311
        %v6520 = vpack.c.b16 %v6316, %v6312
        %v6521 = vpack.c.b16 %v6317, %v6313
        %v6522 = vpack.c.b16 %v6318, %v6314
        %v6523 = vpack.c.b16 %v6323, %v6319
        %v6524 = vpack.c.b16 %v6324, %v6320
        %v6525 = vpack.c.b16 %v6325, %v6321
        %v6526 = vpack.c.b16 %v6326, %v6322
        %v6527 = vpack.c.b16 %v6331, %v6327
        %v6528 = vpack.c.b16 %v6332, %v6328
        %v6529 = vpack.c.b16 %v6333, %v6329
        %v6530 = vpack.c.b16 %v6334, %v6330
        %v6531 = vpack.c.b16 %v6339, %v6335
        %v6532 = vpack.c.b16 %v6340, %v6336
        %v6533 = vpack.c.b16 %v6341, %v6337
        %v6534 = vpack.c.b16 %v6342, %v6338
        %v6535 = vpack.c.b16 %v6347, %v6343
        %v6536 = vpack.c.b16 %v6348, %v6344
        %v6537 = vpack.c.b16 %v6349, %v6345
        %v6538 = vpack.c.b16 %v6350, %v6346
        %v6539 = vpack.c.b16 %v6355, %v6351
        %v6540 = vpack.c.b16 %v6356, %v6352
        %v6541 = vpack.c.b16 %v6357, %v6353
        %v6542 = vpack.c.b16 %v6358, %v6354
        %v6543 = vpack.c.b16 %v6363, %v6359
        %v6544 = vpack.c.b16 %v6364, %v6360
        %v6545 = vpack.c.b16 %v6365, %v6361
        %v6546 = vpack.c.b16 %v6366, %v6362
        %v6547 = vpack.c.b16 %v6371, %v6367
        %v6548 = vpack.c.b16 %v6372, %v6368
        %v6549 = vpack.c.b16 %v6373, %v6369
        %v6550 = vpack.c.b16 %v6374, %v6370
        %v6551 = vpack.c.b16 %v6379, %v6375
        %v6552 = vpack.c.b16 %v6380, %v6376
        %v6553 = vpack.c.b16 %v6381, %v6377
        %v6554 = vpack.c.b16 %v6382, %v6378
        %v6555 = vpack.c.b16 %v6387, %v6383
        %v6556 = vpack.c.b16 %v6388, %v6384
        %v6557 = vpack.c.b16 %v6389, %v6385
        %v6558 = vpack.c.b16 %v6390, %v6386
        %v6559 = vpack.c.b16 %v6395, %v6391
        %v6560 = vpack.c.b16 %v6396, %v6392
        %v6561 = vpack.c.b16 %v6397, %v6393
        %v6562 = vpack.c.b16 %v6398, %v6394
        %v6563 = vpack.c.b16 %v6403, %v6399
        %v6564 = vpack.c.b16 %v6404, %v6400
        %v6565 = vpack.c.b16 %v6405, %v6401
        %v6566 = vpack.c.b16 %v6406, %v6402
        %v6567 = vpack.c.b16 %v6411, %v6407
        %v6568 = vpack.c.b16 %v6412, %v6408
        %v6569 = vpack.c.b16 %v6413, %v6409
        %v6570 = vpack.c.b16 %v6414, %v6410
        %v6571 = vpack.c.b16 %v6419, %v6415
        %v6572 = vpack.c.b16 %v6420, %v6416
        %v6573 = vpack.c.b16 %v6421, %v6417
        %v6574 = vpack.c.b16 %v6422, %v6418
        %v6575 = vpack.c.b16 %v6427, %v6423
        %v6576 = vpack.c.b16 %v6428, %v6424
        %v6577 = vpack.c.b16 %v6429, %v6425
        %v6578 = vpack.c.b16 %v6430, %v6426
        %v6579 = vpack.c.b16 %v6435, %v6431
        %v6580 = vpack.c.b16 %v6436, %v6432
        %v6581 = vpack.c.b16 %v6437, %v6433
        %v6582 = vpack.c.b16 %v6438, %v6434
        %v6583 = vpack.c.b16 %v6443, %v6439
        %v6584 = vpack.c.b16 %v6444, %v6440
        %v6585 = vpack.c.b16 %v6445, %v6441
        %v6586 = vpack.c.b16 %v6446, %v6442
        %v6587 = vpack.c.b16 %v6451, %v6447
        %v6588 = vpack.c.b16 %v6452, %v6448
        %v6589 = vpack.c.b16 %v6453, %v6449
        %v6590 = vpack.c.b16 %v6454, %v6450
        %v6591 = vpack.c.b16 %v6459, %v6455
        %v6592 = vpack.c.b16 %v6460, %v6456
        %v6593 = vpack.c.b16 %v6461, %v6457
        %v6594 = vpack.c.b16 %v6462, %v6458
        %v6595 = vpack.c.b16 %v6467, %v6463
        %v6596 = vpack.c.b16 %v6468, %v6464
        %v6597 = vpack.c.b16 %v6469, %v6465
        %v6598 = vpack.c.b16 %v6470, %v6466
        %v6728 = vlaneseq
        %v6729 = vshrl.u32 %v6728, 7
        %v6730 = vsub.s32 0, %v6729
        %v6731 = vrot.slane %v6086, %v6730
        %v6732 = vlaneseq
        %v6733 = vshrl.u32 %v6732, 7
        %v6734 = vsub.s32 1, %v6733
        %v6735 = vrot.slane %v6086, %v6734
        %v6736 = vlaneseq
        %v6737 = vshrl.u32 %v6736, 7
        %v6738 = vsub.s32 2, %v6737
        %v6739 = vrot.slane %v6086, %v6738
        %v6740 = vlaneseq
        %v6741 = vshrl.u32 %v6740, 7
        %v6742 = vsub.s32 3, %v6741
        %v6743 = vrot.slane %v6086, %v6742
        %6748 = vmatprep.subr.bf16.mxu0 %v6500
        %6749 = vmatpush1.bf16.msra.mxu0 %v6499
        %6750 = vmatprep.subr.bf16.mxu0 %v6496
        %6751 = vmatpush1.bf16.msra.mxu0 %v6495
        %6752 = vmatprep.subr.bf16.mxu0 %v6492
        %6753 = vmatpush1.bf16.msra.mxu0 %v6491
        %6754 = vmatprep.subr.bf16.mxu0 %v6488
        %6755 = vmatpush1.bf16.msra.mxu0 %v6487
        %6756 = vmatprep.subr.bf16.mxu0 %v6484
        %6757 = vmatpush1.bf16.msra.mxu0 %v6483
        %6758 = vmatprep.subr.bf16.mxu0 %v6480
        %6759 = vmatpush1.bf16.msra.mxu0 %v6479
        %6760 = vmatprep.subr.bf16.mxu0 %v6476
        %6761 = vmatpush1.bf16.msra.mxu0 %v6475
        %6762 = vmatprep.subr.bf16.mxu0 %v6472
        %6763 = vmatpush1.bf16.msra.mxu0 %v6471
        %6764 = vmatprep.subr.bf16.mxu0 %v6532
        %6765 = vmatpush2.bf16.msra.mxu0 %v6531
        %6766 = vmatprep.subr.bf16.mxu0 %v6528
        %6767 = vmatpush2.bf16.msra.mxu0 %v6527
        %6768 = vmatprep.subr.bf16.mxu0 %v6524
        %6769 = vmatpush2.bf16.msra.mxu0 %v6523
        %6770 = vmatprep.subr.bf16.mxu0 %v6520
        %6771 = vmatpush2.bf16.msra.mxu0 %v6519
        %6772 = vmatprep.subr.bf16.mxu0 %v6516
        %6773 = vmatpush2.bf16.msra.mxu0 %v6515
        %6774 = vmatprep.subr.bf16.mxu0 %v6512
        %6775 = vmatpush2.bf16.msra.mxu0 %v6511
        %6776 = vmatprep.subr.bf16.mxu0 %v6508
        %6777 = vmatpush2.bf16.msra.mxu0 %v6507
        %6778 = vmatprep.subr.bf16.mxu0 %v6504
        %6779 = vmatpush2.bf16.msra.mxu0 %v6503
        %6780 = vmatprep.mubr.bf16.mxu0 %v5955
        %6781 = vmatmul.mubr.bf16.gmra.mxu0 %v5954
        %v6782 = vpop.f32.mrf.mxu0
        %v6783 = vadd.f32 %v6731, %v6782
        %v6784 = vpop.f32.mrf.mxu0
        %v6785 = vadd.f32 %v6735, %v6784
        %v6786 = vpop.f32.mrf.mxu0
        %v6787 = vpop.f32.mrf.mxu0
        %6788 = vdwg.mxu0
        %6789 = vmatprep.subr.bf16.mxu0 %v6564
        %6790 = vmatpush1.bf16.msra.mxu0 %v6563
        %6791 = vmatprep.subr.bf16.mxu0 %v6560
        %6792 = vmatpush1.bf16.msra.mxu0 %v6559
        %6793 = vmatprep.subr.bf16.mxu0 %v6556
        %6794 = vmatpush1.bf16.msra.mxu0 %v6555
        %6795 = vmatprep.subr.bf16.mxu0 %v6552
        %6796 = vmatpush1.bf16.msra.mxu0 %v6551
        %6797 = vmatprep.subr.bf16.mxu0 %v6548
        %6798 = vmatpush1.bf16.msra.mxu0 %v6547
        %6799 = vmatprep.subr.bf16.mxu0 %v6544
        %6800 = vmatpush1.bf16.msra.mxu0 %v6543
        %6801 = vmatprep.subr.bf16.mxu0 %v6540
        %6802 = vmatpush1.bf16.msra.mxu0 %v6539
        %6803 = vmatprep.subr.bf16.mxu0 %v6536
        %6804 = vmatpush1.bf16.msra.mxu0 %v6535
        %6805 = vmatprep.subr.bf16.mxu0 %v6596
        %6806 = vmatpush2.bf16.msra.mxu0 %v6595
        %6807 = vmatprep.subr.bf16.mxu0 %v6592
        %6808 = vmatpush2.bf16.msra.mxu0 %v6591
        %6809 = vmatprep.subr.bf16.mxu0 %v6588
        %6810 = vmatpush2.bf16.msra.mxu0 %v6587
        %6811 = vmatprep.subr.bf16.mxu0 %v6584
        %6812 = vmatpush2.bf16.msra.mxu0 %v6583
        %6813 = vmatprep.subr.bf16.mxu0 %v6580
        %6814 = vmatpush2.bf16.msra.mxu0 %v6579
        %6815 = vmatprep.subr.bf16.mxu0 %v6576
        %6816 = vmatpush2.bf16.msra.mxu0 %v6575
        %6817 = vmatprep.subr.bf16.mxu0 %v6572
        %6818 = vmatpush2.bf16.msra.mxu0 %v6571
        %6819 = vmatprep.subr.bf16.mxu0 %v6568
        %6820 = vmatpush2.bf16.msra.mxu0 %v6567
        %6821 = vmatprep.mubr.bf16.mxu0 %v5957
        %6822 = vmatmul.mubr.bf16.gmra.mxu0 %v5956
        %v6823 = vpop.f32.mrf.mxu0
        %v6824 = vadd.f32 %v6783, %v6823
        %v6825 = vpop.f32.mrf.mxu0
        %v6826 = vadd.f32 %v6785, %v6825
        %v6827 = vpop.f32.mrf.mxu0
        %v6828 = vpop.f32.mrf.mxu0
        %6829 = vdwg.mxu0
        %6830 = vmatprep.subr.bf16.mxu0 %v6502
        %6831 = vmatpush1.bf16.msra.mxu0 %v6501
        %6832 = vmatprep.subr.bf16.mxu0 %v6498
        %6833 = vmatpush1.bf16.msra.mxu0 %v6497
        %6834 = vmatprep.subr.bf16.mxu0 %v6494
        %6835 = vmatpush1.bf16.msra.mxu0 %v6493
        %6836 = vmatprep.subr.bf16.mxu0 %v6490
        %6837 = vmatpush1.bf16.msra.mxu0 %v6489
        %6838 = vmatprep.subr.bf16.mxu0 %v6486
        %6839 = vmatpush1.bf16.msra.mxu0 %v6485
        %6840 = vmatprep.subr.bf16.mxu0 %v6482
        %6841 = vmatpush1.bf16.msra.mxu0 %v6481
        %6842 = vmatprep.subr.bf16.mxu0 %v6478
        %6843 = vmatpush1.bf16.msra.mxu0 %v6477
        %6844 = vmatprep.subr.bf16.mxu0 %v6474
        %6845 = vmatpush1.bf16.msra.mxu0 %v6473
        %6846 = vmatprep.subr.bf16.mxu0 %v6534
        %6847 = vmatpush2.bf16.msra.mxu0 %v6533
        %6848 = vmatprep.subr.bf16.mxu0 %v6530
        %6849 = vmatpush2.bf16.msra.mxu0 %v6529
        %6850 = vmatprep.subr.bf16.mxu0 %v6526
        %6851 = vmatpush2.bf16.msra.mxu0 %v6525
        %6852 = vmatprep.subr.bf16.mxu0 %v6522
        %6853 = vmatpush2.bf16.msra.mxu0 %v6521
        %6854 = vmatprep.subr.bf16.mxu0 %v6518
        %6855 = vmatpush2.bf16.msra.mxu0 %v6517
        %6856 = vmatprep.subr.bf16.mxu0 %v6514
        %6857 = vmatpush2.bf16.msra.mxu0 %v6513
        %6858 = vmatprep.subr.bf16.mxu0 %v6510
        %6859 = vmatpush2.bf16.msra.mxu0 %v6509
        %6860 = vmatprep.subr.bf16.mxu0 %v6506
        %6861 = vmatpush2.bf16.msra.mxu0 %v6505
        %6862 = vmatprep.mubr.bf16.mxu0 %v5955
        %6863 = vmatmul.mubr.bf16.gmra.mxu0 %v5954
        %v6864 = vpop.f32.mrf.mxu0
        %v6865 = vadd.f32 %v6739, %v6864
        %v6866 = vpop.f32.mrf.mxu0
        %v6867 = vadd.f32 %v6743, %v6866
        %v6868 = vpop.f32.mrf.mxu0
        %v6869 = vpop.f32.mrf.mxu0
        %6870 = vdwg.mxu0
        %6871 = vmatprep.subr.bf16.mxu0 %v6566
        %6872 = vmatpush1.bf16.msra.mxu0 %v6565
        %6873 = vmatprep.subr.bf16.mxu0 %v6562
        %6874 = vmatpush1.bf16.msra.mxu0 %v6561
        %6875 = vmatprep.subr.bf16.mxu0 %v6558
        %6876 = vmatpush1.bf16.msra.mxu0 %v6557
        %6877 = vmatprep.subr.bf16.mxu0 %v6554
        %6878 = vmatpush1.bf16.msra.mxu0 %v6553
        %6879 = vmatprep.subr.bf16.mxu0 %v6550
        %6880 = vmatpush1.bf16.msra.mxu0 %v6549
        %6881 = vmatprep.subr.bf16.mxu0 %v6546
        %6882 = vmatpush1.bf16.msra.mxu0 %v6545
        %6883 = vmatprep.subr.bf16.mxu0 %v6542
        %6884 = vmatpush1.bf16.msra.mxu0 %v6541
        %6885 = vmatprep.subr.bf16.mxu0 %v6538
        %6886 = vmatpush1.bf16.msra.mxu0 %v6537
        %6887 = vmatprep.subr.bf16.mxu0 %v6598
        %6888 = vmatpush2.bf16.msra.mxu0 %v6597
        %6889 = vmatprep.subr.bf16.mxu0 %v6594
        %6890 = vmatpush2.bf16.msra.mxu0 %v6593
        %6891 = vmatprep.subr.bf16.mxu0 %v6590
        %6892 = vmatpush2.bf16.msra.mxu0 %v6589
        %6893 = vmatprep.subr.bf16.mxu0 %v6586
        %6894 = vmatpush2.bf16.msra.mxu0 %v6585
        %6895 = vmatprep.subr.bf16.mxu0 %v6582
        %6896 = vmatpush2.bf16.msra.mxu0 %v6581
        %6897 = vmatprep.subr.bf16.mxu0 %v6578
        %6898 = vmatpush2.bf16.msra.mxu0 %v6577
        %6899 = vmatprep.subr.bf16.mxu0 %v6574
        %6900 = vmatpush2.bf16.msra.mxu0 %v6573
        %6901 = vmatprep.subr.bf16.mxu0 %v6570
        %6902 = vmatpush2.bf16.msra.mxu0 %v6569
        %6903 = vmatprep.mubr.bf16.mxu0 %v5957
        %6904 = vmatmul.mubr.bf16.gmra.mxu0 %v5956
        %v6905 = vpop.f32.mrf.mxu0
        %v6906 = vadd.f32 %v6865, %v6905
        %v6907 = vpop.f32.mrf.mxu0
        %v6908 = vadd.f32 %v6867, %v6907
        %v6909 = vpop.f32.mrf.mxu0
        %v6910 = vpop.f32.mrf.mxu0
        %6911 = vdwg.mxu0
        %v6912 = vmax.f32 %v6824, 0.0
        %v6913 = vmax.f32 %v6826, 0.0
        %v6914 = vmax.f32 %v6906, 0.0
        %v6915 = vmax.f32 %v6908, 0.0
        %v6920 = vcombine.low %v6912, %v6913
        %v6921 = vcombine.low %v6914, %v6915
        %v6923 = vunpack.c.l.s4 1966171168
        %v6924 = vunpack.c.0.s8 %v6923
        %v6925 = vlaneseq
        %v6926 = vshrl.u32 %v6925, 7
        %v6927 = vsub.s32 %v6924, %v6926
        %v6928 = vrot.slane %v6920, %v6927
        %v6930 = vunpack.c.l.s4 1966171168
        %v6931 = vunpack.c.0.s8 %v6930
        %v6932 = vlaneseq
        %v6933 = vshrl.u32 %v6932, 7
        %v6934 = vsub.s32 %v6931, %v6933
        %v6935 = vrot.slane %v6921, %v6934
        %v6936 = vcombine.low %v6928, %v6935
        %v6938 = vunpack.c.l.s4 1966171168
        %v6939 = vunpack.c.0.s8 %v6938
        %v6940 = vlaneseq
        %v6941 = vshrl.u32 %v6940, 7
        %v6942 = vsub.s32 %v6939, %v6941
        %v6943 = vrot.slane %v6936, %v6942
        %vm6945 = vcmp.lt.s32.totalorder %v1973, 512
        %vm6946 = vmand %vm1974, %vm6945
        %6947 = vst.msk [vmem:[%s524] sm:$0xf] %vm6946, %v6943
        %v6948 = vld [vmem:[%s520] sm:$0xf]
        %v6950 = vlaneseq
        %v6951 = vshrl.u32 %v6950, 7
        %v6952 = vsub.s32 0, %v6951
        %v6953 = vrot.slane %v6948, %v6952
        %v6954 = vlaneseq
        %v6955 = vshrl.u32 %v6954, 7
        %v6956 = vsub.s32 1, %v6955
        %v6957 = vrot.slane %v6948, %v6956
        %v6958 = vlaneseq
        %v6959 = vshrl.u32 %v6958, 7
        %v6960 = vsub.s32 2, %v6959
        %v6961 = vrot.slane %v6948, %v6960
        %v6962 = vlaneseq
        %v6963 = vshrl.u32 %v6962, 7
        %v6964 = vsub.s32 3, %v6963
        %v6965 = vrot.slane %v6948, %v6964
        %v6970 = vpack.c.bf16 %v6953, %v6953
        %v6971 = vpack.c.bf16 %v6957, %v6957
        %v6972 = vpack.c.bf16 %v6961, %v6961
        %v6973 = vpack.c.bf16 %v6965, %v6965
        %v6974 = vld [vmem:[%s9] sm:$0xf]
        %v6975 = vld [vmem:[%s9 + $0x4] sm:$0xf]
        %v6976 = vld [vmem:[%s9 + $0x8] sm:$0xf]
        %v6977 = vld [vmem:[%s9 + $0xc] sm:$0xf]
        %v6978 = vld [vmem:[%s9 + $0x10] sm:$0xf]
        %v6979 = vld [vmem:[%s9 + $0x14] sm:$0xf]
        %v6980 = vld [vmem:[%s9 + $0x18] sm:$0xf]
        %v6981 = vld [vmem:[%s9 + $0x1c] sm:$0xf]
        %v6982 = vld [vmem:[%s9 + $0x20] sm:$0xf]
        %v6983 = vld [vmem:[%s9 + $0x24] sm:$0xf]
        %v6984 = vld [vmem:[%s9 + $0x28] sm:$0xf]
        %v6985 = vld [vmem:[%s9 + $0x2c] sm:$0xf]
        %v6986 = vld [vmem:[%s9 + $0x30] sm:$0xf]
        %v6987 = vld [vmem:[%s9 + $0x34] sm:$0xf]
        %v6988 = vld [vmem:[%s9 + $0x38] sm:$0xf]
        %v6989 = vld [vmem:[%s9 + $0x3c] sm:$0xf]
        %v6990 = vld [vmem:[%s9 + $0x40] sm:$0xf]
        %v6991 = vld [vmem:[%s9 + $0x44] sm:$0xf]
        %v6992 = vld [vmem:[%s9 + $0x48] sm:$0xf]
        %v6993 = vld [vmem:[%s9 + $0x4c] sm:$0xf]
        %v6994 = vld [vmem:[%s9 + $0x50] sm:$0xf]
        %v6995 = vld [vmem:[%s9 + $0x54] sm:$0xf]
        %v6996 = vld [vmem:[%s9 + $0x58] sm:$0xf]
        %v6997 = vld [vmem:[%s9 + $0x5c] sm:$0xf]
        %v6998 = vld [vmem:[%s9 + $0x60] sm:$0xf]
        %v6999 = vld [vmem:[%s9 + $0x64] sm:$0xf]
        %v7000 = vld [vmem:[%s9 + $0x68] sm:$0xf]
        %v7001 = vld [vmem:[%s9 + $0x6c] sm:$0xf]
        %v7002 = vld [vmem:[%s9 + $0x70] sm:$0xf]
        %v7003 = vld [vmem:[%s9 + $0x74] sm:$0xf]
        %v7004 = vld [vmem:[%s9 + $0x78] sm:$0xf]
        %v7005 = vld [vmem:[%s9 + $0x7c] sm:$0xf]
        %v7006 = vld [vmem:[%s9 + $0x80] sm:$0xf]
        %v7007 = vld [vmem:[%s9 + $0x84] sm:$0xf]
        %v7008 = vld [vmem:[%s9 + $0x88] sm:$0xf]
        %v7009 = vld [vmem:[%s9 + $0x8c] sm:$0xf]
        %v7010 = vld [vmem:[%s9 + $0x90] sm:$0xf]
        %v7011 = vld [vmem:[%s9 + $0x94] sm:$0xf]
        %v7012 = vld [vmem:[%s9 + $0x98] sm:$0xf]
        %v7013 = vld [vmem:[%s9 + $0x9c] sm:$0xf]
        %v7014 = vld [vmem:[%s9 + $0xa0] sm:$0xf]
        %v7015 = vld [vmem:[%s9 + $0xa4] sm:$0xf]
        %v7016 = vld [vmem:[%s9 + $0xa8] sm:$0xf]
        %v7017 = vld [vmem:[%s9 + $0xac] sm:$0xf]
        %v7018 = vld [vmem:[%s9 + $0xb0] sm:$0xf]
        %v7019 = vld [vmem:[%s9 + $0xb4] sm:$0xf]
        %v7020 = vld [vmem:[%s9 + $0xb8] sm:$0xf]
        %v7021 = vld [vmem:[%s9 + $0xbc] sm:$0xf]
        %v7022 = vld [vmem:[%s9 + $0xc0] sm:$0xf]
        %v7023 = vld [vmem:[%s9 + $0xc4] sm:$0xf]
        %v7024 = vld [vmem:[%s9 + $0xc8] sm:$0xf]
        %v7025 = vld [vmem:[%s9 + $0xcc] sm:$0xf]
        %v7026 = vld [vmem:[%s9 + $0xd0] sm:$0xf]
        %v7027 = vld [vmem:[%s9 + $0xd4] sm:$0xf]
        %v7028 = vld [vmem:[%s9 + $0xd8] sm:$0xf]
        %v7029 = vld [vmem:[%s9 + $0xdc] sm:$0xf]
        %v7030 = vld [vmem:[%s9 + $0xe0] sm:$0xf]
        %v7031 = vld [vmem:[%s9 + $0xe4] sm:$0xf]
        %v7032 = vld [vmem:[%s9 + $0xe8] sm:$0xf]
        %v7033 = vld [vmem:[%s9 + $0xec] sm:$0xf]
        %v7034 = vld [vmem:[%s9 + $0xf0] sm:$0xf]
        %v7035 = vld [vmem:[%s9 + $0xf4] sm:$0xf]
        %v7036 = vld [vmem:[%s9 + $0xf8] sm:$0xf]
        %v7037 = vld [vmem:[%s9 + $0xfc] sm:$0xf]
        %v7038 = vld [vmem:[%s10] sm:$0x1]
        %v7103 = vunpack.c.l.b16 %v6974
        %v7104 = vunpack.c.l.b16 %v6975
        %v7105 = vunpack.c.l.b16 %v6976
        %v7106 = vunpack.c.l.b16 %v6977
        %v7107 = vunpack.c.l.b16 %v6978
        %v7108 = vunpack.c.l.b16 %v6979
        %v7109 = vunpack.c.l.b16 %v6980
        %v7110 = vunpack.c.l.b16 %v6981
        %v7111 = vunpack.c.l.b16 %v6982
        %v7112 = vunpack.c.l.b16 %v6983
        %v7113 = vunpack.c.l.b16 %v6984
        %v7114 = vunpack.c.l.b16 %v6985
        %v7115 = vunpack.c.l.b16 %v6986
        %v7116 = vunpack.c.l.b16 %v6987
        %v7117 = vunpack.c.l.b16 %v6988
        %v7118 = vunpack.c.l.b16 %v6989
        %v7119 = vunpack.c.l.b16 %v6990
        %v7120 = vunpack.c.l.b16 %v6991
        %v7121 = vunpack.c.l.b16 %v6992
        %v7122 = vunpack.c.l.b16 %v6993
        %v7123 = vunpack.c.l.b16 %v6994
        %v7124 = vunpack.c.l.b16 %v6995
        %v7125 = vunpack.c.l.b16 %v6996
        %v7126 = vunpack.c.l.b16 %v6997
        %v7127 = vunpack.c.l.b16 %v6998
        %v7128 = vunpack.c.l.b16 %v6999
        %v7129 = vunpack.c.l.b16 %v7000
        %v7130 = vunpack.c.l.b16 %v7001
        %v7131 = vunpack.c.l.b16 %v7002
        %v7132 = vunpack.c.l.b16 %v7003
        %v7133 = vunpack.c.l.b16 %v7004
        %v7134 = vunpack.c.l.b16 %v7005
        %v7135 = vunpack.c.l.b16 %v7006
        %v7136 = vunpack.c.l.b16 %v7007
        %v7137 = vunpack.c.l.b16 %v7008
        %v7138 = vunpack.c.l.b16 %v7009
        %v7139 = vunpack.c.l.b16 %v7010
        %v7140 = vunpack.c.l.b16 %v7011
        %v7141 = vunpack.c.l.b16 %v7012
        %v7142 = vunpack.c.l.b16 %v7013
        %v7143 = vunpack.c.l.b16 %v7014
        %v7144 = vunpack.c.l.b16 %v7015
        %v7145 = vunpack.c.l.b16 %v7016
        %v7146 = vunpack.c.l.b16 %v7017
        %v7147 = vunpack.c.l.b16 %v7018
        %v7148 = vunpack.c.l.b16 %v7019
        %v7149 = vunpack.c.l.b16 %v7020
        %v7150 = vunpack.c.l.b16 %v7021
        %v7151 = vunpack.c.l.b16 %v7022
        %v7152 = vunpack.c.l.b16 %v7023
        %v7153 = vunpack.c.l.b16 %v7024
        %v7154 = vunpack.c.l.b16 %v7025
        %v7155 = vunpack.c.l.b16 %v7026
        %v7156 = vunpack.c.l.b16 %v7027
        %v7157 = vunpack.c.l.b16 %v7028
        %v7158 = vunpack.c.l.b16 %v7029
        %v7159 = vunpack.c.l.b16 %v7030
        %v7160 = vunpack.c.l.b16 %v7031
        %v7161 = vunpack.c.l.b16 %v7032
        %v7162 = vunpack.c.l.b16 %v7033
        %v7163 = vunpack.c.l.b16 %v7034
        %v7164 = vunpack.c.l.b16 %v7035
        %v7165 = vunpack.c.l.b16 %v7036
        %v7166 = vunpack.c.l.b16 %v7037
        %v7167 = vpack.c.b16 %v7104, %v7103
        %v7168 = vpack.c.b16 %v7106, %v7105
        %v7169 = vpack.c.b16 %v7108, %v7107
        %v7170 = vpack.c.b16 %v7110, %v7109
        %v7171 = vpack.c.b16 %v7112, %v7111
        %v7172 = vpack.c.b16 %v7114, %v7113
        %v7173 = vpack.c.b16 %v7116, %v7115
        %v7174 = vpack.c.b16 %v7118, %v7117
        %v7175 = vpack.c.b16 %v7120, %v7119
        %v7176 = vpack.c.b16 %v7122, %v7121
        %v7177 = vpack.c.b16 %v7124, %v7123
        %v7178 = vpack.c.b16 %v7126, %v7125
        %v7179 = vpack.c.b16 %v7128, %v7127
        %v7180 = vpack.c.b16 %v7130, %v7129
        %v7181 = vpack.c.b16 %v7132, %v7131
        %v7182 = vpack.c.b16 %v7134, %v7133
        %v7183 = vpack.c.b16 %v7136, %v7135
        %v7184 = vpack.c.b16 %v7138, %v7137
        %v7185 = vpack.c.b16 %v7140, %v7139
        %v7186 = vpack.c.b16 %v7142, %v7141
        %v7187 = vpack.c.b16 %v7144, %v7143
        %v7188 = vpack.c.b16 %v7146, %v7145
        %v7189 = vpack.c.b16 %v7148, %v7147
        %v7190 = vpack.c.b16 %v7150, %v7149
        %v7191 = vpack.c.b16 %v7152, %v7151
        %v7192 = vpack.c.b16 %v7154, %v7153
        %v7193 = vpack.c.b16 %v7156, %v7155
        %v7194 = vpack.c.b16 %v7158, %v7157
        %v7195 = vpack.c.b16 %v7160, %v7159
        %v7196 = vpack.c.b16 %v7162, %v7161
        %v7197 = vpack.c.b16 %v7164, %v7163
        %v7198 = vpack.c.b16 %v7166, %v7165
        %7231 = vmatprep.subr.bf16.mxu0 0
        %7232 = vmatpush1.bf16.msra.mxu0 %v7174
        %7233 = vmatprep.subr.bf16.mxu0 0
        %7234 = vmatpush1.bf16.msra.mxu0 %v7173
        %7235 = vmatprep.subr.bf16.mxu0 0
        %7236 = vmatpush1.bf16.msra.mxu0 %v7172
        %7237 = vmatprep.subr.bf16.mxu0 0
        %7238 = vmatpush1.bf16.msra.mxu0 %v7171
        %7239 = vmatprep.subr.bf16.mxu0 0
        %7240 = vmatpush1.bf16.msra.mxu0 %v7170
        %7241 = vmatprep.subr.bf16.mxu0 0
        %7242 = vmatpush1.bf16.msra.mxu0 %v7169
        %7243 = vmatprep.subr.bf16.mxu0 0
        %7244 = vmatpush1.bf16.msra.mxu0 %v7168
        %7245 = vmatprep.subr.bf16.mxu0 0
        %7246 = vmatpush1.bf16.msra.mxu0 %v7167
        %7247 = vmatprep.subr.bf16.mxu0 0
        %7248 = vmatpush2.bf16.msra.mxu0 %v7182
        %7249 = vmatprep.subr.bf16.mxu0 0
        %7250 = vmatpush2.bf16.msra.mxu0 %v7181
        %7251 = vmatprep.subr.bf16.mxu0 0
        %7252 = vmatpush2.bf16.msra.mxu0 %v7180
        %7253 = vmatprep.subr.bf16.mxu0 0
        %7254 = vmatpush2.bf16.msra.mxu0 %v7179
        %7255 = vmatprep.subr.bf16.mxu0 0
        %7256 = vmatpush2.bf16.msra.mxu0 %v7178
        %7257 = vmatprep.subr.bf16.mxu0 0
        %7258 = vmatpush2.bf16.msra.mxu0 %v7177
        %7259 = vmatprep.subr.bf16.mxu0 0
        %7260 = vmatpush2.bf16.msra.mxu0 %v7176
        %7261 = vmatprep.subr.bf16.mxu0 0
        %7262 = vmatpush2.bf16.msra.mxu0 %v7175
        %7263 = vmatprep.mubr.bf16.mxu0 %v6971
        %7264 = vmatmul.mubr.bf16.gmra.mxu0 %v6970
        %v7265 = vpop.f32.mrf.mxu0
        %v7266 = vadd.f32 %v7038, %v7265
        %v7267 = vpop.f32.mrf.mxu0
        %v7268 = vpop.f32.mrf.mxu0
        %v7269 = vpop.f32.mrf.mxu0
        %7270 = vdwg.mxu0
        %7271 = vmatprep.subr.bf16.mxu0 0
        %7272 = vmatpush1.bf16.msra.mxu0 %v7190
        %7273 = vmatprep.subr.bf16.mxu0 0
        %7274 = vmatpush1.bf16.msra.mxu0 %v7189
        %7275 = vmatprep.subr.bf16.mxu0 0
        %7276 = vmatpush1.bf16.msra.mxu0 %v7188
        %7277 = vmatprep.subr.bf16.mxu0 0
        %7278 = vmatpush1.bf16.msra.mxu0 %v7187
        %7279 = vmatprep.subr.bf16.mxu0 0
        %7280 = vmatpush1.bf16.msra.mxu0 %v7186
        %7281 = vmatprep.subr.bf16.mxu0 0
        %7282 = vmatpush1.bf16.msra.mxu0 %v7185
        %7283 = vmatprep.subr.bf16.mxu0 0
        %7284 = vmatpush1.bf16.msra.mxu0 %v7184
        %7285 = vmatprep.subr.bf16.mxu0 0
        %7286 = vmatpush1.bf16.msra.mxu0 %v7183
        %7287 = vmatprep.subr.bf16.mxu0 0
        %7288 = vmatpush2.bf16.msra.mxu0 %v7198
        %7289 = vmatprep.subr.bf16.mxu0 0
        %7290 = vmatpush2.bf16.msra.mxu0 %v7197
        %7291 = vmatprep.subr.bf16.mxu0 0
        %7292 = vmatpush2.bf16.msra.mxu0 %v7196
        %7293 = vmatprep.subr.bf16.mxu0 0
        %7294 = vmatpush2.bf16.msra.mxu0 %v7195
        %7295 = vmatprep.subr.bf16.mxu0 0
        %7296 = vmatpush2.bf16.msra.mxu0 %v7194
        %7297 = vmatprep.subr.bf16.mxu0 0
        %7298 = vmatpush2.bf16.msra.mxu0 %v7193
        %7299 = vmatprep.subr.bf16.mxu0 0
        %7300 = vmatpush2.bf16.msra.mxu0 %v7192
        %7301 = vmatprep.subr.bf16.mxu0 0
        %7302 = vmatpush2.bf16.msra.mxu0 %v7191
        %7303 = vmatprep.mubr.bf16.mxu0 %v6973
        %7304 = vmatmul.mubr.bf16.gmra.mxu0 %v6972
        %v7305 = vpop.f32.mrf.mxu0
        %v7306 = vadd.f32 %v7266, %v7305
        %v7307 = vpop.f32.mrf.mxu0
        %v7308 = vpop.f32.mrf.mxu0
        %v7309 = vpop.f32.mrf.mxu0
        %7310 = vdwg.mxu0
        %7311 = vst [vmem:[%s505] sm:$0x1] %v7306
        %s7312 = sand.u32 %s301, 1
        %s7313 = scalar_lea.sflag [#allocation10], %s7312
        %s7314 = sand.u32 %s301, 1
        %s7315 = scalar_lea.vmem [#allocation16], %s7314
        %p7316 = scmp.lt.s32.totalorder %s31, 1
        %s7317 = scalar_select %p7316, %s31, 1
        %s7318 = smul.addr %s7317, 4
        %s7319 = scalar_lea.vmem %s13, %s7318
        // Predicated region
        $region85: #{cnn_5_large_forward.1} parent=67 // pred_check
          %p7320 = pneg %p311
        $region86: #{cnn_5_large_forward.1} parent=67 // pred_check_branch
          %7322 = sbr.rel (%p7320) target = $region88
        $region87: #{cnn_5_large_forward.1} parent=67 // pred_region
          %s7324 = ssub.s32 16, 16
          %7325 = vsyncadd %s7313, %s7324
          %s7326 = smul.addr %s31, 16
          %s7327 = scalar_lea.hbm %s12, %s7326
          %s7329 = sshll.u32 %s7315, 4
          %s7330 = int_to_ptr.vmem [resolvable:$true] %s7329
          %7332 = dma.vmem_to_hbm [thread:$0]  %s7330, 16, %s7327, %s7313
        $region88: #{cnn_5_large_forward.1} parent=67 // pred_fallthru
          _
        // Predicated region
        $region89: #{cnn_5_large_forward.1} parent=67 // pred_check
          %p7333 = pneg %p337
        $region90: #{cnn_5_large_forward.1} parent=67 // pred_check_branch
          %7335 = sbr.rel (%p7333) target = $region92
        $region91: #{cnn_5_large_forward.1} parent=67 // pred_region
          _
        $region92: #{cnn_5_large_forward.1} parent=67 // pred_fallthru
          _
      $region68: #{cnn_5_large_forward.1} parent=5 // pred_fallthru
        _
      %p7336 = scmp.le.s32.totalorder 2, %s26
      // Predicated region
      $region93: #{cnn_5_large_forward.1} parent=5 // pred_check
        %p7337 = pneg %p7336
      $region94: #{cnn_5_large_forward.1} parent=5 // pred_check_branch
        %7339 = sbr.rel (%p7337) target = $region96
      $region95: #{cnn_5_large_forward.1} parent=5 // pred_region
        %s7340 = ssub.s32 %s26, 2
        // Predicated region
        $region97: #{cnn_5_large_forward.1} parent=95 // pred_check
          %p7341 = pneg %p317
        $region98: #{cnn_5_large_forward.1} parent=95 // pred_check_branch
          %7343 = sbr.rel (%p7341) target = $region100
        $region99: #{cnn_5_large_forward.1} parent=95 // pred_region
          %s7344 = sand.u32 %s302, 1
          %s7345 = scalar_lea.sflag [#allocation10], %s7344
          %s7346 = sand.u32 %s302, 1
          %s7347 = scalar_lea.vmem [#allocation16], %s7346
          %7348 = dma.done %s7345, 16
        $region100: #{cnn_5_large_forward.1} parent=95 // pred_fallthru
          _
        // Predicated region
        $region101: #{cnn_5_large_forward.1} parent=95 // pred_check
          %p7349 = pneg %p343
        $region102: #{cnn_5_large_forward.1} parent=95 // pred_check_branch
          %7351 = sbr.rel (%p7349) target = $region104
        $region103: #{cnn_5_large_forward.1} parent=95 // pred_region
          %p7352 = scmp.lt.s32.totalorder %s32, 1
          %s7353 = scalar_select %p7352, %s32, 1
          %s7354 = smul.addr %s7353, 4
          %s7355 = scalar_lea.vmem %s13, %s7354
        $region104: #{cnn_5_large_forward.1} parent=95 // pred_fallthru
          _
      $region96: #{cnn_5_large_forward.1} parent=5 // pred_fallthru
        _
    $region6: #{cnn_5_large_forward.1} parent=1 // loop_footer
      %s30 = sadd.s32 1, %s26
    $region7: #{cnn_5_large_forward.1} parent=1 // loop_footer_branch
      %25 = sbr.rel target = $region3
    $region8: #{cnn_5_large_forward.1} parent=1 // loop_exit
      _
    %7356 = vsyncpa [#allocation9], 1
    %s7357 = scalar_lea.sflag [#allocation9], 1
    %7358 = vsyncpa %s7357, 1
    %7359 = vsyncpa [#allocation12], 1
    %7360 = vsyncpa [#allocation15], 1
    %7361 = vsyncpa [#allocation10], 1
    %s7362 = scalar_lea.sflag [#allocation10], 1
    %7363 = vsyncpa %s7362, 1

</llo_original>
